<compile_context>
chip_gen: v7x
topology: tpu7x:2x2x1
jax: 0.10.0
libtpu: 0.0.40
codegen_flags: <defaults>
</compile_context>

<pallas_src>
import math

import jax
import jax.numpy as jnp
from jax import lax
from jax.experimental import pallas as pl
from jax.experimental.pallas import tpu as pltpu

X_DIM = 2048
T_DIM = 512
IN_DIM = X_DIM + T_DIM            # 2560
H1 = 1024
H2 = 512
OUT_DIM = 3 * 2 * 3               # 18
PAD_OUT = 128                     # lane-dense padded output width
B_TOT = H1 + H2 + PAD_OUT         # 1664 = width of the concatenated bias row
NUM_STEPS = 1000
HALF = T_DIM // 2                 # 256
EMB_SCALE = math.log(10000.0) / (HALF - 1)

PATH_POSITION = jnp.array(
    [1.0, 1.0, 0.0, 1.0, 1.0, -0.1,
     1.0, 1.0, 0.0, 1.0, 1.0, 0.0,
     1.0, 1.0, 0.0, 1.0, 1.0, 0.1], dtype=jnp.float32)


# --------------------------- Pallas kernels ----------------------------

def _mlp_padded(x_bf, e_bf, w1a_ref, w1b_ref, w2_ref, w3_ref, b_ref):
    """3-layer MLP with the (x, t_emb) concat folded into two layer-1 matmuls.
    bf16 operands into the MXU, f32 accumulation, f32 bias/ReLU (v5e-safe)."""
    b1 = b_ref[:, 0:H1]                           # (1, 1024)
    b2 = b_ref[:, H1:H1 + H2]                     # (1, 512)
    b3 = b_ref[:, H1 + H2:B_TOT]                  # (1, 128) padded, real in 0..17
    h1 = (jnp.dot(x_bf, w1a_ref[...], preferred_element_type=jnp.float32)
          + jnp.dot(e_bf, w1b_ref[...], preferred_element_type=jnp.float32)
          + b1)
    h1 = jnp.maximum(h1, 0.0).astype(jnp.bfloat16)
    h2 = jnp.dot(h1, w2_ref[...], preferred_element_type=jnp.float32) + b2
    h2 = jnp.maximum(h2, 0.0).astype(jnp.bfloat16)
    return jnp.dot(h2, w3_ref[...], preferred_element_type=jnp.float32) + b3


def mlp_fwd_kernel(x_ref, temb_ref, w1a_ref, w1b_ref, w2_ref, w3_ref, b_ref, o_ref):
    """Single-step forward: noise_pred = net(concat([x, t_emb]))."""
    x_bf = x_ref[...].astype(jnp.bfloat16)        # (B, 2048)
    e_bf = temb_ref[...].astype(jnp.bfloat16)     # (B, 512)
    o_ref[...] = _mlp_padded(x_bf, e_bf, w1a_ref, w1b_ref, w2_ref, w3_ref, b_ref)


def ddim_loop_kernel(x_ref, theta0_ref, emb_ref, w1a_ref, w1b_ref, w2_ref, w3_ref,
                     b_ref, coef_ref, noise_ref, theta_ref):
    """One denoising step of the resident-weight DDIM loop (grid = timesteps).
    Weights / x / biases have constant index_maps -> fetched once, VMEM-resident.
    theta state lives in the revisited output block."""
    s = pl.program_id(0)

    @pl.when(s == 0)
    def _init():
        theta_ref[...] = theta0_ref[...]

    x_bf = x_ref[...].astype(jnp.bfloat16)        # (B, 2048)
    e_bf = emb_ref[0].astype(jnp.bfloat16)        # (1, 512)  this step's t_emb row
    noise_pred = _mlp_padded(x_bf, e_bf, w1a_ref, w1b_ref, w2_ref, w3_ref, b_ref)

    coef = coef_ref[0]                            # (1, 3*128): [sqrt(a_prev)|c|sigma]
    sqrt_alpha_prev = coef[:, 0:PAD_OUT]
    c = coef[:, PAD_OUT:2 * PAD_OUT]
    sigma = coef[:, 2 * PAD_OUT:3 * PAD_OUT]
    theta_ref[...] = (sqrt_alpha_prev * theta_ref[...]
                      + c * noise_pred
                      + sigma * noise_ref[0])


# --------------------------- Pallas wrappers ---------------------------

def mlp_pallas(x, t_emb, params):
    """x: (B, 2048) f32, t_emb: (B, 512) f32 -> (B, PAD_OUT) f32 (padded)."""
    w1a, w1b, w2, w3p, bcat = params
    B = x.shape[0]
    vmem = pl.BlockSpec(memory_space=pltpu.MemorySpace.VMEM)
    return pl.pallas_call(
        mlp_fwd_kernel,
        out_shape=jax.ShapeDtypeStruct((B, PAD_OUT), jnp.float32),
        in_specs=[vmem] * 7,
        out_specs=vmem,
        compiler_params=pltpu.CompilerParams(vmem_limit_bytes=32 << 20),
    )(x, t_emb, w1a, w1b, w2, w3p, bcat)


def ddim_denoise_loop_pallas(x, theta0_pad, params, emb_tab, coef, noise_seq,
                             *, num_steps):
    """Resident-weight multi-step denoise loop (core recurrence of ddim_sample).
    Returns padded theta (B, PAD_OUT); real values in lanes 0..17."""
    w1a, w1b, w2, w3p, bcat = params
    B = x.shape[0]
    return pl.pallas_call(
        ddim_loop_kernel,
        out_shape=jax.ShapeDtypeStruct((B, PAD_OUT), jnp.float32),
        grid=(num_steps,),
        in_specs=[
            pl.BlockSpec((B, X_DIM), lambda s: (0, 0)),            # x        (resident)
            pl.BlockSpec((B, PAD_OUT), lambda s: (0, 0)),          # theta0   (resident)
            pl.BlockSpec((1, 1, T_DIM), lambda s: (s, 0, 0)),      # t_emb row (streams)
            pl.BlockSpec((X_DIM, H1), lambda s: (0, 0)),           # w1a      (resident)
            pl.BlockSpec((T_DIM, H1), lambda s: (0, 0)),           # w1b      (resident)
            pl.BlockSpec((H1, H2), lambda s: (0, 0)),              # w2       (resident)
            pl.BlockSpec((H2, PAD_OUT), lambda s: (0, 0)),         # w3 (pad) (resident)
            pl.BlockSpec((1, B_TOT), lambda s: (0, 0)),            # biases   (resident)
            pl.BlockSpec((1, 1, 3 * PAD_OUT), lambda s: (s, 0, 0)),  # DDIM coef (streams)
            pl.BlockSpec((1, B, PAD_OUT), lambda s: (s, 0, 0)),    # per-step noise
        ],
        out_specs=pl.BlockSpec((B, PAD_OUT), lambda s: (0, 0)),    # theta state (resident)
        compiler_params=pltpu.CompilerParams(
            dimension_semantics=("arbitrary",),
            vmem_limit_bytes=32 << 20),
    )(x, theta0_pad, emb_tab, w1a, w1b, w2, w3p, bcat, coef, noise_seq)


# ------------------------------ JAX glue -------------------------------

def cosine_beta_schedule(timesteps, s=0.008):
    steps = timesteps + 1
    x = jnp.linspace(0.0, float(timesteps), steps, dtype=jnp.float32)
    alphas_cumprod = jnp.cos((x / timesteps + s) / (1 + s) * math.pi * 0.5) ** 2
    alphas_cumprod = alphas_cumprod / alphas_cumprod[0]
    betas = 1.0 - alphas_cumprod[1:] / alphas_cumprod[:-1]
    return jnp.clip(betas, 0.0, 0.999)


def make_buffers(num_steps=NUM_STEPS):
    betas = cosine_beta_schedule(num_steps)
    alphas = 1.0 - betas
    alphas_cumprod = jnp.cumprod(alphas)
    alphas_cumprod_prev = jnp.pad(alphas_cumprod[:-1], (1, 0), constant_values=1.0)
    return dict(
        betas=betas,
        alphas=alphas,
        alphas_cumprod=alphas_cumprod,
        alphas_cumprod_prev=alphas_cumprod_prev,
        sqrt_alphas_cumprod=jnp.sqrt(alphas_cumprod),
        sqrt_one_minus_alphas_cumprod=jnp.sqrt(1.0 - alphas_cumprod),
    )


def _emb_ref(t):
    """t: (N,) f32 -> (N, 512) sinusoidal embedding (matches the module)."""
    k = jnp.arange(HALF, dtype=jnp.float32)
    freqs = jnp.exp(k * (-EMB_SCALE))
    ang = t[:, None] * freqs[None, :]
    return jnp.concatenate([jnp.sin(ang), jnp.cos(ang)], axis=-1)


def _prep_t(t, batch):
    t = jnp.asarray(t, dtype=jnp.float32)
    if t.ndim == 0:
        t = t[None]
    if t.shape[0] == 1:
        t = jnp.broadcast_to(t, (batch,))
    return t


def init_params_f32(key, final_zero_init=True):
    """Faithful nn.Linear-style init, kept in f32 (golden-reference weights).
    Weights stored (in, out)."""
    k1, k2, k3, k4, k5, k6 = jax.random.split(key, 6)

    def unif(k, shape, fan_in):
        bound = 1.0 / math.sqrt(fan_in)
        return jax.random.uniform(k, shape, jnp.float32, -bound, bound)

    w1 = unif(k1, (IN_DIM, H1), IN_DIM)
    b1 = unif(k2, (1, H1), IN_DIM)
    w2 = unif(k3, (H1, H2), H1)
    b2 = unif(k4, (1, H2), H1)
    if final_zero_init:
        # Module-faithful: self.net[-1].weight.zero_(); bias = path_position
        w3 = jnp.zeros((H2, OUT_DIM), jnp.float32)
        b3 = PATH_POSITION.reshape(1, OUT_DIM)
    else:
        w3 = unif(k5, (H2, OUT_DIM), H2)
        b3 = unif(k6, (1, OUT_DIM), H2)
    return dict(w1=w1, b1=b1, w2=w2, b2=b2, w3=w3, b3=b3)


def to_kernel_params(p):
    """Kernel layout: bf16 weights (cast ONCE), w1 split into x / t_emb halves,
    last layer padded to 128 lanes, all three biases concatenated into one
    (1, 1664) f32 row (single DMA)."""
    w1a = p["w1"][:X_DIM].astype(jnp.bfloat16)                       # (2048, 1024)
    w1b = p["w1"][X_DIM:].astype(jnp.bfloat16)                       # (512, 1024)
    w2 = p["w2"].astype(jnp.bfloat16)                                # (1024, 512)
    w3p = jnp.zeros((H2, PAD_OUT), jnp.float32).at[:, :OUT_DIM].set(p["w3"])
    w3p = w3p.astype(jnp.bfloat16)                                   # (512, 128)
    b3p = jnp.zeros((1, PAD_OUT), jnp.float32).at[:, :OUT_DIM].set(p["b3"])
    bcat = jnp.concatenate([p["b1"], p["b2"], b3p], axis=1)          # (1, 1664) f32
    return (w1a, w1b, w2, w3p, bcat)


@jax.jit
def forward(params, buffers, x, t, theta=None, noise=None):
    """Matches DiffusionPatchGenerator.forward.
    x: (B, 2048) f32; t: python int / ()/(B,) array; theta optional (B, 18)."""
    t = _prep_t(t, x.shape[0])
    t_emb = _emb_ref(t)                                 # (B, 512), fused by jit
    noise_pred = mlp_pallas(x, t_emb, params)[:, :OUT_DIM]   # Pallas hot path
    if theta is not None:
        if noise is None:
            # TODO(synk): PyTorch uses torch.randn_like (global RNG); pass `noise`
            # explicitly for real sampling — this fixed key is a deterministic fallback.
            noise = jax.random.normal(jax.random.PRNGKey(0), theta.shape, jnp.float32)
        # NOTE: documented semantic difference — PyTorch passes a float t to
        # gather() here (an upstream dtype bug); we index with int32 instead.
        ti = t.astype(jnp.int32)
        bshape = (theta.shape[0],) + (1,) * (theta.ndim - 1)
        sac = buffers["sqrt_alphas_cumprod"][ti].reshape(bshape)
        somac = buffers["sqrt_one_minus_alphas_cumprod"][ti].reshape(bshape)
        noisy_theta = sac * theta + somac * noise
        return noise_pred, noisy_theta, noise
    return noise_pred


def make_ddim_step_tables(buffers, key, batch, num_steps, eta=1.0):
    """Per-grid-step tables for the resident-weight loop (grid step s -> t = T-1-s):
    lane-broadcast DDIM coefficients, precomputed t-embedding rows, and noise."""
    acp = buffers["alphas_cumprod"][:num_steps]
    acpp = buffers["alphas_cumprod_prev"][:num_steps]
    sigma = eta * jnp.sqrt(jnp.clip((1.0 - acp / acpp) * (1.0 - acpp) / (1.0 - acp),
                                    0.0, None))
    c = jnp.sqrt(jnp.clip(1.0 - acpp - sigma ** 2, 0.0, None))
    sqap = jnp.sqrt(acpp)
    per_t = jnp.stack([sqap, c, sigma], axis=1)                # (T, 3), indexed by t
    per_step = per_t[::-1]                                     # grid order: s -> t=T-1-s
    coef = jnp.repeat(per_step[:, :, None], PAD_OUT, axis=2)   # (T, 3, 128)
    coef = coef.reshape(num_steps, 1, 3 * PAD_OUT)             # (T, 1, 384)

    t_grid = jnp.arange(num_steps - 1, -1, -1, dtype=jnp.float32)   # 999..0
    emb_tab = _emb_ref(t_grid).reshape(num_steps, 1, T_DIM)    # (T, 1, 512)

    # sigma(t=0) == 0, so the last step's noise is multiplied away (as in the module).
    noise_seq = jax.random.normal(key, (num_steps, batch, PAD_OUT), jnp.float32)
    return emb_tab, coef, noise_seq, per_step


# ------------------------------ references -----------------------------

def forward_ref_bf16(params, x, t):
    """Matches the kernel's bf16-weight / f32-accumulate numerics."""
    w1a, w1b, w2, w3p, bcat = params
    t = _prep_t(t, x.shape[0])
    b1 = bcat[:, :H1]
    b2 = bcat[:, H1:H1 + H2]
    b3 = bcat[:, H1 + H2:B_TOT]
    x_bf = x.astype(jnp.bfloat16)
    e_bf = _emb_ref(t).astype(jnp.bfloat16)
    h1 = jnp.maximum(jnp.dot(x_bf, w1a, preferred_element_type=jnp.float32)
                     + jnp.dot(e_bf, w1b, preferred_element_type=jnp.float32) + b1, 0.0)
    h2 = jnp.maximum(jnp.dot(h1.astype(jnp.bfloat16), w2,
                             preferred_element_type=jnp.float32) + b2, 0.0)
    out = jnp.dot(h2.astype(jnp.bfloat16), w3p,
                  preferred_element_type=jnp.float32) + b3
    return out[:, :OUT_DIM]


def forward_ref_f32(p, x, t):
    """f32 golden reference — original PyTorch-module numerics."""
    t = _prep_t(t, x.shape[0])
    x_cat = jnp.concatenate([x, _emb_ref(t)], axis=1)
    h1 = jnp.maximum(x_cat @ p["w1"] + p["b1"], 0.0)
    h2 = jnp.maximum(h1 @ p["w2"] + p["b2"], 0.0)
    return h2 @ p["w3"] + p["b3"]


def ddim_denoise_loop_ref(x, theta0, params, emb_tab, per_step, noise_seq, num_steps):
    """Pure-JAX reference for the multi-step recurrence (same bf16 numerics)."""
    w1a, w1b, w2, w3p, bcat = params
    b1 = bcat[:, :H1]
    b2 = bcat[:, H1:H1 + H2]
    b3 = bcat[:, H1 + H2:H1 + H2 + OUT_DIM]
    w3 = w3p[:, :OUT_DIM]
    x_bf = x.astype(jnp.bfloat16)

    def body(s, theta):
        e_bf = emb_tab[s].astype(jnp.bfloat16)                     # (1, 512)
        h1 = jnp.maximum(jnp.dot(x_bf, w1a, preferred_element_type=jnp.float32)
                         + jnp.dot(e_bf, w1b, preferred_element_type=jnp.float32)
                         + b1, 0.0)
        h2 = jnp.maximum(jnp.dot(h1.astype(jnp.bfloat16), w2,
                                 preferred_element_type=jnp.float32) + b2, 0.0)
        noise_pred = (jnp.dot(h2.astype(jnp.bfloat16), w3,
                              preferred_element_type=jnp.float32) + b3)   # (B, 18)
        sqap, c, sig = per_step[s, 0], per_step[s, 1], per_step[s, 2]
        nz = noise_seq[s, :, :OUT_DIM]
        return sqap * theta + c * noise_pred + sig * nz

    return lax.fori_loop(0, num_steps, body, theta0)


# -------------------------------- main ---------------------------------

if __name__ == "__main__":
    key = jax.random.PRNGKey(0)
    kx, kp, kp2, kth, kn, kth0, kns = jax.random.split(key, 7)

    B = 2
    x = jax.random.normal(kx, (B, X_DIM), dtype=jnp.float32)
    t = 10  # integer timestep, as accepted by the PyTorch forward
    buffers = make_buffers()

    # --- module-faithful init (w3 zeroed, b3 = path_position) ---
    p32 = init_params_f32(kp, final_zero_init=True)
    params = to_kernel_params(p32)
    noise_pred = jax.block_until_ready(forward(params, buffers, x, t))
    assert noise_pred.shape == (B, OUT_DIM)
    # with a zero final weight, the output must equal the path_position bias exactly
    assert jnp.allclose(noise_pred, jnp.broadcast_to(PATH_POSITION, (B, OUT_DIM)),
                        atol=1e-5), "zero-w3 path does not reproduce bias"

    # --- nonzero final layer: exercises all three matmuls ---
    p32_nz = init_params_f32(kp2, final_zero_init=False)
    params_nz = to_kernel_params(p32_nz)
    out_nz = jax.block_until_ready(forward(params_nz, buffers, x, t))
    ref_bf = forward_ref_bf16(params_nz, x, t)     # matched bf16 numerics
    ref_f32 = forward_ref_f32(p32_nz, x, t)        # f32 golden (module numerics)
    assert jnp.allclose(out_nz, ref_bf, atol=1e-2, rtol=1e-2), \
        "mismatch vs bf16-matched reference"
    assert jnp.allclose(out_nz, ref_f32, atol=5e-2, rtol=5e-2), \
        "mismatch vs f32 golden reference"

    # --- theta path (q_sample glue, fused into the same jitted dispatch) ---
    theta = jax.random.normal(kth, (B, OUT_DIM), dtype=jnp.float32)
    noise = jax.random.normal(kn, (B, OUT_DIM), dtype=jnp.float32)
    np2, noisy_theta, noise_out = forward(params, buffers, x, t, theta=theta, noise=noise)
    jax.block_until_ready((np2, noisy_theta, noise_out))
    assert noisy_theta.shape == theta.shape
    ti = jnp.full((B,), t, jnp.int32)
    sac = buffers["sqrt_alphas_cumprod"][ti][:, None]
    somac = buffers["sqrt_one_minus_alphas_cumprod"][ti][:, None]
    assert jnp.allclose(noisy_theta, sac * theta + somac * noise, atol=1e-6), \
        "q_sample mismatch"

    # --- resident-weight multi-step denoising loop (perf review item #1) ---
    emb_tab, coef, noise_seq, per_step = make_ddim_step_tables(buffers, kns, B, NUM_STEPS)
    theta0 = jax.random.normal(kth0, (B, OUT_DIM), dtype=jnp.float32)
    theta0_pad = jnp.zeros((B, PAD_OUT), jnp.float32).at[:, :OUT_DIM].set(theta0)
    theta_k = ddim_denoise_loop_pallas(x, theta0_pad, params_nz, emb_tab, coef,
                                       noise_seq, num_steps=NUM_STEPS)
    theta_k = jax.block_until_ready(theta_k)[:, :OUT_DIM]
    theta_r = ddim_denoise_loop_ref(x, theta0, params_nz, emb_tab, per_step,
                                    noise_seq, NUM_STEPS)
    assert jnp.allclose(theta_k, theta_r, atol=2e-2, rtol=2e-2), \
        "multi-step resident-weight loop mismatch vs reference"

    print("KERNEL_OK")
</pallas_src>

<mosaic_0001>
module attributes {stable_mosaic.version = 11 : i64} {
  func.func @mlp_fwd_kernel(%arg0: memref<2x2048xf32, #tpu.memory_space<vmem>>, %arg1: memref<2x512xf32, #tpu.memory_space<vmem>>, %arg2: memref<2048x1024xbf16, #tpu.memory_space<vmem>>, %arg3: memref<512x1024xbf16, #tpu.memory_space<vmem>>, %arg4: memref<1024x512xbf16, #tpu.memory_space<vmem>>, %arg5: memref<512x128xbf16, #tpu.memory_space<vmem>>, %arg6: memref<1x1664xf32, #tpu.memory_space<vmem>>, %arg7: memref<2x128xf32, #tpu.memory_space<vmem>>) attributes {dimension_semantics = [], scalar_prefetch = 0 : i64, scratch_operands = 0 : i64, tpu.core_type = #tpu.core_type<tc>} {
    %c0 = arith.constant 0 : index
    %c0_0 = arith.constant 0 : index
    %0 = vector.load %arg0[%c0, %c0_0] : memref<2x2048xf32, #tpu.memory_space<vmem>>, vector<2x2048xf32>
    %1 = arith.truncf %0 : vector<2x2048xf32> to vector<2x2048xbf16>
    %c0_1 = arith.constant 0 : index
    %c0_2 = arith.constant 0 : index
    %2 = vector.load %arg1[%c0_1, %c0_2] : memref<2x512xf32, #tpu.memory_space<vmem>>, vector<2x512xf32>
    %3 = arith.truncf %2 : vector<2x512xf32> to vector<2x512xbf16>
    %c0_3 = arith.constant 0 : index
    %c0_4 = arith.constant 0 : index
    %4 = vector.load %arg6[%c0_3, %c0_4] : memref<1x1664xf32, #tpu.memory_space<vmem>>, vector<1x1024xf32>
    %c0_5 = arith.constant 0 : index
    %c1024 = arith.constant 1024 : index
    %5 = vector.load %arg6[%c0_5, %c1024] : memref<1x1664xf32, #tpu.memory_space<vmem>>, vector<1x512xf32>
    %c0_6 = arith.constant 0 : index
    %c1536 = arith.constant 1536 : index
    %6 = vector.load %arg6[%c0_6, %c1536] : memref<1x1664xf32, #tpu.memory_space<vmem>>, vector<1x128xf32>
    %c0_7 = arith.constant 0 : index
    %c0_8 = arith.constant 0 : index
    %7 = vector.load %arg2[%c0_7, %c0_8] : memref<2048x1024xbf16, #tpu.memory_space<vmem>>, vector<2048x1024xbf16>
    %cst = arith.constant dense<0.000000e+00> : vector<2x1024xf32>
    %8 = tpu.matmul %1, %7, %cst {dimension_numbers = #tpu.dot_dimension_numbers<[1], [0], [0], [1], [0, 0, 1, 1], [], []>} : vector<2x2048xbf16>, vector<2048x1024xbf16>, vector<2x1024xf32> -> vector<2x1024xf32>
    %c0_9 = arith.constant 0 : index
    %c0_10 = arith.constant 0 : index
    %9 = vector.load %arg3[%c0_9, %c0_10] : memref<512x1024xbf16, #tpu.memory_space<vmem>>, vector<512x1024xbf16>
    %cst_11 = arith.constant dense<0.000000e+00> : vector<2x1024xf32>
    %10 = tpu.matmul %3, %9, %cst_11 {dimension_numbers = #tpu.dot_dimension_numbers<[1], [0], [0], [1], [0, 0, 1, 1], [], []>} : vector<2x512xbf16>, vector<512x1024xbf16>, vector<2x1024xf32> -> vector<2x1024xf32>
    %11 = arith.addf %8, %10 : vector<2x1024xf32>
    %12 = vector.broadcast %4 : vector<1x1024xf32> to vector<2x1024xf32>
    %13 = arith.addf %11, %12 : vector<2x1024xf32>
    %cst_12 = arith.constant 0.000000e+00 : f32
    %14 = vector.broadcast %cst_12 : f32 to vector<2x1024xf32>
    %15 = arith.maximumf %13, %14 : vector<2x1024xf32>
    %16 = arith.truncf %15 : vector<2x1024xf32> to vector<2x1024xbf16>
    %c0_13 = arith.constant 0 : index
    %c0_14 = arith.constant 0 : index
    %17 = vector.load %arg4[%c0_13, %c0_14] : memref<1024x512xbf16, #tpu.memory_space<vmem>>, vector<1024x512xbf16>
    %cst_15 = arith.constant dense<0.000000e+00> : vector<2x512xf32>
    %18 = tpu.matmul %16, %17, %cst_15 {dimension_numbers = #tpu.dot_dimension_numbers<[1], [0], [0], [1], [0, 0, 1, 1], [], []>} : vector<2x1024xbf16>, vector<1024x512xbf16>, vector<2x512xf32> -> vector<2x512xf32>
    %19 = vector.broadcast %5 : vector<1x512xf32> to vector<2x512xf32>
    %20 = arith.addf %18, %19 : vector<2x512xf32>
    %cst_16 = arith.constant 0.000000e+00 : f32
    %21 = vector.broadcast %cst_16 : f32 to vector<2x512xf32>
    %22 = arith.maximumf %20, %21 : vector<2x512xf32>
    %23 = arith.truncf %22 : vector<2x512xf32> to vector<2x512xbf16>
    %c0_17 = arith.constant 0 : index
    %c0_18 = arith.constant 0 : index
    %24 = vector.load %arg5[%c0_17, %c0_18] : memref<512x128xbf16, #tpu.memory_space<vmem>>, vector<512x128xbf16>
    %cst_19 = arith.constant dense<0.000000e+00> : vector<2x128xf32>
    %25 = tpu.matmul %23, %24, %cst_19 {dimension_numbers = #tpu.dot_dimension_numbers<[1], [0], [0], [1], [0, 0, 1, 1], [], []>} : vector<2x512xbf16>, vector<512x128xbf16>, vector<2x128xf32> -> vector<2x128xf32>
    %26 = vector.broadcast %6 : vector<1x128xf32> to vector<2x128xf32>
    %27 = arith.addf %25, %26 : vector<2x128xf32>
    %c0_20 = arith.constant 0 : index
    %c0_21 = arith.constant 0 : index
    %28 = vector.load %arg7[%c0_20, %c0_21] : memref<2x128xf32, #tpu.memory_space<vmem>>, vector<2x128xf32>
    tpu.vector_store %arg7[%c0_20, %c0_21], %27 {strides = array<i32>} : memref<2x128xf32, #tpu.memory_space<vmem>>, vector<2x128xf32>,
    return
  }
}

</mosaic_0001>

<llo_original>
// kernel: forward.1
$region0: #{forward.1}
  #allocation0 [shape = 'u32[]', space=smem, size = 0x4, offset = 0x4, fixed_abs, tag = 'smem constant byte address 0x4 - core index']
  #allocation1 [shape = 'u32[144,128]{1,0:T(1,128)}', space=vmem, size = 0x12000, scoped, tag = 'internal scratch']
  %s0 = inlined_call_operand.hbm [shape: f32[2,2048], index: 0, kind: input, shape index: {}]
  %s1 = inlined_call_operand.vmem [shape: f32[2,512], index: 1, kind: input, shape index: {}]
  %s2 = inlined_call_operand.hbm [shape: bf16[2048,1024], index: 2, kind: input, shape index: {}]
  %s3 = inlined_call_operand.hbm [shape: bf16[512,1024], index: 3, kind: input, shape index: {}]
  %s4 = inlined_call_operand.hbm [shape: bf16[1024,512], index: 4, kind: input, shape index: {}]
  %s5 = inlined_call_operand.hbm [shape: bf16[512,128], index: 5, kind: input, shape index: {}]
  %s6 = inlined_call_operand.hbm [shape: f32[1,1664], index: 6, kind: input, shape index: {}]
  %s7 = inlined_call_operand.hbm [shape: f32[2,128], index: 7, kind: output, shape index: {}]
  %s8 = sld [smem:[#allocation0]]
  $region62: #{forward.1} parent=0
    _
  %s10 = ssub.s32 1, %s8
  %s11 = scalar_select 0, %s10, %s8
  $region1: #{forward.1} parent=0
    #allocation2 [shape = 'u8[16384]{0}', space=vmem, size = 0x4000, scoped, tag = 'input window, operand 0, single buffered']
    #allocation3 [shape = 's32[1]{0}', space=sflag, size = 0x4, scoped, tag = 'scoped memory for forward.1']
    #allocation4 [shape = 's32[1]{0}', space=sflag, size = 0x4, scoped, tag = 'scoped memory for forward.1']
    #allocation5 [shape = 'u8[4194304]{0}', space=vmem, size = 0x400000, scoped, tag = 'input window, operand 2, single buffered']
    #allocation6 [shape = 's32[1]{0}', space=sflag, size = 0x4, scoped, tag = 'scoped memory for forward.1']
    #allocation7 [shape = 'u8[1048576]{0}', space=vmem, size = 0x100000, scoped, tag = 'input window, operand 3, single buffered']
    #allocation8 [shape = 'u8[1048576]{0}', space=vmem, size = 0x100000, scoped, tag = 'input window, operand 4, single buffered']
    #allocation9 [shape = 's32[1]{0}', space=sflag, size = 0x4, scoped, tag = 'scoped memory for forward.1']
    #allocation10 [shape = 'u8[131072]{0}', space=vmem, size = 0x20000, scoped, tag = 'input window, operand 5, single buffered']
    #allocation11 [shape = 'u8[6656]{0}', space=vmem, size = 0x1c00, scoped, tag = 'input window, operand 6, single buffered']
    #allocation12 [shape = 's32[1]{0}', space=sflag, size = 0x4, scoped, tag = 'scoped memory for forward.1']
    #allocation13 [shape = 'u8[1024]{0}', space=vmem, size = 0x400, scoped, tag = 'output window, operand 0, single buffered']
    %12 = vsyncpa [#allocation3], 0
    %13 = vsyncpa [#allocation6], 0
    %14 = vsyncpa [#allocation9], 0
    %15 = vsyncpa [#allocation12], 0
    %16 = vsyncpa [#allocation4], 0
    // Predicated region
    $region2: #{forward.1} parent=1 // pred_check
      _
    $region3: #{forward.1} parent=1 // pred_check_branch
      %18 = sbr.rel (0) target = $region5
    $region4: #{forward.1} parent=1 // pred_region
      %s20 = ssub.s32 512, 512
      %21 = vsyncadd [#allocation3], %s20
      %s23 = sshll.u32 [#allocation2], 4
      %s24 = int_to_ptr.vmem [resolvable:$true] %s23
      %26 = dma.hbm_to_vmem [thread:$0]  %s0, 512, %s24, [#allocation3]
    $region5: #{forward.1} parent=1 // pred_fallthru
      _
    // Predicated region
    $region6: #{forward.1} parent=1 // pred_check
      _
    $region7: #{forward.1} parent=1 // pred_check_branch
      %28 = sbr.rel (0) target = $region9
    $region8: #{forward.1} parent=1 // pred_region
      _
    $region9: #{forward.1} parent=1 // pred_fallthru
      _
    // Predicated region
    $region10: #{forward.1} parent=1 // pred_check
      _
    $region11: #{forward.1} parent=1 // pred_check_branch
      %30 = sbr.rel (0) target = $region13
    $region12: #{forward.1} parent=1 // pred_region
      %s32 = ssub.s32 131072, 131072
      %33 = vsyncadd [#allocation6], %s32
      %s34 = sshll.u32 [#allocation5], 4
      %s35 = int_to_ptr.vmem [resolvable:$true] %s34
      %40 = dma.hbm_to_vmem [thread:$0]  %s2, 131072, %s35, [#allocation6], 512, 512, 32
    $region13: #{forward.1} parent=1 // pred_fallthru
      _
    // Predicated region
    $region14: #{forward.1} parent=1 // pred_check
      _
    $region15: #{forward.1} parent=1 // pred_check_branch
      %42 = sbr.rel (0) target = $region17
    $region16: #{forward.1} parent=1 // pred_region
      %s44 = ssub.s32 32768, 32768
      %45 = vsyncadd [#allocation6], %s44
      %s46 = sshll.u32 [#allocation7], 4
      %s47 = int_to_ptr.vmem [resolvable:$true] %s46
      %52 = dma.hbm_to_vmem [thread:$0]  %s3, 32768, %s47, [#allocation6], 512, 512, 32
    $region17: #{forward.1} parent=1 // pred_fallthru
      _
    // Predicated region
    $region18: #{forward.1} parent=1 // pred_check
      _
    $region19: #{forward.1} parent=1 // pred_check_branch
      %54 = sbr.rel (0) target = $region21
    $region20: #{forward.1} parent=1 // pred_region
      %s56 = ssub.s32 32768, 32768
      %57 = vsyncadd [#allocation9], %s56
      %s58 = sshll.u32 [#allocation8], 4
      %s59 = int_to_ptr.vmem [resolvable:$true] %s58
      %64 = dma.hbm_to_vmem [thread:$0]  %s4, 32768, %s59, [#allocation9], 256, 256, 16
    $region21: #{forward.1} parent=1 // pred_fallthru
      _
    // Predicated region
    $region22: #{forward.1} parent=1 // pred_check
      _
    $region23: #{forward.1} parent=1 // pred_check_branch
      %66 = sbr.rel (0) target = $region25
    $region24: #{forward.1} parent=1 // pred_region
      %s68 = ssub.s32 4096, 4096
      %69 = vsyncadd [#allocation9], %s68
      %s70 = sshll.u32 [#allocation10], 4
      %s71 = int_to_ptr.vmem [resolvable:$true] %s70
      %76 = dma.hbm_to_vmem [thread:$0]  %s5, 4096, %s71, [#allocation9], 64, 64, 4
    $region25: #{forward.1} parent=1 // pred_fallthru
      _
    // Predicated region
    $region26: #{forward.1} parent=1 // pred_check
      _
    $region27: #{forward.1} parent=1 // pred_check_branch
      %78 = sbr.rel (0) target = $region29
    $region28: #{forward.1} parent=1 // pred_region
      %s80 = ssub.s32 208, 208
      %81 = vsyncadd [#allocation12], %s80
      %s83 = sshll.u32 [#allocation11], 4
      %s84 = int_to_ptr.vmem [resolvable:$true] %s83
      %86 = dma.hbm_to_vmem [thread:$0]  %s6, 208, %s84, [#allocation12]
    $region29: #{forward.1} parent=1 // pred_fallthru
      _
    // Predicated region
    $region30: #{forward.1} parent=1 // pred_check
      _
    $region31: #{forward.1} parent=1 // pred_check_branch
      %88 = sbr.rel (0) target = $region33
    $region32: #{forward.1} parent=1 // pred_region
      %89 = dma.done [#allocation3], 512
    $region33: #{forward.1} parent=1 // pred_fallthru
      _
    // Predicated region
    $region34: #{forward.1} parent=1 // pred_check
      _
    $region35: #{forward.1} parent=1 // pred_check_branch
      %91 = sbr.rel (0) target = $region37
    $region36: #{forward.1} parent=1 // pred_region
      %92 = dma.done [#allocation6], 131072
    $region37: #{forward.1} parent=1 // pred_fallthru
      _
    // Predicated region
    $region38: #{forward.1} parent=1 // pred_check
      _
    $region39: #{forward.1} parent=1 // pred_check_branch
      %94 = sbr.rel (0) target = $region41
    $region40: #{forward.1} parent=1 // pred_region
      %95 = dma.done [#allocation6], 32768
    $region41: #{forward.1} parent=1 // pred_fallthru
      _
    // Predicated region
    $region42: #{forward.1} parent=1 // pred_check
      _
    $region43: #{forward.1} parent=1 // pred_check_branch
      %97 = sbr.rel (0) target = $region45
    $region44: #{forward.1} parent=1 // pred_region
      %98 = dma.done [#allocation9], 32768
    $region45: #{forward.1} parent=1 // pred_fallthru
      _
    // Predicated region
    $region46: #{forward.1} parent=1 // pred_check
      _
    $region47: #{forward.1} parent=1 // pred_check_branch
      %100 = sbr.rel (0) target = $region49
    $region48: #{forward.1} parent=1 // pred_region
      %101 = dma.done [#allocation9], 4096
    $region49: #{forward.1} parent=1 // pred_fallthru
      _
    // Predicated region
    $region50: #{forward.1} parent=1 // pred_check
      _
    $region51: #{forward.1} parent=1 // pred_check_branch
      %103 = sbr.rel (0) target = $region53
    $region52: #{forward.1} parent=1 // pred_region
      %104 = dma.done [#allocation12], 208
    $region53: #{forward.1} parent=1 // pred_fallthru
      _
    %v106 = vld [vmem:[#allocation2] sm:$0xff]
    %v107 = vld [vmem:[#allocation2 + $0x8] sm:$0xff]
    %v108 = vld [vmem:[#allocation2 + $0x10] sm:$0xff]
    %v109 = vld [vmem:[#allocation2 + $0x18] sm:$0xff]
    %v114 = vcombine.high %v106, %v106
    %v116 = vunpack.c.l.s4 1983009808
    %v117 = vunpack.c.0.s8 %v116
    %v118 = vlaneseq
    %v119 = vshrl.u32 %v118, 7
    %v120 = vsub.s32 %v117, %v119
    %v121 = vrot.slane %v106, %v120
    %v123 = vunpack.c.l.s4 1983009808
    %v124 = vunpack.c.0.s8 %v123
    %v125 = vlaneseq
    %v126 = vshrl.u32 %v125, 7
    %v127 = vsub.s32 %v124, %v126
    %v128 = vrot.slane %v114, %v127
    %v129 = vcombine.high %v121, %v121
    %v130 = vcombine.high %v128, %v128
    %v131 = vcombine.high %v107, %v107
    %v133 = vunpack.c.l.s4 1983009808
    %v134 = vunpack.c.0.s8 %v133
    %v135 = vlaneseq
    %v136 = vshrl.u32 %v135, 7
    %v137 = vsub.s32 %v134, %v136
    %v138 = vrot.slane %v107, %v137
    %v140 = vunpack.c.l.s4 1983009808
    %v141 = vunpack.c.0.s8 %v140
    %v142 = vlaneseq
    %v143 = vshrl.u32 %v142, 7
    %v144 = vsub.s32 %v141, %v143
    %v145 = vrot.slane %v131, %v144
    %v146 = vcombine.high %v138, %v138
    %v147 = vcombine.high %v145, %v145
    %v148 = vcombine.high %v108, %v108
    %v150 = vunpack.c.l.s4 1983009808
    %v151 = vunpack.c.0.s8 %v150
    %v152 = vlaneseq
    %v153 = vshrl.u32 %v152, 7
    %v154 = vsub.s32 %v151, %v153
    %v155 = vrot.slane %v108, %v154
    %v157 = vunpack.c.l.s4 1983009808
    %v158 = vunpack.c.0.s8 %v157
    %v159 = vlaneseq
    %v160 = vshrl.u32 %v159, 7
    %v161 = vsub.s32 %v158, %v160
    %v162 = vrot.slane %v148, %v161
    %v163 = vcombine.high %v155, %v155
    %v164 = vcombine.high %v162, %v162
    %v165 = vcombine.high %v109, %v109
    %v167 = vunpack.c.l.s4 1983009808
    %v168 = vunpack.c.0.s8 %v167
    %v169 = vlaneseq
    %v170 = vshrl.u32 %v169, 7
    %v171 = vsub.s32 %v168, %v170
    %v172 = vrot.slane %v109, %v171
    %v174 = vunpack.c.l.s4 1983009808
    %v175 = vunpack.c.0.s8 %v174
    %v176 = vlaneseq
    %v177 = vshrl.u32 %v176, 7
    %v178 = vsub.s32 %v175, %v177
    %v179 = vrot.slane %v165, %v178
    %v180 = vcombine.high %v172, %v172
    %v181 = vcombine.high %v179, %v179
    %v198 = vpack.c.bf16 %v121, %v121
    %v199 = vpack.c.bf16 %v129, %v129
    %v200 = vpack.c.bf16 %v128, %v128
    %v201 = vpack.c.bf16 %v130, %v130
    %v202 = vpack.c.bf16 %v138, %v138
    %v203 = vpack.c.bf16 %v146, %v146
    %v204 = vpack.c.bf16 %v145, %v145
    %v205 = vpack.c.bf16 %v147, %v147
    %v206 = vpack.c.bf16 %v155, %v155
    %v207 = vpack.c.bf16 %v163, %v163
    %v208 = vpack.c.bf16 %v162, %v162
    %v209 = vpack.c.bf16 %v164, %v164
    %v210 = vpack.c.bf16 %v172, %v172
    %v211 = vpack.c.bf16 %v180, %v180
    %v212 = vpack.c.bf16 %v179, %v179
    %v213 = vpack.c.bf16 %v181, %v181
    %v214 = vld [vmem:[%s1] sm:$0xff]
    %v216 = vcombine.high %v214, %v214
    %v218 = vunpack.c.l.s4 1983009808
    %v219 = vunpack.c.0.s8 %v218
    %v220 = vlaneseq
    %v221 = vshrl.u32 %v220, 7
    %v222 = vsub.s32 %v219, %v221
    %v223 = vrot.slane %v214, %v222
    %v225 = vunpack.c.l.s4 1983009808
    %v226 = vunpack.c.0.s8 %v225
    %v227 = vlaneseq
    %v228 = vshrl.u32 %v227, 7
    %v229 = vsub.s32 %v226, %v228
    %v230 = vrot.slane %v216, %v229
    %v231 = vcombine.high %v223, %v223
    %v232 = vcombine.high %v230, %v230
    %v237 = vpack.c.bf16 %v223, %v223
    %v238 = vpack.c.bf16 %v231, %v231
    %v239 = vpack.c.bf16 %v230, %v230
    %v240 = vpack.c.bf16 %v232, %v232
    %v241 = vld [vmem:[#allocation11] sm:$0xff]
    %v242 = vld [vmem:[#allocation11 + $0x8] sm:$0xf]
    %v243 = vld [vmem:[#allocation11 + $0xc] sm:$0x1]
    %v244 = vld [vmem:[#allocation5] sm:$0xff]
    %v245 = vld [vmem:[#allocation5 + $0x8] sm:$0xff]
    %v246 = vld [vmem:[#allocation5 + $0x10] sm:$0xff]
    %v247 = vld [vmem:[#allocation5 + $0x18] sm:$0xff]
    %v248 = vld [vmem:[#allocation5 + $0x20] sm:$0xff]
    %v249 = vld [vmem:[#allocation5 + $0x28] sm:$0xff]
    %v250 = vld [vmem:[#allocation5 + $0x30] sm:$0xff]
    %v251 = vld [vmem:[#allocation5 + $0x38] sm:$0xff]
    %v252 = vld [vmem:[#allocation5 + $0x40] sm:$0xff]
    %v253 = vld [vmem:[#allocation5 + $0x48] sm:$0xff]
    %v254 = vld [vmem:[#allocation5 + $0x50] sm:$0xff]
    %v255 = vld [vmem:[#allocation5 + $0x58] sm:$0xff]
    %v256 = vld [vmem:[#allocation5 + $0x60] sm:$0xff]
    %v257 = vld [vmem:[#allocation5 + $0x68] sm:$0xff]
    %v258 = vld [vmem:[#allocation5 + $0x70] sm:$0xff]
    %v259 = vld [vmem:[#allocation5 + $0x78] sm:$0xff]
    %v260 = vld [vmem:[#allocation5 + $0x80] sm:$0xff]
    %v261 = vld [vmem:[#allocation5 + $0x88] sm:$0xff]
    %v262 = vld [vmem:[#allocation5 + $0x90] sm:$0xff]
    %v263 = vld [vmem:[#allocation5 + $0x98] sm:$0xff]
    %v264 = vld [vmem:[#allocation5 + $0xa0] sm:$0xff]
    %v265 = vld [vmem:[#allocation5 + $0xa8] sm:$0xff]
    %v266 = vld [vmem:[#allocation5 + $0xb0] sm:$0xff]
    %v267 = vld [vmem:[#allocation5 + $0xb8] sm:$0xff]
    %v268 = vld [vmem:[#allocation5 + $0xc0] sm:$0xff]
    %v269 = vld [vmem:[#allocation5 + $0xc8] sm:$0xff]
    %v270 = vld [vmem:[#allocation5 + $0xd0] sm:$0xff]
    %v271 = vld [vmem:[#allocation5 + $0xd8] sm:$0xff]
    %v272 = vld [vmem:[#allocation5 + $0xe0] sm:$0xff]
    %v273 = vld [vmem:[#allocation5 + $0xe8] sm:$0xff]
    %v274 = vld [vmem:[#allocation5 + $0xf0] sm:$0xff]
    %v275 = vld [vmem:[#allocation5 + $0xf8] sm:$0xff]
    %v276 = vld [vmem:[#allocation5 + $0x100] sm:$0xff]
    %v277 = vld [vmem:[#allocation5 + $0x108] sm:$0xff]
    %v278 = vld [vmem:[#allocation5 + $0x110] sm:$0xff]
    %v279 = vld [vmem:[#allocation5 + $0x118] sm:$0xff]
    %v280 = vld [vmem:[#allocation5 + $0x120] sm:$0xff]
    %v281 = vld [vmem:[#allocation5 + $0x128] sm:$0xff]
    %v282 = vld [vmem:[#allocation5 + $0x130] sm:$0xff]
    %v283 = vld [vmem:[#allocation5 + $0x138] sm:$0xff]
    %v284 = vld [vmem:[#allocation5 + $0x140] sm:$0xff]
    %v285 = vld [vmem:[#allocation5 + $0x148] sm:$0xff]
    %v286 = vld [vmem:[#allocation5 + $0x150] sm:$0xff]
    %v287 = vld [vmem:[#allocation5 + $0x158] sm:$0xff]
    %v288 = vld [vmem:[#allocation5 + $0x160] sm:$0xff]
    %v289 = vld [vmem:[#allocation5 + $0x168] sm:$0xff]
    %v290 = vld [vmem:[#allocation5 + $0x170] sm:$0xff]
    %v291 = vld [vmem:[#allocation5 + $0x178] sm:$0xff]
    %v292 = vld [vmem:[#allocation5 + $0x180] sm:$0xff]
    %v293 = vld [vmem:[#allocation5 + $0x188] sm:$0xff]
    %v294 = vld [vmem:[#allocation5 + $0x190] sm:$0xff]
    %v295 = vld [vmem:[#allocation5 + $0x198] sm:$0xff]
    %v296 = vld [vmem:[#allocation5 + $0x1a0] sm:$0xff]
    %v297 = vld [vmem:[#allocation5 + $0x1a8] sm:$0xff]
    %v298 = vld [vmem:[#allocation5 + $0x1b0] sm:$0xff]
    %v299 = vld [vmem:[#allocation5 + $0x1b8] sm:$0xff]
    %v300 = vld [vmem:[#allocation5 + $0x1c0] sm:$0xff]
    %v301 = vld [vmem:[#allocation5 + $0x1c8] sm:$0xff]
    %v302 = vld [vmem:[#allocation5 + $0x1d0] sm:$0xff]
    %v303 = vld [vmem:[#allocation5 + $0x1d8] sm:$0xff]
    %v304 = vld [vmem:[#allocation5 + $0x1e0] sm:$0xff]
    %v305 = vld [vmem:[#allocation5 + $0x1e8] sm:$0xff]
    %v306 = vld [vmem:[#allocation5 + $0x1f0] sm:$0xff]
    %v307 = vld [vmem:[#allocation5 + $0x1f8] sm:$0xff]
    %v308 = vld [vmem:[#allocation5 + $0x200] sm:$0xff]
    %v309 = vld [vmem:[#allocation5 + $0x208] sm:$0xff]
    %v310 = vld [vmem:[#allocation5 + $0x210] sm:$0xff]
    %v311 = vld [vmem:[#allocation5 + $0x218] sm:$0xff]
    %v312 = vld [vmem:[#allocation5 + $0x220] sm:$0xff]
    %v313 = vld [vmem:[#allocation5 + $0x228] sm:$0xff]
    %v314 = vld [vmem:[#allocation5 + $0x230] sm:$0xff]
    %v315 = vld [vmem:[#allocation5 + $0x238] sm:$0xff]
    %v316 = vld [vmem:[#allocation5 + $0x240] sm:$0xff]
    %v317 = vld [vmem:[#allocation5 + $0x248] sm:$0xff]
    %v318 = vld [vmem:[#allocation5 + $0x250] sm:$0xff]
    %v319 = vld [vmem:[#allocation5 + $0x258] sm:$0xff]
    %v320 = vld [vmem:[#allocation5 + $0x260] sm:$0xff]
    %v321 = vld [vmem:[#allocation5 + $0x268] sm:$0xff]
    %v322 = vld [vmem:[#allocation5 + $0x270] sm:$0xff]
    %v323 = vld [vmem:[#allocation5 + $0x278] sm:$0xff]
    %v324 = vld [vmem:[#allocation5 + $0x280] sm:$0xff]
    %v325 = vld [vmem:[#allocation5 + $0x288] sm:$0xff]
    %v326 = vld [vmem:[#allocation5 + $0x290] sm:$0xff]
    %v327 = vld [vmem:[#allocation5 + $0x298] sm:$0xff]
    %v328 = vld [vmem:[#allocation5 + $0x2a0] sm:$0xff]
    %v329 = vld [vmem:[#allocation5 + $0x2a8] sm:$0xff]
    %v330 = vld [vmem:[#allocation5 + $0x2b0] sm:$0xff]
    %v331 = vld [vmem:[#allocation5 + $0x2b8] sm:$0xff]
    %v332 = vld [vmem:[#allocation5 + $0x2c0] sm:$0xff]
    %v333 = vld [vmem:[#allocation5 + $0x2c8] sm:$0xff]
    %v334 = vld [vmem:[#allocation5 + $0x2d0] sm:$0xff]
    %v335 = vld [vmem:[#allocation5 + $0x2d8] sm:$0xff]
    %v336 = vld [vmem:[#allocation5 + $0x2e0] sm:$0xff]
    %v337 = vld [vmem:[#allocation5 + $0x2e8] sm:$0xff]
    %v338 = vld [vmem:[#allocation5 + $0x2f0] sm:$0xff]
    %v339 = vld [vmem:[#allocation5 + $0x2f8] sm:$0xff]
    %v340 = vld [vmem:[#allocation5 + $0x300] sm:$0xff]
    %v341 = vld [vmem:[#allocation5 + $0x308] sm:$0xff]
    %v342 = vld [vmem:[#allocation5 + $0x310] sm:$0xff]
    %v343 = vld [vmem:[#allocation5 + $0x318] sm:$0xff]
    %v344 = vld [vmem:[#allocation5 + $0x320] sm:$0xff]
    %v345 = vld [vmem:[#allocation5 + $0x328] sm:$0xff]
    %v346 = vld [vmem:[#allocation5 + $0x330] sm:$0xff]
    %v347 = vld [vmem:[#allocation5 + $0x338] sm:$0xff]
    %v348 = vld [vmem:[#allocation5 + $0x340] sm:$0xff]
    %v349 = vld [vmem:[#allocation5 + $0x348] sm:$0xff]
    %v350 = vld [vmem:[#allocation5 + $0x350] sm:$0xff]
    %v351 = vld [vmem:[#allocation5 + $0x358] sm:$0xff]
    %v352 = vld [vmem:[#allocation5 + $0x360] sm:$0xff]
    %v353 = vld [vmem:[#allocation5 + $0x368] sm:$0xff]
    %v354 = vld [vmem:[#allocation5 + $0x370] sm:$0xff]
    %v355 = vld [vmem:[#allocation5 + $0x378] sm:$0xff]
    %v356 = vld [vmem:[#allocation5 + $0x380] sm:$0xff]
    %v357 = vld [vmem:[#allocation5 + $0x388] sm:$0xff]
    %v358 = vld [vmem:[#allocation5 + $0x390] sm:$0xff]
    %v359 = vld [vmem:[#allocation5 + $0x398] sm:$0xff]
    %v360 = vld [vmem:[#allocation5 + $0x3a0] sm:$0xff]
    %v361 = vld [vmem:[#allocation5 + $0x3a8] sm:$0xff]
    %v362 = vld [vmem:[#allocation5 + $0x3b0] sm:$0xff]
    %v363 = vld [vmem:[#allocation5 + $0x3b8] sm:$0xff]
    %v364 = vld [vmem:[#allocation5 + $0x3c0] sm:$0xff]
    %v365 = vld [vmem:[#allocation5 + $0x3c8] sm:$0xff]
    %v366 = vld [vmem:[#allocation5 + $0x3d0] sm:$0xff]
    %v367 = vld [vmem:[#allocation5 + $0x3d8] sm:$0xff]
    %v368 = vld [vmem:[#allocation5 + $0x3e0] sm:$0xff]
    %v369 = vld [vmem:[#allocation5 + $0x3e8] sm:$0xff]
    %v370 = vld [vmem:[#allocation5 + $0x3f0] sm:$0xff]
    %v371 = vld [vmem:[#allocation5 + $0x3f8] sm:$0xff]
    %v372 = vld [vmem:[#allocation5 + $0x400] sm:$0xff]
    %v373 = vld [vmem:[#allocation5 + $0x408] sm:$0xff]
    %v374 = vld [vmem:[#allocation5 + $0x410] sm:$0xff]
    %v375 = vld [vmem:[#allocation5 + $0x418] sm:$0xff]
    %v376 = vld [vmem:[#allocation5 + $0x420] sm:$0xff]
    %v377 = vld [vmem:[#allocation5 + $0x428] sm:$0xff]
    %v378 = vld [vmem:[#allocation5 + $0x430] sm:$0xff]
    %v379 = vld [vmem:[#allocation5 + $0x438] sm:$0xff]
    %v380 = vld [vmem:[#allocation5 + $0x440] sm:$0xff]
    %v381 = vld [vmem:[#allocation5 + $0x448] sm:$0xff]
    %v382 = vld [vmem:[#allocation5 + $0x450] sm:$0xff]
    %v383 = vld [vmem:[#allocation5 + $0x458] sm:$0xff]
    %v384 = vld [vmem:[#allocation5 + $0x460] sm:$0xff]
    %v385 = vld [vmem:[#allocation5 + $0x468] sm:$0xff]
    %v386 = vld [vmem:[#allocation5 + $0x470] sm:$0xff]
    %v387 = vld [vmem:[#allocation5 + $0x478] sm:$0xff]
    %v388 = vld [vmem:[#allocation5 + $0x480] sm:$0xff]
    %v389 = vld [vmem:[#allocation5 + $0x488] sm:$0xff]
    %v390 = vld [vmem:[#allocation5 + $0x490] sm:$0xff]
    %v391 = vld [vmem:[#allocation5 + $0x498] sm:$0xff]
    %v392 = vld [vmem:[#allocation5 + $0x4a0] sm:$0xff]
    %v393 = vld [vmem:[#allocation5 + $0x4a8] sm:$0xff]
    %v394 = vld [vmem:[#allocation5 + $0x4b0] sm:$0xff]
    %v395 = vld [vmem:[#allocation5 + $0x4b8] sm:$0xff]
    %v396 = vld [vmem:[#allocation5 + $0x4c0] sm:$0xff]
    %v397 = vld [vmem:[#allocation5 + $0x4c8] sm:$0xff]
    %v398 = vld [vmem:[#allocation5 + $0x4d0] sm:$0xff]
    %v399 = vld [vmem:[#allocation5 + $0x4d8] sm:$0xff]
    %v400 = vld [vmem:[#allocation5 + $0x4e0] sm:$0xff]
    %v401 = vld [vmem:[#allocation5 + $0x4e8] sm:$0xff]
    %v402 = vld [vmem:[#allocation5 + $0x4f0] sm:$0xff]
    %v403 = vld [vmem:[#allocation5 + $0x4f8] sm:$0xff]
    %v404 = vld [vmem:[#allocation5 + $0x500] sm:$0xff]
    %v405 = vld [vmem:[#allocation5 + $0x508] sm:$0xff]
    %v406 = vld [vmem:[#allocation5 + $0x510] sm:$0xff]
    %v407 = vld [vmem:[#allocation5 + $0x518] sm:$0xff]
    %v408 = vld [vmem:[#allocation5 + $0x520] sm:$0xff]
    %v409 = vld [vmem:[#allocation5 + $0x528] sm:$0xff]
    %v410 = vld [vmem:[#allocation5 + $0x530] sm:$0xff]
    %v411 = vld [vmem:[#allocation5 + $0x538] sm:$0xff]
    %v412 = vld [vmem:[#allocation5 + $0x540] sm:$0xff]
    %v413 = vld [vmem:[#allocation5 + $0x548] sm:$0xff]
    %v414 = vld [vmem:[#allocation5 + $0x550] sm:$0xff]
    %v415 = vld [vmem:[#allocation5 + $0x558] sm:$0xff]
    %v416 = vld [vmem:[#allocation5 + $0x560] sm:$0xff]
    %v417 = vld [vmem:[#allocation5 + $0x568] sm:$0xff]
    %v418 = vld [vmem:[#allocation5 + $0x570] sm:$0xff]
    %v419 = vld [vmem:[#allocation5 + $0x578] sm:$0xff]
    %v420 = vld [vmem:[#allocation5 + $0x580] sm:$0xff]
    %v421 = vld [vmem:[#allocation5 + $0x588] sm:$0xff]
    %v422 = vld [vmem:[#allocation5 + $0x590] sm:$0xff]
    %v423 = vld [vmem:[#allocation5 + $0x598] sm:$0xff]
    %v424 = vld [vmem:[#allocation5 + $0x5a0] sm:$0xff]
    %v425 = vld [vmem:[#allocation5 + $0x5a8] sm:$0xff]
    %v426 = vld [vmem:[#allocation5 + $0x5b0] sm:$0xff]
    %v427 = vld [vmem:[#allocation5 + $0x5b8] sm:$0xff]
    %v428 = vld [vmem:[#allocation5 + $0x5c0] sm:$0xff]
    %v429 = vld [vmem:[#allocation5 + $0x5c8] sm:$0xff]
    %v430 = vld [vmem:[#allocation5 + $0x5d0] sm:$0xff]
    %v431 = vld [vmem:[#allocation5 + $0x5d8] sm:$0xff]
    %v432 = vld [vmem:[#allocation5 + $0x5e0] sm:$0xff]
    %v433 = vld [vmem:[#allocation5 + $0x5e8] sm:$0xff]
    %v434 = vld [vmem:[#allocation5 + $0x5f0] sm:$0xff]
    %v435 = vld [vmem:[#allocation5 + $0x5f8] sm:$0xff]
    %v436 = vld [vmem:[#allocation5 + $0x600] sm:$0xff]
    %v437 = vld [vmem:[#allocation5 + $0x608] sm:$0xff]
    %v438 = vld [vmem:[#allocation5 + $0x610] sm:$0xff]
    %v439 = vld [vmem:[#allocation5 + $0x618] sm:$0xff]
    %v440 = vld [vmem:[#allocation5 + $0x620] sm:$0xff]
    %v441 = vld [vmem:[#allocation5 + $0x628] sm:$0xff]
    %v442 = vld [vmem:[#allocation5 + $0x630] sm:$0xff]
    %v443 = vld [vmem:[#allocation5 + $0x638] sm:$0xff]
    %v444 = vld [vmem:[#allocation5 + $0x640] sm:$0xff]
    %v445 = vld [vmem:[#allocation5 + $0x648] sm:$0xff]
    %v446 = vld [vmem:[#allocation5 + $0x650] sm:$0xff]
    %v447 = vld [vmem:[#allocation5 + $0x658] sm:$0xff]
    %v448 = vld [vmem:[#allocation5 + $0x660] sm:$0xff]
    %v449 = vld [vmem:[#allocation5 + $0x668] sm:$0xff]
    %v450 = vld [vmem:[#allocation5 + $0x670] sm:$0xff]
    %v451 = vld [vmem:[#allocation5 + $0x678] sm:$0xff]
    %v452 = vld [vmem:[#allocation5 + $0x680] sm:$0xff]
    %v453 = vld [vmem:[#allocation5 + $0x688] sm:$0xff]
    %v454 = vld [vmem:[#allocation5 + $0x690] sm:$0xff]
    %v455 = vld [vmem:[#allocation5 + $0x698] sm:$0xff]
    %v456 = vld [vmem:[#allocation5 + $0x6a0] sm:$0xff]
    %v457 = vld [vmem:[#allocation5 + $0x6a8] sm:$0xff]
    %v458 = vld [vmem:[#allocation5 + $0x6b0] sm:$0xff]
    %v459 = vld [vmem:[#allocation5 + $0x6b8] sm:$0xff]
    %v460 = vld [vmem:[#allocation5 + $0x6c0] sm:$0xff]
    %v461 = vld [vmem:[#allocation5 + $0x6c8] sm:$0xff]
    %v462 = vld [vmem:[#allocation5 + $0x6d0] sm:$0xff]
    %v463 = vld [vmem:[#allocation5 + $0x6d8] sm:$0xff]
    %v464 = vld [vmem:[#allocation5 + $0x6e0] sm:$0xff]
    %v465 = vld [vmem:[#allocation5 + $0x6e8] sm:$0xff]
    %v466 = vld [vmem:[#allocation5 + $0x6f0] sm:$0xff]
    %v467 = vld [vmem:[#allocation5 + $0x6f8] sm:$0xff]
    %v468 = vld [vmem:[#allocation5 + $0x700] sm:$0xff]
    %v469 = vld [vmem:[#allocation5 + $0x708] sm:$0xff]
    %v470 = vld [vmem:[#allocation5 + $0x710] sm:$0xff]
    %v471 = vld [vmem:[#allocation5 + $0x718] sm:$0xff]
    %v472 = vld [vmem:[#allocation5 + $0x720] sm:$0xff]
    %v473 = vld [vmem:[#allocation5 + $0x728] sm:$0xff]
    %v474 = vld [vmem:[#allocation5 + $0x730] sm:$0xff]
    %v475 = vld [vmem:[#allocation5 + $0x738] sm:$0xff]
    %v476 = vld [vmem:[#allocation5 + $0x740] sm:$0xff]
    %v477 = vld [vmem:[#allocation5 + $0x748] sm:$0xff]
    %v478 = vld [vmem:[#allocation5 + $0x750] sm:$0xff]
    %v479 = vld [vmem:[#allocation5 + $0x758] sm:$0xff]
    %v480 = vld [vmem:[#allocation5 + $0x760] sm:$0xff]
    %v481 = vld [vmem:[#allocation5 + $0x768] sm:$0xff]
    %v482 = vld [vmem:[#allocation5 + $0x770] sm:$0xff]
    %v483 = vld [vmem:[#allocation5 + $0x778] sm:$0xff]
    %v484 = vld [vmem:[#allocation5 + $0x780] sm:$0xff]
    %v485 = vld [vmem:[#allocation5 + $0x788] sm:$0xff]
    %v486 = vld [vmem:[#allocation5 + $0x790] sm:$0xff]
    %v487 = vld [vmem:[#allocation5 + $0x798] sm:$0xff]
    %v488 = vld [vmem:[#allocation5 + $0x7a0] sm:$0xff]
    %v489 = vld [vmem:[#allocation5 + $0x7a8] sm:$0xff]
    %v490 = vld [vmem:[#allocation5 + $0x7b0] sm:$0xff]
    %v491 = vld [vmem:[#allocation5 + $0x7b8] sm:$0xff]
    %v492 = vld [vmem:[#allocation5 + $0x7c0] sm:$0xff]
    %v493 = vld [vmem:[#allocation5 + $0x7c8] sm:$0xff]
    %v494 = vld [vmem:[#allocation5 + $0x7d0] sm:$0xff]
    %v495 = vld [vmem:[#allocation5 + $0x7d8] sm:$0xff]
    %v496 = vld [vmem:[#allocation5 + $0x7e0] sm:$0xff]
    %v497 = vld [vmem:[#allocation5 + $0x7e8] sm:$0xff]
    %v498 = vld [vmem:[#allocation5 + $0x7f0] sm:$0xff]
    %v499 = vld [vmem:[#allocation5 + $0x7f8] sm:$0xff]
    %v500 = vld [vmem:[#allocation5 + $0x800] sm:$0xff]
    %v501 = vld [vmem:[#allocation5 + $0x808] sm:$0xff]
    %v502 = vld [vmem:[#allocation5 + $0x810] sm:$0xff]
    %v503 = vld [vmem:[#allocation5 + $0x818] sm:$0xff]
    %v504 = vld [vmem:[#allocation5 + $0x820] sm:$0xff]
    %v505 = vld [vmem:[#allocation5 + $0x828] sm:$0xff]
    %v506 = vld [vmem:[#allocation5 + $0x830] sm:$0xff]
    %v507 = vld [vmem:[#allocation5 + $0x838] sm:$0xff]
    %v508 = vld [vmem:[#allocation5 + $0x840] sm:$0xff]
    %v509 = vld [vmem:[#allocation5 + $0x848] sm:$0xff]
    %v510 = vld [vmem:[#allocation5 + $0x850] sm:$0xff]
    %v511 = vld [vmem:[#allocation5 + $0x858] sm:$0xff]
    %v512 = vld [vmem:[#allocation5 + $0x860] sm:$0xff]
    %v513 = vld [vmem:[#allocation5 + $0x868] sm:$0xff]
    %v514 = vld [vmem:[#allocation5 + $0x870] sm:$0xff]
    %v515 = vld [vmem:[#allocation5 + $0x878] sm:$0xff]
    %v516 = vld [vmem:[#allocation5 + $0x880] sm:$0xff]
    %v517 = vld [vmem:[#allocation5 + $0x888] sm:$0xff]
    %v518 = vld [vmem:[#allocation5 + $0x890] sm:$0xff]
    %v519 = vld [vmem:[#allocation5 + $0x898] sm:$0xff]
    %v520 = vld [vmem:[#allocation5 + $0x8a0] sm:$0xff]
    %v521 = vld [vmem:[#allocation5 + $0x8a8] sm:$0xff]
    %v522 = vld [vmem:[#allocation5 + $0x8b0] sm:$0xff]
    %v523 = vld [vmem:[#allocation5 + $0x8b8] sm:$0xff]
    %v524 = vld [vmem:[#allocation5 + $0x8c0] sm:$0xff]
    %v525 = vld [vmem:[#allocation5 + $0x8c8] sm:$0xff]
    %v526 = vld [vmem:[#allocation5 + $0x8d0] sm:$0xff]
    %v527 = vld [vmem:[#allocation5 + $0x8d8] sm:$0xff]
    %v528 = vld [vmem:[#allocation5 + $0x8e0] sm:$0xff]
    %v529 = vld [vmem:[#allocation5 + $0x8e8] sm:$0xff]
    %v530 = vld [vmem:[#allocation5 + $0x8f0] sm:$0xff]
    %v531 = vld [vmem:[#allocation5 + $0x8f8] sm:$0xff]
    %v532 = vld [vmem:[#allocation5 + $0x900] sm:$0xff]
    %v533 = vld [vmem:[#allocation5 + $0x908] sm:$0xff]
    %v534 = vld [vmem:[#allocation5 + $0x910] sm:$0xff]
    %v535 = vld [vmem:[#allocation5 + $0x918] sm:$0xff]
    %v536 = vld [vmem:[#allocation5 + $0x920] sm:$0xff]
    %v537 = vld [vmem:[#allocation5 + $0x928] sm:$0xff]
    %v538 = vld [vmem:[#allocation5 + $0x930] sm:$0xff]
    %v539 = vld [vmem:[#allocation5 + $0x938] sm:$0xff]
    %v540 = vld [vmem:[#allocation5 + $0x940] sm:$0xff]
    %v541 = vld [vmem:[#allocation5 + $0x948] sm:$0xff]
    %v542 = vld [vmem:[#allocation5 + $0x950] sm:$0xff]
    %v543 = vld [vmem:[#allocation5 + $0x958] sm:$0xff]
    %v544 = vld [vmem:[#allocation5 + $0x960] sm:$0xff]
    %v545 = vld [vmem:[#allocation5 + $0x968] sm:$0xff]
    %v546 = vld [vmem:[#allocation5 + $0x970] sm:$0xff]
    %v547 = vld [vmem:[#allocation5 + $0x978] sm:$0xff]
    %v548 = vld [vmem:[#allocation5 + $0x980] sm:$0xff]
    %v549 = vld [vmem:[#allocation5 + $0x988] sm:$0xff]
    %v550 = vld [vmem:[#allocation5 + $0x990] sm:$0xff]
    %v551 = vld [vmem:[#allocation5 + $0x998] sm:$0xff]
    %v552 = vld [vmem:[#allocation5 + $0x9a0] sm:$0xff]
    %v553 = vld [vmem:[#allocation5 + $0x9a8] sm:$0xff]
    %v554 = vld [vmem:[#allocation5 + $0x9b0] sm:$0xff]
    %v555 = vld [vmem:[#allocation5 + $0x9b8] sm:$0xff]
    %v556 = vld [vmem:[#allocation5 + $0x9c0] sm:$0xff]
    %v557 = vld [vmem:[#allocation5 + $0x9c8] sm:$0xff]
    %v558 = vld [vmem:[#allocation5 + $0x9d0] sm:$0xff]
    %v559 = vld [vmem:[#allocation5 + $0x9d8] sm:$0xff]
    %v560 = vld [vmem:[#allocation5 + $0x9e0] sm:$0xff]
    %v561 = vld [vmem:[#allocation5 + $0x9e8] sm:$0xff]
    %v562 = vld [vmem:[#allocation5 + $0x9f0] sm:$0xff]
    %v563 = vld [vmem:[#allocation5 + $0x9f8] sm:$0xff]
    %v564 = vld [vmem:[#allocation5 + $0xa00] sm:$0xff]
    %v565 = vld [vmem:[#allocation5 + $0xa08] sm:$0xff]
    %v566 = vld [vmem:[#allocation5 + $0xa10] sm:$0xff]
    %v567 = vld [vmem:[#allocation5 + $0xa18] sm:$0xff]
    %v568 = vld [vmem:[#allocation5 + $0xa20] sm:$0xff]
    %v569 = vld [vmem:[#allocation5 + $0xa28] sm:$0xff]
    %v570 = vld [vmem:[#allocation5 + $0xa30] sm:$0xff]
    %v571 = vld [vmem:[#allocation5 + $0xa38] sm:$0xff]
    %v572 = vld [vmem:[#allocation5 + $0xa40] sm:$0xff]
    %v573 = vld [vmem:[#allocation5 + $0xa48] sm:$0xff]
    %v574 = vld [vmem:[#allocation5 + $0xa50] sm:$0xff]
    %v575 = vld [vmem:[#allocation5 + $0xa58] sm:$0xff]
    %v576 = vld [vmem:[#allocation5 + $0xa60] sm:$0xff]
    %v577 = vld [vmem:[#allocation5 + $0xa68] sm:$0xff]
    %v578 = vld [vmem:[#allocation5 + $0xa70] sm:$0xff]
    %v579 = vld [vmem:[#allocation5 + $0xa78] sm:$0xff]
    %v580 = vld [vmem:[#allocation5 + $0xa80] sm:$0xff]
    %v581 = vld [vmem:[#allocation5 + $0xa88] sm:$0xff]
    %v582 = vld [vmem:[#allocation5 + $0xa90] sm:$0xff]
    %v583 = vld [vmem:[#allocation5 + $0xa98] sm:$0xff]
    %v584 = vld [vmem:[#allocation5 + $0xaa0] sm:$0xff]
    %v585 = vld [vmem:[#allocation5 + $0xaa8] sm:$0xff]
    %v586 = vld [vmem:[#allocation5 + $0xab0] sm:$0xff]
    %v587 = vld [vmem:[#allocation5 + $0xab8] sm:$0xff]
    %v588 = vld [vmem:[#allocation5 + $0xac0] sm:$0xff]
    %v589 = vld [vmem:[#allocation5 + $0xac8] sm:$0xff]
    %v590 = vld [vmem:[#allocation5 + $0xad0] sm:$0xff]
    %v591 = vld [vmem:[#allocation5 + $0xad8] sm:$0xff]
    %v592 = vld [vmem:[#allocation5 + $0xae0] sm:$0xff]
    %v593 = vld [vmem:[#allocation5 + $0xae8] sm:$0xff]
    %v594 = vld [vmem:[#allocation5 + $0xaf0] sm:$0xff]
    %v595 = vld [vmem:[#allocation5 + $0xaf8] sm:$0xff]
    %v596 = vld [vmem:[#allocation5 + $0xb00] sm:$0xff]
    %v597 = vld [vmem:[#allocation5 + $0xb08] sm:$0xff]
    %v598 = vld [vmem:[#allocation5 + $0xb10] sm:$0xff]
    %v599 = vld [vmem:[#allocation5 + $0xb18] sm:$0xff]
    %v600 = vld [vmem:[#allocation5 + $0xb20] sm:$0xff]
    %v601 = vld [vmem:[#allocation5 + $0xb28] sm:$0xff]
    %v602 = vld [vmem:[#allocation5 + $0xb30] sm:$0xff]
    %v603 = vld [vmem:[#allocation5 + $0xb38] sm:$0xff]
    %v604 = vld [vmem:[#allocation5 + $0xb40] sm:$0xff]
    %v605 = vld [vmem:[#allocation5 + $0xb48] sm:$0xff]
    %v606 = vld [vmem:[#allocation5 + $0xb50] sm:$0xff]
    %v607 = vld [vmem:[#allocation5 + $0xb58] sm:$0xff]
    %v608 = vld [vmem:[#allocation5 + $0xb60] sm:$0xff]
    %v609 = vld [vmem:[#allocation5 + $0xb68] sm:$0xff]
    %v610 = vld [vmem:[#allocation5 + $0xb70] sm:$0xff]
    %v611 = vld [vmem:[#allocation5 + $0xb78] sm:$0xff]
    %v612 = vld [vmem:[#allocation5 + $0xb80] sm:$0xff]
    %v613 = vld [vmem:[#allocation5 + $0xb88] sm:$0xff]
    %v614 = vld [vmem:[#allocation5 + $0xb90] sm:$0xff]
    %v615 = vld [vmem:[#allocation5 + $0xb98] sm:$0xff]
    %v616 = vld [vmem:[#allocation5 + $0xba0] sm:$0xff]
    %v617 = vld [vmem:[#allocation5 + $0xba8] sm:$0xff]
    %v618 = vld [vmem:[#allocation5 + $0xbb0] sm:$0xff]
    %v619 = vld [vmem:[#allocation5 + $0xbb8] sm:$0xff]
    %v620 = vld [vmem:[#allocation5 + $0xbc0] sm:$0xff]
    %v621 = vld [vmem:[#allocation5 + $0xbc8] sm:$0xff]
    %v622 = vld [vmem:[#allocation5 + $0xbd0] sm:$0xff]
    %v623 = vld [vmem:[#allocation5 + $0xbd8] sm:$0xff]
    %v624 = vld [vmem:[#allocation5 + $0xbe0] sm:$0xff]
    %v625 = vld [vmem:[#allocation5 + $0xbe8] sm:$0xff]
    %v626 = vld [vmem:[#allocation5 + $0xbf0] sm:$0xff]
    %v627 = vld [vmem:[#allocation5 + $0xbf8] sm:$0xff]
    %v628 = vld [vmem:[#allocation5 + $0xc00] sm:$0xff]
    %v629 = vld [vmem:[#allocation5 + $0xc08] sm:$0xff]
    %v630 = vld [vmem:[#allocation5 + $0xc10] sm:$0xff]
    %v631 = vld [vmem:[#allocation5 + $0xc18] sm:$0xff]
    %v632 = vld [vmem:[#allocation5 + $0xc20] sm:$0xff]
    %v633 = vld [vmem:[#allocation5 + $0xc28] sm:$0xff]
    %v634 = vld [vmem:[#allocation5 + $0xc30] sm:$0xff]
    %v635 = vld [vmem:[#allocation5 + $0xc38] sm:$0xff]
    %v636 = vld [vmem:[#allocation5 + $0xc40] sm:$0xff]
    %v637 = vld [vmem:[#allocation5 + $0xc48] sm:$0xff]
    %v638 = vld [vmem:[#allocation5 + $0xc50] sm:$0xff]
    %v639 = vld [vmem:[#allocation5 + $0xc58] sm:$0xff]
    %v640 = vld [vmem:[#allocation5 + $0xc60] sm:$0xff]
    %v641 = vld [vmem:[#allocation5 + $0xc68] sm:$0xff]
    %v642 = vld [vmem:[#allocation5 + $0xc70] sm:$0xff]
    %v643 = vld [vmem:[#allocation5 + $0xc78] sm:$0xff]
    %v644 = vld [vmem:[#allocation5 + $0xc80] sm:$0xff]
    %v645 = vld [vmem:[#allocation5 + $0xc88] sm:$0xff]
    %v646 = vld [vmem:[#allocation5 + $0xc90] sm:$0xff]
    %v647 = vld [vmem:[#allocation5 + $0xc98] sm:$0xff]
    %v648 = vld [vmem:[#allocation5 + $0xca0] sm:$0xff]
    %v649 = vld [vmem:[#allocation5 + $0xca8] sm:$0xff]
    %v650 = vld [vmem:[#allocation5 + $0xcb0] sm:$0xff]
    %v651 = vld [vmem:[#allocation5 + $0xcb8] sm:$0xff]
    %v652 = vld [vmem:[#allocation5 + $0xcc0] sm:$0xff]
    %v653 = vld [vmem:[#allocation5 + $0xcc8] sm:$0xff]
    %v654 = vld [vmem:[#allocation5 + $0xcd0] sm:$0xff]
    %v655 = vld [vmem:[#allocation5 + $0xcd8] sm:$0xff]
    %v656 = vld [vmem:[#allocation5 + $0xce0] sm:$0xff]
    %v657 = vld [vmem:[#allocation5 + $0xce8] sm:$0xff]
    %v658 = vld [vmem:[#allocation5 + $0xcf0] sm:$0xff]
    %v659 = vld [vmem:[#allocation5 + $0xcf8] sm:$0xff]
    %v660 = vld [vmem:[#allocation5 + $0xd00] sm:$0xff]
    %v661 = vld [vmem:[#allocation5 + $0xd08] sm:$0xff]
    %v662 = vld [vmem:[#allocation5 + $0xd10] sm:$0xff]
    %v663 = vld [vmem:[#allocation5 + $0xd18] sm:$0xff]
    %v664 = vld [vmem:[#allocation5 + $0xd20] sm:$0xff]
    %v665 = vld [vmem:[#allocation5 + $0xd28] sm:$0xff]
    %v666 = vld [vmem:[#allocation5 + $0xd30] sm:$0xff]
    %v667 = vld [vmem:[#allocation5 + $0xd38] sm:$0xff]
    %v668 = vld [vmem:[#allocation5 + $0xd40] sm:$0xff]
    %v669 = vld [vmem:[#allocation5 + $0xd48] sm:$0xff]
    %v670 = vld [vmem:[#allocation5 + $0xd50] sm:$0xff]
    %v671 = vld [vmem:[#allocation5 + $0xd58] sm:$0xff]
    %v672 = vld [vmem:[#allocation5 + $0xd60] sm:$0xff]
    %v673 = vld [vmem:[#allocation5 + $0xd68] sm:$0xff]
    %v674 = vld [vmem:[#allocation5 + $0xd70] sm:$0xff]
    %v675 = vld [vmem:[#allocation5 + $0xd78] sm:$0xff]
    %v676 = vld [vmem:[#allocation5 + $0xd80] sm:$0xff]
    %v677 = vld [vmem:[#allocation5 + $0xd88] sm:$0xff]
    %v678 = vld [vmem:[#allocation5 + $0xd90] sm:$0xff]
    %v679 = vld [vmem:[#allocation5 + $0xd98] sm:$0xff]
    %v680 = vld [vmem:[#allocation5 + $0xda0] sm:$0xff]
    %v681 = vld [vmem:[#allocation5 + $0xda8] sm:$0xff]
    %v682 = vld [vmem:[#allocation5 + $0xdb0] sm:$0xff]
    %v683 = vld [vmem:[#allocation5 + $0xdb8] sm:$0xff]
    %v684 = vld [vmem:[#allocation5 + $0xdc0] sm:$0xff]
    %v685 = vld [vmem:[#allocation5 + $0xdc8] sm:$0xff]
    %v686 = vld [vmem:[#allocation5 + $0xdd0] sm:$0xff]
    %v687 = vld [vmem:[#allocation5 + $0xdd8] sm:$0xff]
    %v688 = vld [vmem:[#allocation5 + $0xde0] sm:$0xff]
    %v689 = vld [vmem:[#allocation5 + $0xde8] sm:$0xff]
    %v690 = vld [vmem:[#allocation5 + $0xdf0] sm:$0xff]
    %v691 = vld [vmem:[#allocation5 + $0xdf8] sm:$0xff]
    %v692 = vld [vmem:[#allocation5 + $0xe00] sm:$0xff]
    %v693 = vld [vmem:[#allocation5 + $0xe08] sm:$0xff]
    %v694 = vld [vmem:[#allocation5 + $0xe10] sm:$0xff]
    %v695 = vld [vmem:[#allocation5 + $0xe18] sm:$0xff]
    %v696 = vld [vmem:[#allocation5 + $0xe20] sm:$0xff]
    %v697 = vld [vmem:[#allocation5 + $0xe28] sm:$0xff]
    %v698 = vld [vmem:[#allocation5 + $0xe30] sm:$0xff]
    %v699 = vld [vmem:[#allocation5 + $0xe38] sm:$0xff]
    %v700 = vld [vmem:[#allocation5 + $0xe40] sm:$0xff]
    %v701 = vld [vmem:[#allocation5 + $0xe48] sm:$0xff]
    %v702 = vld [vmem:[#allocation5 + $0xe50] sm:$0xff]
    %v703 = vld [vmem:[#allocation5 + $0xe58] sm:$0xff]
    %v704 = vld [vmem:[#allocation5 + $0xe60] sm:$0xff]
    %v705 = vld [vmem:[#allocation5 + $0xe68] sm:$0xff]
    %v706 = vld [vmem:[#allocation5 + $0xe70] sm:$0xff]
    %v707 = vld [vmem:[#allocation5 + $0xe78] sm:$0xff]
    %v708 = vld [vmem:[#allocation5 + $0xe80] sm:$0xff]
    %v709 = vld [vmem:[#allocation5 + $0xe88] sm:$0xff]
    %v710 = vld [vmem:[#allocation5 + $0xe90] sm:$0xff]
    %v711 = vld [vmem:[#allocation5 + $0xe98] sm:$0xff]
    %v712 = vld [vmem:[#allocation5 + $0xea0] sm:$0xff]
    %v713 = vld [vmem:[#allocation5 + $0xea8] sm:$0xff]
    %v714 = vld [vmem:[#allocation5 + $0xeb0] sm:$0xff]
    %v715 = vld [vmem:[#allocation5 + $0xeb8] sm:$0xff]
    %v716 = vld [vmem:[#allocation5 + $0xec0] sm:$0xff]
    %v717 = vld [vmem:[#allocation5 + $0xec8] sm:$0xff]
    %v718 = vld [vmem:[#allocation5 + $0xed0] sm:$0xff]
    %v719 = vld [vmem:[#allocation5 + $0xed8] sm:$0xff]
    %v720 = vld [vmem:[#allocation5 + $0xee0] sm:$0xff]
    %v721 = vld [vmem:[#allocation5 + $0xee8] sm:$0xff]
    %v722 = vld [vmem:[#allocation5 + $0xef0] sm:$0xff]
    %v723 = vld [vmem:[#allocation5 + $0xef8] sm:$0xff]
    %v724 = vld [vmem:[#allocation5 + $0xf00] sm:$0xff]
    %v725 = vld [vmem:[#allocation5 + $0xf08] sm:$0xff]
    %v726 = vld [vmem:[#allocation5 + $0xf10] sm:$0xff]
    %v727 = vld [vmem:[#allocation5 + $0xf18] sm:$0xff]
    %v728 = vld [vmem:[#allocation5 + $0xf20] sm:$0xff]
    %v729 = vld [vmem:[#allocation5 + $0xf28] sm:$0xff]
    %v730 = vld [vmem:[#allocation5 + $0xf30] sm:$0xff]
    %v731 = vld [vmem:[#allocation5 + $0xf38] sm:$0xff]
    %v732 = vld [vmem:[#allocation5 + $0xf40] sm:$0xff]
    %v733 = vld [vmem:[#allocation5 + $0xf48] sm:$0xff]
    %v734 = vld [vmem:[#allocation5 + $0xf50] sm:$0xff]
    %v735 = vld [vmem:[#allocation5 + $0xf58] sm:$0xff]
    %v736 = vld [vmem:[#allocation5 + $0xf60] sm:$0xff]
    %v737 = vld [vmem:[#allocation5 + $0xf68] sm:$0xff]
    %v738 = vld [vmem:[#allocation5 + $0xf70] sm:$0xff]
    %v739 = vld [vmem:[#allocation5 + $0xf78] sm:$0xff]
    %v740 = vld [vmem:[#allocation5 + $0xf80] sm:$0xff]
    %v741 = vld [vmem:[#allocation5 + $0xf88] sm:$0xff]
    %v742 = vld [vmem:[#allocation5 + $0xf90] sm:$0xff]
    %v743 = vld [vmem:[#allocation5 + $0xf98] sm:$0xff]
    %v744 = vld [vmem:[#allocation5 + $0xfa0] sm:$0xff]
    %v745 = vld [vmem:[#allocation5 + $0xfa8] sm:$0xff]
    %v746 = vld [vmem:[#allocation5 + $0xfb0] sm:$0xff]
    %v747 = vld [vmem:[#allocation5 + $0xfb8] sm:$0xff]
    %v748 = vld [vmem:[#allocation5 + $0xfc0] sm:$0xff]
    %v749 = vld [vmem:[#allocation5 + $0xfc8] sm:$0xff]
    %v750 = vld [vmem:[#allocation5 + $0xfd0] sm:$0xff]
    %v751 = vld [vmem:[#allocation5 + $0xfd8] sm:$0xff]
    %v752 = vld [vmem:[#allocation5 + $0xfe0] sm:$0xff]
    %v753 = vld [vmem:[#allocation5 + $0xfe8] sm:$0xff]
    %v754 = vld [vmem:[#allocation5 + $0xff0] sm:$0xff]
    %v755 = vld [vmem:[#allocation5 + $0xff8] sm:$0xff]
    %v756 = vld [vmem:[#allocation5 + $0x1000] sm:$0xff]
    %v757 = vld [vmem:[#allocation5 + $0x1008] sm:$0xff]
    %v758 = vld [vmem:[#allocation5 + $0x1010] sm:$0xff]
    %v759 = vld [vmem:[#allocation5 + $0x1018] sm:$0xff]
    %v760 = vld [vmem:[#allocation5 + $0x1020] sm:$0xff]
    %v761 = vld [vmem:[#allocation5 + $0x1028] sm:$0xff]
    %v762 = vld [vmem:[#allocation5 + $0x1030] sm:$0xff]
    %v763 = vld [vmem:[#allocation5 + $0x1038] sm:$0xff]
    %v764 = vld [vmem:[#allocation5 + $0x1040] sm:$0xff]
    %v765 = vld [vmem:[#allocation5 + $0x1048] sm:$0xff]
    %v766 = vld [vmem:[#allocation5 + $0x1050] sm:$0xff]
    %v767 = vld [vmem:[#allocation5 + $0x1058] sm:$0xff]
    %v768 = vld [vmem:[#allocation5 + $0x1060] sm:$0xff]
    %v769 = vld [vmem:[#allocation5 + $0x1068] sm:$0xff]
    %v770 = vld [vmem:[#allocation5 + $0x1070] sm:$0xff]
    %v771 = vld [vmem:[#allocation5 + $0x1078] sm:$0xff]
    %v772 = vld [vmem:[#allocation5 + $0x1080] sm:$0xff]
    %v773 = vld [vmem:[#allocation5 + $0x1088] sm:$0xff]
    %v774 = vld [vmem:[#allocation5 + $0x1090] sm:$0xff]
    %v775 = vld [vmem:[#allocation5 + $0x1098] sm:$0xff]
    %v776 = vld [vmem:[#allocation5 + $0x10a0] sm:$0xff]
    %v777 = vld [vmem:[#allocation5 + $0x10a8] sm:$0xff]
    %v778 = vld [vmem:[#allocation5 + $0x10b0] sm:$0xff]
    %v779 = vld [vmem:[#allocation5 + $0x10b8] sm:$0xff]
    %v780 = vld [vmem:[#allocation5 + $0x10c0] sm:$0xff]
    %v781 = vld [vmem:[#allocation5 + $0x10c8] sm:$0xff]
    %v782 = vld [vmem:[#allocation5 + $0x10d0] sm:$0xff]
    %v783 = vld [vmem:[#allocation5 + $0x10d8] sm:$0xff]
    %v784 = vld [vmem:[#allocation5 + $0x10e0] sm:$0xff]
    %v785 = vld [vmem:[#allocation5 + $0x10e8] sm:$0xff]
    %v786 = vld [vmem:[#allocation5 + $0x10f0] sm:$0xff]
    %v787 = vld [vmem:[#allocation5 + $0x10f8] sm:$0xff]
    %v788 = vld [vmem:[#allocation5 + $0x1100] sm:$0xff]
    %v789 = vld [vmem:[#allocation5 + $0x1108] sm:$0xff]
    %v790 = vld [vmem:[#allocation5 + $0x1110] sm:$0xff]
    %v791 = vld [vmem:[#allocation5 + $0x1118] sm:$0xff]
    %v792 = vld [vmem:[#allocation5 + $0x1120] sm:$0xff]
    %v793 = vld [vmem:[#allocation5 + $0x1128] sm:$0xff]
    %v794 = vld [vmem:[#allocation5 + $0x1130] sm:$0xff]
    %v795 = vld [vmem:[#allocation5 + $0x1138] sm:$0xff]
    %v796 = vld [vmem:[#allocation5 + $0x1140] sm:$0xff]
    %v797 = vld [vmem:[#allocation5 + $0x1148] sm:$0xff]
    %v798 = vld [vmem:[#allocation5 + $0x1150] sm:$0xff]
    %v799 = vld [vmem:[#allocation5 + $0x1158] sm:$0xff]
    %v800 = vld [vmem:[#allocation5 + $0x1160] sm:$0xff]
    %v801 = vld [vmem:[#allocation5 + $0x1168] sm:$0xff]
    %v802 = vld [vmem:[#allocation5 + $0x1170] sm:$0xff]
    %v803 = vld [vmem:[#allocation5 + $0x1178] sm:$0xff]
    %v804 = vld [vmem:[#allocation5 + $0x1180] sm:$0xff]
    %v805 = vld [vmem:[#allocation5 + $0x1188] sm:$0xff]
    %v806 = vld [vmem:[#allocation5 + $0x1190] sm:$0xff]
    %v807 = vld [vmem:[#allocation5 + $0x1198] sm:$0xff]
    %v808 = vld [vmem:[#allocation5 + $0x11a0] sm:$0xff]
    %v809 = vld [vmem:[#allocation5 + $0x11a8] sm:$0xff]
    %v810 = vld [vmem:[#allocation5 + $0x11b0] sm:$0xff]
    %v811 = vld [vmem:[#allocation5 + $0x11b8] sm:$0xff]
    %v812 = vld [vmem:[#allocation5 + $0x11c0] sm:$0xff]
    %v813 = vld [vmem:[#allocation5 + $0x11c8] sm:$0xff]
    %v814 = vld [vmem:[#allocation5 + $0x11d0] sm:$0xff]
    %v815 = vld [vmem:[#allocation5 + $0x11d8] sm:$0xff]
    %v816 = vld [vmem:[#allocation5 + $0x11e0] sm:$0xff]
    %v817 = vld [vmem:[#allocation5 + $0x11e8] sm:$0xff]
    %v818 = vld [vmem:[#allocation5 + $0x11f0] sm:$0xff]
    %v819 = vld [vmem:[#allocation5 + $0x11f8] sm:$0xff]
    %v820 = vld [vmem:[#allocation5 + $0x1200] sm:$0xff]
    %v821 = vld [vmem:[#allocation5 + $0x1208] sm:$0xff]
    %v822 = vld [vmem:[#allocation5 + $0x1210] sm:$0xff]
    %v823 = vld [vmem:[#allocation5 + $0x1218] sm:$0xff]
    %v824 = vld [vmem:[#allocation5 + $0x1220] sm:$0xff]
    %v825 = vld [vmem:[#allocation5 + $0x1228] sm:$0xff]
    %v826 = vld [vmem:[#allocation5 + $0x1230] sm:$0xff]
    %v827 = vld [vmem:[#allocation5 + $0x1238] sm:$0xff]
    %v828 = vld [vmem:[#allocation5 + $0x1240] sm:$0xff]
    %v829 = vld [vmem:[#allocation5 + $0x1248] sm:$0xff]
    %v830 = vld [vmem:[#allocation5 + $0x1250] sm:$0xff]
    %v831 = vld [vmem:[#allocation5 + $0x1258] sm:$0xff]
    %v832 = vld [vmem:[#allocation5 + $0x1260] sm:$0xff]
    %v833 = vld [vmem:[#allocation5 + $0x1268] sm:$0xff]
    %v834 = vld [vmem:[#allocation5 + $0x1270] sm:$0xff]
    %v835 = vld [vmem:[#allocation5 + $0x1278] sm:$0xff]
    %v836 = vld [vmem:[#allocation5 + $0x1280] sm:$0xff]
    %v837 = vld [vmem:[#allocation5 + $0x1288] sm:$0xff]
    %v838 = vld [vmem:[#allocation5 + $0x1290] sm:$0xff]
    %v839 = vld [vmem:[#allocation5 + $0x1298] sm:$0xff]
    %v840 = vld [vmem:[#allocation5 + $0x12a0] sm:$0xff]
    %v841 = vld [vmem:[#allocation5 + $0x12a8] sm:$0xff]
    %v842 = vld [vmem:[#allocation5 + $0x12b0] sm:$0xff]
    %v843 = vld [vmem:[#allocation5 + $0x12b8] sm:$0xff]
    %v844 = vld [vmem:[#allocation5 + $0x12c0] sm:$0xff]
    %v845 = vld [vmem:[#allocation5 + $0x12c8] sm:$0xff]
    %v846 = vld [vmem:[#allocation5 + $0x12d0] sm:$0xff]
    %v847 = vld [vmem:[#allocation5 + $0x12d8] sm:$0xff]
    %v848 = vld [vmem:[#allocation5 + $0x12e0] sm:$0xff]
    %v849 = vld [vmem:[#allocation5 + $0x12e8] sm:$0xff]
    %v850 = vld [vmem:[#allocation5 + $0x12f0] sm:$0xff]
    %v851 = vld [vmem:[#allocation5 + $0x12f8] sm:$0xff]
    %v852 = vld [vmem:[#allocation5 + $0x1300] sm:$0xff]
    %v853 = vld [vmem:[#allocation5 + $0x1308] sm:$0xff]
    %v854 = vld [vmem:[#allocation5 + $0x1310] sm:$0xff]
    %v855 = vld [vmem:[#allocation5 + $0x1318] sm:$0xff]
    %v856 = vld [vmem:[#allocation5 + $0x1320] sm:$0xff]
    %v857 = vld [vmem:[#allocation5 + $0x1328] sm:$0xff]
    %v858 = vld [vmem:[#allocation5 + $0x1330] sm:$0xff]
    %v859 = vld [vmem:[#allocation5 + $0x1338] sm:$0xff]
    %v860 = vld [vmem:[#allocation5 + $0x1340] sm:$0xff]
    %v861 = vld [vmem:[#allocation5 + $0x1348] sm:$0xff]
    %v862 = vld [vmem:[#allocation5 + $0x1350] sm:$0xff]
    %v863 = vld [vmem:[#allocation5 + $0x1358] sm:$0xff]
    %v864 = vld [vmem:[#allocation5 + $0x1360] sm:$0xff]
    %v865 = vld [vmem:[#allocation5 + $0x1368] sm:$0xff]
    %v866 = vld [vmem:[#allocation5 + $0x1370] sm:$0xff]
    %v867 = vld [vmem:[#allocation5 + $0x1378] sm:$0xff]
    %v868 = vld [vmem:[#allocation5 + $0x1380] sm:$0xff]
    %v869 = vld [vmem:[#allocation5 + $0x1388] sm:$0xff]
    %v870 = vld [vmem:[#allocation5 + $0x1390] sm:$0xff]
    %v871 = vld [vmem:[#allocation5 + $0x1398] sm:$0xff]
    %v872 = vld [vmem:[#allocation5 + $0x13a0] sm:$0xff]
    %v873 = vld [vmem:[#allocation5 + $0x13a8] sm:$0xff]
    %v874 = vld [vmem:[#allocation5 + $0x13b0] sm:$0xff]
    %v875 = vld [vmem:[#allocation5 + $0x13b8] sm:$0xff]
    %v876 = vld [vmem:[#allocation5 + $0x13c0] sm:$0xff]
    %v877 = vld [vmem:[#allocation5 + $0x13c8] sm:$0xff]
    %v878 = vld [vmem:[#allocation5 + $0x13d0] sm:$0xff]
    %v879 = vld [vmem:[#allocation5 + $0x13d8] sm:$0xff]
    %v880 = vld [vmem:[#allocation5 + $0x13e0] sm:$0xff]
    %v881 = vld [vmem:[#allocation5 + $0x13e8] sm:$0xff]
    %v882 = vld [vmem:[#allocation5 + $0x13f0] sm:$0xff]
    %v883 = vld [vmem:[#allocation5 + $0x13f8] sm:$0xff]
    %v884 = vld [vmem:[#allocation5 + $0x1400] sm:$0xff]
    %v885 = vld [vmem:[#allocation5 + $0x1408] sm:$0xff]
    %v886 = vld [vmem:[#allocation5 + $0x1410] sm:$0xff]
    %v887 = vld [vmem:[#allocation5 + $0x1418] sm:$0xff]
    %v888 = vld [vmem:[#allocation5 + $0x1420] sm:$0xff]
    %v889 = vld [vmem:[#allocation5 + $0x1428] sm:$0xff]
    %v890 = vld [vmem:[#allocation5 + $0x1430] sm:$0xff]
    %v891 = vld [vmem:[#allocation5 + $0x1438] sm:$0xff]
    %v892 = vld [vmem:[#allocation5 + $0x1440] sm:$0xff]
    %v893 = vld [vmem:[#allocation5 + $0x1448] sm:$0xff]
    %v894 = vld [vmem:[#allocation5 + $0x1450] sm:$0xff]
    %v895 = vld [vmem:[#allocation5 + $0x1458] sm:$0xff]
    %v896 = vld [vmem:[#allocation5 + $0x1460] sm:$0xff]
    %v897 = vld [vmem:[#allocation5 + $0x1468] sm:$0xff]
    %v898 = vld [vmem:[#allocation5 + $0x1470] sm:$0xff]
    %v899 = vld [vmem:[#allocation5 + $0x1478] sm:$0xff]
    %v900 = vld [vmem:[#allocation5 + $0x1480] sm:$0xff]
    %v901 = vld [vmem:[#allocation5 + $0x1488] sm:$0xff]
    %v902 = vld [vmem:[#allocation5 + $0x1490] sm:$0xff]
    %v903 = vld [vmem:[#allocation5 + $0x1498] sm:$0xff]
    %v904 = vld [vmem:[#allocation5 + $0x14a0] sm:$0xff]
    %v905 = vld [vmem:[#allocation5 + $0x14a8] sm:$0xff]
    %v906 = vld [vmem:[#allocation5 + $0x14b0] sm:$0xff]
    %v907 = vld [vmem:[#allocation5 + $0x14b8] sm:$0xff]
    %v908 = vld [vmem:[#allocation5 + $0x14c0] sm:$0xff]
    %v909 = vld [vmem:[#allocation5 + $0x14c8] sm:$0xff]
    %v910 = vld [vmem:[#allocation5 + $0x14d0] sm:$0xff]
    %v911 = vld [vmem:[#allocation5 + $0x14d8] sm:$0xff]
    %v912 = vld [vmem:[#allocation5 + $0x14e0] sm:$0xff]
    %v913 = vld [vmem:[#allocation5 + $0x14e8] sm:$0xff]
    %v914 = vld [vmem:[#allocation5 + $0x14f0] sm:$0xff]
    %v915 = vld [vmem:[#allocation5 + $0x14f8] sm:$0xff]
    %v916 = vld [vmem:[#allocation5 + $0x1500] sm:$0xff]
    %v917 = vld [vmem:[#allocation5 + $0x1508] sm:$0xff]
    %v918 = vld [vmem:[#allocation5 + $0x1510] sm:$0xff]
    %v919 = vld [vmem:[#allocation5 + $0x1518] sm:$0xff]
    %v920 = vld [vmem:[#allocation5 + $0x1520] sm:$0xff]
    %v921 = vld [vmem:[#allocation5 + $0x1528] sm:$0xff]
    %v922 = vld [vmem:[#allocation5 + $0x1530] sm:$0xff]
    %v923 = vld [vmem:[#allocation5 + $0x1538] sm:$0xff]
    %v924 = vld [vmem:[#allocation5 + $0x1540] sm:$0xff]
    %v925 = vld [vmem:[#allocation5 + $0x1548] sm:$0xff]
    %v926 = vld [vmem:[#allocation5 + $0x1550] sm:$0xff]
    %v927 = vld [vmem:[#allocation5 + $0x1558] sm:$0xff]
    %v928 = vld [vmem:[#allocation5 + $0x1560] sm:$0xff]
    %v929 = vld [vmem:[#allocation5 + $0x1568] sm:$0xff]
    %v930 = vld [vmem:[#allocation5 + $0x1570] sm:$0xff]
    %v931 = vld [vmem:[#allocation5 + $0x1578] sm:$0xff]
    %v932 = vld [vmem:[#allocation5 + $0x1580] sm:$0xff]
    %v933 = vld [vmem:[#allocation5 + $0x1588] sm:$0xff]
    %v934 = vld [vmem:[#allocation5 + $0x1590] sm:$0xff]
    %v935 = vld [vmem:[#allocation5 + $0x1598] sm:$0xff]
    %v936 = vld [vmem:[#allocation5 + $0x15a0] sm:$0xff]
    %v937 = vld [vmem:[#allocation5 + $0x15a8] sm:$0xff]
    %v938 = vld [vmem:[#allocation5 + $0x15b0] sm:$0xff]
    %v939 = vld [vmem:[#allocation5 + $0x15b8] sm:$0xff]
    %v940 = vld [vmem:[#allocation5 + $0x15c0] sm:$0xff]
    %v941 = vld [vmem:[#allocation5 + $0x15c8] sm:$0xff]
    %v942 = vld [vmem:[#allocation5 + $0x15d0] sm:$0xff]
    %v943 = vld [vmem:[#allocation5 + $0x15d8] sm:$0xff]
    %v944 = vld [vmem:[#allocation5 + $0x15e0] sm:$0xff]
    %v945 = vld [vmem:[#allocation5 + $0x15e8] sm:$0xff]
    %v946 = vld [vmem:[#allocation5 + $0x15f0] sm:$0xff]
    %v947 = vld [vmem:[#allocation5 + $0x15f8] sm:$0xff]
    %v948 = vld [vmem:[#allocation5 + $0x1600] sm:$0xff]
    %v949 = vld [vmem:[#allocation5 + $0x1608] sm:$0xff]
    %v950 = vld [vmem:[#allocation5 + $0x1610] sm:$0xff]
    %v951 = vld [vmem:[#allocation5 + $0x1618] sm:$0xff]
    %v952 = vld [vmem:[#allocation5 + $0x1620] sm:$0xff]
    %v953 = vld [vmem:[#allocation5 + $0x1628] sm:$0xff]
    %v954 = vld [vmem:[#allocation5 + $0x1630] sm:$0xff]
    %v955 = vld [vmem:[#allocation5 + $0x1638] sm:$0xff]
    %v956 = vld [vmem:[#allocation5 + $0x1640] sm:$0xff]
    %v957 = vld [vmem:[#allocation5 + $0x1648] sm:$0xff]
    %v958 = vld [vmem:[#allocation5 + $0x1650] sm:$0xff]
    %v959 = vld [vmem:[#allocation5 + $0x1658] sm:$0xff]
    %v960 = vld [vmem:[#allocation5 + $0x1660] sm:$0xff]
    %v961 = vld [vmem:[#allocation5 + $0x1668] sm:$0xff]
    %v962 = vld [vmem:[#allocation5 + $0x1670] sm:$0xff]
    %v963 = vld [vmem:[#allocation5 + $0x1678] sm:$0xff]
    %v964 = vld [vmem:[#allocation5 + $0x1680] sm:$0xff]
    %v965 = vld [vmem:[#allocation5 + $0x1688] sm:$0xff]
    %v966 = vld [vmem:[#allocation5 + $0x1690] sm:$0xff]
    %v967 = vld [vmem:[#allocation5 + $0x1698] sm:$0xff]
    %v968 = vld [vmem:[#allocation5 + $0x16a0] sm:$0xff]
    %v969 = vld [vmem:[#allocation5 + $0x16a8] sm:$0xff]
    %v970 = vld [vmem:[#allocation5 + $0x16b0] sm:$0xff]
    %v971 = vld [vmem:[#allocation5 + $0x16b8] sm:$0xff]
    %v972 = vld [vmem:[#allocation5 + $0x16c0] sm:$0xff]
    %v973 = vld [vmem:[#allocation5 + $0x16c8] sm:$0xff]
    %v974 = vld [vmem:[#allocation5 + $0x16d0] sm:$0xff]
    %v975 = vld [vmem:[#allocation5 + $0x16d8] sm:$0xff]
    %v976 = vld [vmem:[#allocation5 + $0x16e0] sm:$0xff]
    %v977 = vld [vmem:[#allocation5 + $0x16e8] sm:$0xff]
    %v978 = vld [vmem:[#allocation5 + $0x16f0] sm:$0xff]
    %v979 = vld [vmem:[#allocation5 + $0x16f8] sm:$0xff]
    %v980 = vld [vmem:[#allocation5 + $0x1700] sm:$0xff]
    %v981 = vld [vmem:[#allocation5 + $0x1708] sm:$0xff]
    %v982 = vld [vmem:[#allocation5 + $0x1710] sm:$0xff]
    %v983 = vld [vmem:[#allocation5 + $0x1718] sm:$0xff]
    %v984 = vld [vmem:[#allocation5 + $0x1720] sm:$0xff]
    %v985 = vld [vmem:[#allocation5 + $0x1728] sm:$0xff]
    %v986 = vld [vmem:[#allocation5 + $0x1730] sm:$0xff]
    %v987 = vld [vmem:[#allocation5 + $0x1738] sm:$0xff]
    %v988 = vld [vmem:[#allocation5 + $0x1740] sm:$0xff]
    %v989 = vld [vmem:[#allocation5 + $0x1748] sm:$0xff]
    %v990 = vld [vmem:[#allocation5 + $0x1750] sm:$0xff]
    %v991 = vld [vmem:[#allocation5 + $0x1758] sm:$0xff]
    %v992 = vld [vmem:[#allocation5 + $0x1760] sm:$0xff]
    %v993 = vld [vmem:[#allocation5 + $0x1768] sm:$0xff]
    %v994 = vld [vmem:[#allocation5 + $0x1770] sm:$0xff]
    %v995 = vld [vmem:[#allocation5 + $0x1778] sm:$0xff]
    %v996 = vld [vmem:[#allocation5 + $0x1780] sm:$0xff]
    %v997 = vld [vmem:[#allocation5 + $0x1788] sm:$0xff]
    %v998 = vld [vmem:[#allocation5 + $0x1790] sm:$0xff]
    %v999 = vld [vmem:[#allocation5 + $0x1798] sm:$0xff]
    %v1000 = vld [vmem:[#allocation5 + $0x17a0] sm:$0xff]
    %v1001 = vld [vmem:[#allocation5 + $0x17a8] sm:$0xff]
    %v1002 = vld [vmem:[#allocation5 + $0x17b0] sm:$0xff]
    %v1003 = vld [vmem:[#allocation5 + $0x17b8] sm:$0xff]
    %v1004 = vld [vmem:[#allocation5 + $0x17c0] sm:$0xff]
    %v1005 = vld [vmem:[#allocation5 + $0x17c8] sm:$0xff]
    %v1006 = vld [vmem:[#allocation5 + $0x17d0] sm:$0xff]
    %v1007 = vld [vmem:[#allocation5 + $0x17d8] sm:$0xff]
    %v1008 = vld [vmem:[#allocation5 + $0x17e0] sm:$0xff]
    %v1009 = vld [vmem:[#allocation5 + $0x17e8] sm:$0xff]
    %v1010 = vld [vmem:[#allocation5 + $0x17f0] sm:$0xff]
    %v1011 = vld [vmem:[#allocation5 + $0x17f8] sm:$0xff]
    %v1012 = vld [vmem:[#allocation5 + $0x1800] sm:$0xff]
    %v1013 = vld [vmem:[#allocation5 + $0x1808] sm:$0xff]
    %v1014 = vld [vmem:[#allocation5 + $0x1810] sm:$0xff]
    %v1015 = vld [vmem:[#allocation5 + $0x1818] sm:$0xff]
    %v1016 = vld [vmem:[#allocation5 + $0x1820] sm:$0xff]
    %v1017 = vld [vmem:[#allocation5 + $0x1828] sm:$0xff]
    %v1018 = vld [vmem:[#allocation5 + $0x1830] sm:$0xff]
    %v1019 = vld [vmem:[#allocation5 + $0x1838] sm:$0xff]
    %v1020 = vld [vmem:[#allocation5 + $0x1840] sm:$0xff]
    %v1021 = vld [vmem:[#allocation5 + $0x1848] sm:$0xff]
    %v1022 = vld [vmem:[#allocation5 + $0x1850] sm:$0xff]
    %v1023 = vld [vmem:[#allocation5 + $0x1858] sm:$0xff]
    %v1024 = vld [vmem:[#allocation5 + $0x1860] sm:$0xff]
    %v1025 = vld [vmem:[#allocation5 + $0x1868] sm:$0xff]
    %v1026 = vld [vmem:[#allocation5 + $0x1870] sm:$0xff]
    %v1027 = vld [vmem:[#allocation5 + $0x1878] sm:$0xff]
    %v1028 = vld [vmem:[#allocation5 + $0x1880] sm:$0xff]
    %v1029 = vld [vmem:[#allocation5 + $0x1888] sm:$0xff]
    %v1030 = vld [vmem:[#allocation5 + $0x1890] sm:$0xff]
    %v1031 = vld [vmem:[#allocation5 + $0x1898] sm:$0xff]
    %v1032 = vld [vmem:[#allocation5 + $0x18a0] sm:$0xff]
    %v1033 = vld [vmem:[#allocation5 + $0x18a8] sm:$0xff]
    %v1034 = vld [vmem:[#allocation5 + $0x18b0] sm:$0xff]
    %v1035 = vld [vmem:[#allocation5 + $0x18b8] sm:$0xff]
    %v1036 = vld [vmem:[#allocation5 + $0x18c0] sm:$0xff]
    %v1037 = vld [vmem:[#allocation5 + $0x18c8] sm:$0xff]
    %v1038 = vld [vmem:[#allocation5 + $0x18d0] sm:$0xff]
    %v1039 = vld [vmem:[#allocation5 + $0x18d8] sm:$0xff]
    %v1040 = vld [vmem:[#allocation5 + $0x18e0] sm:$0xff]
    %v1041 = vld [vmem:[#allocation5 + $0x18e8] sm:$0xff]
    %v1042 = vld [vmem:[#allocation5 + $0x18f0] sm:$0xff]
    %v1043 = vld [vmem:[#allocation5 + $0x18f8] sm:$0xff]
    %v1044 = vld [vmem:[#allocation5 + $0x1900] sm:$0xff]
    %v1045 = vld [vmem:[#allocation5 + $0x1908] sm:$0xff]
    %v1046 = vld [vmem:[#allocation5 + $0x1910] sm:$0xff]
    %v1047 = vld [vmem:[#allocation5 + $0x1918] sm:$0xff]
    %v1048 = vld [vmem:[#allocation5 + $0x1920] sm:$0xff]
    %v1049 = vld [vmem:[#allocation5 + $0x1928] sm:$0xff]
    %v1050 = vld [vmem:[#allocation5 + $0x1930] sm:$0xff]
    %v1051 = vld [vmem:[#allocation5 + $0x1938] sm:$0xff]
    %v1052 = vld [vmem:[#allocation5 + $0x1940] sm:$0xff]
    %v1053 = vld [vmem:[#allocation5 + $0x1948] sm:$0xff]
    %v1054 = vld [vmem:[#allocation5 + $0x1950] sm:$0xff]
    %v1055 = vld [vmem:[#allocation5 + $0x1958] sm:$0xff]
    %v1056 = vld [vmem:[#allocation5 + $0x1960] sm:$0xff]
    %v1057 = vld [vmem:[#allocation5 + $0x1968] sm:$0xff]
    %v1058 = vld [vmem:[#allocation5 + $0x1970] sm:$0xff]
    %v1059 = vld [vmem:[#allocation5 + $0x1978] sm:$0xff]
    %v1060 = vld [vmem:[#allocation5 + $0x1980] sm:$0xff]
    %v1061 = vld [vmem:[#allocation5 + $0x1988] sm:$0xff]
    %v1062 = vld [vmem:[#allocation5 + $0x1990] sm:$0xff]
    %v1063 = vld [vmem:[#allocation5 + $0x1998] sm:$0xff]
    %v1064 = vld [vmem:[#allocation5 + $0x19a0] sm:$0xff]
    %v1065 = vld [vmem:[#allocation5 + $0x19a8] sm:$0xff]
    %v1066 = vld [vmem:[#allocation5 + $0x19b0] sm:$0xff]
    %v1067 = vld [vmem:[#allocation5 + $0x19b8] sm:$0xff]
    %v1068 = vld [vmem:[#allocation5 + $0x19c0] sm:$0xff]
    %v1069 = vld [vmem:[#allocation5 + $0x19c8] sm:$0xff]
    %v1070 = vld [vmem:[#allocation5 + $0x19d0] sm:$0xff]
    %v1071 = vld [vmem:[#allocation5 + $0x19d8] sm:$0xff]
    %v1072 = vld [vmem:[#allocation5 + $0x19e0] sm:$0xff]
    %v1073 = vld [vmem:[#allocation5 + $0x19e8] sm:$0xff]
    %v1074 = vld [vmem:[#allocation5 + $0x19f0] sm:$0xff]
    %v1075 = vld [vmem:[#allocation5 + $0x19f8] sm:$0xff]
    %v1076 = vld [vmem:[#allocation5 + $0x1a00] sm:$0xff]
    %v1077 = vld [vmem:[#allocation5 + $0x1a08] sm:$0xff]
    %v1078 = vld [vmem:[#allocation5 + $0x1a10] sm:$0xff]
    %v1079 = vld [vmem:[#allocation5 + $0x1a18] sm:$0xff]
    %v1080 = vld [vmem:[#allocation5 + $0x1a20] sm:$0xff]
    %v1081 = vld [vmem:[#allocation5 + $0x1a28] sm:$0xff]
    %v1082 = vld [vmem:[#allocation5 + $0x1a30] sm:$0xff]
    %v1083 = vld [vmem:[#allocation5 + $0x1a38] sm:$0xff]
    %v1084 = vld [vmem:[#allocation5 + $0x1a40] sm:$0xff]
    %v1085 = vld [vmem:[#allocation5 + $0x1a48] sm:$0xff]
    %v1086 = vld [vmem:[#allocation5 + $0x1a50] sm:$0xff]
    %v1087 = vld [vmem:[#allocation5 + $0x1a58] sm:$0xff]
    %v1088 = vld [vmem:[#allocation5 + $0x1a60] sm:$0xff]
    %v1089 = vld [vmem:[#allocation5 + $0x1a68] sm:$0xff]
    %v1090 = vld [vmem:[#allocation5 + $0x1a70] sm:$0xff]
    %v1091 = vld [vmem:[#allocation5 + $0x1a78] sm:$0xff]
    %v1092 = vld [vmem:[#allocation5 + $0x1a80] sm:$0xff]
    %v1093 = vld [vmem:[#allocation5 + $0x1a88] sm:$0xff]
    %v1094 = vld [vmem:[#allocation5 + $0x1a90] sm:$0xff]
    %v1095 = vld [vmem:[#allocation5 + $0x1a98] sm:$0xff]
    %v1096 = vld [vmem:[#allocation5 + $0x1aa0] sm:$0xff]
    %v1097 = vld [vmem:[#allocation5 + $0x1aa8] sm:$0xff]
    %v1098 = vld [vmem:[#allocation5 + $0x1ab0] sm:$0xff]
    %v1099 = vld [vmem:[#allocation5 + $0x1ab8] sm:$0xff]
    %v1100 = vld [vmem:[#allocation5 + $0x1ac0] sm:$0xff]
    %v1101 = vld [vmem:[#allocation5 + $0x1ac8] sm:$0xff]
    %v1102 = vld [vmem:[#allocation5 + $0x1ad0] sm:$0xff]
    %v1103 = vld [vmem:[#allocation5 + $0x1ad8] sm:$0xff]
    %v1104 = vld [vmem:[#allocation5 + $0x1ae0] sm:$0xff]
    %v1105 = vld [vmem:[#allocation5 + $0x1ae8] sm:$0xff]
    %v1106 = vld [vmem:[#allocation5 + $0x1af0] sm:$0xff]
    %v1107 = vld [vmem:[#allocation5 + $0x1af8] sm:$0xff]
    %v1108 = vld [vmem:[#allocation5 + $0x1b00] sm:$0xff]
    %v1109 = vld [vmem:[#allocation5 + $0x1b08] sm:$0xff]
    %v1110 = vld [vmem:[#allocation5 + $0x1b10] sm:$0xff]
    %v1111 = vld [vmem:[#allocation5 + $0x1b18] sm:$0xff]
    %v1112 = vld [vmem:[#allocation5 + $0x1b20] sm:$0xff]
    %v1113 = vld [vmem:[#allocation5 + $0x1b28] sm:$0xff]
    %v1114 = vld [vmem:[#allocation5 + $0x1b30] sm:$0xff]
    %v1115 = vld [vmem:[#allocation5 + $0x1b38] sm:$0xff]
    %v1116 = vld [vmem:[#allocation5 + $0x1b40] sm:$0xff]
    %v1117 = vld [vmem:[#allocation5 + $0x1b48] sm:$0xff]
    %v1118 = vld [vmem:[#allocation5 + $0x1b50] sm:$0xff]
    %v1119 = vld [vmem:[#allocation5 + $0x1b58] sm:$0xff]
    %v1120 = vld [vmem:[#allocation5 + $0x1b60] sm:$0xff]
    %v1121 = vld [vmem:[#allocation5 + $0x1b68] sm:$0xff]
    %v1122 = vld [vmem:[#allocation5 + $0x1b70] sm:$0xff]
    %v1123 = vld [vmem:[#allocation5 + $0x1b78] sm:$0xff]
    %v1124 = vld [vmem:[#allocation5 + $0x1b80] sm:$0xff]
    %v1125 = vld [vmem:[#allocation5 + $0x1b88] sm:$0xff]
    %v1126 = vld [vmem:[#allocation5 + $0x1b90] sm:$0xff]
    %v1127 = vld [vmem:[#allocation5 + $0x1b98] sm:$0xff]
    %v1128 = vld [vmem:[#allocation5 + $0x1ba0] sm:$0xff]
    %v1129 = vld [vmem:[#allocation5 + $0x1ba8] sm:$0xff]
    %v1130 = vld [vmem:[#allocation5 + $0x1bb0] sm:$0xff]
    %v1131 = vld [vmem:[#allocation5 + $0x1bb8] sm:$0xff]
    %v1132 = vld [vmem:[#allocation5 + $0x1bc0] sm:$0xff]
    %v1133 = vld [vmem:[#allocation5 + $0x1bc8] sm:$0xff]
    %v1134 = vld [vmem:[#allocation5 + $0x1bd0] sm:$0xff]
    %v1135 = vld [vmem:[#allocation5 + $0x1bd8] sm:$0xff]
    %v1136 = vld [vmem:[#allocation5 + $0x1be0] sm:$0xff]
    %v1137 = vld [vmem:[#allocation5 + $0x1be8] sm:$0xff]
    %v1138 = vld [vmem:[#allocation5 + $0x1bf0] sm:$0xff]
    %v1139 = vld [vmem:[#allocation5 + $0x1bf8] sm:$0xff]
    %v1140 = vld [vmem:[#allocation5 + $0x1c00] sm:$0xff]
    %v1141 = vld [vmem:[#allocation5 + $0x1c08] sm:$0xff]
    %v1142 = vld [vmem:[#allocation5 + $0x1c10] sm:$0xff]
    %v1143 = vld [vmem:[#allocation5 + $0x1c18] sm:$0xff]
    %v1144 = vld [vmem:[#allocation5 + $0x1c20] sm:$0xff]
    %v1145 = vld [vmem:[#allocation5 + $0x1c28] sm:$0xff]
    %v1146 = vld [vmem:[#allocation5 + $0x1c30] sm:$0xff]
    %v1147 = vld [vmem:[#allocation5 + $0x1c38] sm:$0xff]
    %v1148 = vld [vmem:[#allocation5 + $0x1c40] sm:$0xff]
    %v1149 = vld [vmem:[#allocation5 + $0x1c48] sm:$0xff]
    %v1150 = vld [vmem:[#allocation5 + $0x1c50] sm:$0xff]
    %v1151 = vld [vmem:[#allocation5 + $0x1c58] sm:$0xff]
    %v1152 = vld [vmem:[#allocation5 + $0x1c60] sm:$0xff]
    %v1153 = vld [vmem:[#allocation5 + $0x1c68] sm:$0xff]
    %v1154 = vld [vmem:[#allocation5 + $0x1c70] sm:$0xff]
    %v1155 = vld [vmem:[#allocation5 + $0x1c78] sm:$0xff]
    %v1156 = vld [vmem:[#allocation5 + $0x1c80] sm:$0xff]
    %v1157 = vld [vmem:[#allocation5 + $0x1c88] sm:$0xff]
    %v1158 = vld [vmem:[#allocation5 + $0x1c90] sm:$0xff]
    %v1159 = vld [vmem:[#allocation5 + $0x1c98] sm:$0xff]
    %v1160 = vld [vmem:[#allocation5 + $0x1ca0] sm:$0xff]
    %v1161 = vld [vmem:[#allocation5 + $0x1ca8] sm:$0xff]
    %v1162 = vld [vmem:[#allocation5 + $0x1cb0] sm:$0xff]
    %v1163 = vld [vmem:[#allocation5 + $0x1cb8] sm:$0xff]
    %v1164 = vld [vmem:[#allocation5 + $0x1cc0] sm:$0xff]
    %v1165 = vld [vmem:[#allocation5 + $0x1cc8] sm:$0xff]
    %v1166 = vld [vmem:[#allocation5 + $0x1cd0] sm:$0xff]
    %v1167 = vld [vmem:[#allocation5 + $0x1cd8] sm:$0xff]
    %v1168 = vld [vmem:[#allocation5 + $0x1ce0] sm:$0xff]
    %v1169 = vld [vmem:[#allocation5 + $0x1ce8] sm:$0xff]
    %v1170 = vld [vmem:[#allocation5 + $0x1cf0] sm:$0xff]
    %v1171 = vld [vmem:[#allocation5 + $0x1cf8] sm:$0xff]
    %v1172 = vld [vmem:[#allocation5 + $0x1d00] sm:$0xff]
    %v1173 = vld [vmem:[#allocation5 + $0x1d08] sm:$0xff]
    %v1174 = vld [vmem:[#allocation5 + $0x1d10] sm:$0xff]
    %v1175 = vld [vmem:[#allocation5 + $0x1d18] sm:$0xff]
    %v1176 = vld [vmem:[#allocation5 + $0x1d20] sm:$0xff]
    %v1177 = vld [vmem:[#allocation5 + $0x1d28] sm:$0xff]
    %v1178 = vld [vmem:[#allocation5 + $0x1d30] sm:$0xff]
    %v1179 = vld [vmem:[#allocation5 + $0x1d38] sm:$0xff]
    %v1180 = vld [vmem:[#allocation5 + $0x1d40] sm:$0xff]
    %v1181 = vld [vmem:[#allocation5 + $0x1d48] sm:$0xff]
    %v1182 = vld [vmem:[#allocation5 + $0x1d50] sm:$0xff]
    %v1183 = vld [vmem:[#allocation5 + $0x1d58] sm:$0xff]
    %v1184 = vld [vmem:[#allocation5 + $0x1d60] sm:$0xff]
    %v1185 = vld [vmem:[#allocation5 + $0x1d68] sm:$0xff]
    %v1186 = vld [vmem:[#allocation5 + $0x1d70] sm:$0xff]
    %v1187 = vld [vmem:[#allocation5 + $0x1d78] sm:$0xff]
    %v1188 = vld [vmem:[#allocation5 + $0x1d80] sm:$0xff]
    %v1189 = vld [vmem:[#allocation5 + $0x1d88] sm:$0xff]
    %v1190 = vld [vmem:[#allocation5 + $0x1d90] sm:$0xff]
    %v1191 = vld [vmem:[#allocation5 + $0x1d98] sm:$0xff]
    %v1192 = vld [vmem:[#allocation5 + $0x1da0] sm:$0xff]
    %v1193 = vld [vmem:[#allocation5 + $0x1da8] sm:$0xff]
    %v1194 = vld [vmem:[#allocation5 + $0x1db0] sm:$0xff]
    %v1195 = vld [vmem:[#allocation5 + $0x1db8] sm:$0xff]
    %v1196 = vld [vmem:[#allocation5 + $0x1dc0] sm:$0xff]
    %v1197 = vld [vmem:[#allocation5 + $0x1dc8] sm:$0xff]
    %v1198 = vld [vmem:[#allocation5 + $0x1dd0] sm:$0xff]
    %v1199 = vld [vmem:[#allocation5 + $0x1dd8] sm:$0xff]
    %v1200 = vld [vmem:[#allocation5 + $0x1de0] sm:$0xff]
    %v1201 = vld [vmem:[#allocation5 + $0x1de8] sm:$0xff]
    %v1202 = vld [vmem:[#allocation5 + $0x1df0] sm:$0xff]
    %v1203 = vld [vmem:[#allocation5 + $0x1df8] sm:$0xff]
    %v1204 = vld [vmem:[#allocation5 + $0x1e00] sm:$0xff]
    %v1205 = vld [vmem:[#allocation5 + $0x1e08] sm:$0xff]
    %v1206 = vld [vmem:[#allocation5 + $0x1e10] sm:$0xff]
    %v1207 = vld [vmem:[#allocation5 + $0x1e18] sm:$0xff]
    %v1208 = vld [vmem:[#allocation5 + $0x1e20] sm:$0xff]
    %v1209 = vld [vmem:[#allocation5 + $0x1e28] sm:$0xff]
    %v1210 = vld [vmem:[#allocation5 + $0x1e30] sm:$0xff]
    %v1211 = vld [vmem:[#allocation5 + $0x1e38] sm:$0xff]
    %v1212 = vld [vmem:[#allocation5 + $0x1e40] sm:$0xff]
    %v1213 = vld [vmem:[#allocation5 + $0x1e48] sm:$0xff]
    %v1214 = vld [vmem:[#allocation5 + $0x1e50] sm:$0xff]
    %v1215 = vld [vmem:[#allocation5 + $0x1e58] sm:$0xff]
    %v1216 = vld [vmem:[#allocation5 + $0x1e60] sm:$0xff]
    %v1217 = vld [vmem:[#allocation5 + $0x1e68] sm:$0xff]
    %v1218 = vld [vmem:[#allocation5 + $0x1e70] sm:$0xff]
    %v1219 = vld [vmem:[#allocation5 + $0x1e78] sm:$0xff]
    %v1220 = vld [vmem:[#allocation5 + $0x1e80] sm:$0xff]
    %v1221 = vld [vmem:[#allocation5 + $0x1e88] sm:$0xff]
    %v1222 = vld [vmem:[#allocation5 + $0x1e90] sm:$0xff]
    %v1223 = vld [vmem:[#allocation5 + $0x1e98] sm:$0xff]
    %v1224 = vld [vmem:[#allocation5 + $0x1ea0] sm:$0xff]
    %v1225 = vld [vmem:[#allocation5 + $0x1ea8] sm:$0xff]
    %v1226 = vld [vmem:[#allocation5 + $0x1eb0] sm:$0xff]
    %v1227 = vld [vmem:[#allocation5 + $0x1eb8] sm:$0xff]
    %v1228 = vld [vmem:[#allocation5 + $0x1ec0] sm:$0xff]
    %v1229 = vld [vmem:[#allocation5 + $0x1ec8] sm:$0xff]
    %v1230 = vld [vmem:[#allocation5 + $0x1ed0] sm:$0xff]
    %v1231 = vld [vmem:[#allocation5 + $0x1ed8] sm:$0xff]
    %v1232 = vld [vmem:[#allocation5 + $0x1ee0] sm:$0xff]
    %v1233 = vld [vmem:[#allocation5 + $0x1ee8] sm:$0xff]
    %v1234 = vld [vmem:[#allocation5 + $0x1ef0] sm:$0xff]
    %v1235 = vld [vmem:[#allocation5 + $0x1ef8] sm:$0xff]
    %v1236 = vld [vmem:[#allocation5 + $0x1f00] sm:$0xff]
    %v1237 = vld [vmem:[#allocation5 + $0x1f08] sm:$0xff]
    %v1238 = vld [vmem:[#allocation5 + $0x1f10] sm:$0xff]
    %v1239 = vld [vmem:[#allocation5 + $0x1f18] sm:$0xff]
    %v1240 = vld [vmem:[#allocation5 + $0x1f20] sm:$0xff]
    %v1241 = vld [vmem:[#allocation5 + $0x1f28] sm:$0xff]
    %v1242 = vld [vmem:[#allocation5 + $0x1f30] sm:$0xff]
    %v1243 = vld [vmem:[#allocation5 + $0x1f38] sm:$0xff]
    %v1244 = vld [vmem:[#allocation5 + $0x1f40] sm:$0xff]
    %v1245 = vld [vmem:[#allocation5 + $0x1f48] sm:$0xff]
    %v1246 = vld [vmem:[#allocation5 + $0x1f50] sm:$0xff]
    %v1247 = vld [vmem:[#allocation5 + $0x1f58] sm:$0xff]
    %v1248 = vld [vmem:[#allocation5 + $0x1f60] sm:$0xff]
    %v1249 = vld [vmem:[#allocation5 + $0x1f68] sm:$0xff]
    %v1250 = vld [vmem:[#allocation5 + $0x1f70] sm:$0xff]
    %v1251 = vld [vmem:[#allocation5 + $0x1f78] sm:$0xff]
    %v1252 = vld [vmem:[#allocation5 + $0x1f80] sm:$0xff]
    %v1253 = vld [vmem:[#allocation5 + $0x1f88] sm:$0xff]
    %v1254 = vld [vmem:[#allocation5 + $0x1f90] sm:$0xff]
    %v1255 = vld [vmem:[#allocation5 + $0x1f98] sm:$0xff]
    %v1256 = vld [vmem:[#allocation5 + $0x1fa0] sm:$0xff]
    %v1257 = vld [vmem:[#allocation5 + $0x1fa8] sm:$0xff]
    %v1258 = vld [vmem:[#allocation5 + $0x1fb0] sm:$0xff]
    %v1259 = vld [vmem:[#allocation5 + $0x1fb8] sm:$0xff]
    %v1260 = vld [vmem:[#allocation5 + $0x1fc0] sm:$0xff]
    %v1261 = vld [vmem:[#allocation5 + $0x1fc8] sm:$0xff]
    %v1262 = vld [vmem:[#allocation5 + $0x1fd0] sm:$0xff]
    %v1263 = vld [vmem:[#allocation5 + $0x1fd8] sm:$0xff]
    %v1264 = vld [vmem:[#allocation5 + $0x1fe0] sm:$0xff]
    %v1265 = vld [vmem:[#allocation5 + $0x1fe8] sm:$0xff]
    %v1266 = vld [vmem:[#allocation5 + $0x1ff0] sm:$0xff]
    %v1267 = vld [vmem:[#allocation5 + $0x1ff8] sm:$0xff]
    %v1268 = vld [vmem:[#allocation7] sm:$0xff]
    %v1269 = vld [vmem:[#allocation7 + $0x8] sm:$0xff]
    %v1270 = vld [vmem:[#allocation7 + $0x10] sm:$0xff]
    %v1271 = vld [vmem:[#allocation7 + $0x18] sm:$0xff]
    %v1272 = vld [vmem:[#allocation7 + $0x20] sm:$0xff]
    %v1273 = vld [vmem:[#allocation7 + $0x28] sm:$0xff]
    %v1274 = vld [vmem:[#allocation7 + $0x30] sm:$0xff]
    %v1275 = vld [vmem:[#allocation7 + $0x38] sm:$0xff]
    %v1276 = vld [vmem:[#allocation7 + $0x40] sm:$0xff]
    %v1277 = vld [vmem:[#allocation7 + $0x48] sm:$0xff]
    %v1278 = vld [vmem:[#allocation7 + $0x50] sm:$0xff]
    %v1279 = vld [vmem:[#allocation7 + $0x58] sm:$0xff]
    %v1280 = vld [vmem:[#allocation7 + $0x60] sm:$0xff]
    %v1281 = vld [vmem:[#allocation7 + $0x68] sm:$0xff]
    %v1282 = vld [vmem:[#allocation7 + $0x70] sm:$0xff]
    %v1283 = vld [vmem:[#allocation7 + $0x78] sm:$0xff]
    %v1284 = vld [vmem:[#allocation7 + $0x80] sm:$0xff]
    %v1285 = vld [vmem:[#allocation7 + $0x88] sm:$0xff]
    %v1286 = vld [vmem:[#allocation7 + $0x90] sm:$0xff]
    %v1287 = vld [vmem:[#allocation7 + $0x98] sm:$0xff]
    %v1288 = vld [vmem:[#allocation7 + $0xa0] sm:$0xff]
    %v1289 = vld [vmem:[#allocation7 + $0xa8] sm:$0xff]
    %v1290 = vld [vmem:[#allocation7 + $0xb0] sm:$0xff]
    %v1291 = vld [vmem:[#allocation7 + $0xb8] sm:$0xff]
    %v1292 = vld [vmem:[#allocation7 + $0xc0] sm:$0xff]
    %v1293 = vld [vmem:[#allocation7 + $0xc8] sm:$0xff]
    %v1294 = vld [vmem:[#allocation7 + $0xd0] sm:$0xff]
    %v1295 = vld [vmem:[#allocation7 + $0xd8] sm:$0xff]
    %v1296 = vld [vmem:[#allocation7 + $0xe0] sm:$0xff]
    %v1297 = vld [vmem:[#allocation7 + $0xe8] sm:$0xff]
    %v1298 = vld [vmem:[#allocation7 + $0xf0] sm:$0xff]
    %v1299 = vld [vmem:[#allocation7 + $0xf8] sm:$0xff]
    %v1300 = vld [vmem:[#allocation7 + $0x100] sm:$0xff]
    %v1301 = vld [vmem:[#allocation7 + $0x108] sm:$0xff]
    %v1302 = vld [vmem:[#allocation7 + $0x110] sm:$0xff]
    %v1303 = vld [vmem:[#allocation7 + $0x118] sm:$0xff]
    %v1304 = vld [vmem:[#allocation7 + $0x120] sm:$0xff]
    %v1305 = vld [vmem:[#allocation7 + $0x128] sm:$0xff]
    %v1306 = vld [vmem:[#allocation7 + $0x130] sm:$0xff]
    %v1307 = vld [vmem:[#allocation7 + $0x138] sm:$0xff]
    %v1308 = vld [vmem:[#allocation7 + $0x140] sm:$0xff]
    %v1309 = vld [vmem:[#allocation7 + $0x148] sm:$0xff]
    %v1310 = vld [vmem:[#allocation7 + $0x150] sm:$0xff]
    %v1311 = vld [vmem:[#allocation7 + $0x158] sm:$0xff]
    %v1312 = vld [vmem:[#allocation7 + $0x160] sm:$0xff]
    %v1313 = vld [vmem:[#allocation7 + $0x168] sm:$0xff]
    %v1314 = vld [vmem:[#allocation7 + $0x170] sm:$0xff]
    %v1315 = vld [vmem:[#allocation7 + $0x178] sm:$0xff]
    %v1316 = vld [vmem:[#allocation7 + $0x180] sm:$0xff]
    %v1317 = vld [vmem:[#allocation7 + $0x188] sm:$0xff]
    %v1318 = vld [vmem:[#allocation7 + $0x190] sm:$0xff]
    %v1319 = vld [vmem:[#allocation7 + $0x198] sm:$0xff]
    %v1320 = vld [vmem:[#allocation7 + $0x1a0] sm:$0xff]
    %v1321 = vld [vmem:[#allocation7 + $0x1a8] sm:$0xff]
    %v1322 = vld [vmem:[#allocation7 + $0x1b0] sm:$0xff]
    %v1323 = vld [vmem:[#allocation7 + $0x1b8] sm:$0xff]
    %v1324 = vld [vmem:[#allocation7 + $0x1c0] sm:$0xff]
    %v1325 = vld [vmem:[#allocation7 + $0x1c8] sm:$0xff]
    %v1326 = vld [vmem:[#allocation7 + $0x1d0] sm:$0xff]
    %v1327 = vld [vmem:[#allocation7 + $0x1d8] sm:$0xff]
    %v1328 = vld [vmem:[#allocation7 + $0x1e0] sm:$0xff]
    %v1329 = vld [vmem:[#allocation7 + $0x1e8] sm:$0xff]
    %v1330 = vld [vmem:[#allocation7 + $0x1f0] sm:$0xff]
    %v1331 = vld [vmem:[#allocation7 + $0x1f8] sm:$0xff]
    %v1332 = vld [vmem:[#allocation7 + $0x200] sm:$0xff]
    %v1333 = vld [vmem:[#allocation7 + $0x208] sm:$0xff]
    %v1334 = vld [vmem:[#allocation7 + $0x210] sm:$0xff]
    %v1335 = vld [vmem:[#allocation7 + $0x218] sm:$0xff]
    %v1336 = vld [vmem:[#allocation7 + $0x220] sm:$0xff]
    %v1337 = vld [vmem:[#allocation7 + $0x228] sm:$0xff]
    %v1338 = vld [vmem:[#allocation7 + $0x230] sm:$0xff]
    %v1339 = vld [vmem:[#allocation7 + $0x238] sm:$0xff]
    %v1340 = vld [vmem:[#allocation7 + $0x240] sm:$0xff]
    %v1341 = vld [vmem:[#allocation7 + $0x248] sm:$0xff]
    %v1342 = vld [vmem:[#allocation7 + $0x250] sm:$0xff]
    %v1343 = vld [vmem:[#allocation7 + $0x258] sm:$0xff]
    %v1344 = vld [vmem:[#allocation7 + $0x260] sm:$0xff]
    %v1345 = vld [vmem:[#allocation7 + $0x268] sm:$0xff]
    %v1346 = vld [vmem:[#allocation7 + $0x270] sm:$0xff]
    %v1347 = vld [vmem:[#allocation7 + $0x278] sm:$0xff]
    %v1348 = vld [vmem:[#allocation7 + $0x280] sm:$0xff]
    %v1349 = vld [vmem:[#allocation7 + $0x288] sm:$0xff]
    %v1350 = vld [vmem:[#allocation7 + $0x290] sm:$0xff]
    %v1351 = vld [vmem:[#allocation7 + $0x298] sm:$0xff]
    %v1352 = vld [vmem:[#allocation7 + $0x2a0] sm:$0xff]
    %v1353 = vld [vmem:[#allocation7 + $0x2a8] sm:$0xff]
    %v1354 = vld [vmem:[#allocation7 + $0x2b0] sm:$0xff]
    %v1355 = vld [vmem:[#allocation7 + $0x2b8] sm:$0xff]
    %v1356 = vld [vmem:[#allocation7 + $0x2c0] sm:$0xff]
    %v1357 = vld [vmem:[#allocation7 + $0x2c8] sm:$0xff]
    %v1358 = vld [vmem:[#allocation7 + $0x2d0] sm:$0xff]
    %v1359 = vld [vmem:[#allocation7 + $0x2d8] sm:$0xff]
    %v1360 = vld [vmem:[#allocation7 + $0x2e0] sm:$0xff]
    %v1361 = vld [vmem:[#allocation7 + $0x2e8] sm:$0xff]
    %v1362 = vld [vmem:[#allocation7 + $0x2f0] sm:$0xff]
    %v1363 = vld [vmem:[#allocation7 + $0x2f8] sm:$0xff]
    %v1364 = vld [vmem:[#allocation7 + $0x300] sm:$0xff]
    %v1365 = vld [vmem:[#allocation7 + $0x308] sm:$0xff]
    %v1366 = vld [vmem:[#allocation7 + $0x310] sm:$0xff]
    %v1367 = vld [vmem:[#allocation7 + $0x318] sm:$0xff]
    %v1368 = vld [vmem:[#allocation7 + $0x320] sm:$0xff]
    %v1369 = vld [vmem:[#allocation7 + $0x328] sm:$0xff]
    %v1370 = vld [vmem:[#allocation7 + $0x330] sm:$0xff]
    %v1371 = vld [vmem:[#allocation7 + $0x338] sm:$0xff]
    %v1372 = vld [vmem:[#allocation7 + $0x340] sm:$0xff]
    %v1373 = vld [vmem:[#allocation7 + $0x348] sm:$0xff]
    %v1374 = vld [vmem:[#allocation7 + $0x350] sm:$0xff]
    %v1375 = vld [vmem:[#allocation7 + $0x358] sm:$0xff]
    %v1376 = vld [vmem:[#allocation7 + $0x360] sm:$0xff]
    %v1377 = vld [vmem:[#allocation7 + $0x368] sm:$0xff]
    %v1378 = vld [vmem:[#allocation7 + $0x370] sm:$0xff]
    %v1379 = vld [vmem:[#allocation7 + $0x378] sm:$0xff]
    %v1380 = vld [vmem:[#allocation7 + $0x380] sm:$0xff]
    %v1381 = vld [vmem:[#allocation7 + $0x388] sm:$0xff]
    %v1382 = vld [vmem:[#allocation7 + $0x390] sm:$0xff]
    %v1383 = vld [vmem:[#allocation7 + $0x398] sm:$0xff]
    %v1384 = vld [vmem:[#allocation7 + $0x3a0] sm:$0xff]
    %v1385 = vld [vmem:[#allocation7 + $0x3a8] sm:$0xff]
    %v1386 = vld [vmem:[#allocation7 + $0x3b0] sm:$0xff]
    %v1387 = vld [vmem:[#allocation7 + $0x3b8] sm:$0xff]
    %v1388 = vld [vmem:[#allocation7 + $0x3c0] sm:$0xff]
    %v1389 = vld [vmem:[#allocation7 + $0x3c8] sm:$0xff]
    %v1390 = vld [vmem:[#allocation7 + $0x3d0] sm:$0xff]
    %v1391 = vld [vmem:[#allocation7 + $0x3d8] sm:$0xff]
    %v1392 = vld [vmem:[#allocation7 + $0x3e0] sm:$0xff]
    %v1393 = vld [vmem:[#allocation7 + $0x3e8] sm:$0xff]
    %v1394 = vld [vmem:[#allocation7 + $0x3f0] sm:$0xff]
    %v1395 = vld [vmem:[#allocation7 + $0x3f8] sm:$0xff]
    %v1396 = vld [vmem:[#allocation7 + $0x400] sm:$0xff]
    %v1397 = vld [vmem:[#allocation7 + $0x408] sm:$0xff]
    %v1398 = vld [vmem:[#allocation7 + $0x410] sm:$0xff]
    %v1399 = vld [vmem:[#allocation7 + $0x418] sm:$0xff]
    %v1400 = vld [vmem:[#allocation7 + $0x420] sm:$0xff]
    %v1401 = vld [vmem:[#allocation7 + $0x428] sm:$0xff]
    %v1402 = vld [vmem:[#allocation7 + $0x430] sm:$0xff]
    %v1403 = vld [vmem:[#allocation7 + $0x438] sm:$0xff]
    %v1404 = vld [vmem:[#allocation7 + $0x440] sm:$0xff]
    %v1405 = vld [vmem:[#allocation7 + $0x448] sm:$0xff]
    %v1406 = vld [vmem:[#allocation7 + $0x450] sm:$0xff]
    %v1407 = vld [vmem:[#allocation7 + $0x458] sm:$0xff]
    %v1408 = vld [vmem:[#allocation7 + $0x460] sm:$0xff]
    %v1409 = vld [vmem:[#allocation7 + $0x468] sm:$0xff]
    %v1410 = vld [vmem:[#allocation7 + $0x470] sm:$0xff]
    %v1411 = vld [vmem:[#allocation7 + $0x478] sm:$0xff]
    %v1412 = vld [vmem:[#allocation7 + $0x480] sm:$0xff]
    %v1413 = vld [vmem:[#allocation7 + $0x488] sm:$0xff]
    %v1414 = vld [vmem:[#allocation7 + $0x490] sm:$0xff]
    %v1415 = vld [vmem:[#allocation7 + $0x498] sm:$0xff]
    %v1416 = vld [vmem:[#allocation7 + $0x4a0] sm:$0xff]
    %v1417 = vld [vmem:[#allocation7 + $0x4a8] sm:$0xff]
    %v1418 = vld [vmem:[#allocation7 + $0x4b0] sm:$0xff]
    %v1419 = vld [vmem:[#allocation7 + $0x4b8] sm:$0xff]
    %v1420 = vld [vmem:[#allocation7 + $0x4c0] sm:$0xff]
    %v1421 = vld [vmem:[#allocation7 + $0x4c8] sm:$0xff]
    %v1422 = vld [vmem:[#allocation7 + $0x4d0] sm:$0xff]
    %v1423 = vld [vmem:[#allocation7 + $0x4d8] sm:$0xff]
    %v1424 = vld [vmem:[#allocation7 + $0x4e0] sm:$0xff]
    %v1425 = vld [vmem:[#allocation7 + $0x4e8] sm:$0xff]
    %v1426 = vld [vmem:[#allocation7 + $0x4f0] sm:$0xff]
    %v1427 = vld [vmem:[#allocation7 + $0x4f8] sm:$0xff]
    %v1428 = vld [vmem:[#allocation7 + $0x500] sm:$0xff]
    %v1429 = vld [vmem:[#allocation7 + $0x508] sm:$0xff]
    %v1430 = vld [vmem:[#allocation7 + $0x510] sm:$0xff]
    %v1431 = vld [vmem:[#allocation7 + $0x518] sm:$0xff]
    %v1432 = vld [vmem:[#allocation7 + $0x520] sm:$0xff]
    %v1433 = vld [vmem:[#allocation7 + $0x528] sm:$0xff]
    %v1434 = vld [vmem:[#allocation7 + $0x530] sm:$0xff]
    %v1435 = vld [vmem:[#allocation7 + $0x538] sm:$0xff]
    %v1436 = vld [vmem:[#allocation7 + $0x540] sm:$0xff]
    %v1437 = vld [vmem:[#allocation7 + $0x548] sm:$0xff]
    %v1438 = vld [vmem:[#allocation7 + $0x550] sm:$0xff]
    %v1439 = vld [vmem:[#allocation7 + $0x558] sm:$0xff]
    %v1440 = vld [vmem:[#allocation7 + $0x560] sm:$0xff]
    %v1441 = vld [vmem:[#allocation7 + $0x568] sm:$0xff]
    %v1442 = vld [vmem:[#allocation7 + $0x570] sm:$0xff]
    %v1443 = vld [vmem:[#allocation7 + $0x578] sm:$0xff]
    %v1444 = vld [vmem:[#allocation7 + $0x580] sm:$0xff]
    %v1445 = vld [vmem:[#allocation7 + $0x588] sm:$0xff]
    %v1446 = vld [vmem:[#allocation7 + $0x590] sm:$0xff]
    %v1447 = vld [vmem:[#allocation7 + $0x598] sm:$0xff]
    %v1448 = vld [vmem:[#allocation7 + $0x5a0] sm:$0xff]
    %v1449 = vld [vmem:[#allocation7 + $0x5a8] sm:$0xff]
    %v1450 = vld [vmem:[#allocation7 + $0x5b0] sm:$0xff]
    %v1451 = vld [vmem:[#allocation7 + $0x5b8] sm:$0xff]
    %v1452 = vld [vmem:[#allocation7 + $0x5c0] sm:$0xff]
    %v1453 = vld [vmem:[#allocation7 + $0x5c8] sm:$0xff]
    %v1454 = vld [vmem:[#allocation7 + $0x5d0] sm:$0xff]
    %v1455 = vld [vmem:[#allocation7 + $0x5d8] sm:$0xff]
    %v1456 = vld [vmem:[#allocation7 + $0x5e0] sm:$0xff]
    %v1457 = vld [vmem:[#allocation7 + $0x5e8] sm:$0xff]
    %v1458 = vld [vmem:[#allocation7 + $0x5f0] sm:$0xff]
    %v1459 = vld [vmem:[#allocation7 + $0x5f8] sm:$0xff]
    %v1460 = vld [vmem:[#allocation7 + $0x600] sm:$0xff]
    %v1461 = vld [vmem:[#allocation7 + $0x608] sm:$0xff]
    %v1462 = vld [vmem:[#allocation7 + $0x610] sm:$0xff]
    %v1463 = vld [vmem:[#allocation7 + $0x618] sm:$0xff]
    %v1464 = vld [vmem:[#allocation7 + $0x620] sm:$0xff]
    %v1465 = vld [vmem:[#allocation7 + $0x628] sm:$0xff]
    %v1466 = vld [vmem:[#allocation7 + $0x630] sm:$0xff]
    %v1467 = vld [vmem:[#allocation7 + $0x638] sm:$0xff]
    %v1468 = vld [vmem:[#allocation7 + $0x640] sm:$0xff]
    %v1469 = vld [vmem:[#allocation7 + $0x648] sm:$0xff]
    %v1470 = vld [vmem:[#allocation7 + $0x650] sm:$0xff]
    %v1471 = vld [vmem:[#allocation7 + $0x658] sm:$0xff]
    %v1472 = vld [vmem:[#allocation7 + $0x660] sm:$0xff]
    %v1473 = vld [vmem:[#allocation7 + $0x668] sm:$0xff]
    %v1474 = vld [vmem:[#allocation7 + $0x670] sm:$0xff]
    %v1475 = vld [vmem:[#allocation7 + $0x678] sm:$0xff]
    %v1476 = vld [vmem:[#allocation7 + $0x680] sm:$0xff]
    %v1477 = vld [vmem:[#allocation7 + $0x688] sm:$0xff]
    %v1478 = vld [vmem:[#allocation7 + $0x690] sm:$0xff]
    %v1479 = vld [vmem:[#allocation7 + $0x698] sm:$0xff]
    %v1480 = vld [vmem:[#allocation7 + $0x6a0] sm:$0xff]
    %v1481 = vld [vmem:[#allocation7 + $0x6a8] sm:$0xff]
    %v1482 = vld [vmem:[#allocation7 + $0x6b0] sm:$0xff]
    %v1483 = vld [vmem:[#allocation7 + $0x6b8] sm:$0xff]
    %v1484 = vld [vmem:[#allocation7 + $0x6c0] sm:$0xff]
    %v1485 = vld [vmem:[#allocation7 + $0x6c8] sm:$0xff]
    %v1486 = vld [vmem:[#allocation7 + $0x6d0] sm:$0xff]
    %v1487 = vld [vmem:[#allocation7 + $0x6d8] sm:$0xff]
    %v1488 = vld [vmem:[#allocation7 + $0x6e0] sm:$0xff]
    %v1489 = vld [vmem:[#allocation7 + $0x6e8] sm:$0xff]
    %v1490 = vld [vmem:[#allocation7 + $0x6f0] sm:$0xff]
    %v1491 = vld [vmem:[#allocation7 + $0x6f8] sm:$0xff]
    %v1492 = vld [vmem:[#allocation7 + $0x700] sm:$0xff]
    %v1493 = vld [vmem:[#allocation7 + $0x708] sm:$0xff]
    %v1494 = vld [vmem:[#allocation7 + $0x710] sm:$0xff]
    %v1495 = vld [vmem:[#allocation7 + $0x718] sm:$0xff]
    %v1496 = vld [vmem:[#allocation7 + $0x720] sm:$0xff]
    %v1497 = vld [vmem:[#allocation7 + $0x728] sm:$0xff]
    %v1498 = vld [vmem:[#allocation7 + $0x730] sm:$0xff]
    %v1499 = vld [vmem:[#allocation7 + $0x738] sm:$0xff]
    %v1500 = vld [vmem:[#allocation7 + $0x740] sm:$0xff]
    %v1501 = vld [vmem:[#allocation7 + $0x748] sm:$0xff]
    %v1502 = vld [vmem:[#allocation7 + $0x750] sm:$0xff]
    %v1503 = vld [vmem:[#allocation7 + $0x758] sm:$0xff]
    %v1504 = vld [vmem:[#allocation7 + $0x760] sm:$0xff]
    %v1505 = vld [vmem:[#allocation7 + $0x768] sm:$0xff]
    %v1506 = vld [vmem:[#allocation7 + $0x770] sm:$0xff]
    %v1507 = vld [vmem:[#allocation7 + $0x778] sm:$0xff]
    %v1508 = vld [vmem:[#allocation7 + $0x780] sm:$0xff]
    %v1509 = vld [vmem:[#allocation7 + $0x788] sm:$0xff]
    %v1510 = vld [vmem:[#allocation7 + $0x790] sm:$0xff]
    %v1511 = vld [vmem:[#allocation7 + $0x798] sm:$0xff]
    %v1512 = vld [vmem:[#allocation7 + $0x7a0] sm:$0xff]
    %v1513 = vld [vmem:[#allocation7 + $0x7a8] sm:$0xff]
    %v1514 = vld [vmem:[#allocation7 + $0x7b0] sm:$0xff]
    %v1515 = vld [vmem:[#allocation7 + $0x7b8] sm:$0xff]
    %v1516 = vld [vmem:[#allocation7 + $0x7c0] sm:$0xff]
    %v1517 = vld [vmem:[#allocation7 + $0x7c8] sm:$0xff]
    %v1518 = vld [vmem:[#allocation7 + $0x7d0] sm:$0xff]
    %v1519 = vld [vmem:[#allocation7 + $0x7d8] sm:$0xff]
    %v1520 = vld [vmem:[#allocation7 + $0x7e0] sm:$0xff]
    %v1521 = vld [vmem:[#allocation7 + $0x7e8] sm:$0xff]
    %v1522 = vld [vmem:[#allocation7 + $0x7f0] sm:$0xff]
    %v1523 = vld [vmem:[#allocation7 + $0x7f8] sm:$0xff]
    %v1780 = vunpack.c.l.b16 %v1268
    %v1781 = vunpack.c.h.b16 %v1268
    %v1782 = vunpack.c.l.b16 %v1269
    %v1783 = vunpack.c.h.b16 %v1269
    %v1784 = vunpack.c.l.b16 %v1270
    %v1785 = vunpack.c.h.b16 %v1270
    %v1786 = vunpack.c.l.b16 %v1271
    %v1787 = vunpack.c.h.b16 %v1271
    %v1788 = vunpack.c.l.b16 %v1272
    %v1789 = vunpack.c.h.b16 %v1272
    %v1790 = vunpack.c.l.b16 %v1273
    %v1791 = vunpack.c.h.b16 %v1273
    %v1792 = vunpack.c.l.b16 %v1274
    %v1793 = vunpack.c.h.b16 %v1274
    %v1794 = vunpack.c.l.b16 %v1275
    %v1795 = vunpack.c.h.b16 %v1275
    %v1796 = vunpack.c.l.b16 %v1276
    %v1797 = vunpack.c.h.b16 %v1276
    %v1798 = vunpack.c.l.b16 %v1277
    %v1799 = vunpack.c.h.b16 %v1277
    %v1800 = vunpack.c.l.b16 %v1278
    %v1801 = vunpack.c.h.b16 %v1278
    %v1802 = vunpack.c.l.b16 %v1279
    %v1803 = vunpack.c.h.b16 %v1279
    %v1804 = vunpack.c.l.b16 %v1280
    %v1805 = vunpack.c.h.b16 %v1280
    %v1806 = vunpack.c.l.b16 %v1281
    %v1807 = vunpack.c.h.b16 %v1281
    %v1808 = vunpack.c.l.b16 %v1282
    %v1809 = vunpack.c.h.b16 %v1282
    %v1810 = vunpack.c.l.b16 %v1283
    %v1811 = vunpack.c.h.b16 %v1283
    %v1812 = vunpack.c.l.b16 %v1284
    %v1813 = vunpack.c.h.b16 %v1284
    %v1814 = vunpack.c.l.b16 %v1285
    %v1815 = vunpack.c.h.b16 %v1285
    %v1816 = vunpack.c.l.b16 %v1286
    %v1817 = vunpack.c.h.b16 %v1286
    %v1818 = vunpack.c.l.b16 %v1287
    %v1819 = vunpack.c.h.b16 %v1287
    %v1820 = vunpack.c.l.b16 %v1288
    %v1821 = vunpack.c.h.b16 %v1288
    %v1822 = vunpack.c.l.b16 %v1289
    %v1823 = vunpack.c.h.b16 %v1289
    %v1824 = vunpack.c.l.b16 %v1290
    %v1825 = vunpack.c.h.b16 %v1290
    %v1826 = vunpack.c.l.b16 %v1291
    %v1827 = vunpack.c.h.b16 %v1291
    %v1828 = vunpack.c.l.b16 %v1292
    %v1829 = vunpack.c.h.b16 %v1292
    %v1830 = vunpack.c.l.b16 %v1293
    %v1831 = vunpack.c.h.b16 %v1293
    %v1832 = vunpack.c.l.b16 %v1294
    %v1833 = vunpack.c.h.b16 %v1294
    %v1834 = vunpack.c.l.b16 %v1295
    %v1835 = vunpack.c.h.b16 %v1295
    %v1836 = vunpack.c.l.b16 %v1296
    %v1837 = vunpack.c.h.b16 %v1296
    %v1838 = vunpack.c.l.b16 %v1297
    %v1839 = vunpack.c.h.b16 %v1297
    %v1840 = vunpack.c.l.b16 %v1298
    %v1841 = vunpack.c.h.b16 %v1298
    %v1842 = vunpack.c.l.b16 %v1299
    %v1843 = vunpack.c.h.b16 %v1299
    %v1844 = vunpack.c.l.b16 %v1300
    %v1845 = vunpack.c.h.b16 %v1300
    %v1846 = vunpack.c.l.b16 %v1301
    %v1847 = vunpack.c.h.b16 %v1301
    %v1848 = vunpack.c.l.b16 %v1302
    %v1849 = vunpack.c.h.b16 %v1302
    %v1850 = vunpack.c.l.b16 %v1303
    %v1851 = vunpack.c.h.b16 %v1303
    %v1852 = vunpack.c.l.b16 %v1304
    %v1853 = vunpack.c.h.b16 %v1304
    %v1854 = vunpack.c.l.b16 %v1305
    %v1855 = vunpack.c.h.b16 %v1305
    %v1856 = vunpack.c.l.b16 %v1306
    %v1857 = vunpack.c.h.b16 %v1306
    %v1858 = vunpack.c.l.b16 %v1307
    %v1859 = vunpack.c.h.b16 %v1307
    %v1860 = vunpack.c.l.b16 %v1308
    %v1861 = vunpack.c.h.b16 %v1308
    %v1862 = vunpack.c.l.b16 %v1309
    %v1863 = vunpack.c.h.b16 %v1309
    %v1864 = vunpack.c.l.b16 %v1310
    %v1865 = vunpack.c.h.b16 %v1310
    %v1866 = vunpack.c.l.b16 %v1311
    %v1867 = vunpack.c.h.b16 %v1311
    %v1868 = vunpack.c.l.b16 %v1312
    %v1869 = vunpack.c.h.b16 %v1312
    %v1870 = vunpack.c.l.b16 %v1313
    %v1871 = vunpack.c.h.b16 %v1313
    %v1872 = vunpack.c.l.b16 %v1314
    %v1873 = vunpack.c.h.b16 %v1314
    %v1874 = vunpack.c.l.b16 %v1315
    %v1875 = vunpack.c.h.b16 %v1315
    %v1876 = vunpack.c.l.b16 %v1316
    %v1877 = vunpack.c.h.b16 %v1316
    %v1878 = vunpack.c.l.b16 %v1317
    %v1879 = vunpack.c.h.b16 %v1317
    %v1880 = vunpack.c.l.b16 %v1318
    %v1881 = vunpack.c.h.b16 %v1318
    %v1882 = vunpack.c.l.b16 %v1319
    %v1883 = vunpack.c.h.b16 %v1319
    %v1884 = vunpack.c.l.b16 %v1320
    %v1885 = vunpack.c.h.b16 %v1320
    %v1886 = vunpack.c.l.b16 %v1321
    %v1887 = vunpack.c.h.b16 %v1321
    %v1888 = vunpack.c.l.b16 %v1322
    %v1889 = vunpack.c.h.b16 %v1322
    %v1890 = vunpack.c.l.b16 %v1323
    %v1891 = vunpack.c.h.b16 %v1323
    %v1892 = vunpack.c.l.b16 %v1324
    %v1893 = vunpack.c.h.b16 %v1324
    %v1894 = vunpack.c.l.b16 %v1325
    %v1895 = vunpack.c.h.b16 %v1325
    %v1896 = vunpack.c.l.b16 %v1326
    %v1897 = vunpack.c.h.b16 %v1326
    %v1898 = vunpack.c.l.b16 %v1327
    %v1899 = vunpack.c.h.b16 %v1327
    %v1900 = vunpack.c.l.b16 %v1328
    %v1901 = vunpack.c.h.b16 %v1328
    %v1902 = vunpack.c.l.b16 %v1329
    %v1903 = vunpack.c.h.b16 %v1329
    %v1904 = vunpack.c.l.b16 %v1330
    %v1905 = vunpack.c.h.b16 %v1330
    %v1906 = vunpack.c.l.b16 %v1331
    %v1907 = vunpack.c.h.b16 %v1331
    %v1908 = vunpack.c.l.b16 %v1332
    %v1909 = vunpack.c.h.b16 %v1332
    %v1910 = vunpack.c.l.b16 %v1333
    %v1911 = vunpack.c.h.b16 %v1333
    %v1912 = vunpack.c.l.b16 %v1334
    %v1913 = vunpack.c.h.b16 %v1334
    %v1914 = vunpack.c.l.b16 %v1335
    %v1915 = vunpack.c.h.b16 %v1335
    %v1916 = vunpack.c.l.b16 %v1336
    %v1917 = vunpack.c.h.b16 %v1336
    %v1918 = vunpack.c.l.b16 %v1337
    %v1919 = vunpack.c.h.b16 %v1337
    %v1920 = vunpack.c.l.b16 %v1338
    %v1921 = vunpack.c.h.b16 %v1338
    %v1922 = vunpack.c.l.b16 %v1339
    %v1923 = vunpack.c.h.b16 %v1339
    %v1924 = vunpack.c.l.b16 %v1340
    %v1925 = vunpack.c.h.b16 %v1340
    %v1926 = vunpack.c.l.b16 %v1341
    %v1927 = vunpack.c.h.b16 %v1341
    %v1928 = vunpack.c.l.b16 %v1342
    %v1929 = vunpack.c.h.b16 %v1342
    %v1930 = vunpack.c.l.b16 %v1343
    %v1931 = vunpack.c.h.b16 %v1343
    %v1932 = vunpack.c.l.b16 %v1344
    %v1933 = vunpack.c.h.b16 %v1344
    %v1934 = vunpack.c.l.b16 %v1345
    %v1935 = vunpack.c.h.b16 %v1345
    %v1936 = vunpack.c.l.b16 %v1346
    %v1937 = vunpack.c.h.b16 %v1346
    %v1938 = vunpack.c.l.b16 %v1347
    %v1939 = vunpack.c.h.b16 %v1347
    %v1940 = vunpack.c.l.b16 %v1348
    %v1941 = vunpack.c.h.b16 %v1348
    %v1942 = vunpack.c.l.b16 %v1349
    %v1943 = vunpack.c.h.b16 %v1349
    %v1944 = vunpack.c.l.b16 %v1350
    %v1945 = vunpack.c.h.b16 %v1350
    %v1946 = vunpack.c.l.b16 %v1351
    %v1947 = vunpack.c.h.b16 %v1351
    %v1948 = vunpack.c.l.b16 %v1352
    %v1949 = vunpack.c.h.b16 %v1352
    %v1950 = vunpack.c.l.b16 %v1353
    %v1951 = vunpack.c.h.b16 %v1353
    %v1952 = vunpack.c.l.b16 %v1354
    %v1953 = vunpack.c.h.b16 %v1354
    %v1954 = vunpack.c.l.b16 %v1355
    %v1955 = vunpack.c.h.b16 %v1355
    %v1956 = vunpack.c.l.b16 %v1356
    %v1957 = vunpack.c.h.b16 %v1356
    %v1958 = vunpack.c.l.b16 %v1357
    %v1959 = vunpack.c.h.b16 %v1357
    %v1960 = vunpack.c.l.b16 %v1358
    %v1961 = vunpack.c.h.b16 %v1358
    %v1962 = vunpack.c.l.b16 %v1359
    %v1963 = vunpack.c.h.b16 %v1359
    %v1964 = vunpack.c.l.b16 %v1360
    %v1965 = vunpack.c.h.b16 %v1360
    %v1966 = vunpack.c.l.b16 %v1361
    %v1967 = vunpack.c.h.b16 %v1361
    %v1968 = vunpack.c.l.b16 %v1362
    %v1969 = vunpack.c.h.b16 %v1362
    %v1970 = vunpack.c.l.b16 %v1363
    %v1971 = vunpack.c.h.b16 %v1363
    %v1972 = vunpack.c.l.b16 %v1364
    %v1973 = vunpack.c.h.b16 %v1364
    %v1974 = vunpack.c.l.b16 %v1365
    %v1975 = vunpack.c.h.b16 %v1365
    %v1976 = vunpack.c.l.b16 %v1366
    %v1977 = vunpack.c.h.b16 %v1366
    %v1978 = vunpack.c.l.b16 %v1367
    %v1979 = vunpack.c.h.b16 %v1367
    %v1980 = vunpack.c.l.b16 %v1368
    %v1981 = vunpack.c.h.b16 %v1368
    %v1982 = vunpack.c.l.b16 %v1369
    %v1983 = vunpack.c.h.b16 %v1369
    %v1984 = vunpack.c.l.b16 %v1370
    %v1985 = vunpack.c.h.b16 %v1370
    %v1986 = vunpack.c.l.b16 %v1371
    %v1987 = vunpack.c.h.b16 %v1371
    %v1988 = vunpack.c.l.b16 %v1372
    %v1989 = vunpack.c.h.b16 %v1372
    %v1990 = vunpack.c.l.b16 %v1373
    %v1991 = vunpack.c.h.b16 %v1373
    %v1992 = vunpack.c.l.b16 %v1374
    %v1993 = vunpack.c.h.b16 %v1374
    %v1994 = vunpack.c.l.b16 %v1375
    %v1995 = vunpack.c.h.b16 %v1375
    %v1996 = vunpack.c.l.b16 %v1376
    %v1997 = vunpack.c.h.b16 %v1376
    %v1998 = vunpack.c.l.b16 %v1377
    %v1999 = vunpack.c.h.b16 %v1377
    %v2000 = vunpack.c.l.b16 %v1378
    %v2001 = vunpack.c.h.b16 %v1378
    %v2002 = vunpack.c.l.b16 %v1379
    %v2003 = vunpack.c.h.b16 %v1379
    %v2004 = vunpack.c.l.b16 %v1380
    %v2005 = vunpack.c.h.b16 %v1380
    %v2006 = vunpack.c.l.b16 %v1381
    %v2007 = vunpack.c.h.b16 %v1381
    %v2008 = vunpack.c.l.b16 %v1382
    %v2009 = vunpack.c.h.b16 %v1382
    %v2010 = vunpack.c.l.b16 %v1383
    %v2011 = vunpack.c.h.b16 %v1383
    %v2012 = vunpack.c.l.b16 %v1384
    %v2013 = vunpack.c.h.b16 %v1384
    %v2014 = vunpack.c.l.b16 %v1385
    %v2015 = vunpack.c.h.b16 %v1385
    %v2016 = vunpack.c.l.b16 %v1386
    %v2017 = vunpack.c.h.b16 %v1386
    %v2018 = vunpack.c.l.b16 %v1387
    %v2019 = vunpack.c.h.b16 %v1387
    %v2020 = vunpack.c.l.b16 %v1388
    %v2021 = vunpack.c.h.b16 %v1388
    %v2022 = vunpack.c.l.b16 %v1389
    %v2023 = vunpack.c.h.b16 %v1389
    %v2024 = vunpack.c.l.b16 %v1390
    %v2025 = vunpack.c.h.b16 %v1390
    %v2026 = vunpack.c.l.b16 %v1391
    %v2027 = vunpack.c.h.b16 %v1391
    %v2028 = vunpack.c.l.b16 %v1392
    %v2029 = vunpack.c.h.b16 %v1392
    %v2030 = vunpack.c.l.b16 %v1393
    %v2031 = vunpack.c.h.b16 %v1393
    %v2032 = vunpack.c.l.b16 %v1394
    %v2033 = vunpack.c.h.b16 %v1394
    %v2034 = vunpack.c.l.b16 %v1395
    %v2035 = vunpack.c.h.b16 %v1395
    %v2036 = vunpack.c.l.b16 %v1396
    %v2037 = vunpack.c.h.b16 %v1396
    %v2038 = vunpack.c.l.b16 %v1397
    %v2039 = vunpack.c.h.b16 %v1397
    %v2040 = vunpack.c.l.b16 %v1398
    %v2041 = vunpack.c.h.b16 %v1398
    %v2042 = vunpack.c.l.b16 %v1399
    %v2043 = vunpack.c.h.b16 %v1399
    %v2044 = vunpack.c.l.b16 %v1400
    %v2045 = vunpack.c.h.b16 %v1400
    %v2046 = vunpack.c.l.b16 %v1401
    %v2047 = vunpack.c.h.b16 %v1401
    %v2048 = vunpack.c.l.b16 %v1402
    %v2049 = vunpack.c.h.b16 %v1402
    %v2050 = vunpack.c.l.b16 %v1403
    %v2051 = vunpack.c.h.b16 %v1403
    %v2052 = vunpack.c.l.b16 %v1404
    %v2053 = vunpack.c.h.b16 %v1404
    %v2054 = vunpack.c.l.b16 %v1405
    %v2055 = vunpack.c.h.b16 %v1405
    %v2056 = vunpack.c.l.b16 %v1406
    %v2057 = vunpack.c.h.b16 %v1406
    %v2058 = vunpack.c.l.b16 %v1407
    %v2059 = vunpack.c.h.b16 %v1407
    %v2060 = vunpack.c.l.b16 %v1408
    %v2061 = vunpack.c.h.b16 %v1408
    %v2062 = vunpack.c.l.b16 %v1409
    %v2063 = vunpack.c.h.b16 %v1409
    %v2064 = vunpack.c.l.b16 %v1410
    %v2065 = vunpack.c.h.b16 %v1410
    %v2066 = vunpack.c.l.b16 %v1411
    %v2067 = vunpack.c.h.b16 %v1411
    %v2068 = vunpack.c.l.b16 %v1412
    %v2069 = vunpack.c.h.b16 %v1412
    %v2070 = vunpack.c.l.b16 %v1413
    %v2071 = vunpack.c.h.b16 %v1413
    %v2072 = vunpack.c.l.b16 %v1414
    %v2073 = vunpack.c.h.b16 %v1414
    %v2074 = vunpack.c.l.b16 %v1415
    %v2075 = vunpack.c.h.b16 %v1415
    %v2076 = vunpack.c.l.b16 %v1416
    %v2077 = vunpack.c.h.b16 %v1416
    %v2078 = vunpack.c.l.b16 %v1417
    %v2079 = vunpack.c.h.b16 %v1417
    %v2080 = vunpack.c.l.b16 %v1418
    %v2081 = vunpack.c.h.b16 %v1418
    %v2082 = vunpack.c.l.b16 %v1419
    %v2083 = vunpack.c.h.b16 %v1419
    %v2084 = vunpack.c.l.b16 %v1420
    %v2085 = vunpack.c.h.b16 %v1420
    %v2086 = vunpack.c.l.b16 %v1421
    %v2087 = vunpack.c.h.b16 %v1421
    %v2088 = vunpack.c.l.b16 %v1422
    %v2089 = vunpack.c.h.b16 %v1422
    %v2090 = vunpack.c.l.b16 %v1423
    %v2091 = vunpack.c.h.b16 %v1423
    %v2092 = vunpack.c.l.b16 %v1424
    %v2093 = vunpack.c.h.b16 %v1424
    %v2094 = vunpack.c.l.b16 %v1425
    %v2095 = vunpack.c.h.b16 %v1425
    %v2096 = vunpack.c.l.b16 %v1426
    %v2097 = vunpack.c.h.b16 %v1426
    %v2098 = vunpack.c.l.b16 %v1427
    %v2099 = vunpack.c.h.b16 %v1427
    %v2100 = vunpack.c.l.b16 %v1428
    %v2101 = vunpack.c.h.b16 %v1428
    %v2102 = vunpack.c.l.b16 %v1429
    %v2103 = vunpack.c.h.b16 %v1429
    %v2104 = vunpack.c.l.b16 %v1430
    %v2105 = vunpack.c.h.b16 %v1430
    %v2106 = vunpack.c.l.b16 %v1431
    %v2107 = vunpack.c.h.b16 %v1431
    %v2108 = vunpack.c.l.b16 %v1432
    %v2109 = vunpack.c.h.b16 %v1432
    %v2110 = vunpack.c.l.b16 %v1433
    %v2111 = vunpack.c.h.b16 %v1433
    %v2112 = vunpack.c.l.b16 %v1434
    %v2113 = vunpack.c.h.b16 %v1434
    %v2114 = vunpack.c.l.b16 %v1435
    %v2115 = vunpack.c.h.b16 %v1435
    %v2116 = vunpack.c.l.b16 %v1436
    %v2117 = vunpack.c.h.b16 %v1436
    %v2118 = vunpack.c.l.b16 %v1437
    %v2119 = vunpack.c.h.b16 %v1437
    %v2120 = vunpack.c.l.b16 %v1438
    %v2121 = vunpack.c.h.b16 %v1438
    %v2122 = vunpack.c.l.b16 %v1439
    %v2123 = vunpack.c.h.b16 %v1439
    %v2124 = vunpack.c.l.b16 %v1440
    %v2125 = vunpack.c.h.b16 %v1440
    %v2126 = vunpack.c.l.b16 %v1441
    %v2127 = vunpack.c.h.b16 %v1441
    %v2128 = vunpack.c.l.b16 %v1442
    %v2129 = vunpack.c.h.b16 %v1442
    %v2130 = vunpack.c.l.b16 %v1443
    %v2131 = vunpack.c.h.b16 %v1443
    %v2132 = vunpack.c.l.b16 %v1444
    %v2133 = vunpack.c.h.b16 %v1444
    %v2134 = vunpack.c.l.b16 %v1445
    %v2135 = vunpack.c.h.b16 %v1445
    %v2136 = vunpack.c.l.b16 %v1446
    %v2137 = vunpack.c.h.b16 %v1446
    %v2138 = vunpack.c.l.b16 %v1447
    %v2139 = vunpack.c.h.b16 %v1447
    %v2140 = vunpack.c.l.b16 %v1448
    %v2141 = vunpack.c.h.b16 %v1448
    %v2142 = vunpack.c.l.b16 %v1449
    %v2143 = vunpack.c.h.b16 %v1449
    %v2144 = vunpack.c.l.b16 %v1450
    %v2145 = vunpack.c.h.b16 %v1450
    %v2146 = vunpack.c.l.b16 %v1451
    %v2147 = vunpack.c.h.b16 %v1451
    %v2148 = vunpack.c.l.b16 %v1452
    %v2149 = vunpack.c.h.b16 %v1452
    %v2150 = vunpack.c.l.b16 %v1453
    %v2151 = vunpack.c.h.b16 %v1453
    %v2152 = vunpack.c.l.b16 %v1454
    %v2153 = vunpack.c.h.b16 %v1454
    %v2154 = vunpack.c.l.b16 %v1455
    %v2155 = vunpack.c.h.b16 %v1455
    %v2156 = vunpack.c.l.b16 %v1456
    %v2157 = vunpack.c.h.b16 %v1456
    %v2158 = vunpack.c.l.b16 %v1457
    %v2159 = vunpack.c.h.b16 %v1457
    %v2160 = vunpack.c.l.b16 %v1458
    %v2161 = vunpack.c.h.b16 %v1458
    %v2162 = vunpack.c.l.b16 %v1459
    %v2163 = vunpack.c.h.b16 %v1459
    %v2164 = vunpack.c.l.b16 %v1460
    %v2165 = vunpack.c.h.b16 %v1460
    %v2166 = vunpack.c.l.b16 %v1461
    %v2167 = vunpack.c.h.b16 %v1461
    %v2168 = vunpack.c.l.b16 %v1462
    %v2169 = vunpack.c.h.b16 %v1462
    %v2170 = vunpack.c.l.b16 %v1463
    %v2171 = vunpack.c.h.b16 %v1463
    %v2172 = vunpack.c.l.b16 %v1464
    %v2173 = vunpack.c.h.b16 %v1464
    %v2174 = vunpack.c.l.b16 %v1465
    %v2175 = vunpack.c.h.b16 %v1465
    %v2176 = vunpack.c.l.b16 %v1466
    %v2177 = vunpack.c.h.b16 %v1466
    %v2178 = vunpack.c.l.b16 %v1467
    %v2179 = vunpack.c.h.b16 %v1467
    %v2180 = vunpack.c.l.b16 %v1468
    %v2181 = vunpack.c.h.b16 %v1468
    %v2182 = vunpack.c.l.b16 %v1469
    %v2183 = vunpack.c.h.b16 %v1469
    %v2184 = vunpack.c.l.b16 %v1470
    %v2185 = vunpack.c.h.b16 %v1470
    %v2186 = vunpack.c.l.b16 %v1471
    %v2187 = vunpack.c.h.b16 %v1471
    %v2188 = vunpack.c.l.b16 %v1472
    %v2189 = vunpack.c.h.b16 %v1472
    %v2190 = vunpack.c.l.b16 %v1473
    %v2191 = vunpack.c.h.b16 %v1473
    %v2192 = vunpack.c.l.b16 %v1474
    %v2193 = vunpack.c.h.b16 %v1474
    %v2194 = vunpack.c.l.b16 %v1475
    %v2195 = vunpack.c.h.b16 %v1475
    %v2196 = vunpack.c.l.b16 %v1476
    %v2197 = vunpack.c.h.b16 %v1476
    %v2198 = vunpack.c.l.b16 %v1477
    %v2199 = vunpack.c.h.b16 %v1477
    %v2200 = vunpack.c.l.b16 %v1478
    %v2201 = vunpack.c.h.b16 %v1478
    %v2202 = vunpack.c.l.b16 %v1479
    %v2203 = vunpack.c.h.b16 %v1479
    %v2204 = vunpack.c.l.b16 %v1480
    %v2205 = vunpack.c.h.b16 %v1480
    %v2206 = vunpack.c.l.b16 %v1481
    %v2207 = vunpack.c.h.b16 %v1481
    %v2208 = vunpack.c.l.b16 %v1482
    %v2209 = vunpack.c.h.b16 %v1482
    %v2210 = vunpack.c.l.b16 %v1483
    %v2211 = vunpack.c.h.b16 %v1483
    %v2212 = vunpack.c.l.b16 %v1484
    %v2213 = vunpack.c.h.b16 %v1484
    %v2214 = vunpack.c.l.b16 %v1485
    %v2215 = vunpack.c.h.b16 %v1485
    %v2216 = vunpack.c.l.b16 %v1486
    %v2217 = vunpack.c.h.b16 %v1486
    %v2218 = vunpack.c.l.b16 %v1487
    %v2219 = vunpack.c.h.b16 %v1487
    %v2220 = vunpack.c.l.b16 %v1488
    %v2221 = vunpack.c.h.b16 %v1488
    %v2222 = vunpack.c.l.b16 %v1489
    %v2223 = vunpack.c.h.b16 %v1489
    %v2224 = vunpack.c.l.b16 %v1490
    %v2225 = vunpack.c.h.b16 %v1490
    %v2226 = vunpack.c.l.b16 %v1491
    %v2227 = vunpack.c.h.b16 %v1491
    %v2228 = vunpack.c.l.b16 %v1492
    %v2229 = vunpack.c.h.b16 %v1492
    %v2230 = vunpack.c.l.b16 %v1493
    %v2231 = vunpack.c.h.b16 %v1493
    %v2232 = vunpack.c.l.b16 %v1494
    %v2233 = vunpack.c.h.b16 %v1494
    %v2234 = vunpack.c.l.b16 %v1495
    %v2235 = vunpack.c.h.b16 %v1495
    %v2236 = vunpack.c.l.b16 %v1496
    %v2237 = vunpack.c.h.b16 %v1496
    %v2238 = vunpack.c.l.b16 %v1497
    %v2239 = vunpack.c.h.b16 %v1497
    %v2240 = vunpack.c.l.b16 %v1498
    %v2241 = vunpack.c.h.b16 %v1498
    %v2242 = vunpack.c.l.b16 %v1499
    %v2243 = vunpack.c.h.b16 %v1499
    %v2244 = vunpack.c.l.b16 %v1500
    %v2245 = vunpack.c.h.b16 %v1500
    %v2246 = vunpack.c.l.b16 %v1501
    %v2247 = vunpack.c.h.b16 %v1501
    %v2248 = vunpack.c.l.b16 %v1502
    %v2249 = vunpack.c.h.b16 %v1502
    %v2250 = vunpack.c.l.b16 %v1503
    %v2251 = vunpack.c.h.b16 %v1503
    %v2252 = vunpack.c.l.b16 %v1504
    %v2253 = vunpack.c.h.b16 %v1504
    %v2254 = vunpack.c.l.b16 %v1505
    %v2255 = vunpack.c.h.b16 %v1505
    %v2256 = vunpack.c.l.b16 %v1506
    %v2257 = vunpack.c.h.b16 %v1506
    %v2258 = vunpack.c.l.b16 %v1507
    %v2259 = vunpack.c.h.b16 %v1507
    %v2260 = vunpack.c.l.b16 %v1508
    %v2261 = vunpack.c.h.b16 %v1508
    %v2262 = vunpack.c.l.b16 %v1509
    %v2263 = vunpack.c.h.b16 %v1509
    %v2264 = vunpack.c.l.b16 %v1510
    %v2265 = vunpack.c.h.b16 %v1510
    %v2266 = vunpack.c.l.b16 %v1511
    %v2267 = vunpack.c.h.b16 %v1511
    %v2268 = vunpack.c.l.b16 %v1512
    %v2269 = vunpack.c.h.b16 %v1512
    %v2270 = vunpack.c.l.b16 %v1513
    %v2271 = vunpack.c.h.b16 %v1513
    %v2272 = vunpack.c.l.b16 %v1514
    %v2273 = vunpack.c.h.b16 %v1514
    %v2274 = vunpack.c.l.b16 %v1515
    %v2275 = vunpack.c.h.b16 %v1515
    %v2276 = vunpack.c.l.b16 %v1516
    %v2277 = vunpack.c.h.b16 %v1516
    %v2278 = vunpack.c.l.b16 %v1517
    %v2279 = vunpack.c.h.b16 %v1517
    %v2280 = vunpack.c.l.b16 %v1518
    %v2281 = vunpack.c.h.b16 %v1518
    %v2282 = vunpack.c.l.b16 %v1519
    %v2283 = vunpack.c.h.b16 %v1519
    %v2284 = vunpack.c.l.b16 %v1520
    %v2285 = vunpack.c.h.b16 %v1520
    %v2286 = vunpack.c.l.b16 %v1521
    %v2287 = vunpack.c.h.b16 %v1521
    %v2288 = vunpack.c.l.b16 %v1522
    %v2289 = vunpack.c.h.b16 %v1522
    %v2290 = vunpack.c.l.b16 %v1523
    %v2291 = vunpack.c.h.b16 %v1523
    %v2292 = vpack.c.b16 %v1788, %v1780
    %v2293 = vpack.c.b16 %v1789, %v1781
    %v2294 = vpack.c.b16 %v1790, %v1782
    %v2295 = vpack.c.b16 %v1791, %v1783
    %v2296 = vpack.c.b16 %v1792, %v1784
    %v2297 = vpack.c.b16 %v1793, %v1785
    %v2298 = vpack.c.b16 %v1794, %v1786
    %v2299 = vpack.c.b16 %v1795, %v1787
    %v2300 = vpack.c.b16 %v1804, %v1796
    %v2301 = vpack.c.b16 %v1805, %v1797
    %v2302 = vpack.c.b16 %v1806, %v1798
    %v2303 = vpack.c.b16 %v1807, %v1799
    %v2304 = vpack.c.b16 %v1808, %v1800
    %v2305 = vpack.c.b16 %v1809, %v1801
    %v2306 = vpack.c.b16 %v1810, %v1802
    %v2307 = vpack.c.b16 %v1811, %v1803
    %v2308 = vpack.c.b16 %v1820, %v1812
    %v2309 = vpack.c.b16 %v1821, %v1813
    %v2310 = vpack.c.b16 %v1822, %v1814
    %v2311 = vpack.c.b16 %v1823, %v1815
    %v2312 = vpack.c.b16 %v1824, %v1816
    %v2313 = vpack.c.b16 %v1825, %v1817
    %v2314 = vpack.c.b16 %v1826, %v1818
    %v2315 = vpack.c.b16 %v1827, %v1819
    %v2316 = vpack.c.b16 %v1836, %v1828
    %v2317 = vpack.c.b16 %v1837, %v1829
    %v2318 = vpack.c.b16 %v1838, %v1830
    %v2319 = vpack.c.b16 %v1839, %v1831
    %v2320 = vpack.c.b16 %v1840, %v1832
    %v2321 = vpack.c.b16 %v1841, %v1833
    %v2322 = vpack.c.b16 %v1842, %v1834
    %v2323 = vpack.c.b16 %v1843, %v1835
    %v2324 = vpack.c.b16 %v1852, %v1844
    %v2325 = vpack.c.b16 %v1853, %v1845
    %v2326 = vpack.c.b16 %v1854, %v1846
    %v2327 = vpack.c.b16 %v1855, %v1847
    %v2328 = vpack.c.b16 %v1856, %v1848
    %v2329 = vpack.c.b16 %v1857, %v1849
    %v2330 = vpack.c.b16 %v1858, %v1850
    %v2331 = vpack.c.b16 %v1859, %v1851
    %v2332 = vpack.c.b16 %v1868, %v1860
    %v2333 = vpack.c.b16 %v1869, %v1861
    %v2334 = vpack.c.b16 %v1870, %v1862
    %v2335 = vpack.c.b16 %v1871, %v1863
    %v2336 = vpack.c.b16 %v1872, %v1864
    %v2337 = vpack.c.b16 %v1873, %v1865
    %v2338 = vpack.c.b16 %v1874, %v1866
    %v2339 = vpack.c.b16 %v1875, %v1867
    %v2340 = vpack.c.b16 %v1884, %v1876
    %v2341 = vpack.c.b16 %v1885, %v1877
    %v2342 = vpack.c.b16 %v1886, %v1878
    %v2343 = vpack.c.b16 %v1887, %v1879
    %v2344 = vpack.c.b16 %v1888, %v1880
    %v2345 = vpack.c.b16 %v1889, %v1881
    %v2346 = vpack.c.b16 %v1890, %v1882
    %v2347 = vpack.c.b16 %v1891, %v1883
    %v2348 = vpack.c.b16 %v1900, %v1892
    %v2349 = vpack.c.b16 %v1901, %v1893
    %v2350 = vpack.c.b16 %v1902, %v1894
    %v2351 = vpack.c.b16 %v1903, %v1895
    %v2352 = vpack.c.b16 %v1904, %v1896
    %v2353 = vpack.c.b16 %v1905, %v1897
    %v2354 = vpack.c.b16 %v1906, %v1898
    %v2355 = vpack.c.b16 %v1907, %v1899
    %v2356 = vpack.c.b16 %v1916, %v1908
    %v2357 = vpack.c.b16 %v1917, %v1909
    %v2358 = vpack.c.b16 %v1918, %v1910
    %v2359 = vpack.c.b16 %v1919, %v1911
    %v2360 = vpack.c.b16 %v1920, %v1912
    %v2361 = vpack.c.b16 %v1921, %v1913
    %v2362 = vpack.c.b16 %v1922, %v1914
    %v2363 = vpack.c.b16 %v1923, %v1915
    %v2364 = vpack.c.b16 %v1932, %v1924
    %v2365 = vpack.c.b16 %v1933, %v1925
    %v2366 = vpack.c.b16 %v1934, %v1926
    %v2367 = vpack.c.b16 %v1935, %v1927
    %v2368 = vpack.c.b16 %v1936, %v1928
    %v2369 = vpack.c.b16 %v1937, %v1929
    %v2370 = vpack.c.b16 %v1938, %v1930
    %v2371 = vpack.c.b16 %v1939, %v1931
    %v2372 = vpack.c.b16 %v1948, %v1940
    %v2373 = vpack.c.b16 %v1949, %v1941
    %v2374 = vpack.c.b16 %v1950, %v1942
    %v2375 = vpack.c.b16 %v1951, %v1943
    %v2376 = vpack.c.b16 %v1952, %v1944
    %v2377 = vpack.c.b16 %v1953, %v1945
    %v2378 = vpack.c.b16 %v1954, %v1946
    %v2379 = vpack.c.b16 %v1955, %v1947
    %v2380 = vpack.c.b16 %v1964, %v1956
    %v2381 = vpack.c.b16 %v1965, %v1957
    %v2382 = vpack.c.b16 %v1966, %v1958
    %v2383 = vpack.c.b16 %v1967, %v1959
    %v2384 = vpack.c.b16 %v1968, %v1960
    %v2385 = vpack.c.b16 %v1969, %v1961
    %v2386 = vpack.c.b16 %v1970, %v1962
    %v2387 = vpack.c.b16 %v1971, %v1963
    %v2388 = vpack.c.b16 %v1980, %v1972
    %v2389 = vpack.c.b16 %v1981, %v1973
    %v2390 = vpack.c.b16 %v1982, %v1974
    %v2391 = vpack.c.b16 %v1983, %v1975
    %v2392 = vpack.c.b16 %v1984, %v1976
    %v2393 = vpack.c.b16 %v1985, %v1977
    %v2394 = vpack.c.b16 %v1986, %v1978
    %v2395 = vpack.c.b16 %v1987, %v1979
    %v2396 = vpack.c.b16 %v1996, %v1988
    %v2397 = vpack.c.b16 %v1997, %v1989
    %v2398 = vpack.c.b16 %v1998, %v1990
    %v2399 = vpack.c.b16 %v1999, %v1991
    %v2400 = vpack.c.b16 %v2000, %v1992
    %v2401 = vpack.c.b16 %v2001, %v1993
    %v2402 = vpack.c.b16 %v2002, %v1994
    %v2403 = vpack.c.b16 %v2003, %v1995
    %v2404 = vpack.c.b16 %v2012, %v2004
    %v2405 = vpack.c.b16 %v2013, %v2005
    %v2406 = vpack.c.b16 %v2014, %v2006
    %v2407 = vpack.c.b16 %v2015, %v2007
    %v2408 = vpack.c.b16 %v2016, %v2008
    %v2409 = vpack.c.b16 %v2017, %v2009
    %v2410 = vpack.c.b16 %v2018, %v2010
    %v2411 = vpack.c.b16 %v2019, %v2011
    %v2412 = vpack.c.b16 %v2028, %v2020
    %v2413 = vpack.c.b16 %v2029, %v2021
    %v2414 = vpack.c.b16 %v2030, %v2022
    %v2415 = vpack.c.b16 %v2031, %v2023
    %v2416 = vpack.c.b16 %v2032, %v2024
    %v2417 = vpack.c.b16 %v2033, %v2025
    %v2418 = vpack.c.b16 %v2034, %v2026
    %v2419 = vpack.c.b16 %v2035, %v2027
    %v2420 = vpack.c.b16 %v2044, %v2036
    %v2421 = vpack.c.b16 %v2045, %v2037
    %v2422 = vpack.c.b16 %v2046, %v2038
    %v2423 = vpack.c.b16 %v2047, %v2039
    %v2424 = vpack.c.b16 %v2048, %v2040
    %v2425 = vpack.c.b16 %v2049, %v2041
    %v2426 = vpack.c.b16 %v2050, %v2042
    %v2427 = vpack.c.b16 %v2051, %v2043
    %v2428 = vpack.c.b16 %v2060, %v2052
    %v2429 = vpack.c.b16 %v2061, %v2053
    %v2430 = vpack.c.b16 %v2062, %v2054
    %v2431 = vpack.c.b16 %v2063, %v2055
    %v2432 = vpack.c.b16 %v2064, %v2056
    %v2433 = vpack.c.b16 %v2065, %v2057
    %v2434 = vpack.c.b16 %v2066, %v2058
    %v2435 = vpack.c.b16 %v2067, %v2059
    %v2436 = vpack.c.b16 %v2076, %v2068
    %v2437 = vpack.c.b16 %v2077, %v2069
    %v2438 = vpack.c.b16 %v2078, %v2070
    %v2439 = vpack.c.b16 %v2079, %v2071
    %v2440 = vpack.c.b16 %v2080, %v2072
    %v2441 = vpack.c.b16 %v2081, %v2073
    %v2442 = vpack.c.b16 %v2082, %v2074
    %v2443 = vpack.c.b16 %v2083, %v2075
    %v2444 = vpack.c.b16 %v2092, %v2084
    %v2445 = vpack.c.b16 %v2093, %v2085
    %v2446 = vpack.c.b16 %v2094, %v2086
    %v2447 = vpack.c.b16 %v2095, %v2087
    %v2448 = vpack.c.b16 %v2096, %v2088
    %v2449 = vpack.c.b16 %v2097, %v2089
    %v2450 = vpack.c.b16 %v2098, %v2090
    %v2451 = vpack.c.b16 %v2099, %v2091
    %v2452 = vpack.c.b16 %v2108, %v2100
    %v2453 = vpack.c.b16 %v2109, %v2101
    %v2454 = vpack.c.b16 %v2110, %v2102
    %v2455 = vpack.c.b16 %v2111, %v2103
    %v2456 = vpack.c.b16 %v2112, %v2104
    %v2457 = vpack.c.b16 %v2113, %v2105
    %v2458 = vpack.c.b16 %v2114, %v2106
    %v2459 = vpack.c.b16 %v2115, %v2107
    %v2460 = vpack.c.b16 %v2124, %v2116
    %v2461 = vpack.c.b16 %v2125, %v2117
    %v2462 = vpack.c.b16 %v2126, %v2118
    %v2463 = vpack.c.b16 %v2127, %v2119
    %v2464 = vpack.c.b16 %v2128, %v2120
    %v2465 = vpack.c.b16 %v2129, %v2121
    %v2466 = vpack.c.b16 %v2130, %v2122
    %v2467 = vpack.c.b16 %v2131, %v2123
    %v2468 = vpack.c.b16 %v2140, %v2132
    %v2469 = vpack.c.b16 %v2141, %v2133
    %v2470 = vpack.c.b16 %v2142, %v2134
    %v2471 = vpack.c.b16 %v2143, %v2135
    %v2472 = vpack.c.b16 %v2144, %v2136
    %v2473 = vpack.c.b16 %v2145, %v2137
    %v2474 = vpack.c.b16 %v2146, %v2138
    %v2475 = vpack.c.b16 %v2147, %v2139
    %v2476 = vpack.c.b16 %v2156, %v2148
    %v2477 = vpack.c.b16 %v2157, %v2149
    %v2478 = vpack.c.b16 %v2158, %v2150
    %v2479 = vpack.c.b16 %v2159, %v2151
    %v2480 = vpack.c.b16 %v2160, %v2152
    %v2481 = vpack.c.b16 %v2161, %v2153
    %v2482 = vpack.c.b16 %v2162, %v2154
    %v2483 = vpack.c.b16 %v2163, %v2155
    %v2484 = vpack.c.b16 %v2172, %v2164
    %v2485 = vpack.c.b16 %v2173, %v2165
    %v2486 = vpack.c.b16 %v2174, %v2166
    %v2487 = vpack.c.b16 %v2175, %v2167
    %v2488 = vpack.c.b16 %v2176, %v2168
    %v2489 = vpack.c.b16 %v2177, %v2169
    %v2490 = vpack.c.b16 %v2178, %v2170
    %v2491 = vpack.c.b16 %v2179, %v2171
    %v2492 = vpack.c.b16 %v2188, %v2180
    %v2493 = vpack.c.b16 %v2189, %v2181
    %v2494 = vpack.c.b16 %v2190, %v2182
    %v2495 = vpack.c.b16 %v2191, %v2183
    %v2496 = vpack.c.b16 %v2192, %v2184
    %v2497 = vpack.c.b16 %v2193, %v2185
    %v2498 = vpack.c.b16 %v2194, %v2186
    %v2499 = vpack.c.b16 %v2195, %v2187
    %v2500 = vpack.c.b16 %v2204, %v2196
    %v2501 = vpack.c.b16 %v2205, %v2197
    %v2502 = vpack.c.b16 %v2206, %v2198
    %v2503 = vpack.c.b16 %v2207, %v2199
    %v2504 = vpack.c.b16 %v2208, %v2200
    %v2505 = vpack.c.b16 %v2209, %v2201
    %v2506 = vpack.c.b16 %v2210, %v2202
    %v2507 = vpack.c.b16 %v2211, %v2203
    %v2508 = vpack.c.b16 %v2220, %v2212
    %v2509 = vpack.c.b16 %v2221, %v2213
    %v2510 = vpack.c.b16 %v2222, %v2214
    %v2511 = vpack.c.b16 %v2223, %v2215
    %v2512 = vpack.c.b16 %v2224, %v2216
    %v2513 = vpack.c.b16 %v2225, %v2217
    %v2514 = vpack.c.b16 %v2226, %v2218
    %v2515 = vpack.c.b16 %v2227, %v2219
    %v2516 = vpack.c.b16 %v2236, %v2228
    %v2517 = vpack.c.b16 %v2237, %v2229
    %v2518 = vpack.c.b16 %v2238, %v2230
    %v2519 = vpack.c.b16 %v2239, %v2231
    %v2520 = vpack.c.b16 %v2240, %v2232
    %v2521 = vpack.c.b16 %v2241, %v2233
    %v2522 = vpack.c.b16 %v2242, %v2234
    %v2523 = vpack.c.b16 %v2243, %v2235
    %v2524 = vpack.c.b16 %v2252, %v2244
    %v2525 = vpack.c.b16 %v2253, %v2245
    %v2526 = vpack.c.b16 %v2254, %v2246
    %v2527 = vpack.c.b16 %v2255, %v2247
    %v2528 = vpack.c.b16 %v2256, %v2248
    %v2529 = vpack.c.b16 %v2257, %v2249
    %v2530 = vpack.c.b16 %v2258, %v2250
    %v2531 = vpack.c.b16 %v2259, %v2251
    %v2532 = vpack.c.b16 %v2268, %v2260
    %v2533 = vpack.c.b16 %v2269, %v2261
    %v2534 = vpack.c.b16 %v2270, %v2262
    %v2535 = vpack.c.b16 %v2271, %v2263
    %v2536 = vpack.c.b16 %v2272, %v2264
    %v2537 = vpack.c.b16 %v2273, %v2265
    %v2538 = vpack.c.b16 %v2274, %v2266
    %v2539 = vpack.c.b16 %v2275, %v2267
    %v2540 = vpack.c.b16 %v2284, %v2276
    %v2541 = vpack.c.b16 %v2285, %v2277
    %v2542 = vpack.c.b16 %v2286, %v2278
    %v2543 = vpack.c.b16 %v2287, %v2279
    %v2544 = vpack.c.b16 %v2288, %v2280
    %v2545 = vpack.c.b16 %v2289, %v2281
    %v2546 = vpack.c.b16 %v2290, %v2282
    %v2547 = vpack.c.b16 %v2291, %v2283
    %2804 = vmatprep.subr.bf16.mxu0 %v2293
    %2805 = vmatpush1.bf16.msra.mxu0 %v2292
    %2806 = vmatprep.subr.bf16.mxu0 %v2301
    %2807 = vmatpush1.bf16.msra.mxu0 %v2300
    %2808 = vmatprep.subr.bf16.mxu0 %v2309
    %2809 = vmatpush1.bf16.msra.mxu0 %v2308
    %2810 = vmatprep.subr.bf16.mxu0 %v2317
    %2811 = vmatpush1.bf16.msra.mxu0 %v2316
    %2812 = vmatprep.subr.bf16.mxu0 %v2325
    %2813 = vmatpush1.bf16.msra.mxu0 %v2324
    %2814 = vmatprep.subr.bf16.mxu0 %v2333
    %2815 = vmatpush1.bf16.msra.mxu0 %v2332
    %2816 = vmatprep.subr.bf16.mxu0 %v2341
    %2817 = vmatpush1.bf16.msra.mxu0 %v2340
    %2818 = vmatprep.subr.bf16.mxu0 %v2349
    %2819 = vmatpush1.bf16.msra.mxu0 %v2348
    %2820 = vmatprep.subr.bf16.mxu0 %v2357
    %2821 = vmatpush1.bf16.msra.mxu0 %v2356
    %2822 = vmatprep.subr.bf16.mxu0 %v2365
    %2823 = vmatpush1.bf16.msra.mxu0 %v2364
    %2824 = vmatprep.subr.bf16.mxu0 %v2373
    %2825 = vmatpush1.bf16.msra.mxu0 %v2372
    %2826 = vmatprep.subr.bf16.mxu0 %v2381
    %2827 = vmatpush1.bf16.msra.mxu0 %v2380
    %2828 = vmatprep.subr.bf16.mxu0 %v2389
    %2829 = vmatpush1.bf16.msra.mxu0 %v2388
    %2830 = vmatprep.subr.bf16.mxu0 %v2397
    %2831 = vmatpush1.bf16.msra.mxu0 %v2396
    %2832 = vmatprep.subr.bf16.mxu0 %v2405
    %2833 = vmatpush1.bf16.msra.mxu0 %v2404
    %2834 = vmatprep.subr.bf16.mxu0 %v2413
    %2835 = vmatpush1.bf16.msra.mxu0 %v2412
    %2836 = vmatprep.mubr.bf16.mxu0 %v238
    %2837 = vmatmul.mubr.bf16.gmra.mrb[0].mxu0 %v237
    %v2838 = vpop.f32.mrb[0].mxu0
    %v2839 = vadd.f32 0.0, %v2838
    %v2840 = vpop.f32.mrb[0].mxu0
    %v2841 = vadd.f32 0.0, %v2840
    %v2842 = vpop.f32.mrb[0].mxu0
    %v2843 = vpop.f32.mrb[0].mxu0
    %2844 = vdwg.mxu0
    %2845 = vmatprep.subr.bf16.mxu0 %v2421
    %2846 = vmatpush1.bf16.msra.mxu0 %v2420
    %2847 = vmatprep.subr.bf16.mxu0 %v2429
    %2848 = vmatpush1.bf16.msra.mxu0 %v2428
    %2849 = vmatprep.subr.bf16.mxu0 %v2437
    %2850 = vmatpush1.bf16.msra.mxu0 %v2436
    %2851 = vmatprep.subr.bf16.mxu0 %v2445
    %2852 = vmatpush1.bf16.msra.mxu0 %v2444
    %2853 = vmatprep.subr.bf16.mxu0 %v2453
    %2854 = vmatpush1.bf16.msra.mxu0 %v2452
    %2855 = vmatprep.subr.bf16.mxu0 %v2461
    %2856 = vmatpush1.bf16.msra.mxu0 %v2460
    %2857 = vmatprep.subr.bf16.mxu0 %v2469
    %2858 = vmatpush1.bf16.msra.mxu0 %v2468
    %2859 = vmatprep.subr.bf16.mxu0 %v2477
    %2860 = vmatpush1.bf16.msra.mxu0 %v2476
    %2861 = vmatprep.subr.bf16.mxu0 %v2485
    %2862 = vmatpush1.bf16.msra.mxu0 %v2484
    %2863 = vmatprep.subr.bf16.mxu0 %v2493
    %2864 = vmatpush1.bf16.msra.mxu0 %v2492
    %2865 = vmatprep.subr.bf16.mxu0 %v2501
    %2866 = vmatpush1.bf16.msra.mxu0 %v2500
    %2867 = vmatprep.subr.bf16.mxu0 %v2509
    %2868 = vmatpush1.bf16.msra.mxu0 %v2508
    %2869 = vmatprep.subr.bf16.mxu0 %v2517
    %2870 = vmatpush1.bf16.msra.mxu0 %v2516
    %2871 = vmatprep.subr.bf16.mxu0 %v2525
    %2872 = vmatpush1.bf16.msra.mxu0 %v2524
    %2873 = vmatprep.subr.bf16.mxu0 %v2533
    %2874 = vmatpush1.bf16.msra.mxu0 %v2532
    %2875 = vmatprep.subr.bf16.mxu0 %v2541
    %2876 = vmatpush1.bf16.msra.mxu0 %v2540
    %2877 = vmatprep.mubr.bf16.mxu0 %v240
    %2878 = vmatmul.mubr.bf16.gmra.mrb[0].mxu0 %v239
    %v2879 = vpop.f32.mrb[0].mxu0
    %v2880 = vadd.f32 %v2839, %v2879
    %v2881 = vpop.f32.mrb[0].mxu0
    %v2882 = vadd.f32 %v2841, %v2881
    %v2883 = vpop.f32.mrb[0].mxu0
    %v2884 = vpop.f32.mrb[0].mxu0
    %2885 = vdwg.mxu0
    %2886 = vmatprep.subr.bf16.mxu0 %v2295
    %2887 = vmatpush1.bf16.msra.mxu0 %v2294
    %2888 = vmatprep.subr.bf16.mxu0 %v2303
    %2889 = vmatpush1.bf16.msra.mxu0 %v2302
    %2890 = vmatprep.subr.bf16.mxu0 %v2311
    %2891 = vmatpush1.bf16.msra.mxu0 %v2310
    %2892 = vmatprep.subr.bf16.mxu0 %v2319
    %2893 = vmatpush1.bf16.msra.mxu0 %v2318
    %2894 = vmatprep.subr.bf16.mxu0 %v2327
    %2895 = vmatpush1.bf16.msra.mxu0 %v2326
    %2896 = vmatprep.subr.bf16.mxu0 %v2335
    %2897 = vmatpush1.bf16.msra.mxu0 %v2334
    %2898 = vmatprep.subr.bf16.mxu0 %v2343
    %2899 = vmatpush1.bf16.msra.mxu0 %v2342
    %2900 = vmatprep.subr.bf16.mxu0 %v2351
    %2901 = vmatpush1.bf16.msra.mxu0 %v2350
    %2902 = vmatprep.subr.bf16.mxu0 %v2359
    %2903 = vmatpush1.bf16.msra.mxu0 %v2358
    %2904 = vmatprep.subr.bf16.mxu0 %v2367
    %2905 = vmatpush1.bf16.msra.mxu0 %v2366
    %2906 = vmatprep.subr.bf16.mxu0 %v2375
    %2907 = vmatpush1.bf16.msra.mxu0 %v2374
    %2908 = vmatprep.subr.bf16.mxu0 %v2383
    %2909 = vmatpush1.bf16.msra.mxu0 %v2382
    %2910 = vmatprep.subr.bf16.mxu0 %v2391
    %2911 = vmatpush1.bf16.msra.mxu0 %v2390
    %2912 = vmatprep.subr.bf16.mxu0 %v2399
    %2913 = vmatpush1.bf16.msra.mxu0 %v2398
    %2914 = vmatprep.subr.bf16.mxu0 %v2407
    %2915 = vmatpush1.bf16.msra.mxu0 %v2406
    %2916 = vmatprep.subr.bf16.mxu0 %v2415
    %2917 = vmatpush1.bf16.msra.mxu0 %v2414
    %2918 = vmatprep.mubr.bf16.mxu0 %v238
    %2919 = vmatmul.mubr.bf16.gmra.mrb[0].mxu0 %v237
    %v2920 = vpop.f32.mrb[0].mxu0
    %v2921 = vadd.f32 0.0, %v2920
    %v2922 = vpop.f32.mrb[0].mxu0
    %v2923 = vadd.f32 0.0, %v2922
    %v2924 = vpop.f32.mrb[0].mxu0
    %v2925 = vpop.f32.mrb[0].mxu0
    %2926 = vdwg.mxu0
    %2927 = vmatprep.subr.bf16.mxu0 %v2423
    %2928 = vmatpush1.bf16.msra.mxu0 %v2422
    %2929 = vmatprep.subr.bf16.mxu0 %v2431
    %2930 = vmatpush1.bf16.msra.mxu0 %v2430
    %2931 = vmatprep.subr.bf16.mxu0 %v2439
    %2932 = vmatpush1.bf16.msra.mxu0 %v2438
    %2933 = vmatprep.subr.bf16.mxu0 %v2447
    %2934 = vmatpush1.bf16.msra.mxu0 %v2446
    %2935 = vmatprep.subr.bf16.mxu0 %v2455
    %2936 = vmatpush1.bf16.msra.mxu0 %v2454
    %2937 = vmatprep.subr.bf16.mxu0 %v2463
    %2938 = vmatpush1.bf16.msra.mxu0 %v2462
    %2939 = vmatprep.subr.bf16.mxu0 %v2471
    %2940 = vmatpush1.bf16.msra.mxu0 %v2470
    %2941 = vmatprep.subr.bf16.mxu0 %v2479
    %2942 = vmatpush1.bf16.msra.mxu0 %v2478
    %2943 = vmatprep.subr.bf16.mxu0 %v2487
    %2944 = vmatpush1.bf16.msra.mxu0 %v2486
    %2945 = vmatprep.subr.bf16.mxu0 %v2495
    %2946 = vmatpush1.bf16.msra.mxu0 %v2494
    %2947 = vmatprep.subr.bf16.mxu0 %v2503
    %2948 = vmatpush1.bf16.msra.mxu0 %v2502
    %2949 = vmatprep.subr.bf16.mxu0 %v2511
    %2950 = vmatpush1.bf16.msra.mxu0 %v2510
    %2951 = vmatprep.subr.bf16.mxu0 %v2519
    %2952 = vmatpush1.bf16.msra.mxu0 %v2518
    %2953 = vmatprep.subr.bf16.mxu0 %v2527
    %2954 = vmatpush1.bf16.msra.mxu0 %v2526
    %2955 = vmatprep.subr.bf16.mxu0 %v2535
    %2956 = vmatpush1.bf16.msra.mxu0 %v2534
    %2957 = vmatprep.subr.bf16.mxu0 %v2543
    %2958 = vmatpush1.bf16.msra.mxu0 %v2542
    %2959 = vmatprep.mubr.bf16.mxu0 %v240
    %2960 = vmatmul.mubr.bf16.gmra.mrb[0].mxu0 %v239
    %v2961 = vpop.f32.mrb[0].mxu0
    %v2962 = vadd.f32 %v2921, %v2961
    %v2963 = vpop.f32.mrb[0].mxu0
    %v2964 = vadd.f32 %v2923, %v2963
    %v2965 = vpop.f32.mrb[0].mxu0
    %v2966 = vpop.f32.mrb[0].mxu0
    %2967 = vdwg.mxu0
    %2968 = vmatprep.subr.bf16.mxu0 %v2297
    %2969 = vmatpush1.bf16.msra.mxu0 %v2296
    %2970 = vmatprep.subr.bf16.mxu0 %v2305
    %2971 = vmatpush1.bf16.msra.mxu0 %v2304
    %2972 = vmatprep.subr.bf16.mxu0 %v2313
    %2973 = vmatpush1.bf16.msra.mxu0 %v2312
    %2974 = vmatprep.subr.bf16.mxu0 %v2321
    %2975 = vmatpush1.bf16.msra.mxu0 %v2320
    %2976 = vmatprep.subr.bf16.mxu0 %v2329
    %2977 = vmatpush1.bf16.msra.mxu0 %v2328
    %2978 = vmatprep.subr.bf16.mxu0 %v2337
    %2979 = vmatpush1.bf16.msra.mxu0 %v2336
    %2980 = vmatprep.subr.bf16.mxu0 %v2345
    %2981 = vmatpush1.bf16.msra.mxu0 %v2344
    %2982 = vmatprep.subr.bf16.mxu0 %v2353
    %2983 = vmatpush1.bf16.msra.mxu0 %v2352
    %2984 = vmatprep.subr.bf16.mxu0 %v2361
    %2985 = vmatpush1.bf16.msra.mxu0 %v2360
    %2986 = vmatprep.subr.bf16.mxu0 %v2369
    %2987 = vmatpush1.bf16.msra.mxu0 %v2368
    %2988 = vmatprep.subr.bf16.mxu0 %v2377
    %2989 = vmatpush1.bf16.msra.mxu0 %v2376
    %2990 = vmatprep.subr.bf16.mxu0 %v2385
    %2991 = vmatpush1.bf16.msra.mxu0 %v2384
    %2992 = vmatprep.subr.bf16.mxu0 %v2393
    %2993 = vmatpush1.bf16.msra.mxu0 %v2392
    %2994 = vmatprep.subr.bf16.mxu0 %v2401
    %2995 = vmatpush1.bf16.msra.mxu0 %v2400
    %2996 = vmatprep.subr.bf16.mxu0 %v2409
    %2997 = vmatpush1.bf16.msra.mxu0 %v2408
    %2998 = vmatprep.subr.bf16.mxu0 %v2417
    %2999 = vmatpush1.bf16.msra.mxu0 %v2416
    %3000 = vmatprep.mubr.bf16.mxu0 %v238
    %3001 = vmatmul.mubr.bf16.gmra.mrb[0].mxu0 %v237
    %v3002 = vpop.f32.mrb[0].mxu0
    %v3003 = vadd.f32 0.0, %v3002
    %v3004 = vpop.f32.mrb[0].mxu0
    %v3005 = vadd.f32 0.0, %v3004
    %v3006 = vpop.f32.mrb[0].mxu0
    %v3007 = vpop.f32.mrb[0].mxu0
    %3008 = vdwg.mxu0
    %3009 = vmatprep.subr.bf16.mxu0 %v2425
    %3010 = vmatpush1.bf16.msra.mxu0 %v2424
    %3011 = vmatprep.subr.bf16.mxu0 %v2433
    %3012 = vmatpush1.bf16.msra.mxu0 %v2432
    %3013 = vmatprep.subr.bf16.mxu0 %v2441
    %3014 = vmatpush1.bf16.msra.mxu0 %v2440
    %3015 = vmatprep.subr.bf16.mxu0 %v2449
    %3016 = vmatpush1.bf16.msra.mxu0 %v2448
    %3017 = vmatprep.subr.bf16.mxu0 %v2457
    %3018 = vmatpush1.bf16.msra.mxu0 %v2456
    %3019 = vmatprep.subr.bf16.mxu0 %v2465
    %3020 = vmatpush1.bf16.msra.mxu0 %v2464
    %3021 = vmatprep.subr.bf16.mxu0 %v2473
    %3022 = vmatpush1.bf16.msra.mxu0 %v2472
    %3023 = vmatprep.subr.bf16.mxu0 %v2481
    %3024 = vmatpush1.bf16.msra.mxu0 %v2480
    %3025 = vmatprep.subr.bf16.mxu0 %v2489
    %3026 = vmatpush1.bf16.msra.mxu0 %v2488
    %3027 = vmatprep.subr.bf16.mxu0 %v2497
    %3028 = vmatpush1.bf16.msra.mxu0 %v2496
    %3029 = vmatprep.subr.bf16.mxu0 %v2505
    %3030 = vmatpush1.bf16.msra.mxu0 %v2504
    %3031 = vmatprep.subr.bf16.mxu0 %v2513
    %3032 = vmatpush1.bf16.msra.mxu0 %v2512
    %3033 = vmatprep.subr.bf16.mxu0 %v2521
    %3034 = vmatpush1.bf16.msra.mxu0 %v2520
    %3035 = vmatprep.subr.bf16.mxu0 %v2529
    %3036 = vmatpush1.bf16.msra.mxu0 %v2528
    %3037 = vmatprep.subr.bf16.mxu0 %v2537
    %3038 = vmatpush1.bf16.msra.mxu0 %v2536
    %3039 = vmatprep.subr.bf16.mxu0 %v2545
    %3040 = vmatpush1.bf16.msra.mxu0 %v2544
    %3041 = vmatprep.mubr.bf16.mxu0 %v240
    %3042 = vmatmul.mubr.bf16.gmra.mrb[0].mxu0 %v239
    %v3043 = vpop.f32.mrb[0].mxu0
    %v3044 = vadd.f32 %v3003, %v3043
    %v3045 = vpop.f32.mrb[0].mxu0
    %v3046 = vadd.f32 %v3005, %v3045
    %v3047 = vpop.f32.mrb[0].mxu0
    %v3048 = vpop.f32.mrb[0].mxu0
    %3049 = vdwg.mxu0
    %3050 = vmatprep.subr.bf16.mxu0 %v2299
    %3051 = vmatpush1.bf16.msra.mxu0 %v2298
    %3052 = vmatprep.subr.bf16.mxu0 %v2307
    %3053 = vmatpush1.bf16.msra.mxu0 %v2306
    %3054 = vmatprep.subr.bf16.mxu0 %v2315
    %3055 = vmatpush1.bf16.msra.mxu0 %v2314
    %3056 = vmatprep.subr.bf16.mxu0 %v2323
    %3057 = vmatpush1.bf16.msra.mxu0 %v2322
    %3058 = vmatprep.subr.bf16.mxu0 %v2331
    %3059 = vmatpush1.bf16.msra.mxu0 %v2330
    %3060 = vmatprep.subr.bf16.mxu0 %v2339
    %3061 = vmatpush1.bf16.msra.mxu0 %v2338
    %3062 = vmatprep.subr.bf16.mxu0 %v2347
    %3063 = vmatpush1.bf16.msra.mxu0 %v2346
    %3064 = vmatprep.subr.bf16.mxu0 %v2355
    %3065 = vmatpush1.bf16.msra.mxu0 %v2354
    %3066 = vmatprep.subr.bf16.mxu0 %v2363
    %3067 = vmatpush1.bf16.msra.mxu0 %v2362
    %3068 = vmatprep.subr.bf16.mxu0 %v2371
    %3069 = vmatpush1.bf16.msra.mxu0 %v2370
    %3070 = vmatprep.subr.bf16.mxu0 %v2379
    %3071 = vmatpush1.bf16.msra.mxu0 %v2378
    %3072 = vmatprep.subr.bf16.mxu0 %v2387
    %3073 = vmatpush1.bf16.msra.mxu0 %v2386
    %3074 = vmatprep.subr.bf16.mxu0 %v2395
    %3075 = vmatpush1.bf16.msra.mxu0 %v2394
    %3076 = vmatprep.subr.bf16.mxu0 %v2403
    %3077 = vmatpush1.bf16.msra.mxu0 %v2402
    %3078 = vmatprep.subr.bf16.mxu0 %v2411
    %3079 = vmatpush1.bf16.msra.mxu0 %v2410
    %3080 = vmatprep.subr.bf16.mxu0 %v2419
    %3081 = vmatpush1.bf16.msra.mxu0 %v2418
    %3082 = vmatprep.mubr.bf16.mxu0 %v238
    %3083 = vmatmul.mubr.bf16.gmra.mrb[0].mxu0 %v237
    %v3084 = vpop.f32.mrb[0].mxu0
    %v3085 = vadd.f32 0.0, %v3084
    %v3086 = vpop.f32.mrb[0].mxu0
    %v3087 = vadd.f32 0.0, %v3086
    %v3088 = vpop.f32.mrb[0].mxu0
    %v3089 = vpop.f32.mrb[0].mxu0
    %3090 = vdwg.mxu0
    %3091 = vmatprep.subr.bf16.mxu0 %v2427
    %3092 = vmatpush1.bf16.msra.mxu0 %v2426
    %3093 = vmatprep.subr.bf16.mxu0 %v2435
    %3094 = vmatpush1.bf16.msra.mxu0 %v2434
    %3095 = vmatprep.subr.bf16.mxu0 %v2443
    %3096 = vmatpush1.bf16.msra.mxu0 %v2442
    %3097 = vmatprep.subr.bf16.mxu0 %v2451
    %3098 = vmatpush1.bf16.msra.mxu0 %v2450
    %3099 = vmatprep.subr.bf16.mxu0 %v2459
    %3100 = vmatpush1.bf16.msra.mxu0 %v2458
    %3101 = vmatprep.subr.bf16.mxu0 %v2467
    %3102 = vmatpush1.bf16.msra.mxu0 %v2466
    %3103 = vmatprep.subr.bf16.mxu0 %v2475
    %3104 = vmatpush1.bf16.msra.mxu0 %v2474
    %3105 = vmatprep.subr.bf16.mxu0 %v2483
    %3106 = vmatpush1.bf16.msra.mxu0 %v2482
    %3107 = vmatprep.subr.bf16.mxu0 %v2491
    %3108 = vmatpush1.bf16.msra.mxu0 %v2490
    %3109 = vmatprep.subr.bf16.mxu0 %v2499
    %3110 = vmatpush1.bf16.msra.mxu0 %v2498
    %3111 = vmatprep.subr.bf16.mxu0 %v2507
    %3112 = vmatpush1.bf16.msra.mxu0 %v2506
    %3113 = vmatprep.subr.bf16.mxu0 %v2515
    %3114 = vmatpush1.bf16.msra.mxu0 %v2514
    %3115 = vmatprep.subr.bf16.mxu0 %v2523
    %3116 = vmatpush1.bf16.msra.mxu0 %v2522
    %3117 = vmatprep.subr.bf16.mxu0 %v2531
    %3118 = vmatpush1.bf16.msra.mxu0 %v2530
    %3119 = vmatprep.subr.bf16.mxu0 %v2539
    %3120 = vmatpush1.bf16.msra.mxu0 %v2538
    %3121 = vmatprep.subr.bf16.mxu0 %v2547
    %3122 = vmatpush1.bf16.msra.mxu0 %v2546
    %3123 = vmatprep.mubr.bf16.mxu0 %v240
    %3124 = vmatmul.mubr.bf16.gmra.mrb[0].mxu0 %v239
    %v3125 = vpop.f32.mrb[0].mxu0
    %v3126 = vadd.f32 %v3085, %v3125
    %v3127 = vpop.f32.mrb[0].mxu0
    %v3128 = vadd.f32 %v3087, %v3127
    %v3129 = vpop.f32.mrb[0].mxu0
    %v3130 = vpop.f32.mrb[0].mxu0
    %3131 = vdwg.mxu0
    %v4156 = vunpack.c.l.b16 %v244
    %v4157 = vunpack.c.h.b16 %v244
    %v4158 = vunpack.c.l.b16 %v245
    %v4159 = vunpack.c.h.b16 %v245
    %v4160 = vunpack.c.l.b16 %v246
    %v4161 = vunpack.c.h.b16 %v246
    %v4162 = vunpack.c.l.b16 %v247
    %v4163 = vunpack.c.h.b16 %v247
    %v4164 = vunpack.c.l.b16 %v248
    %v4165 = vunpack.c.h.b16 %v248
    %v4166 = vunpack.c.l.b16 %v249
    %v4167 = vunpack.c.h.b16 %v249
    %v4168 = vunpack.c.l.b16 %v250
    %v4169 = vunpack.c.h.b16 %v250
    %v4170 = vunpack.c.l.b16 %v251
    %v4171 = vunpack.c.h.b16 %v251
    %v4172 = vunpack.c.l.b16 %v252
    %v4173 = vunpack.c.h.b16 %v252
    %v4174 = vunpack.c.l.b16 %v253
    %v4175 = vunpack.c.h.b16 %v253
    %v4176 = vunpack.c.l.b16 %v254
    %v4177 = vunpack.c.h.b16 %v254
    %v4178 = vunpack.c.l.b16 %v255
    %v4179 = vunpack.c.h.b16 %v255
    %v4180 = vunpack.c.l.b16 %v256
    %v4181 = vunpack.c.h.b16 %v256
    %v4182 = vunpack.c.l.b16 %v257
    %v4183 = vunpack.c.h.b16 %v257
    %v4184 = vunpack.c.l.b16 %v258
    %v4185 = vunpack.c.h.b16 %v258
    %v4186 = vunpack.c.l.b16 %v259
    %v4187 = vunpack.c.h.b16 %v259
    %v4188 = vunpack.c.l.b16 %v260
    %v4189 = vunpack.c.h.b16 %v260
    %v4190 = vunpack.c.l.b16 %v261
    %v4191 = vunpack.c.h.b16 %v261
    %v4192 = vunpack.c.l.b16 %v262
    %v4193 = vunpack.c.h.b16 %v262
    %v4194 = vunpack.c.l.b16 %v263
    %v4195 = vunpack.c.h.b16 %v263
    %v4196 = vunpack.c.l.b16 %v264
    %v4197 = vunpack.c.h.b16 %v264
    %v4198 = vunpack.c.l.b16 %v265
    %v4199 = vunpack.c.h.b16 %v265
    %v4200 = vunpack.c.l.b16 %v266
    %v4201 = vunpack.c.h.b16 %v266
    %v4202 = vunpack.c.l.b16 %v267
    %v4203 = vunpack.c.h.b16 %v267
    %v4204 = vunpack.c.l.b16 %v268
    %v4205 = vunpack.c.h.b16 %v268
    %v4206 = vunpack.c.l.b16 %v269
    %v4207 = vunpack.c.h.b16 %v269
    %v4208 = vunpack.c.l.b16 %v270
    %v4209 = vunpack.c.h.b16 %v270
    %v4210 = vunpack.c.l.b16 %v271
    %v4211 = vunpack.c.h.b16 %v271
    %v4212 = vunpack.c.l.b16 %v272
    %v4213 = vunpack.c.h.b16 %v272
    %v4214 = vunpack.c.l.b16 %v273
    %v4215 = vunpack.c.h.b16 %v273
    %v4216 = vunpack.c.l.b16 %v274
    %v4217 = vunpack.c.h.b16 %v274
    %v4218 = vunpack.c.l.b16 %v275
    %v4219 = vunpack.c.h.b16 %v275
    %v4220 = vunpack.c.l.b16 %v276
    %v4221 = vunpack.c.h.b16 %v276
    %v4222 = vunpack.c.l.b16 %v277
    %v4223 = vunpack.c.h.b16 %v277
    %v4224 = vunpack.c.l.b16 %v278
    %v4225 = vunpack.c.h.b16 %v278
    %v4226 = vunpack.c.l.b16 %v279
    %v4227 = vunpack.c.h.b16 %v279
    %v4228 = vunpack.c.l.b16 %v280
    %v4229 = vunpack.c.h.b16 %v280
    %v4230 = vunpack.c.l.b16 %v281
    %v4231 = vunpack.c.h.b16 %v281
    %v4232 = vunpack.c.l.b16 %v282
    %v4233 = vunpack.c.h.b16 %v282
    %v4234 = vunpack.c.l.b16 %v283
    %v4235 = vunpack.c.h.b16 %v283
    %v4236 = vunpack.c.l.b16 %v284
    %v4237 = vunpack.c.h.b16 %v284
    %v4238 = vunpack.c.l.b16 %v285
    %v4239 = vunpack.c.h.b16 %v285
    %v4240 = vunpack.c.l.b16 %v286
    %v4241 = vunpack.c.h.b16 %v286
    %v4242 = vunpack.c.l.b16 %v287
    %v4243 = vunpack.c.h.b16 %v287
    %v4244 = vunpack.c.l.b16 %v288
    %v4245 = vunpack.c.h.b16 %v288
    %v4246 = vunpack.c.l.b16 %v289
    %v4247 = vunpack.c.h.b16 %v289
    %v4248 = vunpack.c.l.b16 %v290
    %v4249 = vunpack.c.h.b16 %v290
    %v4250 = vunpack.c.l.b16 %v291
    %v4251 = vunpack.c.h.b16 %v291
    %v4252 = vunpack.c.l.b16 %v292
    %v4253 = vunpack.c.h.b16 %v292
    %v4254 = vunpack.c.l.b16 %v293
    %v4255 = vunpack.c.h.b16 %v293
    %v4256 = vunpack.c.l.b16 %v294
    %v4257 = vunpack.c.h.b16 %v294
    %v4258 = vunpack.c.l.b16 %v295
    %v4259 = vunpack.c.h.b16 %v295
    %v4260 = vunpack.c.l.b16 %v296
    %v4261 = vunpack.c.h.b16 %v296
    %v4262 = vunpack.c.l.b16 %v297
    %v4263 = vunpack.c.h.b16 %v297
    %v4264 = vunpack.c.l.b16 %v298
    %v4265 = vunpack.c.h.b16 %v298
    %v4266 = vunpack.c.l.b16 %v299
    %v4267 = vunpack.c.h.b16 %v299
    %v4268 = vunpack.c.l.b16 %v300
    %v4269 = vunpack.c.h.b16 %v300
    %v4270 = vunpack.c.l.b16 %v301
    %v4271 = vunpack.c.h.b16 %v301
    %v4272 = vunpack.c.l.b16 %v302
    %v4273 = vunpack.c.h.b16 %v302
    %v4274 = vunpack.c.l.b16 %v303
    %v4275 = vunpack.c.h.b16 %v303
    %v4276 = vunpack.c.l.b16 %v304
    %v4277 = vunpack.c.h.b16 %v304
    %v4278 = vunpack.c.l.b16 %v305
    %v4279 = vunpack.c.h.b16 %v305
    %v4280 = vunpack.c.l.b16 %v306
    %v4281 = vunpack.c.h.b16 %v306
    %v4282 = vunpack.c.l.b16 %v307
    %v4283 = vunpack.c.h.b16 %v307
    %v4284 = vunpack.c.l.b16 %v308
    %v4285 = vunpack.c.h.b16 %v308
    %v4286 = vunpack.c.l.b16 %v309
    %v4287 = vunpack.c.h.b16 %v309
    %v4288 = vunpack.c.l.b16 %v310
    %v4289 = vunpack.c.h.b16 %v310
    %v4290 = vunpack.c.l.b16 %v311
    %v4291 = vunpack.c.h.b16 %v311
    %v4292 = vunpack.c.l.b16 %v312
    %v4293 = vunpack.c.h.b16 %v312
    %v4294 = vunpack.c.l.b16 %v313
    %v4295 = vunpack.c.h.b16 %v313
    %v4296 = vunpack.c.l.b16 %v314
    %v4297 = vunpack.c.h.b16 %v314
    %v4298 = vunpack.c.l.b16 %v315
    %v4299 = vunpack.c.h.b16 %v315
    %v4300 = vunpack.c.l.b16 %v316
    %v4301 = vunpack.c.h.b16 %v316
    %v4302 = vunpack.c.l.b16 %v317
    %v4303 = vunpack.c.h.b16 %v317
    %v4304 = vunpack.c.l.b16 %v318
    %v4305 = vunpack.c.h.b16 %v318
    %v4306 = vunpack.c.l.b16 %v319
    %v4307 = vunpack.c.h.b16 %v319
    %v4308 = vunpack.c.l.b16 %v320
    %v4309 = vunpack.c.h.b16 %v320
    %v4310 = vunpack.c.l.b16 %v321
    %v4311 = vunpack.c.h.b16 %v321
    %v4312 = vunpack.c.l.b16 %v322
    %v4313 = vunpack.c.h.b16 %v322
    %v4314 = vunpack.c.l.b16 %v323
    %v4315 = vunpack.c.h.b16 %v323
    %v4316 = vunpack.c.l.b16 %v324
    %v4317 = vunpack.c.h.b16 %v324
    %v4318 = vunpack.c.l.b16 %v325
    %v4319 = vunpack.c.h.b16 %v325
    %v4320 = vunpack.c.l.b16 %v326
    %v4321 = vunpack.c.h.b16 %v326
    %v4322 = vunpack.c.l.b16 %v327
    %v4323 = vunpack.c.h.b16 %v327
    %v4324 = vunpack.c.l.b16 %v328
    %v4325 = vunpack.c.h.b16 %v328
    %v4326 = vunpack.c.l.b16 %v329
    %v4327 = vunpack.c.h.b16 %v329
    %v4328 = vunpack.c.l.b16 %v330
    %v4329 = vunpack.c.h.b16 %v330
    %v4330 = vunpack.c.l.b16 %v331
    %v4331 = vunpack.c.h.b16 %v331
    %v4332 = vunpack.c.l.b16 %v332
    %v4333 = vunpack.c.h.b16 %v332
    %v4334 = vunpack.c.l.b16 %v333
    %v4335 = vunpack.c.h.b16 %v333
    %v4336 = vunpack.c.l.b16 %v334
    %v4337 = vunpack.c.h.b16 %v334
    %v4338 = vunpack.c.l.b16 %v335
    %v4339 = vunpack.c.h.b16 %v335
    %v4340 = vunpack.c.l.b16 %v336
    %v4341 = vunpack.c.h.b16 %v336
    %v4342 = vunpack.c.l.b16 %v337
    %v4343 = vunpack.c.h.b16 %v337
    %v4344 = vunpack.c.l.b16 %v338
    %v4345 = vunpack.c.h.b16 %v338
    %v4346 = vunpack.c.l.b16 %v339
    %v4347 = vunpack.c.h.b16 %v339
    %v4348 = vunpack.c.l.b16 %v340
    %v4349 = vunpack.c.h.b16 %v340
    %v4350 = vunpack.c.l.b16 %v341
    %v4351 = vunpack.c.h.b16 %v341
    %v4352 = vunpack.c.l.b16 %v342
    %v4353 = vunpack.c.h.b16 %v342
    %v4354 = vunpack.c.l.b16 %v343
    %v4355 = vunpack.c.h.b16 %v343
    %v4356 = vunpack.c.l.b16 %v344
    %v4357 = vunpack.c.h.b16 %v344
    %v4358 = vunpack.c.l.b16 %v345
    %v4359 = vunpack.c.h.b16 %v345
    %v4360 = vunpack.c.l.b16 %v346
    %v4361 = vunpack.c.h.b16 %v346
    %v4362 = vunpack.c.l.b16 %v347
    %v4363 = vunpack.c.h.b16 %v347
    %v4364 = vunpack.c.l.b16 %v348
    %v4365 = vunpack.c.h.b16 %v348
    %v4366 = vunpack.c.l.b16 %v349
    %v4367 = vunpack.c.h.b16 %v349
    %v4368 = vunpack.c.l.b16 %v350
    %v4369 = vunpack.c.h.b16 %v350
    %v4370 = vunpack.c.l.b16 %v351
    %v4371 = vunpack.c.h.b16 %v351
    %v4372 = vunpack.c.l.b16 %v352
    %v4373 = vunpack.c.h.b16 %v352
    %v4374 = vunpack.c.l.b16 %v353
    %v4375 = vunpack.c.h.b16 %v353
    %v4376 = vunpack.c.l.b16 %v354
    %v4377 = vunpack.c.h.b16 %v354
    %v4378 = vunpack.c.l.b16 %v355
    %v4379 = vunpack.c.h.b16 %v355
    %v4380 = vunpack.c.l.b16 %v356
    %v4381 = vunpack.c.h.b16 %v356
    %v4382 = vunpack.c.l.b16 %v357
    %v4383 = vunpack.c.h.b16 %v357
    %v4384 = vunpack.c.l.b16 %v358
    %v4385 = vunpack.c.h.b16 %v358
    %v4386 = vunpack.c.l.b16 %v359
    %v4387 = vunpack.c.h.b16 %v359
    %v4388 = vunpack.c.l.b16 %v360
    %v4389 = vunpack.c.h.b16 %v360
    %v4390 = vunpack.c.l.b16 %v361
    %v4391 = vunpack.c.h.b16 %v361
    %v4392 = vunpack.c.l.b16 %v362
    %v4393 = vunpack.c.h.b16 %v362
    %v4394 = vunpack.c.l.b16 %v363
    %v4395 = vunpack.c.h.b16 %v363
    %v4396 = vunpack.c.l.b16 %v364
    %v4397 = vunpack.c.h.b16 %v364
    %v4398 = vunpack.c.l.b16 %v365
    %v4399 = vunpack.c.h.b16 %v365
    %v4400 = vunpack.c.l.b16 %v366
    %v4401 = vunpack.c.h.b16 %v366
    %v4402 = vunpack.c.l.b16 %v367
    %v4403 = vunpack.c.h.b16 %v367
    %v4404 = vunpack.c.l.b16 %v368
    %v4405 = vunpack.c.h.b16 %v368
    %v4406 = vunpack.c.l.b16 %v369
    %v4407 = vunpack.c.h.b16 %v369
    %v4408 = vunpack.c.l.b16 %v370
    %v4409 = vunpack.c.h.b16 %v370
    %v4410 = vunpack.c.l.b16 %v371
    %v4411 = vunpack.c.h.b16 %v371
    %v4412 = vunpack.c.l.b16 %v372
    %v4413 = vunpack.c.h.b16 %v372
    %v4414 = vunpack.c.l.b16 %v373
    %v4415 = vunpack.c.h.b16 %v373
    %v4416 = vunpack.c.l.b16 %v374
    %v4417 = vunpack.c.h.b16 %v374
    %v4418 = vunpack.c.l.b16 %v375
    %v4419 = vunpack.c.h.b16 %v375
    %v4420 = vunpack.c.l.b16 %v376
    %v4421 = vunpack.c.h.b16 %v376
    %v4422 = vunpack.c.l.b16 %v377
    %v4423 = vunpack.c.h.b16 %v377
    %v4424 = vunpack.c.l.b16 %v378
    %v4425 = vunpack.c.h.b16 %v378
    %v4426 = vunpack.c.l.b16 %v379
    %v4427 = vunpack.c.h.b16 %v379
    %v4428 = vunpack.c.l.b16 %v380
    %v4429 = vunpack.c.h.b16 %v380
    %v4430 = vunpack.c.l.b16 %v381
    %v4431 = vunpack.c.h.b16 %v381
    %v4432 = vunpack.c.l.b16 %v382
    %v4433 = vunpack.c.h.b16 %v382
    %v4434 = vunpack.c.l.b16 %v383
    %v4435 = vunpack.c.h.b16 %v383
    %v4436 = vunpack.c.l.b16 %v384
    %v4437 = vunpack.c.h.b16 %v384
    %v4438 = vunpack.c.l.b16 %v385
    %v4439 = vunpack.c.h.b16 %v385
    %v4440 = vunpack.c.l.b16 %v386
    %v4441 = vunpack.c.h.b16 %v386
    %v4442 = vunpack.c.l.b16 %v387
    %v4443 = vunpack.c.h.b16 %v387
    %v4444 = vunpack.c.l.b16 %v388
    %v4445 = vunpack.c.h.b16 %v388
    %v4446 = vunpack.c.l.b16 %v389
    %v4447 = vunpack.c.h.b16 %v389
    %v4448 = vunpack.c.l.b16 %v390
    %v4449 = vunpack.c.h.b16 %v390
    %v4450 = vunpack.c.l.b16 %v391
    %v4451 = vunpack.c.h.b16 %v391
    %v4452 = vunpack.c.l.b16 %v392
    %v4453 = vunpack.c.h.b16 %v392
    %v4454 = vunpack.c.l.b16 %v393
    %v4455 = vunpack.c.h.b16 %v393
    %v4456 = vunpack.c.l.b16 %v394
    %v4457 = vunpack.c.h.b16 %v394
    %v4458 = vunpack.c.l.b16 %v395
    %v4459 = vunpack.c.h.b16 %v395
    %v4460 = vunpack.c.l.b16 %v396
    %v4461 = vunpack.c.h.b16 %v396
    %v4462 = vunpack.c.l.b16 %v397
    %v4463 = vunpack.c.h.b16 %v397
    %v4464 = vunpack.c.l.b16 %v398
    %v4465 = vunpack.c.h.b16 %v398
    %v4466 = vunpack.c.l.b16 %v399
    %v4467 = vunpack.c.h.b16 %v399
    %v4468 = vunpack.c.l.b16 %v400
    %v4469 = vunpack.c.h.b16 %v400
    %v4470 = vunpack.c.l.b16 %v401
    %v4471 = vunpack.c.h.b16 %v401
    %v4472 = vunpack.c.l.b16 %v402
    %v4473 = vunpack.c.h.b16 %v402
    %v4474 = vunpack.c.l.b16 %v403
    %v4475 = vunpack.c.h.b16 %v403
    %v4476 = vunpack.c.l.b16 %v404
    %v4477 = vunpack.c.h.b16 %v404
    %v4478 = vunpack.c.l.b16 %v405
    %v4479 = vunpack.c.h.b16 %v405
    %v4480 = vunpack.c.l.b16 %v406
    %v4481 = vunpack.c.h.b16 %v406
    %v4482 = vunpack.c.l.b16 %v407
    %v4483 = vunpack.c.h.b16 %v407
    %v4484 = vunpack.c.l.b16 %v408
    %v4485 = vunpack.c.h.b16 %v408
    %v4486 = vunpack.c.l.b16 %v409
    %v4487 = vunpack.c.h.b16 %v409
    %v4488 = vunpack.c.l.b16 %v410
    %v4489 = vunpack.c.h.b16 %v410
    %v4490 = vunpack.c.l.b16 %v411
    %v4491 = vunpack.c.h.b16 %v411
    %v4492 = vunpack.c.l.b16 %v412
    %v4493 = vunpack.c.h.b16 %v412
    %v4494 = vunpack.c.l.b16 %v413
    %v4495 = vunpack.c.h.b16 %v413
    %v4496 = vunpack.c.l.b16 %v414
    %v4497 = vunpack.c.h.b16 %v414
    %v4498 = vunpack.c.l.b16 %v415
    %v4499 = vunpack.c.h.b16 %v415
    %v4500 = vunpack.c.l.b16 %v416
    %v4501 = vunpack.c.h.b16 %v416
    %v4502 = vunpack.c.l.b16 %v417
    %v4503 = vunpack.c.h.b16 %v417
    %v4504 = vunpack.c.l.b16 %v418
    %v4505 = vunpack.c.h.b16 %v418
    %v4506 = vunpack.c.l.b16 %v419
    %v4507 = vunpack.c.h.b16 %v419
    %v4508 = vunpack.c.l.b16 %v420
    %v4509 = vunpack.c.h.b16 %v420
    %v4510 = vunpack.c.l.b16 %v421
    %v4511 = vunpack.c.h.b16 %v421
    %v4512 = vunpack.c.l.b16 %v422
    %v4513 = vunpack.c.h.b16 %v422
    %v4514 = vunpack.c.l.b16 %v423
    %v4515 = vunpack.c.h.b16 %v423
    %v4516 = vunpack.c.l.b16 %v424
    %v4517 = vunpack.c.h.b16 %v424
    %v4518 = vunpack.c.l.b16 %v425
    %v4519 = vunpack.c.h.b16 %v425
    %v4520 = vunpack.c.l.b16 %v426
    %v4521 = vunpack.c.h.b16 %v426
    %v4522 = vunpack.c.l.b16 %v427
    %v4523 = vunpack.c.h.b16 %v427
    %v4524 = vunpack.c.l.b16 %v428
    %v4525 = vunpack.c.h.b16 %v428
    %v4526 = vunpack.c.l.b16 %v429
    %v4527 = vunpack.c.h.b16 %v429
    %v4528 = vunpack.c.l.b16 %v430
    %v4529 = vunpack.c.h.b16 %v430
    %v4530 = vunpack.c.l.b16 %v431
    %v4531 = vunpack.c.h.b16 %v431
    %v4532 = vunpack.c.l.b16 %v432
    %v4533 = vunpack.c.h.b16 %v432
    %v4534 = vunpack.c.l.b16 %v433
    %v4535 = vunpack.c.h.b16 %v433
    %v4536 = vunpack.c.l.b16 %v434
    %v4537 = vunpack.c.h.b16 %v434
    %v4538 = vunpack.c.l.b16 %v435
    %v4539 = vunpack.c.h.b16 %v435
    %v4540 = vunpack.c.l.b16 %v436
    %v4541 = vunpack.c.h.b16 %v436
    %v4542 = vunpack.c.l.b16 %v437
    %v4543 = vunpack.c.h.b16 %v437
    %v4544 = vunpack.c.l.b16 %v438
    %v4545 = vunpack.c.h.b16 %v438
    %v4546 = vunpack.c.l.b16 %v439
    %v4547 = vunpack.c.h.b16 %v439
    %v4548 = vunpack.c.l.b16 %v440
    %v4549 = vunpack.c.h.b16 %v440
    %v4550 = vunpack.c.l.b16 %v441
    %v4551 = vunpack.c.h.b16 %v441
    %v4552 = vunpack.c.l.b16 %v442
    %v4553 = vunpack.c.h.b16 %v442
    %v4554 = vunpack.c.l.b16 %v443
    %v4555 = vunpack.c.h.b16 %v443
    %v4556 = vunpack.c.l.b16 %v444
    %v4557 = vunpack.c.h.b16 %v444
    %v4558 = vunpack.c.l.b16 %v445
    %v4559 = vunpack.c.h.b16 %v445
    %v4560 = vunpack.c.l.b16 %v446
    %v4561 = vunpack.c.h.b16 %v446
    %v4562 = vunpack.c.l.b16 %v447
    %v4563 = vunpack.c.h.b16 %v447
    %v4564 = vunpack.c.l.b16 %v448
    %v4565 = vunpack.c.h.b16 %v448
    %v4566 = vunpack.c.l.b16 %v449
    %v4567 = vunpack.c.h.b16 %v449
    %v4568 = vunpack.c.l.b16 %v450
    %v4569 = vunpack.c.h.b16 %v450
    %v4570 = vunpack.c.l.b16 %v451
    %v4571 = vunpack.c.h.b16 %v451
    %v4572 = vunpack.c.l.b16 %v452
    %v4573 = vunpack.c.h.b16 %v452
    %v4574 = vunpack.c.l.b16 %v453
    %v4575 = vunpack.c.h.b16 %v453
    %v4576 = vunpack.c.l.b16 %v454
    %v4577 = vunpack.c.h.b16 %v454
    %v4578 = vunpack.c.l.b16 %v455
    %v4579 = vunpack.c.h.b16 %v455
    %v4580 = vunpack.c.l.b16 %v456
    %v4581 = vunpack.c.h.b16 %v456
    %v4582 = vunpack.c.l.b16 %v457
    %v4583 = vunpack.c.h.b16 %v457
    %v4584 = vunpack.c.l.b16 %v458
    %v4585 = vunpack.c.h.b16 %v458
    %v4586 = vunpack.c.l.b16 %v459
    %v4587 = vunpack.c.h.b16 %v459
    %v4588 = vunpack.c.l.b16 %v460
    %v4589 = vunpack.c.h.b16 %v460
    %v4590 = vunpack.c.l.b16 %v461
    %v4591 = vunpack.c.h.b16 %v461
    %v4592 = vunpack.c.l.b16 %v462
    %v4593 = vunpack.c.h.b16 %v462
    %v4594 = vunpack.c.l.b16 %v463
    %v4595 = vunpack.c.h.b16 %v463
    %v4596 = vunpack.c.l.b16 %v464
    %v4597 = vunpack.c.h.b16 %v464
    %v4598 = vunpack.c.l.b16 %v465
    %v4599 = vunpack.c.h.b16 %v465
    %v4600 = vunpack.c.l.b16 %v466
    %v4601 = vunpack.c.h.b16 %v466
    %v4602 = vunpack.c.l.b16 %v467
    %v4603 = vunpack.c.h.b16 %v467
    %v4604 = vunpack.c.l.b16 %v468
    %v4605 = vunpack.c.h.b16 %v468
    %v4606 = vunpack.c.l.b16 %v469
    %v4607 = vunpack.c.h.b16 %v469
    %v4608 = vunpack.c.l.b16 %v470
    %v4609 = vunpack.c.h.b16 %v470
    %v4610 = vunpack.c.l.b16 %v471
    %v4611 = vunpack.c.h.b16 %v471
    %v4612 = vunpack.c.l.b16 %v472
    %v4613 = vunpack.c.h.b16 %v472
    %v4614 = vunpack.c.l.b16 %v473
    %v4615 = vunpack.c.h.b16 %v473
    %v4616 = vunpack.c.l.b16 %v474
    %v4617 = vunpack.c.h.b16 %v474
    %v4618 = vunpack.c.l.b16 %v475
    %v4619 = vunpack.c.h.b16 %v475
    %v4620 = vunpack.c.l.b16 %v476
    %v4621 = vunpack.c.h.b16 %v476
    %v4622 = vunpack.c.l.b16 %v477
    %v4623 = vunpack.c.h.b16 %v477
    %v4624 = vunpack.c.l.b16 %v478
    %v4625 = vunpack.c.h.b16 %v478
    %v4626 = vunpack.c.l.b16 %v479
    %v4627 = vunpack.c.h.b16 %v479
    %v4628 = vunpack.c.l.b16 %v480
    %v4629 = vunpack.c.h.b16 %v480
    %v4630 = vunpack.c.l.b16 %v481
    %v4631 = vunpack.c.h.b16 %v481
    %v4632 = vunpack.c.l.b16 %v482
    %v4633 = vunpack.c.h.b16 %v482
    %v4634 = vunpack.c.l.b16 %v483
    %v4635 = vunpack.c.h.b16 %v483
    %v4636 = vunpack.c.l.b16 %v484
    %v4637 = vunpack.c.h.b16 %v484
    %v4638 = vunpack.c.l.b16 %v485
    %v4639 = vunpack.c.h.b16 %v485
    %v4640 = vunpack.c.l.b16 %v486
    %v4641 = vunpack.c.h.b16 %v486
    %v4642 = vunpack.c.l.b16 %v487
    %v4643 = vunpack.c.h.b16 %v487
    %v4644 = vunpack.c.l.b16 %v488
    %v4645 = vunpack.c.h.b16 %v488
    %v4646 = vunpack.c.l.b16 %v489
    %v4647 = vunpack.c.h.b16 %v489
    %v4648 = vunpack.c.l.b16 %v490
    %v4649 = vunpack.c.h.b16 %v490
    %v4650 = vunpack.c.l.b16 %v491
    %v4651 = vunpack.c.h.b16 %v491
    %v4652 = vunpack.c.l.b16 %v492
    %v4653 = vunpack.c.h.b16 %v492
    %v4654 = vunpack.c.l.b16 %v493
    %v4655 = vunpack.c.h.b16 %v493
    %v4656 = vunpack.c.l.b16 %v494
    %v4657 = vunpack.c.h.b16 %v494
    %v4658 = vunpack.c.l.b16 %v495
    %v4659 = vunpack.c.h.b16 %v495
    %v4660 = vunpack.c.l.b16 %v496
    %v4661 = vunpack.c.h.b16 %v496
    %v4662 = vunpack.c.l.b16 %v497
    %v4663 = vunpack.c.h.b16 %v497
    %v4664 = vunpack.c.l.b16 %v498
    %v4665 = vunpack.c.h.b16 %v498
    %v4666 = vunpack.c.l.b16 %v499
    %v4667 = vunpack.c.h.b16 %v499
    %v4668 = vunpack.c.l.b16 %v500
    %v4669 = vunpack.c.h.b16 %v500
    %v4670 = vunpack.c.l.b16 %v501
    %v4671 = vunpack.c.h.b16 %v501
    %v4672 = vunpack.c.l.b16 %v502
    %v4673 = vunpack.c.h.b16 %v502
    %v4674 = vunpack.c.l.b16 %v503
    %v4675 = vunpack.c.h.b16 %v503
    %v4676 = vunpack.c.l.b16 %v504
    %v4677 = vunpack.c.h.b16 %v504
    %v4678 = vunpack.c.l.b16 %v505
    %v4679 = vunpack.c.h.b16 %v505
    %v4680 = vunpack.c.l.b16 %v506
    %v4681 = vunpack.c.h.b16 %v506
    %v4682 = vunpack.c.l.b16 %v507
    %v4683 = vunpack.c.h.b16 %v507
    %v4684 = vunpack.c.l.b16 %v508
    %v4685 = vunpack.c.h.b16 %v508
    %v4686 = vunpack.c.l.b16 %v509
    %v4687 = vunpack.c.h.b16 %v509
    %v4688 = vunpack.c.l.b16 %v510
    %v4689 = vunpack.c.h.b16 %v510
    %v4690 = vunpack.c.l.b16 %v511
    %v4691 = vunpack.c.h.b16 %v511
    %v4692 = vunpack.c.l.b16 %v512
    %v4693 = vunpack.c.h.b16 %v512
    %v4694 = vunpack.c.l.b16 %v513
    %v4695 = vunpack.c.h.b16 %v513
    %v4696 = vunpack.c.l.b16 %v514
    %v4697 = vunpack.c.h.b16 %v514
    %v4698 = vunpack.c.l.b16 %v515
    %v4699 = vunpack.c.h.b16 %v515
    %v4700 = vunpack.c.l.b16 %v516
    %v4701 = vunpack.c.h.b16 %v516
    %v4702 = vunpack.c.l.b16 %v517
    %v4703 = vunpack.c.h.b16 %v517
    %v4704 = vunpack.c.l.b16 %v518
    %v4705 = vunpack.c.h.b16 %v518
    %v4706 = vunpack.c.l.b16 %v519
    %v4707 = vunpack.c.h.b16 %v519
    %v4708 = vunpack.c.l.b16 %v520
    %v4709 = vunpack.c.h.b16 %v520
    %v4710 = vunpack.c.l.b16 %v521
    %v4711 = vunpack.c.h.b16 %v521
    %v4712 = vunpack.c.l.b16 %v522
    %v4713 = vunpack.c.h.b16 %v522
    %v4714 = vunpack.c.l.b16 %v523
    %v4715 = vunpack.c.h.b16 %v523
    %v4716 = vunpack.c.l.b16 %v524
    %v4717 = vunpack.c.h.b16 %v524
    %v4718 = vunpack.c.l.b16 %v525
    %v4719 = vunpack.c.h.b16 %v525
    %v4720 = vunpack.c.l.b16 %v526
    %v4721 = vunpack.c.h.b16 %v526
    %v4722 = vunpack.c.l.b16 %v527
    %v4723 = vunpack.c.h.b16 %v527
    %v4724 = vunpack.c.l.b16 %v528
    %v4725 = vunpack.c.h.b16 %v528
    %v4726 = vunpack.c.l.b16 %v529
    %v4727 = vunpack.c.h.b16 %v529
    %v4728 = vunpack.c.l.b16 %v530
    %v4729 = vunpack.c.h.b16 %v530
    %v4730 = vunpack.c.l.b16 %v531
    %v4731 = vunpack.c.h.b16 %v531
    %v4732 = vunpack.c.l.b16 %v532
    %v4733 = vunpack.c.h.b16 %v532
    %v4734 = vunpack.c.l.b16 %v533
    %v4735 = vunpack.c.h.b16 %v533
    %v4736 = vunpack.c.l.b16 %v534
    %v4737 = vunpack.c.h.b16 %v534
    %v4738 = vunpack.c.l.b16 %v535
    %v4739 = vunpack.c.h.b16 %v535
    %v4740 = vunpack.c.l.b16 %v536
    %v4741 = vunpack.c.h.b16 %v536
    %v4742 = vunpack.c.l.b16 %v537
    %v4743 = vunpack.c.h.b16 %v537
    %v4744 = vunpack.c.l.b16 %v538
    %v4745 = vunpack.c.h.b16 %v538
    %v4746 = vunpack.c.l.b16 %v539
    %v4747 = vunpack.c.h.b16 %v539
    %v4748 = vunpack.c.l.b16 %v540
    %v4749 = vunpack.c.h.b16 %v540
    %v4750 = vunpack.c.l.b16 %v541
    %v4751 = vunpack.c.h.b16 %v541
    %v4752 = vunpack.c.l.b16 %v542
    %v4753 = vunpack.c.h.b16 %v542
    %v4754 = vunpack.c.l.b16 %v543
    %v4755 = vunpack.c.h.b16 %v543
    %v4756 = vunpack.c.l.b16 %v544
    %v4757 = vunpack.c.h.b16 %v544
    %v4758 = vunpack.c.l.b16 %v545
    %v4759 = vunpack.c.h.b16 %v545
    %v4760 = vunpack.c.l.b16 %v546
    %v4761 = vunpack.c.h.b16 %v546
    %v4762 = vunpack.c.l.b16 %v547
    %v4763 = vunpack.c.h.b16 %v547
    %v4764 = vunpack.c.l.b16 %v548
    %v4765 = vunpack.c.h.b16 %v548
    %v4766 = vunpack.c.l.b16 %v549
    %v4767 = vunpack.c.h.b16 %v549
    %v4768 = vunpack.c.l.b16 %v550
    %v4769 = vunpack.c.h.b16 %v550
    %v4770 = vunpack.c.l.b16 %v551
    %v4771 = vunpack.c.h.b16 %v551
    %v4772 = vunpack.c.l.b16 %v552
    %v4773 = vunpack.c.h.b16 %v552
    %v4774 = vunpack.c.l.b16 %v553
    %v4775 = vunpack.c.h.b16 %v553
    %v4776 = vunpack.c.l.b16 %v554
    %v4777 = vunpack.c.h.b16 %v554
    %v4778 = vunpack.c.l.b16 %v555
    %v4779 = vunpack.c.h.b16 %v555
    %v4780 = vunpack.c.l.b16 %v556
    %v4781 = vunpack.c.h.b16 %v556
    %v4782 = vunpack.c.l.b16 %v557
    %v4783 = vunpack.c.h.b16 %v557
    %v4784 = vunpack.c.l.b16 %v558
    %v4785 = vunpack.c.h.b16 %v558
    %v4786 = vunpack.c.l.b16 %v559
    %v4787 = vunpack.c.h.b16 %v559
    %v4788 = vunpack.c.l.b16 %v560
    %v4789 = vunpack.c.h.b16 %v560
    %v4790 = vunpack.c.l.b16 %v561
    %v4791 = vunpack.c.h.b16 %v561
    %v4792 = vunpack.c.l.b16 %v562
    %v4793 = vunpack.c.h.b16 %v562
    %v4794 = vunpack.c.l.b16 %v563
    %v4795 = vunpack.c.h.b16 %v563
    %v4796 = vunpack.c.l.b16 %v564
    %v4797 = vunpack.c.h.b16 %v564
    %v4798 = vunpack.c.l.b16 %v565
    %v4799 = vunpack.c.h.b16 %v565
    %v4800 = vunpack.c.l.b16 %v566
    %v4801 = vunpack.c.h.b16 %v566
    %v4802 = vunpack.c.l.b16 %v567
    %v4803 = vunpack.c.h.b16 %v567
    %v4804 = vunpack.c.l.b16 %v568
    %v4805 = vunpack.c.h.b16 %v568
    %v4806 = vunpack.c.l.b16 %v569
    %v4807 = vunpack.c.h.b16 %v569
    %v4808 = vunpack.c.l.b16 %v570
    %v4809 = vunpack.c.h.b16 %v570
    %v4810 = vunpack.c.l.b16 %v571
    %v4811 = vunpack.c.h.b16 %v571
    %v4812 = vunpack.c.l.b16 %v572
    %v4813 = vunpack.c.h.b16 %v572
    %v4814 = vunpack.c.l.b16 %v573
    %v4815 = vunpack.c.h.b16 %v573
    %v4816 = vunpack.c.l.b16 %v574
    %v4817 = vunpack.c.h.b16 %v574
    %v4818 = vunpack.c.l.b16 %v575
    %v4819 = vunpack.c.h.b16 %v575
    %v4820 = vunpack.c.l.b16 %v576
    %v4821 = vunpack.c.h.b16 %v576
    %v4822 = vunpack.c.l.b16 %v577
    %v4823 = vunpack.c.h.b16 %v577
    %v4824 = vunpack.c.l.b16 %v578
    %v4825 = vunpack.c.h.b16 %v578
    %v4826 = vunpack.c.l.b16 %v579
    %v4827 = vunpack.c.h.b16 %v579
    %v4828 = vunpack.c.l.b16 %v580
    %v4829 = vunpack.c.h.b16 %v580
    %v4830 = vunpack.c.l.b16 %v581
    %v4831 = vunpack.c.h.b16 %v581
    %v4832 = vunpack.c.l.b16 %v582
    %v4833 = vunpack.c.h.b16 %v582
    %v4834 = vunpack.c.l.b16 %v583
    %v4835 = vunpack.c.h.b16 %v583
    %v4836 = vunpack.c.l.b16 %v584
    %v4837 = vunpack.c.h.b16 %v584
    %v4838 = vunpack.c.l.b16 %v585
    %v4839 = vunpack.c.h.b16 %v585
    %v4840 = vunpack.c.l.b16 %v586
    %v4841 = vunpack.c.h.b16 %v586
    %v4842 = vunpack.c.l.b16 %v587
    %v4843 = vunpack.c.h.b16 %v587
    %v4844 = vunpack.c.l.b16 %v588
    %v4845 = vunpack.c.h.b16 %v588
    %v4846 = vunpack.c.l.b16 %v589
    %v4847 = vunpack.c.h.b16 %v589
    %v4848 = vunpack.c.l.b16 %v590
    %v4849 = vunpack.c.h.b16 %v590
    %v4850 = vunpack.c.l.b16 %v591
    %v4851 = vunpack.c.h.b16 %v591
    %v4852 = vunpack.c.l.b16 %v592
    %v4853 = vunpack.c.h.b16 %v592
    %v4854 = vunpack.c.l.b16 %v593
    %v4855 = vunpack.c.h.b16 %v593
    %v4856 = vunpack.c.l.b16 %v594
    %v4857 = vunpack.c.h.b16 %v594
    %v4858 = vunpack.c.l.b16 %v595
    %v4859 = vunpack.c.h.b16 %v595
    %v4860 = vunpack.c.l.b16 %v596
    %v4861 = vunpack.c.h.b16 %v596
    %v4862 = vunpack.c.l.b16 %v597
    %v4863 = vunpack.c.h.b16 %v597
    %v4864 = vunpack.c.l.b16 %v598
    %v4865 = vunpack.c.h.b16 %v598
    %v4866 = vunpack.c.l.b16 %v599
    %v4867 = vunpack.c.h.b16 %v599
    %v4868 = vunpack.c.l.b16 %v600
    %v4869 = vunpack.c.h.b16 %v600
    %v4870 = vunpack.c.l.b16 %v601
    %v4871 = vunpack.c.h.b16 %v601
    %v4872 = vunpack.c.l.b16 %v602
    %v4873 = vunpack.c.h.b16 %v602
    %v4874 = vunpack.c.l.b16 %v603
    %v4875 = vunpack.c.h.b16 %v603
    %v4876 = vunpack.c.l.b16 %v604
    %v4877 = vunpack.c.h.b16 %v604
    %v4878 = vunpack.c.l.b16 %v605
    %v4879 = vunpack.c.h.b16 %v605
    %v4880 = vunpack.c.l.b16 %v606
    %v4881 = vunpack.c.h.b16 %v606
    %v4882 = vunpack.c.l.b16 %v607
    %v4883 = vunpack.c.h.b16 %v607
    %v4884 = vunpack.c.l.b16 %v608
    %v4885 = vunpack.c.h.b16 %v608
    %v4886 = vunpack.c.l.b16 %v609
    %v4887 = vunpack.c.h.b16 %v609
    %v4888 = vunpack.c.l.b16 %v610
    %v4889 = vunpack.c.h.b16 %v610
    %v4890 = vunpack.c.l.b16 %v611
    %v4891 = vunpack.c.h.b16 %v611
    %v4892 = vunpack.c.l.b16 %v612
    %v4893 = vunpack.c.h.b16 %v612
    %v4894 = vunpack.c.l.b16 %v613
    %v4895 = vunpack.c.h.b16 %v613
    %v4896 = vunpack.c.l.b16 %v614
    %v4897 = vunpack.c.h.b16 %v614
    %v4898 = vunpack.c.l.b16 %v615
    %v4899 = vunpack.c.h.b16 %v615
    %v4900 = vunpack.c.l.b16 %v616
    %v4901 = vunpack.c.h.b16 %v616
    %v4902 = vunpack.c.l.b16 %v617
    %v4903 = vunpack.c.h.b16 %v617
    %v4904 = vunpack.c.l.b16 %v618
    %v4905 = vunpack.c.h.b16 %v618
    %v4906 = vunpack.c.l.b16 %v619
    %v4907 = vunpack.c.h.b16 %v619
    %v4908 = vunpack.c.l.b16 %v620
    %v4909 = vunpack.c.h.b16 %v620
    %v4910 = vunpack.c.l.b16 %v621
    %v4911 = vunpack.c.h.b16 %v621
    %v4912 = vunpack.c.l.b16 %v622
    %v4913 = vunpack.c.h.b16 %v622
    %v4914 = vunpack.c.l.b16 %v623
    %v4915 = vunpack.c.h.b16 %v623
    %v4916 = vunpack.c.l.b16 %v624
    %v4917 = vunpack.c.h.b16 %v624
    %v4918 = vunpack.c.l.b16 %v625
    %v4919 = vunpack.c.h.b16 %v625
    %v4920 = vunpack.c.l.b16 %v626
    %v4921 = vunpack.c.h.b16 %v626
    %v4922 = vunpack.c.l.b16 %v627
    %v4923 = vunpack.c.h.b16 %v627
    %v4924 = vunpack.c.l.b16 %v628
    %v4925 = vunpack.c.h.b16 %v628
    %v4926 = vunpack.c.l.b16 %v629
    %v4927 = vunpack.c.h.b16 %v629
    %v4928 = vunpack.c.l.b16 %v630
    %v4929 = vunpack.c.h.b16 %v630
    %v4930 = vunpack.c.l.b16 %v631
    %v4931 = vunpack.c.h.b16 %v631
    %v4932 = vunpack.c.l.b16 %v632
    %v4933 = vunpack.c.h.b16 %v632
    %v4934 = vunpack.c.l.b16 %v633
    %v4935 = vunpack.c.h.b16 %v633
    %v4936 = vunpack.c.l.b16 %v634
    %v4937 = vunpack.c.h.b16 %v634
    %v4938 = vunpack.c.l.b16 %v635
    %v4939 = vunpack.c.h.b16 %v635
    %v4940 = vunpack.c.l.b16 %v636
    %v4941 = vunpack.c.h.b16 %v636
    %v4942 = vunpack.c.l.b16 %v637
    %v4943 = vunpack.c.h.b16 %v637
    %v4944 = vunpack.c.l.b16 %v638
    %v4945 = vunpack.c.h.b16 %v638
    %v4946 = vunpack.c.l.b16 %v639
    %v4947 = vunpack.c.h.b16 %v639
    %v4948 = vunpack.c.l.b16 %v640
    %v4949 = vunpack.c.h.b16 %v640
    %v4950 = vunpack.c.l.b16 %v641
    %v4951 = vunpack.c.h.b16 %v641
    %v4952 = vunpack.c.l.b16 %v642
    %v4953 = vunpack.c.h.b16 %v642
    %v4954 = vunpack.c.l.b16 %v643
    %v4955 = vunpack.c.h.b16 %v643
    %v4956 = vunpack.c.l.b16 %v644
    %v4957 = vunpack.c.h.b16 %v644
    %v4958 = vunpack.c.l.b16 %v645
    %v4959 = vunpack.c.h.b16 %v645
    %v4960 = vunpack.c.l.b16 %v646
    %v4961 = vunpack.c.h.b16 %v646
    %v4962 = vunpack.c.l.b16 %v647
    %v4963 = vunpack.c.h.b16 %v647
    %v4964 = vunpack.c.l.b16 %v648
    %v4965 = vunpack.c.h.b16 %v648
    %v4966 = vunpack.c.l.b16 %v649
    %v4967 = vunpack.c.h.b16 %v649
    %v4968 = vunpack.c.l.b16 %v650
    %v4969 = vunpack.c.h.b16 %v650
    %v4970 = vunpack.c.l.b16 %v651
    %v4971 = vunpack.c.h.b16 %v651
    %v4972 = vunpack.c.l.b16 %v652
    %v4973 = vunpack.c.h.b16 %v652
    %v4974 = vunpack.c.l.b16 %v653
    %v4975 = vunpack.c.h.b16 %v653
    %v4976 = vunpack.c.l.b16 %v654
    %v4977 = vunpack.c.h.b16 %v654
    %v4978 = vunpack.c.l.b16 %v655
    %v4979 = vunpack.c.h.b16 %v655
    %v4980 = vunpack.c.l.b16 %v656
    %v4981 = vunpack.c.h.b16 %v656
    %v4982 = vunpack.c.l.b16 %v657
    %v4983 = vunpack.c.h.b16 %v657
    %v4984 = vunpack.c.l.b16 %v658
    %v4985 = vunpack.c.h.b16 %v658
    %v4986 = vunpack.c.l.b16 %v659
    %v4987 = vunpack.c.h.b16 %v659
    %v4988 = vunpack.c.l.b16 %v660
    %v4989 = vunpack.c.h.b16 %v660
    %v4990 = vunpack.c.l.b16 %v661
    %v4991 = vunpack.c.h.b16 %v661
    %v4992 = vunpack.c.l.b16 %v662
    %v4993 = vunpack.c.h.b16 %v662
    %v4994 = vunpack.c.l.b16 %v663
    %v4995 = vunpack.c.h.b16 %v663
    %v4996 = vunpack.c.l.b16 %v664
    %v4997 = vunpack.c.h.b16 %v664
    %v4998 = vunpack.c.l.b16 %v665
    %v4999 = vunpack.c.h.b16 %v665
    %v5000 = vunpack.c.l.b16 %v666
    %v5001 = vunpack.c.h.b16 %v666
    %v5002 = vunpack.c.l.b16 %v667
    %v5003 = vunpack.c.h.b16 %v667
    %v5004 = vunpack.c.l.b16 %v668
    %v5005 = vunpack.c.h.b16 %v668
    %v5006 = vunpack.c.l.b16 %v669
    %v5007 = vunpack.c.h.b16 %v669
    %v5008 = vunpack.c.l.b16 %v670
    %v5009 = vunpack.c.h.b16 %v670
    %v5010 = vunpack.c.l.b16 %v671
    %v5011 = vunpack.c.h.b16 %v671
    %v5012 = vunpack.c.l.b16 %v672
    %v5013 = vunpack.c.h.b16 %v672
    %v5014 = vunpack.c.l.b16 %v673
    %v5015 = vunpack.c.h.b16 %v673
    %v5016 = vunpack.c.l.b16 %v674
    %v5017 = vunpack.c.h.b16 %v674
    %v5018 = vunpack.c.l.b16 %v675
    %v5019 = vunpack.c.h.b16 %v675
    %v5020 = vunpack.c.l.b16 %v676
    %v5021 = vunpack.c.h.b16 %v676
    %v5022 = vunpack.c.l.b16 %v677
    %v5023 = vunpack.c.h.b16 %v677
    %v5024 = vunpack.c.l.b16 %v678
    %v5025 = vunpack.c.h.b16 %v678
    %v5026 = vunpack.c.l.b16 %v679
    %v5027 = vunpack.c.h.b16 %v679
    %v5028 = vunpack.c.l.b16 %v680
    %v5029 = vunpack.c.h.b16 %v680
    %v5030 = vunpack.c.l.b16 %v681
    %v5031 = vunpack.c.h.b16 %v681
    %v5032 = vunpack.c.l.b16 %v682
    %v5033 = vunpack.c.h.b16 %v682
    %v5034 = vunpack.c.l.b16 %v683
    %v5035 = vunpack.c.h.b16 %v683
    %v5036 = vunpack.c.l.b16 %v684
    %v5037 = vunpack.c.h.b16 %v684
    %v5038 = vunpack.c.l.b16 %v685
    %v5039 = vunpack.c.h.b16 %v685
    %v5040 = vunpack.c.l.b16 %v686
    %v5041 = vunpack.c.h.b16 %v686
    %v5042 = vunpack.c.l.b16 %v687
    %v5043 = vunpack.c.h.b16 %v687
    %v5044 = vunpack.c.l.b16 %v688
    %v5045 = vunpack.c.h.b16 %v688
    %v5046 = vunpack.c.l.b16 %v689
    %v5047 = vunpack.c.h.b16 %v689
    %v5048 = vunpack.c.l.b16 %v690
    %v5049 = vunpack.c.h.b16 %v690
    %v5050 = vunpack.c.l.b16 %v691
    %v5051 = vunpack.c.h.b16 %v691
    %v5052 = vunpack.c.l.b16 %v692
    %v5053 = vunpack.c.h.b16 %v692
    %v5054 = vunpack.c.l.b16 %v693
    %v5055 = vunpack.c.h.b16 %v693
    %v5056 = vunpack.c.l.b16 %v694
    %v5057 = vunpack.c.h.b16 %v694
    %v5058 = vunpack.c.l.b16 %v695
    %v5059 = vunpack.c.h.b16 %v695
    %v5060 = vunpack.c.l.b16 %v696
    %v5061 = vunpack.c.h.b16 %v696
    %v5062 = vunpack.c.l.b16 %v697
    %v5063 = vunpack.c.h.b16 %v697
    %v5064 = vunpack.c.l.b16 %v698
    %v5065 = vunpack.c.h.b16 %v698
    %v5066 = vunpack.c.l.b16 %v699
    %v5067 = vunpack.c.h.b16 %v699
    %v5068 = vunpack.c.l.b16 %v700
    %v5069 = vunpack.c.h.b16 %v700
    %v5070 = vunpack.c.l.b16 %v701
    %v5071 = vunpack.c.h.b16 %v701
    %v5072 = vunpack.c.l.b16 %v702
    %v5073 = vunpack.c.h.b16 %v702
    %v5074 = vunpack.c.l.b16 %v703
    %v5075 = vunpack.c.h.b16 %v703
    %v5076 = vunpack.c.l.b16 %v704
    %v5077 = vunpack.c.h.b16 %v704
    %v5078 = vunpack.c.l.b16 %v705
    %v5079 = vunpack.c.h.b16 %v705
    %v5080 = vunpack.c.l.b16 %v706
    %v5081 = vunpack.c.h.b16 %v706
    %v5082 = vunpack.c.l.b16 %v707
    %v5083 = vunpack.c.h.b16 %v707
    %v5084 = vunpack.c.l.b16 %v708
    %v5085 = vunpack.c.h.b16 %v708
    %v5086 = vunpack.c.l.b16 %v709
    %v5087 = vunpack.c.h.b16 %v709
    %v5088 = vunpack.c.l.b16 %v710
    %v5089 = vunpack.c.h.b16 %v710
    %v5090 = vunpack.c.l.b16 %v711
    %v5091 = vunpack.c.h.b16 %v711
    %v5092 = vunpack.c.l.b16 %v712
    %v5093 = vunpack.c.h.b16 %v712
    %v5094 = vunpack.c.l.b16 %v713
    %v5095 = vunpack.c.h.b16 %v713
    %v5096 = vunpack.c.l.b16 %v714
    %v5097 = vunpack.c.h.b16 %v714
    %v5098 = vunpack.c.l.b16 %v715
    %v5099 = vunpack.c.h.b16 %v715
    %v5100 = vunpack.c.l.b16 %v716
    %v5101 = vunpack.c.h.b16 %v716
    %v5102 = vunpack.c.l.b16 %v717
    %v5103 = vunpack.c.h.b16 %v717
    %v5104 = vunpack.c.l.b16 %v718
    %v5105 = vunpack.c.h.b16 %v718
    %v5106 = vunpack.c.l.b16 %v719
    %v5107 = vunpack.c.h.b16 %v719
    %v5108 = vunpack.c.l.b16 %v720
    %v5109 = vunpack.c.h.b16 %v720
    %v5110 = vunpack.c.l.b16 %v721
    %v5111 = vunpack.c.h.b16 %v721
    %v5112 = vunpack.c.l.b16 %v722
    %v5113 = vunpack.c.h.b16 %v722
    %v5114 = vunpack.c.l.b16 %v723
    %v5115 = vunpack.c.h.b16 %v723
    %v5116 = vunpack.c.l.b16 %v724
    %v5117 = vunpack.c.h.b16 %v724
    %v5118 = vunpack.c.l.b16 %v725
    %v5119 = vunpack.c.h.b16 %v725
    %v5120 = vunpack.c.l.b16 %v726
    %v5121 = vunpack.c.h.b16 %v726
    %v5122 = vunpack.c.l.b16 %v727
    %v5123 = vunpack.c.h.b16 %v727
    %v5124 = vunpack.c.l.b16 %v728
    %v5125 = vunpack.c.h.b16 %v728
    %v5126 = vunpack.c.l.b16 %v729
    %v5127 = vunpack.c.h.b16 %v729
    %v5128 = vunpack.c.l.b16 %v730
    %v5129 = vunpack.c.h.b16 %v730
    %v5130 = vunpack.c.l.b16 %v731
    %v5131 = vunpack.c.h.b16 %v731
    %v5132 = vunpack.c.l.b16 %v732
    %v5133 = vunpack.c.h.b16 %v732
    %v5134 = vunpack.c.l.b16 %v733
    %v5135 = vunpack.c.h.b16 %v733
    %v5136 = vunpack.c.l.b16 %v734
    %v5137 = vunpack.c.h.b16 %v734
    %v5138 = vunpack.c.l.b16 %v735
    %v5139 = vunpack.c.h.b16 %v735
    %v5140 = vunpack.c.l.b16 %v736
    %v5141 = vunpack.c.h.b16 %v736
    %v5142 = vunpack.c.l.b16 %v737
    %v5143 = vunpack.c.h.b16 %v737
    %v5144 = vunpack.c.l.b16 %v738
    %v5145 = vunpack.c.h.b16 %v738
    %v5146 = vunpack.c.l.b16 %v739
    %v5147 = vunpack.c.h.b16 %v739
    %v5148 = vunpack.c.l.b16 %v740
    %v5149 = vunpack.c.h.b16 %v740
    %v5150 = vunpack.c.l.b16 %v741
    %v5151 = vunpack.c.h.b16 %v741
    %v5152 = vunpack.c.l.b16 %v742
    %v5153 = vunpack.c.h.b16 %v742
    %v5154 = vunpack.c.l.b16 %v743
    %v5155 = vunpack.c.h.b16 %v743
    %v5156 = vunpack.c.l.b16 %v744
    %v5157 = vunpack.c.h.b16 %v744
    %v5158 = vunpack.c.l.b16 %v745
    %v5159 = vunpack.c.h.b16 %v745
    %v5160 = vunpack.c.l.b16 %v746
    %v5161 = vunpack.c.h.b16 %v746
    %v5162 = vunpack.c.l.b16 %v747
    %v5163 = vunpack.c.h.b16 %v747
    %v5164 = vunpack.c.l.b16 %v748
    %v5165 = vunpack.c.h.b16 %v748
    %v5166 = vunpack.c.l.b16 %v749
    %v5167 = vunpack.c.h.b16 %v749
    %v5168 = vunpack.c.l.b16 %v750
    %v5169 = vunpack.c.h.b16 %v750
    %v5170 = vunpack.c.l.b16 %v751
    %v5171 = vunpack.c.h.b16 %v751
    %v5172 = vunpack.c.l.b16 %v752
    %v5173 = vunpack.c.h.b16 %v752
    %v5174 = vunpack.c.l.b16 %v753
    %v5175 = vunpack.c.h.b16 %v753
    %v5176 = vunpack.c.l.b16 %v754
    %v5177 = vunpack.c.h.b16 %v754
    %v5178 = vunpack.c.l.b16 %v755
    %v5179 = vunpack.c.h.b16 %v755
    %v5180 = vunpack.c.l.b16 %v756
    %v5181 = vunpack.c.h.b16 %v756
    %v5182 = vunpack.c.l.b16 %v757
    %v5183 = vunpack.c.h.b16 %v757
    %v5184 = vunpack.c.l.b16 %v758
    %v5185 = vunpack.c.h.b16 %v758
    %v5186 = vunpack.c.l.b16 %v759
    %v5187 = vunpack.c.h.b16 %v759
    %v5188 = vunpack.c.l.b16 %v760
    %v5189 = vunpack.c.h.b16 %v760
    %v5190 = vunpack.c.l.b16 %v761
    %v5191 = vunpack.c.h.b16 %v761
    %v5192 = vunpack.c.l.b16 %v762
    %v5193 = vunpack.c.h.b16 %v762
    %v5194 = vunpack.c.l.b16 %v763
    %v5195 = vunpack.c.h.b16 %v763
    %v5196 = vunpack.c.l.b16 %v764
    %v5197 = vunpack.c.h.b16 %v764
    %v5198 = vunpack.c.l.b16 %v765
    %v5199 = vunpack.c.h.b16 %v765
    %v5200 = vunpack.c.l.b16 %v766
    %v5201 = vunpack.c.h.b16 %v766
    %v5202 = vunpack.c.l.b16 %v767
    %v5203 = vunpack.c.h.b16 %v767
    %v5204 = vunpack.c.l.b16 %v768
    %v5205 = vunpack.c.h.b16 %v768
    %v5206 = vunpack.c.l.b16 %v769
    %v5207 = vunpack.c.h.b16 %v769
    %v5208 = vunpack.c.l.b16 %v770
    %v5209 = vunpack.c.h.b16 %v770
    %v5210 = vunpack.c.l.b16 %v771
    %v5211 = vunpack.c.h.b16 %v771
    %v5212 = vunpack.c.l.b16 %v772
    %v5213 = vunpack.c.h.b16 %v772
    %v5214 = vunpack.c.l.b16 %v773
    %v5215 = vunpack.c.h.b16 %v773
    %v5216 = vunpack.c.l.b16 %v774
    %v5217 = vunpack.c.h.b16 %v774
    %v5218 = vunpack.c.l.b16 %v775
    %v5219 = vunpack.c.h.b16 %v775
    %v5220 = vunpack.c.l.b16 %v776
    %v5221 = vunpack.c.h.b16 %v776
    %v5222 = vunpack.c.l.b16 %v777
    %v5223 = vunpack.c.h.b16 %v777
    %v5224 = vunpack.c.l.b16 %v778
    %v5225 = vunpack.c.h.b16 %v778
    %v5226 = vunpack.c.l.b16 %v779
    %v5227 = vunpack.c.h.b16 %v779
    %v5228 = vunpack.c.l.b16 %v780
    %v5229 = vunpack.c.h.b16 %v780
    %v5230 = vunpack.c.l.b16 %v781
    %v5231 = vunpack.c.h.b16 %v781
    %v5232 = vunpack.c.l.b16 %v782
    %v5233 = vunpack.c.h.b16 %v782
    %v5234 = vunpack.c.l.b16 %v783
    %v5235 = vunpack.c.h.b16 %v783
    %v5236 = vunpack.c.l.b16 %v784
    %v5237 = vunpack.c.h.b16 %v784
    %v5238 = vunpack.c.l.b16 %v785
    %v5239 = vunpack.c.h.b16 %v785
    %v5240 = vunpack.c.l.b16 %v786
    %v5241 = vunpack.c.h.b16 %v786
    %v5242 = vunpack.c.l.b16 %v787
    %v5243 = vunpack.c.h.b16 %v787
    %v5244 = vunpack.c.l.b16 %v788
    %v5245 = vunpack.c.h.b16 %v788
    %v5246 = vunpack.c.l.b16 %v789
    %v5247 = vunpack.c.h.b16 %v789
    %v5248 = vunpack.c.l.b16 %v790
    %v5249 = vunpack.c.h.b16 %v790
    %v5250 = vunpack.c.l.b16 %v791
    %v5251 = vunpack.c.h.b16 %v791
    %v5252 = vunpack.c.l.b16 %v792
    %v5253 = vunpack.c.h.b16 %v792
    %v5254 = vunpack.c.l.b16 %v793
    %v5255 = vunpack.c.h.b16 %v793
    %v5256 = vunpack.c.l.b16 %v794
    %v5257 = vunpack.c.h.b16 %v794
    %v5258 = vunpack.c.l.b16 %v795
    %v5259 = vunpack.c.h.b16 %v795
    %v5260 = vunpack.c.l.b16 %v796
    %v5261 = vunpack.c.h.b16 %v796
    %v5262 = vunpack.c.l.b16 %v797
    %v5263 = vunpack.c.h.b16 %v797
    %v5264 = vunpack.c.l.b16 %v798
    %v5265 = vunpack.c.h.b16 %v798
    %v5266 = vunpack.c.l.b16 %v799
    %v5267 = vunpack.c.h.b16 %v799
    %v5268 = vunpack.c.l.b16 %v800
    %v5269 = vunpack.c.h.b16 %v800
    %v5270 = vunpack.c.l.b16 %v801
    %v5271 = vunpack.c.h.b16 %v801
    %v5272 = vunpack.c.l.b16 %v802
    %v5273 = vunpack.c.h.b16 %v802
    %v5274 = vunpack.c.l.b16 %v803
    %v5275 = vunpack.c.h.b16 %v803
    %v5276 = vunpack.c.l.b16 %v804
    %v5277 = vunpack.c.h.b16 %v804
    %v5278 = vunpack.c.l.b16 %v805
    %v5279 = vunpack.c.h.b16 %v805
    %v5280 = vunpack.c.l.b16 %v806
    %v5281 = vunpack.c.h.b16 %v806
    %v5282 = vunpack.c.l.b16 %v807
    %v5283 = vunpack.c.h.b16 %v807
    %v5284 = vunpack.c.l.b16 %v808
    %v5285 = vunpack.c.h.b16 %v808
    %v5286 = vunpack.c.l.b16 %v809
    %v5287 = vunpack.c.h.b16 %v809
    %v5288 = vunpack.c.l.b16 %v810
    %v5289 = vunpack.c.h.b16 %v810
    %v5290 = vunpack.c.l.b16 %v811
    %v5291 = vunpack.c.h.b16 %v811
    %v5292 = vunpack.c.l.b16 %v812
    %v5293 = vunpack.c.h.b16 %v812
    %v5294 = vunpack.c.l.b16 %v813
    %v5295 = vunpack.c.h.b16 %v813
    %v5296 = vunpack.c.l.b16 %v814
    %v5297 = vunpack.c.h.b16 %v814
    %v5298 = vunpack.c.l.b16 %v815
    %v5299 = vunpack.c.h.b16 %v815
    %v5300 = vunpack.c.l.b16 %v816
    %v5301 = vunpack.c.h.b16 %v816
    %v5302 = vunpack.c.l.b16 %v817
    %v5303 = vunpack.c.h.b16 %v817
    %v5304 = vunpack.c.l.b16 %v818
    %v5305 = vunpack.c.h.b16 %v818
    %v5306 = vunpack.c.l.b16 %v819
    %v5307 = vunpack.c.h.b16 %v819
    %v5308 = vunpack.c.l.b16 %v820
    %v5309 = vunpack.c.h.b16 %v820
    %v5310 = vunpack.c.l.b16 %v821
    %v5311 = vunpack.c.h.b16 %v821
    %v5312 = vunpack.c.l.b16 %v822
    %v5313 = vunpack.c.h.b16 %v822
    %v5314 = vunpack.c.l.b16 %v823
    %v5315 = vunpack.c.h.b16 %v823
    %v5316 = vunpack.c.l.b16 %v824
    %v5317 = vunpack.c.h.b16 %v824
    %v5318 = vunpack.c.l.b16 %v825
    %v5319 = vunpack.c.h.b16 %v825
    %v5320 = vunpack.c.l.b16 %v826
    %v5321 = vunpack.c.h.b16 %v826
    %v5322 = vunpack.c.l.b16 %v827
    %v5323 = vunpack.c.h.b16 %v827
    %v5324 = vunpack.c.l.b16 %v828
    %v5325 = vunpack.c.h.b16 %v828
    %v5326 = vunpack.c.l.b16 %v829
    %v5327 = vunpack.c.h.b16 %v829
    %v5328 = vunpack.c.l.b16 %v830
    %v5329 = vunpack.c.h.b16 %v830
    %v5330 = vunpack.c.l.b16 %v831
    %v5331 = vunpack.c.h.b16 %v831
    %v5332 = vunpack.c.l.b16 %v832
    %v5333 = vunpack.c.h.b16 %v832
    %v5334 = vunpack.c.l.b16 %v833
    %v5335 = vunpack.c.h.b16 %v833
    %v5336 = vunpack.c.l.b16 %v834
    %v5337 = vunpack.c.h.b16 %v834
    %v5338 = vunpack.c.l.b16 %v835
    %v5339 = vunpack.c.h.b16 %v835
    %v5340 = vunpack.c.l.b16 %v836
    %v5341 = vunpack.c.h.b16 %v836
    %v5342 = vunpack.c.l.b16 %v837
    %v5343 = vunpack.c.h.b16 %v837
    %v5344 = vunpack.c.l.b16 %v838
    %v5345 = vunpack.c.h.b16 %v838
    %v5346 = vunpack.c.l.b16 %v839
    %v5347 = vunpack.c.h.b16 %v839
    %v5348 = vunpack.c.l.b16 %v840
    %v5349 = vunpack.c.h.b16 %v840
    %v5350 = vunpack.c.l.b16 %v841
    %v5351 = vunpack.c.h.b16 %v841
    %v5352 = vunpack.c.l.b16 %v842
    %v5353 = vunpack.c.h.b16 %v842
    %v5354 = vunpack.c.l.b16 %v843
    %v5355 = vunpack.c.h.b16 %v843
    %v5356 = vunpack.c.l.b16 %v844
    %v5357 = vunpack.c.h.b16 %v844
    %v5358 = vunpack.c.l.b16 %v845
    %v5359 = vunpack.c.h.b16 %v845
    %v5360 = vunpack.c.l.b16 %v846
    %v5361 = vunpack.c.h.b16 %v846
    %v5362 = vunpack.c.l.b16 %v847
    %v5363 = vunpack.c.h.b16 %v847
    %v5364 = vunpack.c.l.b16 %v848
    %v5365 = vunpack.c.h.b16 %v848
    %v5366 = vunpack.c.l.b16 %v849
    %v5367 = vunpack.c.h.b16 %v849
    %v5368 = vunpack.c.l.b16 %v850
    %v5369 = vunpack.c.h.b16 %v850
    %v5370 = vunpack.c.l.b16 %v851
    %v5371 = vunpack.c.h.b16 %v851
    %v5372 = vunpack.c.l.b16 %v852
    %v5373 = vunpack.c.h.b16 %v852
    %v5374 = vunpack.c.l.b16 %v853
    %v5375 = vunpack.c.h.b16 %v853
    %v5376 = vunpack.c.l.b16 %v854
    %v5377 = vunpack.c.h.b16 %v854
    %v5378 = vunpack.c.l.b16 %v855
    %v5379 = vunpack.c.h.b16 %v855
    %v5380 = vunpack.c.l.b16 %v856
    %v5381 = vunpack.c.h.b16 %v856
    %v5382 = vunpack.c.l.b16 %v857
    %v5383 = vunpack.c.h.b16 %v857
    %v5384 = vunpack.c.l.b16 %v858
    %v5385 = vunpack.c.h.b16 %v858
    %v5386 = vunpack.c.l.b16 %v859
    %v5387 = vunpack.c.h.b16 %v859
    %v5388 = vunpack.c.l.b16 %v860
    %v5389 = vunpack.c.h.b16 %v860
    %v5390 = vunpack.c.l.b16 %v861
    %v5391 = vunpack.c.h.b16 %v861
    %v5392 = vunpack.c.l.b16 %v862
    %v5393 = vunpack.c.h.b16 %v862
    %v5394 = vunpack.c.l.b16 %v863
    %v5395 = vunpack.c.h.b16 %v863
    %v5396 = vunpack.c.l.b16 %v864
    %v5397 = vunpack.c.h.b16 %v864
    %v5398 = vunpack.c.l.b16 %v865
    %v5399 = vunpack.c.h.b16 %v865
    %v5400 = vunpack.c.l.b16 %v866
    %v5401 = vunpack.c.h.b16 %v866
    %v5402 = vunpack.c.l.b16 %v867
    %v5403 = vunpack.c.h.b16 %v867
    %v5404 = vunpack.c.l.b16 %v868
    %v5405 = vunpack.c.h.b16 %v868
    %v5406 = vunpack.c.l.b16 %v869
    %v5407 = vunpack.c.h.b16 %v869
    %v5408 = vunpack.c.l.b16 %v870
    %v5409 = vunpack.c.h.b16 %v870
    %v5410 = vunpack.c.l.b16 %v871
    %v5411 = vunpack.c.h.b16 %v871
    %v5412 = vunpack.c.l.b16 %v872
    %v5413 = vunpack.c.h.b16 %v872
    %v5414 = vunpack.c.l.b16 %v873
    %v5415 = vunpack.c.h.b16 %v873
    %v5416 = vunpack.c.l.b16 %v874
    %v5417 = vunpack.c.h.b16 %v874
    %v5418 = vunpack.c.l.b16 %v875
    %v5419 = vunpack.c.h.b16 %v875
    %v5420 = vunpack.c.l.b16 %v876
    %v5421 = vunpack.c.h.b16 %v876
    %v5422 = vunpack.c.l.b16 %v877
    %v5423 = vunpack.c.h.b16 %v877
    %v5424 = vunpack.c.l.b16 %v878
    %v5425 = vunpack.c.h.b16 %v878
    %v5426 = vunpack.c.l.b16 %v879
    %v5427 = vunpack.c.h.b16 %v879
    %v5428 = vunpack.c.l.b16 %v880
    %v5429 = vunpack.c.h.b16 %v880
    %v5430 = vunpack.c.l.b16 %v881
    %v5431 = vunpack.c.h.b16 %v881
    %v5432 = vunpack.c.l.b16 %v882
    %v5433 = vunpack.c.h.b16 %v882
    %v5434 = vunpack.c.l.b16 %v883
    %v5435 = vunpack.c.h.b16 %v883
    %v5436 = vunpack.c.l.b16 %v884
    %v5437 = vunpack.c.h.b16 %v884
    %v5438 = vunpack.c.l.b16 %v885
    %v5439 = vunpack.c.h.b16 %v885
    %v5440 = vunpack.c.l.b16 %v886
    %v5441 = vunpack.c.h.b16 %v886
    %v5442 = vunpack.c.l.b16 %v887
    %v5443 = vunpack.c.h.b16 %v887
    %v5444 = vunpack.c.l.b16 %v888
    %v5445 = vunpack.c.h.b16 %v888
    %v5446 = vunpack.c.l.b16 %v889
    %v5447 = vunpack.c.h.b16 %v889
    %v5448 = vunpack.c.l.b16 %v890
    %v5449 = vunpack.c.h.b16 %v890
    %v5450 = vunpack.c.l.b16 %v891
    %v5451 = vunpack.c.h.b16 %v891
    %v5452 = vunpack.c.l.b16 %v892
    %v5453 = vunpack.c.h.b16 %v892
    %v5454 = vunpack.c.l.b16 %v893
    %v5455 = vunpack.c.h.b16 %v893
    %v5456 = vunpack.c.l.b16 %v894
    %v5457 = vunpack.c.h.b16 %v894
    %v5458 = vunpack.c.l.b16 %v895
    %v5459 = vunpack.c.h.b16 %v895
    %v5460 = vunpack.c.l.b16 %v896
    %v5461 = vunpack.c.h.b16 %v896
    %v5462 = vunpack.c.l.b16 %v897
    %v5463 = vunpack.c.h.b16 %v897
    %v5464 = vunpack.c.l.b16 %v898
    %v5465 = vunpack.c.h.b16 %v898
    %v5466 = vunpack.c.l.b16 %v899
    %v5467 = vunpack.c.h.b16 %v899
    %v5468 = vunpack.c.l.b16 %v900
    %v5469 = vunpack.c.h.b16 %v900
    %v5470 = vunpack.c.l.b16 %v901
    %v5471 = vunpack.c.h.b16 %v901
    %v5472 = vunpack.c.l.b16 %v902
    %v5473 = vunpack.c.h.b16 %v902
    %v5474 = vunpack.c.l.b16 %v903
    %v5475 = vunpack.c.h.b16 %v903
    %v5476 = vunpack.c.l.b16 %v904
    %v5477 = vunpack.c.h.b16 %v904
    %v5478 = vunpack.c.l.b16 %v905
    %v5479 = vunpack.c.h.b16 %v905
    %v5480 = vunpack.c.l.b16 %v906
    %v5481 = vunpack.c.h.b16 %v906
    %v5482 = vunpack.c.l.b16 %v907
    %v5483 = vunpack.c.h.b16 %v907
    %v5484 = vunpack.c.l.b16 %v908
    %v5485 = vunpack.c.h.b16 %v908
    %v5486 = vunpack.c.l.b16 %v909
    %v5487 = vunpack.c.h.b16 %v909
    %v5488 = vunpack.c.l.b16 %v910
    %v5489 = vunpack.c.h.b16 %v910
    %v5490 = vunpack.c.l.b16 %v911
    %v5491 = vunpack.c.h.b16 %v911
    %v5492 = vunpack.c.l.b16 %v912
    %v5493 = vunpack.c.h.b16 %v912
    %v5494 = vunpack.c.l.b16 %v913
    %v5495 = vunpack.c.h.b16 %v913
    %v5496 = vunpack.c.l.b16 %v914
    %v5497 = vunpack.c.h.b16 %v914
    %v5498 = vunpack.c.l.b16 %v915
    %v5499 = vunpack.c.h.b16 %v915
    %v5500 = vunpack.c.l.b16 %v916
    %v5501 = vunpack.c.h.b16 %v916
    %v5502 = vunpack.c.l.b16 %v917
    %v5503 = vunpack.c.h.b16 %v917
    %v5504 = vunpack.c.l.b16 %v918
    %v5505 = vunpack.c.h.b16 %v918
    %v5506 = vunpack.c.l.b16 %v919
    %v5507 = vunpack.c.h.b16 %v919
    %v5508 = vunpack.c.l.b16 %v920
    %v5509 = vunpack.c.h.b16 %v920
    %v5510 = vunpack.c.l.b16 %v921
    %v5511 = vunpack.c.h.b16 %v921
    %v5512 = vunpack.c.l.b16 %v922
    %v5513 = vunpack.c.h.b16 %v922
    %v5514 = vunpack.c.l.b16 %v923
    %v5515 = vunpack.c.h.b16 %v923
    %v5516 = vunpack.c.l.b16 %v924
    %v5517 = vunpack.c.h.b16 %v924
    %v5518 = vunpack.c.l.b16 %v925
    %v5519 = vunpack.c.h.b16 %v925
    %v5520 = vunpack.c.l.b16 %v926
    %v5521 = vunpack.c.h.b16 %v926
    %v5522 = vunpack.c.l.b16 %v927
    %v5523 = vunpack.c.h.b16 %v927
    %v5524 = vunpack.c.l.b16 %v928
    %v5525 = vunpack.c.h.b16 %v928
    %v5526 = vunpack.c.l.b16 %v929
    %v5527 = vunpack.c.h.b16 %v929
    %v5528 = vunpack.c.l.b16 %v930
    %v5529 = vunpack.c.h.b16 %v930
    %v5530 = vunpack.c.l.b16 %v931
    %v5531 = vunpack.c.h.b16 %v931
    %v5532 = vunpack.c.l.b16 %v932
    %v5533 = vunpack.c.h.b16 %v932
    %v5534 = vunpack.c.l.b16 %v933
    %v5535 = vunpack.c.h.b16 %v933
    %v5536 = vunpack.c.l.b16 %v934
    %v5537 = vunpack.c.h.b16 %v934
    %v5538 = vunpack.c.l.b16 %v935
    %v5539 = vunpack.c.h.b16 %v935
    %v5540 = vunpack.c.l.b16 %v936
    %v5541 = vunpack.c.h.b16 %v936
    %v5542 = vunpack.c.l.b16 %v937
    %v5543 = vunpack.c.h.b16 %v937
    %v5544 = vunpack.c.l.b16 %v938
    %v5545 = vunpack.c.h.b16 %v938
    %v5546 = vunpack.c.l.b16 %v939
    %v5547 = vunpack.c.h.b16 %v939
    %v5548 = vunpack.c.l.b16 %v940
    %v5549 = vunpack.c.h.b16 %v940
    %v5550 = vunpack.c.l.b16 %v941
    %v5551 = vunpack.c.h.b16 %v941
    %v5552 = vunpack.c.l.b16 %v942
    %v5553 = vunpack.c.h.b16 %v942
    %v5554 = vunpack.c.l.b16 %v943
    %v5555 = vunpack.c.h.b16 %v943
    %v5556 = vunpack.c.l.b16 %v944
    %v5557 = vunpack.c.h.b16 %v944
    %v5558 = vunpack.c.l.b16 %v945
    %v5559 = vunpack.c.h.b16 %v945
    %v5560 = vunpack.c.l.b16 %v946
    %v5561 = vunpack.c.h.b16 %v946
    %v5562 = vunpack.c.l.b16 %v947
    %v5563 = vunpack.c.h.b16 %v947
    %v5564 = vunpack.c.l.b16 %v948
    %v5565 = vunpack.c.h.b16 %v948
    %v5566 = vunpack.c.l.b16 %v949
    %v5567 = vunpack.c.h.b16 %v949
    %v5568 = vunpack.c.l.b16 %v950
    %v5569 = vunpack.c.h.b16 %v950
    %v5570 = vunpack.c.l.b16 %v951
    %v5571 = vunpack.c.h.b16 %v951
    %v5572 = vunpack.c.l.b16 %v952
    %v5573 = vunpack.c.h.b16 %v952
    %v5574 = vunpack.c.l.b16 %v953
    %v5575 = vunpack.c.h.b16 %v953
    %v5576 = vunpack.c.l.b16 %v954
    %v5577 = vunpack.c.h.b16 %v954
    %v5578 = vunpack.c.l.b16 %v955
    %v5579 = vunpack.c.h.b16 %v955
    %v5580 = vunpack.c.l.b16 %v956
    %v5581 = vunpack.c.h.b16 %v956
    %v5582 = vunpack.c.l.b16 %v957
    %v5583 = vunpack.c.h.b16 %v957
    %v5584 = vunpack.c.l.b16 %v958
    %v5585 = vunpack.c.h.b16 %v958
    %v5586 = vunpack.c.l.b16 %v959
    %v5587 = vunpack.c.h.b16 %v959
    %v5588 = vunpack.c.l.b16 %v960
    %v5589 = vunpack.c.h.b16 %v960
    %v5590 = vunpack.c.l.b16 %v961
    %v5591 = vunpack.c.h.b16 %v961
    %v5592 = vunpack.c.l.b16 %v962
    %v5593 = vunpack.c.h.b16 %v962
    %v5594 = vunpack.c.l.b16 %v963
    %v5595 = vunpack.c.h.b16 %v963
    %v5596 = vunpack.c.l.b16 %v964
    %v5597 = vunpack.c.h.b16 %v964
    %v5598 = vunpack.c.l.b16 %v965
    %v5599 = vunpack.c.h.b16 %v965
    %v5600 = vunpack.c.l.b16 %v966
    %v5601 = vunpack.c.h.b16 %v966
    %v5602 = vunpack.c.l.b16 %v967
    %v5603 = vunpack.c.h.b16 %v967
    %v5604 = vunpack.c.l.b16 %v968
    %v5605 = vunpack.c.h.b16 %v968
    %v5606 = vunpack.c.l.b16 %v969
    %v5607 = vunpack.c.h.b16 %v969
    %v5608 = vunpack.c.l.b16 %v970
    %v5609 = vunpack.c.h.b16 %v970
    %v5610 = vunpack.c.l.b16 %v971
    %v5611 = vunpack.c.h.b16 %v971
    %v5612 = vunpack.c.l.b16 %v972
    %v5613 = vunpack.c.h.b16 %v972
    %v5614 = vunpack.c.l.b16 %v973
    %v5615 = vunpack.c.h.b16 %v973
    %v5616 = vunpack.c.l.b16 %v974
    %v5617 = vunpack.c.h.b16 %v974
    %v5618 = vunpack.c.l.b16 %v975
    %v5619 = vunpack.c.h.b16 %v975
    %v5620 = vunpack.c.l.b16 %v976
    %v5621 = vunpack.c.h.b16 %v976
    %v5622 = vunpack.c.l.b16 %v977
    %v5623 = vunpack.c.h.b16 %v977
    %v5624 = vunpack.c.l.b16 %v978
    %v5625 = vunpack.c.h.b16 %v978
    %v5626 = vunpack.c.l.b16 %v979
    %v5627 = vunpack.c.h.b16 %v979
    %v5628 = vunpack.c.l.b16 %v980
    %v5629 = vunpack.c.h.b16 %v980
    %v5630 = vunpack.c.l.b16 %v981
    %v5631 = vunpack.c.h.b16 %v981
    %v5632 = vunpack.c.l.b16 %v982
    %v5633 = vunpack.c.h.b16 %v982
    %v5634 = vunpack.c.l.b16 %v983
    %v5635 = vunpack.c.h.b16 %v983
    %v5636 = vunpack.c.l.b16 %v984
    %v5637 = vunpack.c.h.b16 %v984
    %v5638 = vunpack.c.l.b16 %v985
    %v5639 = vunpack.c.h.b16 %v985
    %v5640 = vunpack.c.l.b16 %v986
    %v5641 = vunpack.c.h.b16 %v986
    %v5642 = vunpack.c.l.b16 %v987
    %v5643 = vunpack.c.h.b16 %v987
    %v5644 = vunpack.c.l.b16 %v988
    %v5645 = vunpack.c.h.b16 %v988
    %v5646 = vunpack.c.l.b16 %v989
    %v5647 = vunpack.c.h.b16 %v989
    %v5648 = vunpack.c.l.b16 %v990
    %v5649 = vunpack.c.h.b16 %v990
    %v5650 = vunpack.c.l.b16 %v991
    %v5651 = vunpack.c.h.b16 %v991
    %v5652 = vunpack.c.l.b16 %v992
    %v5653 = vunpack.c.h.b16 %v992
    %v5654 = vunpack.c.l.b16 %v993
    %v5655 = vunpack.c.h.b16 %v993
    %v5656 = vunpack.c.l.b16 %v994
    %v5657 = vunpack.c.h.b16 %v994
    %v5658 = vunpack.c.l.b16 %v995
    %v5659 = vunpack.c.h.b16 %v995
    %v5660 = vunpack.c.l.b16 %v996
    %v5661 = vunpack.c.h.b16 %v996
    %v5662 = vunpack.c.l.b16 %v997
    %v5663 = vunpack.c.h.b16 %v997
    %v5664 = vunpack.c.l.b16 %v998
    %v5665 = vunpack.c.h.b16 %v998
    %v5666 = vunpack.c.l.b16 %v999
    %v5667 = vunpack.c.h.b16 %v999
    %v5668 = vunpack.c.l.b16 %v1000
    %v5669 = vunpack.c.h.b16 %v1000
    %v5670 = vunpack.c.l.b16 %v1001
    %v5671 = vunpack.c.h.b16 %v1001
    %v5672 = vunpack.c.l.b16 %v1002
    %v5673 = vunpack.c.h.b16 %v1002
    %v5674 = vunpack.c.l.b16 %v1003
    %v5675 = vunpack.c.h.b16 %v1003
    %v5676 = vunpack.c.l.b16 %v1004
    %v5677 = vunpack.c.h.b16 %v1004
    %v5678 = vunpack.c.l.b16 %v1005
    %v5679 = vunpack.c.h.b16 %v1005
    %v5680 = vunpack.c.l.b16 %v1006
    %v5681 = vunpack.c.h.b16 %v1006
    %v5682 = vunpack.c.l.b16 %v1007
    %v5683 = vunpack.c.h.b16 %v1007
    %v5684 = vunpack.c.l.b16 %v1008
    %v5685 = vunpack.c.h.b16 %v1008
    %v5686 = vunpack.c.l.b16 %v1009
    %v5687 = vunpack.c.h.b16 %v1009
    %v5688 = vunpack.c.l.b16 %v1010
    %v5689 = vunpack.c.h.b16 %v1010
    %v5690 = vunpack.c.l.b16 %v1011
    %v5691 = vunpack.c.h.b16 %v1011
    %v5692 = vunpack.c.l.b16 %v1012
    %v5693 = vunpack.c.h.b16 %v1012
    %v5694 = vunpack.c.l.b16 %v1013
    %v5695 = vunpack.c.h.b16 %v1013
    %v5696 = vunpack.c.l.b16 %v1014
    %v5697 = vunpack.c.h.b16 %v1014
    %v5698 = vunpack.c.l.b16 %v1015
    %v5699 = vunpack.c.h.b16 %v1015
    %v5700 = vunpack.c.l.b16 %v1016
    %v5701 = vunpack.c.h.b16 %v1016
    %v5702 = vunpack.c.l.b16 %v1017
    %v5703 = vunpack.c.h.b16 %v1017
    %v5704 = vunpack.c.l.b16 %v1018
    %v5705 = vunpack.c.h.b16 %v1018
    %v5706 = vunpack.c.l.b16 %v1019
    %v5707 = vunpack.c.h.b16 %v1019
    %v5708 = vunpack.c.l.b16 %v1020
    %v5709 = vunpack.c.h.b16 %v1020
    %v5710 = vunpack.c.l.b16 %v1021
    %v5711 = vunpack.c.h.b16 %v1021
    %v5712 = vunpack.c.l.b16 %v1022
    %v5713 = vunpack.c.h.b16 %v1022
    %v5714 = vunpack.c.l.b16 %v1023
    %v5715 = vunpack.c.h.b16 %v1023
    %v5716 = vunpack.c.l.b16 %v1024
    %v5717 = vunpack.c.h.b16 %v1024
    %v5718 = vunpack.c.l.b16 %v1025
    %v5719 = vunpack.c.h.b16 %v1025
    %v5720 = vunpack.c.l.b16 %v1026
    %v5721 = vunpack.c.h.b16 %v1026
    %v5722 = vunpack.c.l.b16 %v1027
    %v5723 = vunpack.c.h.b16 %v1027
    %v5724 = vunpack.c.l.b16 %v1028
    %v5725 = vunpack.c.h.b16 %v1028
    %v5726 = vunpack.c.l.b16 %v1029
    %v5727 = vunpack.c.h.b16 %v1029
    %v5728 = vunpack.c.l.b16 %v1030
    %v5729 = vunpack.c.h.b16 %v1030
    %v5730 = vunpack.c.l.b16 %v1031
    %v5731 = vunpack.c.h.b16 %v1031
    %v5732 = vunpack.c.l.b16 %v1032
    %v5733 = vunpack.c.h.b16 %v1032
    %v5734 = vunpack.c.l.b16 %v1033
    %v5735 = vunpack.c.h.b16 %v1033
    %v5736 = vunpack.c.l.b16 %v1034
    %v5737 = vunpack.c.h.b16 %v1034
    %v5738 = vunpack.c.l.b16 %v1035
    %v5739 = vunpack.c.h.b16 %v1035
    %v5740 = vunpack.c.l.b16 %v1036
    %v5741 = vunpack.c.h.b16 %v1036
    %v5742 = vunpack.c.l.b16 %v1037
    %v5743 = vunpack.c.h.b16 %v1037
    %v5744 = vunpack.c.l.b16 %v1038
    %v5745 = vunpack.c.h.b16 %v1038
    %v5746 = vunpack.c.l.b16 %v1039
    %v5747 = vunpack.c.h.b16 %v1039
    %v5748 = vunpack.c.l.b16 %v1040
    %v5749 = vunpack.c.h.b16 %v1040
    %v5750 = vunpack.c.l.b16 %v1041
    %v5751 = vunpack.c.h.b16 %v1041
    %v5752 = vunpack.c.l.b16 %v1042
    %v5753 = vunpack.c.h.b16 %v1042
    %v5754 = vunpack.c.l.b16 %v1043
    %v5755 = vunpack.c.h.b16 %v1043
    %v5756 = vunpack.c.l.b16 %v1044
    %v5757 = vunpack.c.h.b16 %v1044
    %v5758 = vunpack.c.l.b16 %v1045
    %v5759 = vunpack.c.h.b16 %v1045
    %v5760 = vunpack.c.l.b16 %v1046
    %v5761 = vunpack.c.h.b16 %v1046
    %v5762 = vunpack.c.l.b16 %v1047
    %v5763 = vunpack.c.h.b16 %v1047
    %v5764 = vunpack.c.l.b16 %v1048
    %v5765 = vunpack.c.h.b16 %v1048
    %v5766 = vunpack.c.l.b16 %v1049
    %v5767 = vunpack.c.h.b16 %v1049
    %v5768 = vunpack.c.l.b16 %v1050
    %v5769 = vunpack.c.h.b16 %v1050
    %v5770 = vunpack.c.l.b16 %v1051
    %v5771 = vunpack.c.h.b16 %v1051
    %v5772 = vunpack.c.l.b16 %v1052
    %v5773 = vunpack.c.h.b16 %v1052
    %v5774 = vunpack.c.l.b16 %v1053
    %v5775 = vunpack.c.h.b16 %v1053
    %v5776 = vunpack.c.l.b16 %v1054
    %v5777 = vunpack.c.h.b16 %v1054
    %v5778 = vunpack.c.l.b16 %v1055
    %v5779 = vunpack.c.h.b16 %v1055
    %v5780 = vunpack.c.l.b16 %v1056
    %v5781 = vunpack.c.h.b16 %v1056
    %v5782 = vunpack.c.l.b16 %v1057
    %v5783 = vunpack.c.h.b16 %v1057
    %v5784 = vunpack.c.l.b16 %v1058
    %v5785 = vunpack.c.h.b16 %v1058
    %v5786 = vunpack.c.l.b16 %v1059
    %v5787 = vunpack.c.h.b16 %v1059
    %v5788 = vunpack.c.l.b16 %v1060
    %v5789 = vunpack.c.h.b16 %v1060
    %v5790 = vunpack.c.l.b16 %v1061
    %v5791 = vunpack.c.h.b16 %v1061
    %v5792 = vunpack.c.l.b16 %v1062
    %v5793 = vunpack.c.h.b16 %v1062
    %v5794 = vunpack.c.l.b16 %v1063
    %v5795 = vunpack.c.h.b16 %v1063
    %v5796 = vunpack.c.l.b16 %v1064
    %v5797 = vunpack.c.h.b16 %v1064
    %v5798 = vunpack.c.l.b16 %v1065
    %v5799 = vunpack.c.h.b16 %v1065
    %v5800 = vunpack.c.l.b16 %v1066
    %v5801 = vunpack.c.h.b16 %v1066
    %v5802 = vunpack.c.l.b16 %v1067
    %v5803 = vunpack.c.h.b16 %v1067
    %v5804 = vunpack.c.l.b16 %v1068
    %v5805 = vunpack.c.h.b16 %v1068
    %v5806 = vunpack.c.l.b16 %v1069
    %v5807 = vunpack.c.h.b16 %v1069
    %v5808 = vunpack.c.l.b16 %v1070
    %v5809 = vunpack.c.h.b16 %v1070
    %v5810 = vunpack.c.l.b16 %v1071
    %v5811 = vunpack.c.h.b16 %v1071
    %v5812 = vunpack.c.l.b16 %v1072
    %v5813 = vunpack.c.h.b16 %v1072
    %v5814 = vunpack.c.l.b16 %v1073
    %v5815 = vunpack.c.h.b16 %v1073
    %v5816 = vunpack.c.l.b16 %v1074
    %v5817 = vunpack.c.h.b16 %v1074
    %v5818 = vunpack.c.l.b16 %v1075
    %v5819 = vunpack.c.h.b16 %v1075
    %v5820 = vunpack.c.l.b16 %v1076
    %v5821 = vunpack.c.h.b16 %v1076
    %v5822 = vunpack.c.l.b16 %v1077
    %v5823 = vunpack.c.h.b16 %v1077
    %v5824 = vunpack.c.l.b16 %v1078
    %v5825 = vunpack.c.h.b16 %v1078
    %v5826 = vunpack.c.l.b16 %v1079
    %v5827 = vunpack.c.h.b16 %v1079
    %v5828 = vunpack.c.l.b16 %v1080
    %v5829 = vunpack.c.h.b16 %v1080
    %v5830 = vunpack.c.l.b16 %v1081
    %v5831 = vunpack.c.h.b16 %v1081
    %v5832 = vunpack.c.l.b16 %v1082
    %v5833 = vunpack.c.h.b16 %v1082
    %v5834 = vunpack.c.l.b16 %v1083
    %v5835 = vunpack.c.h.b16 %v1083
    %v5836 = vunpack.c.l.b16 %v1084
    %v5837 = vunpack.c.h.b16 %v1084
    %v5838 = vunpack.c.l.b16 %v1085
    %v5839 = vunpack.c.h.b16 %v1085
    %v5840 = vunpack.c.l.b16 %v1086
    %v5841 = vunpack.c.h.b16 %v1086
    %v5842 = vunpack.c.l.b16 %v1087
    %v5843 = vunpack.c.h.b16 %v1087
    %v5844 = vunpack.c.l.b16 %v1088
    %v5845 = vunpack.c.h.b16 %v1088
    %v5846 = vunpack.c.l.b16 %v1089
    %v5847 = vunpack.c.h.b16 %v1089
    %v5848 = vunpack.c.l.b16 %v1090
    %v5849 = vunpack.c.h.b16 %v1090
    %v5850 = vunpack.c.l.b16 %v1091
    %v5851 = vunpack.c.h.b16 %v1091
    %v5852 = vunpack.c.l.b16 %v1092
    %v5853 = vunpack.c.h.b16 %v1092
    %v5854 = vunpack.c.l.b16 %v1093
    %v5855 = vunpack.c.h.b16 %v1093
    %v5856 = vunpack.c.l.b16 %v1094
    %v5857 = vunpack.c.h.b16 %v1094
    %v5858 = vunpack.c.l.b16 %v1095
    %v5859 = vunpack.c.h.b16 %v1095
    %v5860 = vunpack.c.l.b16 %v1096
    %v5861 = vunpack.c.h.b16 %v1096
    %v5862 = vunpack.c.l.b16 %v1097
    %v5863 = vunpack.c.h.b16 %v1097
    %v5864 = vunpack.c.l.b16 %v1098
    %v5865 = vunpack.c.h.b16 %v1098
    %v5866 = vunpack.c.l.b16 %v1099
    %v5867 = vunpack.c.h.b16 %v1099
    %v5868 = vunpack.c.l.b16 %v1100
    %v5869 = vunpack.c.h.b16 %v1100
    %v5870 = vunpack.c.l.b16 %v1101
    %v5871 = vunpack.c.h.b16 %v1101
    %v5872 = vunpack.c.l.b16 %v1102
    %v5873 = vunpack.c.h.b16 %v1102
    %v5874 = vunpack.c.l.b16 %v1103
    %v5875 = vunpack.c.h.b16 %v1103
    %v5876 = vunpack.c.l.b16 %v1104
    %v5877 = vunpack.c.h.b16 %v1104
    %v5878 = vunpack.c.l.b16 %v1105
    %v5879 = vunpack.c.h.b16 %v1105
    %v5880 = vunpack.c.l.b16 %v1106
    %v5881 = vunpack.c.h.b16 %v1106
    %v5882 = vunpack.c.l.b16 %v1107
    %v5883 = vunpack.c.h.b16 %v1107
    %v5884 = vunpack.c.l.b16 %v1108
    %v5885 = vunpack.c.h.b16 %v1108
    %v5886 = vunpack.c.l.b16 %v1109
    %v5887 = vunpack.c.h.b16 %v1109
    %v5888 = vunpack.c.l.b16 %v1110
    %v5889 = vunpack.c.h.b16 %v1110
    %v5890 = vunpack.c.l.b16 %v1111
    %v5891 = vunpack.c.h.b16 %v1111
    %v5892 = vunpack.c.l.b16 %v1112
    %v5893 = vunpack.c.h.b16 %v1112
    %v5894 = vunpack.c.l.b16 %v1113
    %v5895 = vunpack.c.h.b16 %v1113
    %v5896 = vunpack.c.l.b16 %v1114
    %v5897 = vunpack.c.h.b16 %v1114
    %v5898 = vunpack.c.l.b16 %v1115
    %v5899 = vunpack.c.h.b16 %v1115
    %v5900 = vunpack.c.l.b16 %v1116
    %v5901 = vunpack.c.h.b16 %v1116
    %v5902 = vunpack.c.l.b16 %v1117
    %v5903 = vunpack.c.h.b16 %v1117
    %v5904 = vunpack.c.l.b16 %v1118
    %v5905 = vunpack.c.h.b16 %v1118
    %v5906 = vunpack.c.l.b16 %v1119
    %v5907 = vunpack.c.h.b16 %v1119
    %v5908 = vunpack.c.l.b16 %v1120
    %v5909 = vunpack.c.h.b16 %v1120
    %v5910 = vunpack.c.l.b16 %v1121
    %v5911 = vunpack.c.h.b16 %v1121
    %v5912 = vunpack.c.l.b16 %v1122
    %v5913 = vunpack.c.h.b16 %v1122
    %v5914 = vunpack.c.l.b16 %v1123
    %v5915 = vunpack.c.h.b16 %v1123
    %v5916 = vunpack.c.l.b16 %v1124
    %v5917 = vunpack.c.h.b16 %v1124
    %v5918 = vunpack.c.l.b16 %v1125
    %v5919 = vunpack.c.h.b16 %v1125
    %v5920 = vunpack.c.l.b16 %v1126
    %v5921 = vunpack.c.h.b16 %v1126
    %v5922 = vunpack.c.l.b16 %v1127
    %v5923 = vunpack.c.h.b16 %v1127
    %v5924 = vunpack.c.l.b16 %v1128
    %v5925 = vunpack.c.h.b16 %v1128
    %v5926 = vunpack.c.l.b16 %v1129
    %v5927 = vunpack.c.h.b16 %v1129
    %v5928 = vunpack.c.l.b16 %v1130
    %v5929 = vunpack.c.h.b16 %v1130
    %v5930 = vunpack.c.l.b16 %v1131
    %v5931 = vunpack.c.h.b16 %v1131
    %v5932 = vunpack.c.l.b16 %v1132
    %v5933 = vunpack.c.h.b16 %v1132
    %v5934 = vunpack.c.l.b16 %v1133
    %v5935 = vunpack.c.h.b16 %v1133
    %v5936 = vunpack.c.l.b16 %v1134
    %v5937 = vunpack.c.h.b16 %v1134
    %v5938 = vunpack.c.l.b16 %v1135
    %v5939 = vunpack.c.h.b16 %v1135
    %v5940 = vunpack.c.l.b16 %v1136
    %v5941 = vunpack.c.h.b16 %v1136
    %v5942 = vunpack.c.l.b16 %v1137
    %v5943 = vunpack.c.h.b16 %v1137
    %v5944 = vunpack.c.l.b16 %v1138
    %v5945 = vunpack.c.h.b16 %v1138
    %v5946 = vunpack.c.l.b16 %v1139
    %v5947 = vunpack.c.h.b16 %v1139
    %v5948 = vunpack.c.l.b16 %v1140
    %v5949 = vunpack.c.h.b16 %v1140
    %v5950 = vunpack.c.l.b16 %v1141
    %v5951 = vunpack.c.h.b16 %v1141
    %v5952 = vunpack.c.l.b16 %v1142
    %v5953 = vunpack.c.h.b16 %v1142
    %v5954 = vunpack.c.l.b16 %v1143
    %v5955 = vunpack.c.h.b16 %v1143
    %v5956 = vunpack.c.l.b16 %v1144
    %v5957 = vunpack.c.h.b16 %v1144
    %v5958 = vunpack.c.l.b16 %v1145
    %v5959 = vunpack.c.h.b16 %v1145
    %v5960 = vunpack.c.l.b16 %v1146
    %v5961 = vunpack.c.h.b16 %v1146
    %v5962 = vunpack.c.l.b16 %v1147
    %v5963 = vunpack.c.h.b16 %v1147
    %v5964 = vunpack.c.l.b16 %v1148
    %v5965 = vunpack.c.h.b16 %v1148
    %v5966 = vunpack.c.l.b16 %v1149
    %v5967 = vunpack.c.h.b16 %v1149
    %v5968 = vunpack.c.l.b16 %v1150
    %v5969 = vunpack.c.h.b16 %v1150
    %v5970 = vunpack.c.l.b16 %v1151
    %v5971 = vunpack.c.h.b16 %v1151
    %v5972 = vunpack.c.l.b16 %v1152
    %v5973 = vunpack.c.h.b16 %v1152
    %v5974 = vunpack.c.l.b16 %v1153
    %v5975 = vunpack.c.h.b16 %v1153
    %v5976 = vunpack.c.l.b16 %v1154
    %v5977 = vunpack.c.h.b16 %v1154
    %v5978 = vunpack.c.l.b16 %v1155
    %v5979 = vunpack.c.h.b16 %v1155
    %v5980 = vunpack.c.l.b16 %v1156
    %v5981 = vunpack.c.h.b16 %v1156
    %v5982 = vunpack.c.l.b16 %v1157
    %v5983 = vunpack.c.h.b16 %v1157
    %v5984 = vunpack.c.l.b16 %v1158
    %v5985 = vunpack.c.h.b16 %v1158
    %v5986 = vunpack.c.l.b16 %v1159
    %v5987 = vunpack.c.h.b16 %v1159
    %v5988 = vunpack.c.l.b16 %v1160
    %v5989 = vunpack.c.h.b16 %v1160
    %v5990 = vunpack.c.l.b16 %v1161
    %v5991 = vunpack.c.h.b16 %v1161
    %v5992 = vunpack.c.l.b16 %v1162
    %v5993 = vunpack.c.h.b16 %v1162
    %v5994 = vunpack.c.l.b16 %v1163
    %v5995 = vunpack.c.h.b16 %v1163
    %v5996 = vunpack.c.l.b16 %v1164
    %v5997 = vunpack.c.h.b16 %v1164
    %v5998 = vunpack.c.l.b16 %v1165
    %v5999 = vunpack.c.h.b16 %v1165
    %v6000 = vunpack.c.l.b16 %v1166
    %v6001 = vunpack.c.h.b16 %v1166
    %v6002 = vunpack.c.l.b16 %v1167
    %v6003 = vunpack.c.h.b16 %v1167
    %v6004 = vunpack.c.l.b16 %v1168
    %v6005 = vunpack.c.h.b16 %v1168
    %v6006 = vunpack.c.l.b16 %v1169
    %v6007 = vunpack.c.h.b16 %v1169
    %v6008 = vunpack.c.l.b16 %v1170
    %v6009 = vunpack.c.h.b16 %v1170
    %v6010 = vunpack.c.l.b16 %v1171
    %v6011 = vunpack.c.h.b16 %v1171
    %v6012 = vunpack.c.l.b16 %v1172
    %v6013 = vunpack.c.h.b16 %v1172
    %v6014 = vunpack.c.l.b16 %v1173
    %v6015 = vunpack.c.h.b16 %v1173
    %v6016 = vunpack.c.l.b16 %v1174
    %v6017 = vunpack.c.h.b16 %v1174
    %v6018 = vunpack.c.l.b16 %v1175
    %v6019 = vunpack.c.h.b16 %v1175
    %v6020 = vunpack.c.l.b16 %v1176
    %v6021 = vunpack.c.h.b16 %v1176
    %v6022 = vunpack.c.l.b16 %v1177
    %v6023 = vunpack.c.h.b16 %v1177
    %v6024 = vunpack.c.l.b16 %v1178
    %v6025 = vunpack.c.h.b16 %v1178
    %v6026 = vunpack.c.l.b16 %v1179
    %v6027 = vunpack.c.h.b16 %v1179
    %v6028 = vunpack.c.l.b16 %v1180
    %v6029 = vunpack.c.h.b16 %v1180
    %v6030 = vunpack.c.l.b16 %v1181
    %v6031 = vunpack.c.h.b16 %v1181
    %v6032 = vunpack.c.l.b16 %v1182
    %v6033 = vunpack.c.h.b16 %v1182
    %v6034 = vunpack.c.l.b16 %v1183
    %v6035 = vunpack.c.h.b16 %v1183
    %v6036 = vunpack.c.l.b16 %v1184
    %v6037 = vunpack.c.h.b16 %v1184
    %v6038 = vunpack.c.l.b16 %v1185
    %v6039 = vunpack.c.h.b16 %v1185
    %v6040 = vunpack.c.l.b16 %v1186
    %v6041 = vunpack.c.h.b16 %v1186
    %v6042 = vunpack.c.l.b16 %v1187
    %v6043 = vunpack.c.h.b16 %v1187
    %v6044 = vunpack.c.l.b16 %v1188
    %v6045 = vunpack.c.h.b16 %v1188
    %v6046 = vunpack.c.l.b16 %v1189
    %v6047 = vunpack.c.h.b16 %v1189
    %v6048 = vunpack.c.l.b16 %v1190
    %v6049 = vunpack.c.h.b16 %v1190
    %v6050 = vunpack.c.l.b16 %v1191
    %v6051 = vunpack.c.h.b16 %v1191
    %v6052 = vunpack.c.l.b16 %v1192
    %v6053 = vunpack.c.h.b16 %v1192
    %v6054 = vunpack.c.l.b16 %v1193
    %v6055 = vunpack.c.h.b16 %v1193
    %v6056 = vunpack.c.l.b16 %v1194
    %v6057 = vunpack.c.h.b16 %v1194
    %v6058 = vunpack.c.l.b16 %v1195
    %v6059 = vunpack.c.h.b16 %v1195
    %v6060 = vunpack.c.l.b16 %v1196
    %v6061 = vunpack.c.h.b16 %v1196
    %v6062 = vunpack.c.l.b16 %v1197
    %v6063 = vunpack.c.h.b16 %v1197
    %v6064 = vunpack.c.l.b16 %v1198
    %v6065 = vunpack.c.h.b16 %v1198
    %v6066 = vunpack.c.l.b16 %v1199
    %v6067 = vunpack.c.h.b16 %v1199
    %v6068 = vunpack.c.l.b16 %v1200
    %v6069 = vunpack.c.h.b16 %v1200
    %v6070 = vunpack.c.l.b16 %v1201
    %v6071 = vunpack.c.h.b16 %v1201
    %v6072 = vunpack.c.l.b16 %v1202
    %v6073 = vunpack.c.h.b16 %v1202
    %v6074 = vunpack.c.l.b16 %v1203
    %v6075 = vunpack.c.h.b16 %v1203
    %v6076 = vunpack.c.l.b16 %v1204
    %v6077 = vunpack.c.h.b16 %v1204
    %v6078 = vunpack.c.l.b16 %v1205
    %v6079 = vunpack.c.h.b16 %v1205
    %v6080 = vunpack.c.l.b16 %v1206
    %v6081 = vunpack.c.h.b16 %v1206
    %v6082 = vunpack.c.l.b16 %v1207
    %v6083 = vunpack.c.h.b16 %v1207
    %v6084 = vunpack.c.l.b16 %v1208
    %v6085 = vunpack.c.h.b16 %v1208
    %v6086 = vunpack.c.l.b16 %v1209
    %v6087 = vunpack.c.h.b16 %v1209
    %v6088 = vunpack.c.l.b16 %v1210
    %v6089 = vunpack.c.h.b16 %v1210
    %v6090 = vunpack.c.l.b16 %v1211
    %v6091 = vunpack.c.h.b16 %v1211
    %v6092 = vunpack.c.l.b16 %v1212
    %v6093 = vunpack.c.h.b16 %v1212
    %v6094 = vunpack.c.l.b16 %v1213
    %v6095 = vunpack.c.h.b16 %v1213
    %v6096 = vunpack.c.l.b16 %v1214
    %v6097 = vunpack.c.h.b16 %v1214
    %v6098 = vunpack.c.l.b16 %v1215
    %v6099 = vunpack.c.h.b16 %v1215
    %v6100 = vunpack.c.l.b16 %v1216
    %v6101 = vunpack.c.h.b16 %v1216
    %v6102 = vunpack.c.l.b16 %v1217
    %v6103 = vunpack.c.h.b16 %v1217
    %v6104 = vunpack.c.l.b16 %v1218
    %v6105 = vunpack.c.h.b16 %v1218
    %v6106 = vunpack.c.l.b16 %v1219
    %v6107 = vunpack.c.h.b16 %v1219
    %v6108 = vunpack.c.l.b16 %v1220
    %v6109 = vunpack.c.h.b16 %v1220
    %v6110 = vunpack.c.l.b16 %v1221
    %v6111 = vunpack.c.h.b16 %v1221
    %v6112 = vunpack.c.l.b16 %v1222
    %v6113 = vunpack.c.h.b16 %v1222
    %v6114 = vunpack.c.l.b16 %v1223
    %v6115 = vunpack.c.h.b16 %v1223
    %v6116 = vunpack.c.l.b16 %v1224
    %v6117 = vunpack.c.h.b16 %v1224
    %v6118 = vunpack.c.l.b16 %v1225
    %v6119 = vunpack.c.h.b16 %v1225
    %v6120 = vunpack.c.l.b16 %v1226
    %v6121 = vunpack.c.h.b16 %v1226
    %v6122 = vunpack.c.l.b16 %v1227
    %v6123 = vunpack.c.h.b16 %v1227
    %v6124 = vunpack.c.l.b16 %v1228
    %v6125 = vunpack.c.h.b16 %v1228
    %v6126 = vunpack.c.l.b16 %v1229
    %v6127 = vunpack.c.h.b16 %v1229
    %v6128 = vunpack.c.l.b16 %v1230
    %v6129 = vunpack.c.h.b16 %v1230
    %v6130 = vunpack.c.l.b16 %v1231
    %v6131 = vunpack.c.h.b16 %v1231
    %v6132 = vunpack.c.l.b16 %v1232
    %v6133 = vunpack.c.h.b16 %v1232
    %v6134 = vunpack.c.l.b16 %v1233
    %v6135 = vunpack.c.h.b16 %v1233
    %v6136 = vunpack.c.l.b16 %v1234
    %v6137 = vunpack.c.h.b16 %v1234
    %v6138 = vunpack.c.l.b16 %v1235
    %v6139 = vunpack.c.h.b16 %v1235
    %v6140 = vunpack.c.l.b16 %v1236
    %v6141 = vunpack.c.h.b16 %v1236
    %v6142 = vunpack.c.l.b16 %v1237
    %v6143 = vunpack.c.h.b16 %v1237
    %v6144 = vunpack.c.l.b16 %v1238
    %v6145 = vunpack.c.h.b16 %v1238
    %v6146 = vunpack.c.l.b16 %v1239
    %v6147 = vunpack.c.h.b16 %v1239
    %v6148 = vunpack.c.l.b16 %v1240
    %v6149 = vunpack.c.h.b16 %v1240
    %v6150 = vunpack.c.l.b16 %v1241
    %v6151 = vunpack.c.h.b16 %v1241
    %v6152 = vunpack.c.l.b16 %v1242
    %v6153 = vunpack.c.h.b16 %v1242
    %v6154 = vunpack.c.l.b16 %v1243
    %v6155 = vunpack.c.h.b16 %v1243
    %v6156 = vunpack.c.l.b16 %v1244
    %v6157 = vunpack.c.h.b16 %v1244
    %v6158 = vunpack.c.l.b16 %v1245
    %v6159 = vunpack.c.h.b16 %v1245
    %v6160 = vunpack.c.l.b16 %v1246
    %v6161 = vunpack.c.h.b16 %v1246
    %v6162 = vunpack.c.l.b16 %v1247
    %v6163 = vunpack.c.h.b16 %v1247
    %v6164 = vunpack.c.l.b16 %v1248
    %v6165 = vunpack.c.h.b16 %v1248
    %v6166 = vunpack.c.l.b16 %v1249
    %v6167 = vunpack.c.h.b16 %v1249
    %v6168 = vunpack.c.l.b16 %v1250
    %v6169 = vunpack.c.h.b16 %v1250
    %v6170 = vunpack.c.l.b16 %v1251
    %v6171 = vunpack.c.h.b16 %v1251
    %v6172 = vunpack.c.l.b16 %v1252
    %v6173 = vunpack.c.h.b16 %v1252
    %v6174 = vunpack.c.l.b16 %v1253
    %v6175 = vunpack.c.h.b16 %v1253
    %v6176 = vunpack.c.l.b16 %v1254
    %v6177 = vunpack.c.h.b16 %v1254
    %v6178 = vunpack.c.l.b16 %v1255
    %v6179 = vunpack.c.h.b16 %v1255
    %v6180 = vunpack.c.l.b16 %v1256
    %v6181 = vunpack.c.h.b16 %v1256
    %v6182 = vunpack.c.l.b16 %v1257
    %v6183 = vunpack.c.h.b16 %v1257
    %v6184 = vunpack.c.l.b16 %v1258
    %v6185 = vunpack.c.h.b16 %v1258
    %v6186 = vunpack.c.l.b16 %v1259
    %v6187 = vunpack.c.h.b16 %v1259
    %v6188 = vunpack.c.l.b16 %v1260
    %v6189 = vunpack.c.h.b16 %v1260
    %v6190 = vunpack.c.l.b16 %v1261
    %v6191 = vunpack.c.h.b16 %v1261
    %v6192 = vunpack.c.l.b16 %v1262
    %v6193 = vunpack.c.h.b16 %v1262
    %v6194 = vunpack.c.l.b16 %v1263
    %v6195 = vunpack.c.h.b16 %v1263
    %v6196 = vunpack.c.l.b16 %v1264
    %v6197 = vunpack.c.h.b16 %v1264
    %v6198 = vunpack.c.l.b16 %v1265
    %v6199 = vunpack.c.h.b16 %v1265
    %v6200 = vunpack.c.l.b16 %v1266
    %v6201 = vunpack.c.h.b16 %v1266
    %v6202 = vunpack.c.l.b16 %v1267
    %v6203 = vunpack.c.h.b16 %v1267
    %v6204 = vpack.c.b16 %v4164, %v4156
    %v6205 = vpack.c.b16 %v4165, %v4157
    %v6206 = vpack.c.b16 %v4166, %v4158
    %v6207 = vpack.c.b16 %v4167, %v4159
    %v6208 = vpack.c.b16 %v4168, %v4160
    %v6209 = vpack.c.b16 %v4169, %v4161
    %v6210 = vpack.c.b16 %v4170, %v4162
    %v6211 = vpack.c.b16 %v4171, %v4163
    %v6212 = vpack.c.b16 %v4180, %v4172
    %v6213 = vpack.c.b16 %v4181, %v4173
    %v6214 = vpack.c.b16 %v4182, %v4174
    %v6215 = vpack.c.b16 %v4183, %v4175
    %v6216 = vpack.c.b16 %v4184, %v4176
    %v6217 = vpack.c.b16 %v4185, %v4177
    %v6218 = vpack.c.b16 %v4186, %v4178
    %v6219 = vpack.c.b16 %v4187, %v4179
    %v6220 = vpack.c.b16 %v4196, %v4188
    %v6221 = vpack.c.b16 %v4197, %v4189
    %v6222 = vpack.c.b16 %v4198, %v4190
    %v6223 = vpack.c.b16 %v4199, %v4191
    %v6224 = vpack.c.b16 %v4200, %v4192
    %v6225 = vpack.c.b16 %v4201, %v4193
    %v6226 = vpack.c.b16 %v4202, %v4194
    %v6227 = vpack.c.b16 %v4203, %v4195
    %v6228 = vpack.c.b16 %v4212, %v4204
    %v6229 = vpack.c.b16 %v4213, %v4205
    %v6230 = vpack.c.b16 %v4214, %v4206
    %v6231 = vpack.c.b16 %v4215, %v4207
    %v6232 = vpack.c.b16 %v4216, %v4208
    %v6233 = vpack.c.b16 %v4217, %v4209
    %v6234 = vpack.c.b16 %v4218, %v4210
    %v6235 = vpack.c.b16 %v4219, %v4211
    %v6236 = vpack.c.b16 %v4228, %v4220
    %v6237 = vpack.c.b16 %v4229, %v4221
    %v6238 = vpack.c.b16 %v4230, %v4222
    %v6239 = vpack.c.b16 %v4231, %v4223
    %v6240 = vpack.c.b16 %v4232, %v4224
    %v6241 = vpack.c.b16 %v4233, %v4225
    %v6242 = vpack.c.b16 %v4234, %v4226
    %v6243 = vpack.c.b16 %v4235, %v4227
    %v6244 = vpack.c.b16 %v4244, %v4236
    %v6245 = vpack.c.b16 %v4245, %v4237
    %v6246 = vpack.c.b16 %v4246, %v4238
    %v6247 = vpack.c.b16 %v4247, %v4239
    %v6248 = vpack.c.b16 %v4248, %v4240
    %v6249 = vpack.c.b16 %v4249, %v4241
    %v6250 = vpack.c.b16 %v4250, %v4242
    %v6251 = vpack.c.b16 %v4251, %v4243
    %v6252 = vpack.c.b16 %v4260, %v4252
    %v6253 = vpack.c.b16 %v4261, %v4253
    %v6254 = vpack.c.b16 %v4262, %v4254
    %v6255 = vpack.c.b16 %v4263, %v4255
    %v6256 = vpack.c.b16 %v4264, %v4256
    %v6257 = vpack.c.b16 %v4265, %v4257
    %v6258 = vpack.c.b16 %v4266, %v4258
    %v6259 = vpack.c.b16 %v4267, %v4259
    %v6260 = vpack.c.b16 %v4276, %v4268
    %v6261 = vpack.c.b16 %v4277, %v4269
    %v6262 = vpack.c.b16 %v4278, %v4270
    %v6263 = vpack.c.b16 %v4279, %v4271
    %v6264 = vpack.c.b16 %v4280, %v4272
    %v6265 = vpack.c.b16 %v4281, %v4273
    %v6266 = vpack.c.b16 %v4282, %v4274
    %v6267 = vpack.c.b16 %v4283, %v4275
    %v6268 = vpack.c.b16 %v4292, %v4284
    %v6269 = vpack.c.b16 %v4293, %v4285
    %v6270 = vpack.c.b16 %v4294, %v4286
    %v6271 = vpack.c.b16 %v4295, %v4287
    %v6272 = vpack.c.b16 %v4296, %v4288
    %v6273 = vpack.c.b16 %v4297, %v4289
    %v6274 = vpack.c.b16 %v4298, %v4290
    %v6275 = vpack.c.b16 %v4299, %v4291
    %v6276 = vpack.c.b16 %v4308, %v4300
    %v6277 = vpack.c.b16 %v4309, %v4301
    %v6278 = vpack.c.b16 %v4310, %v4302
    %v6279 = vpack.c.b16 %v4311, %v4303
    %v6280 = vpack.c.b16 %v4312, %v4304
    %v6281 = vpack.c.b16 %v4313, %v4305
    %v6282 = vpack.c.b16 %v4314, %v4306
    %v6283 = vpack.c.b16 %v4315, %v4307
    %v6284 = vpack.c.b16 %v4324, %v4316
    %v6285 = vpack.c.b16 %v4325, %v4317
    %v6286 = vpack.c.b16 %v4326, %v4318
    %v6287 = vpack.c.b16 %v4327, %v4319
    %v6288 = vpack.c.b16 %v4328, %v4320
    %v6289 = vpack.c.b16 %v4329, %v4321
    %v6290 = vpack.c.b16 %v4330, %v4322
    %v6291 = vpack.c.b16 %v4331, %v4323
    %v6292 = vpack.c.b16 %v4340, %v4332
    %v6293 = vpack.c.b16 %v4341, %v4333
    %v6294 = vpack.c.b16 %v4342, %v4334
    %v6295 = vpack.c.b16 %v4343, %v4335
    %v6296 = vpack.c.b16 %v4344, %v4336
    %v6297 = vpack.c.b16 %v4345, %v4337
    %v6298 = vpack.c.b16 %v4346, %v4338
    %v6299 = vpack.c.b16 %v4347, %v4339
    %v6300 = vpack.c.b16 %v4356, %v4348
    %v6301 = vpack.c.b16 %v4357, %v4349
    %v6302 = vpack.c.b16 %v4358, %v4350
    %v6303 = vpack.c.b16 %v4359, %v4351
    %v6304 = vpack.c.b16 %v4360, %v4352
    %v6305 = vpack.c.b16 %v4361, %v4353
    %v6306 = vpack.c.b16 %v4362, %v4354
    %v6307 = vpack.c.b16 %v4363, %v4355
    %v6308 = vpack.c.b16 %v4372, %v4364
    %v6309 = vpack.c.b16 %v4373, %v4365
    %v6310 = vpack.c.b16 %v4374, %v4366
    %v6311 = vpack.c.b16 %v4375, %v4367
    %v6312 = vpack.c.b16 %v4376, %v4368
    %v6313 = vpack.c.b16 %v4377, %v4369
    %v6314 = vpack.c.b16 %v4378, %v4370
    %v6315 = vpack.c.b16 %v4379, %v4371
    %v6316 = vpack.c.b16 %v4388, %v4380
    %v6317 = vpack.c.b16 %v4389, %v4381
    %v6318 = vpack.c.b16 %v4390, %v4382
    %v6319 = vpack.c.b16 %v4391, %v4383
    %v6320 = vpack.c.b16 %v4392, %v4384
    %v6321 = vpack.c.b16 %v4393, %v4385
    %v6322 = vpack.c.b16 %v4394, %v4386
    %v6323 = vpack.c.b16 %v4395, %v4387
    %v6324 = vpack.c.b16 %v4404, %v4396
    %v6325 = vpack.c.b16 %v4405, %v4397
    %v6326 = vpack.c.b16 %v4406, %v4398
    %v6327 = vpack.c.b16 %v4407, %v4399
    %v6328 = vpack.c.b16 %v4408, %v4400
    %v6329 = vpack.c.b16 %v4409, %v4401
    %v6330 = vpack.c.b16 %v4410, %v4402
    %v6331 = vpack.c.b16 %v4411, %v4403
    %v6332 = vpack.c.b16 %v4420, %v4412
    %v6333 = vpack.c.b16 %v4421, %v4413
    %v6334 = vpack.c.b16 %v4422, %v4414
    %v6335 = vpack.c.b16 %v4423, %v4415
    %v6336 = vpack.c.b16 %v4424, %v4416
    %v6337 = vpack.c.b16 %v4425, %v4417
    %v6338 = vpack.c.b16 %v4426, %v4418
    %v6339 = vpack.c.b16 %v4427, %v4419
    %v6340 = vpack.c.b16 %v4436, %v4428
    %v6341 = vpack.c.b16 %v4437, %v4429
    %v6342 = vpack.c.b16 %v4438, %v4430
    %v6343 = vpack.c.b16 %v4439, %v4431
    %v6344 = vpack.c.b16 %v4440, %v4432
    %v6345 = vpack.c.b16 %v4441, %v4433
    %v6346 = vpack.c.b16 %v4442, %v4434
    %v6347 = vpack.c.b16 %v4443, %v4435
    %v6348 = vpack.c.b16 %v4452, %v4444
    %v6349 = vpack.c.b16 %v4453, %v4445
    %v6350 = vpack.c.b16 %v4454, %v4446
    %v6351 = vpack.c.b16 %v4455, %v4447
    %v6352 = vpack.c.b16 %v4456, %v4448
    %v6353 = vpack.c.b16 %v4457, %v4449
    %v6354 = vpack.c.b16 %v4458, %v4450
    %v6355 = vpack.c.b16 %v4459, %v4451
    %v6356 = vpack.c.b16 %v4468, %v4460
    %v6357 = vpack.c.b16 %v4469, %v4461
    %v6358 = vpack.c.b16 %v4470, %v4462
    %v6359 = vpack.c.b16 %v4471, %v4463
    %v6360 = vpack.c.b16 %v4472, %v4464
    %v6361 = vpack.c.b16 %v4473, %v4465
    %v6362 = vpack.c.b16 %v4474, %v4466
    %v6363 = vpack.c.b16 %v4475, %v4467
    %v6364 = vpack.c.b16 %v4484, %v4476
    %v6365 = vpack.c.b16 %v4485, %v4477
    %v6366 = vpack.c.b16 %v4486, %v4478
    %v6367 = vpack.c.b16 %v4487, %v4479
    %v6368 = vpack.c.b16 %v4488, %v4480
    %v6369 = vpack.c.b16 %v4489, %v4481
    %v6370 = vpack.c.b16 %v4490, %v4482
    %v6371 = vpack.c.b16 %v4491, %v4483
    %v6372 = vpack.c.b16 %v4500, %v4492
    %v6373 = vpack.c.b16 %v4501, %v4493
    %v6374 = vpack.c.b16 %v4502, %v4494
    %v6375 = vpack.c.b16 %v4503, %v4495
    %v6376 = vpack.c.b16 %v4504, %v4496
    %v6377 = vpack.c.b16 %v4505, %v4497
    %v6378 = vpack.c.b16 %v4506, %v4498
    %v6379 = vpack.c.b16 %v4507, %v4499
    %v6380 = vpack.c.b16 %v4516, %v4508
    %v6381 = vpack.c.b16 %v4517, %v4509
    %v6382 = vpack.c.b16 %v4518, %v4510
    %v6383 = vpack.c.b16 %v4519, %v4511
    %v6384 = vpack.c.b16 %v4520, %v4512
    %v6385 = vpack.c.b16 %v4521, %v4513
    %v6386 = vpack.c.b16 %v4522, %v4514
    %v6387 = vpack.c.b16 %v4523, %v4515
    %v6388 = vpack.c.b16 %v4532, %v4524
    %v6389 = vpack.c.b16 %v4533, %v4525
    %v6390 = vpack.c.b16 %v4534, %v4526
    %v6391 = vpack.c.b16 %v4535, %v4527
    %v6392 = vpack.c.b16 %v4536, %v4528
    %v6393 = vpack.c.b16 %v4537, %v4529
    %v6394 = vpack.c.b16 %v4538, %v4530
    %v6395 = vpack.c.b16 %v4539, %v4531
    %v6396 = vpack.c.b16 %v4548, %v4540
    %v6397 = vpack.c.b16 %v4549, %v4541
    %v6398 = vpack.c.b16 %v4550, %v4542
    %v6399 = vpack.c.b16 %v4551, %v4543
    %v6400 = vpack.c.b16 %v4552, %v4544
    %v6401 = vpack.c.b16 %v4553, %v4545
    %v6402 = vpack.c.b16 %v4554, %v4546
    %v6403 = vpack.c.b16 %v4555, %v4547
    %v6404 = vpack.c.b16 %v4564, %v4556
    %v6405 = vpack.c.b16 %v4565, %v4557
    %v6406 = vpack.c.b16 %v4566, %v4558
    %v6407 = vpack.c.b16 %v4567, %v4559
    %v6408 = vpack.c.b16 %v4568, %v4560
    %v6409 = vpack.c.b16 %v4569, %v4561
    %v6410 = vpack.c.b16 %v4570, %v4562
    %v6411 = vpack.c.b16 %v4571, %v4563
    %v6412 = vpack.c.b16 %v4580, %v4572
    %v6413 = vpack.c.b16 %v4581, %v4573
    %v6414 = vpack.c.b16 %v4582, %v4574
    %v6415 = vpack.c.b16 %v4583, %v4575
    %v6416 = vpack.c.b16 %v4584, %v4576
    %v6417 = vpack.c.b16 %v4585, %v4577
    %v6418 = vpack.c.b16 %v4586, %v4578
    %v6419 = vpack.c.b16 %v4587, %v4579
    %v6420 = vpack.c.b16 %v4596, %v4588
    %v6421 = vpack.c.b16 %v4597, %v4589
    %v6422 = vpack.c.b16 %v4598, %v4590
    %v6423 = vpack.c.b16 %v4599, %v4591
    %v6424 = vpack.c.b16 %v4600, %v4592
    %v6425 = vpack.c.b16 %v4601, %v4593
    %v6426 = vpack.c.b16 %v4602, %v4594
    %v6427 = vpack.c.b16 %v4603, %v4595
    %v6428 = vpack.c.b16 %v4612, %v4604
    %v6429 = vpack.c.b16 %v4613, %v4605
    %v6430 = vpack.c.b16 %v4614, %v4606
    %v6431 = vpack.c.b16 %v4615, %v4607
    %v6432 = vpack.c.b16 %v4616, %v4608
    %v6433 = vpack.c.b16 %v4617, %v4609
    %v6434 = vpack.c.b16 %v4618, %v4610
    %v6435 = vpack.c.b16 %v4619, %v4611
    %v6436 = vpack.c.b16 %v4628, %v4620
    %v6437 = vpack.c.b16 %v4629, %v4621
    %v6438 = vpack.c.b16 %v4630, %v4622
    %v6439 = vpack.c.b16 %v4631, %v4623
    %v6440 = vpack.c.b16 %v4632, %v4624
    %v6441 = vpack.c.b16 %v4633, %v4625
    %v6442 = vpack.c.b16 %v4634, %v4626
    %v6443 = vpack.c.b16 %v4635, %v4627
    %v6444 = vpack.c.b16 %v4644, %v4636
    %v6445 = vpack.c.b16 %v4645, %v4637
    %v6446 = vpack.c.b16 %v4646, %v4638
    %v6447 = vpack.c.b16 %v4647, %v4639
    %v6448 = vpack.c.b16 %v4648, %v4640
    %v6449 = vpack.c.b16 %v4649, %v4641
    %v6450 = vpack.c.b16 %v4650, %v4642
    %v6451 = vpack.c.b16 %v4651, %v4643
    %v6452 = vpack.c.b16 %v4660, %v4652
    %v6453 = vpack.c.b16 %v4661, %v4653
    %v6454 = vpack.c.b16 %v4662, %v4654
    %v6455 = vpack.c.b16 %v4663, %v4655
    %v6456 = vpack.c.b16 %v4664, %v4656
    %v6457 = vpack.c.b16 %v4665, %v4657
    %v6458 = vpack.c.b16 %v4666, %v4658
    %v6459 = vpack.c.b16 %v4667, %v4659
    %v6460 = vpack.c.b16 %v4676, %v4668
    %v6461 = vpack.c.b16 %v4677, %v4669
    %v6462 = vpack.c.b16 %v4678, %v4670
    %v6463 = vpack.c.b16 %v4679, %v4671
    %v6464 = vpack.c.b16 %v4680, %v4672
    %v6465 = vpack.c.b16 %v4681, %v4673
    %v6466 = vpack.c.b16 %v4682, %v4674
    %v6467 = vpack.c.b16 %v4683, %v4675
    %v6468 = vpack.c.b16 %v4692, %v4684
    %v6469 = vpack.c.b16 %v4693, %v4685
    %v6470 = vpack.c.b16 %v4694, %v4686
    %v6471 = vpack.c.b16 %v4695, %v4687
    %v6472 = vpack.c.b16 %v4696, %v4688
    %v6473 = vpack.c.b16 %v4697, %v4689
    %v6474 = vpack.c.b16 %v4698, %v4690
    %v6475 = vpack.c.b16 %v4699, %v4691
    %v6476 = vpack.c.b16 %v4708, %v4700
    %v6477 = vpack.c.b16 %v4709, %v4701
    %v6478 = vpack.c.b16 %v4710, %v4702
    %v6479 = vpack.c.b16 %v4711, %v4703
    %v6480 = vpack.c.b16 %v4712, %v4704
    %v6481 = vpack.c.b16 %v4713, %v4705
    %v6482 = vpack.c.b16 %v4714, %v4706
    %v6483 = vpack.c.b16 %v4715, %v4707
    %v6484 = vpack.c.b16 %v4724, %v4716
    %v6485 = vpack.c.b16 %v4725, %v4717
    %v6486 = vpack.c.b16 %v4726, %v4718
    %v6487 = vpack.c.b16 %v4727, %v4719
    %v6488 = vpack.c.b16 %v4728, %v4720
    %v6489 = vpack.c.b16 %v4729, %v4721
    %v6490 = vpack.c.b16 %v4730, %v4722
    %v6491 = vpack.c.b16 %v4731, %v4723
    %v6492 = vpack.c.b16 %v4740, %v4732
    %v6493 = vpack.c.b16 %v4741, %v4733
    %v6494 = vpack.c.b16 %v4742, %v4734
    %v6495 = vpack.c.b16 %v4743, %v4735
    %v6496 = vpack.c.b16 %v4744, %v4736
    %v6497 = vpack.c.b16 %v4745, %v4737
    %v6498 = vpack.c.b16 %v4746, %v4738
    %v6499 = vpack.c.b16 %v4747, %v4739
    %v6500 = vpack.c.b16 %v4756, %v4748
    %v6501 = vpack.c.b16 %v4757, %v4749
    %v6502 = vpack.c.b16 %v4758, %v4750
    %v6503 = vpack.c.b16 %v4759, %v4751
    %v6504 = vpack.c.b16 %v4760, %v4752
    %v6505 = vpack.c.b16 %v4761, %v4753
    %v6506 = vpack.c.b16 %v4762, %v4754
    %v6507 = vpack.c.b16 %v4763, %v4755
    %v6508 = vpack.c.b16 %v4772, %v4764
    %v6509 = vpack.c.b16 %v4773, %v4765
    %v6510 = vpack.c.b16 %v4774, %v4766
    %v6511 = vpack.c.b16 %v4775, %v4767
    %v6512 = vpack.c.b16 %v4776, %v4768
    %v6513 = vpack.c.b16 %v4777, %v4769
    %v6514 = vpack.c.b16 %v4778, %v4770
    %v6515 = vpack.c.b16 %v4779, %v4771
    %v6516 = vpack.c.b16 %v4788, %v4780
    %v6517 = vpack.c.b16 %v4789, %v4781
    %v6518 = vpack.c.b16 %v4790, %v4782
    %v6519 = vpack.c.b16 %v4791, %v4783
    %v6520 = vpack.c.b16 %v4792, %v4784
    %v6521 = vpack.c.b16 %v4793, %v4785
    %v6522 = vpack.c.b16 %v4794, %v4786
    %v6523 = vpack.c.b16 %v4795, %v4787
    %v6524 = vpack.c.b16 %v4804, %v4796
    %v6525 = vpack.c.b16 %v4805, %v4797
    %v6526 = vpack.c.b16 %v4806, %v4798
    %v6527 = vpack.c.b16 %v4807, %v4799
    %v6528 = vpack.c.b16 %v4808, %v4800
    %v6529 = vpack.c.b16 %v4809, %v4801
    %v6530 = vpack.c.b16 %v4810, %v4802
    %v6531 = vpack.c.b16 %v4811, %v4803
    %v6532 = vpack.c.b16 %v4820, %v4812
    %v6533 = vpack.c.b16 %v4821, %v4813
    %v6534 = vpack.c.b16 %v4822, %v4814
    %v6535 = vpack.c.b16 %v4823, %v4815
    %v6536 = vpack.c.b16 %v4824, %v4816
    %v6537 = vpack.c.b16 %v4825, %v4817
    %v6538 = vpack.c.b16 %v4826, %v4818
    %v6539 = vpack.c.b16 %v4827, %v4819
    %v6540 = vpack.c.b16 %v4836, %v4828
    %v6541 = vpack.c.b16 %v4837, %v4829
    %v6542 = vpack.c.b16 %v4838, %v4830
    %v6543 = vpack.c.b16 %v4839, %v4831
    %v6544 = vpack.c.b16 %v4840, %v4832
    %v6545 = vpack.c.b16 %v4841, %v4833
    %v6546 = vpack.c.b16 %v4842, %v4834
    %v6547 = vpack.c.b16 %v4843, %v4835
    %v6548 = vpack.c.b16 %v4852, %v4844
    %v6549 = vpack.c.b16 %v4853, %v4845
    %v6550 = vpack.c.b16 %v4854, %v4846
    %v6551 = vpack.c.b16 %v4855, %v4847
    %v6552 = vpack.c.b16 %v4856, %v4848
    %v6553 = vpack.c.b16 %v4857, %v4849
    %v6554 = vpack.c.b16 %v4858, %v4850
    %v6555 = vpack.c.b16 %v4859, %v4851
    %v6556 = vpack.c.b16 %v4868, %v4860
    %v6557 = vpack.c.b16 %v4869, %v4861
    %v6558 = vpack.c.b16 %v4870, %v4862
    %v6559 = vpack.c.b16 %v4871, %v4863
    %v6560 = vpack.c.b16 %v4872, %v4864
    %v6561 = vpack.c.b16 %v4873, %v4865
    %v6562 = vpack.c.b16 %v4874, %v4866
    %v6563 = vpack.c.b16 %v4875, %v4867
    %v6564 = vpack.c.b16 %v4884, %v4876
    %v6565 = vpack.c.b16 %v4885, %v4877
    %v6566 = vpack.c.b16 %v4886, %v4878
    %v6567 = vpack.c.b16 %v4887, %v4879
    %v6568 = vpack.c.b16 %v4888, %v4880
    %v6569 = vpack.c.b16 %v4889, %v4881
    %v6570 = vpack.c.b16 %v4890, %v4882
    %v6571 = vpack.c.b16 %v4891, %v4883
    %v6572 = vpack.c.b16 %v4900, %v4892
    %v6573 = vpack.c.b16 %v4901, %v4893
    %v6574 = vpack.c.b16 %v4902, %v4894
    %v6575 = vpack.c.b16 %v4903, %v4895
    %v6576 = vpack.c.b16 %v4904, %v4896
    %v6577 = vpack.c.b16 %v4905, %v4897
    %v6578 = vpack.c.b16 %v4906, %v4898
    %v6579 = vpack.c.b16 %v4907, %v4899
    %v6580 = vpack.c.b16 %v4916, %v4908
    %v6581 = vpack.c.b16 %v4917, %v4909
    %v6582 = vpack.c.b16 %v4918, %v4910
    %v6583 = vpack.c.b16 %v4919, %v4911
    %v6584 = vpack.c.b16 %v4920, %v4912
    %v6585 = vpack.c.b16 %v4921, %v4913
    %v6586 = vpack.c.b16 %v4922, %v4914
    %v6587 = vpack.c.b16 %v4923, %v4915
    %v6588 = vpack.c.b16 %v4932, %v4924
    %v6589 = vpack.c.b16 %v4933, %v4925
    %v6590 = vpack.c.b16 %v4934, %v4926
    %v6591 = vpack.c.b16 %v4935, %v4927
    %v6592 = vpack.c.b16 %v4936, %v4928
    %v6593 = vpack.c.b16 %v4937, %v4929
    %v6594 = vpack.c.b16 %v4938, %v4930
    %v6595 = vpack.c.b16 %v4939, %v4931
    %v6596 = vpack.c.b16 %v4948, %v4940
    %v6597 = vpack.c.b16 %v4949, %v4941
    %v6598 = vpack.c.b16 %v4950, %v4942
    %v6599 = vpack.c.b16 %v4951, %v4943
    %v6600 = vpack.c.b16 %v4952, %v4944
    %v6601 = vpack.c.b16 %v4953, %v4945
    %v6602 = vpack.c.b16 %v4954, %v4946
    %v6603 = vpack.c.b16 %v4955, %v4947
    %v6604 = vpack.c.b16 %v4964, %v4956
    %v6605 = vpack.c.b16 %v4965, %v4957
    %v6606 = vpack.c.b16 %v4966, %v4958
    %v6607 = vpack.c.b16 %v4967, %v4959
    %v6608 = vpack.c.b16 %v4968, %v4960
    %v6609 = vpack.c.b16 %v4969, %v4961
    %v6610 = vpack.c.b16 %v4970, %v4962
    %v6611 = vpack.c.b16 %v4971, %v4963
    %v6612 = vpack.c.b16 %v4980, %v4972
    %v6613 = vpack.c.b16 %v4981, %v4973
    %v6614 = vpack.c.b16 %v4982, %v4974
    %v6615 = vpack.c.b16 %v4983, %v4975
    %v6616 = vpack.c.b16 %v4984, %v4976
    %v6617 = vpack.c.b16 %v4985, %v4977
    %v6618 = vpack.c.b16 %v4986, %v4978
    %v6619 = vpack.c.b16 %v4987, %v4979
    %v6620 = vpack.c.b16 %v4996, %v4988
    %v6621 = vpack.c.b16 %v4997, %v4989
    %v6622 = vpack.c.b16 %v4998, %v4990
    %v6623 = vpack.c.b16 %v4999, %v4991
    %v6624 = vpack.c.b16 %v5000, %v4992
    %v6625 = vpack.c.b16 %v5001, %v4993
    %v6626 = vpack.c.b16 %v5002, %v4994
    %v6627 = vpack.c.b16 %v5003, %v4995
    %v6628 = vpack.c.b16 %v5012, %v5004
    %v6629 = vpack.c.b16 %v5013, %v5005
    %v6630 = vpack.c.b16 %v5014, %v5006
    %v6631 = vpack.c.b16 %v5015, %v5007
    %v6632 = vpack.c.b16 %v5016, %v5008
    %v6633 = vpack.c.b16 %v5017, %v5009
    %v6634 = vpack.c.b16 %v5018, %v5010
    %v6635 = vpack.c.b16 %v5019, %v5011
    %v6636 = vpack.c.b16 %v5028, %v5020
    %v6637 = vpack.c.b16 %v5029, %v5021
    %v6638 = vpack.c.b16 %v5030, %v5022
    %v6639 = vpack.c.b16 %v5031, %v5023
    %v6640 = vpack.c.b16 %v5032, %v5024
    %v6641 = vpack.c.b16 %v5033, %v5025
    %v6642 = vpack.c.b16 %v5034, %v5026
    %v6643 = vpack.c.b16 %v5035, %v5027
    %v6644 = vpack.c.b16 %v5044, %v5036
    %v6645 = vpack.c.b16 %v5045, %v5037
    %v6646 = vpack.c.b16 %v5046, %v5038
    %v6647 = vpack.c.b16 %v5047, %v5039
    %v6648 = vpack.c.b16 %v5048, %v5040
    %v6649 = vpack.c.b16 %v5049, %v5041
    %v6650 = vpack.c.b16 %v5050, %v5042
    %v6651 = vpack.c.b16 %v5051, %v5043
    %v6652 = vpack.c.b16 %v5060, %v5052
    %v6653 = vpack.c.b16 %v5061, %v5053
    %v6654 = vpack.c.b16 %v5062, %v5054
    %v6655 = vpack.c.b16 %v5063, %v5055
    %v6656 = vpack.c.b16 %v5064, %v5056
    %v6657 = vpack.c.b16 %v5065, %v5057
    %v6658 = vpack.c.b16 %v5066, %v5058
    %v6659 = vpack.c.b16 %v5067, %v5059
    %v6660 = vpack.c.b16 %v5076, %v5068
    %v6661 = vpack.c.b16 %v5077, %v5069
    %v6662 = vpack.c.b16 %v5078, %v5070
    %v6663 = vpack.c.b16 %v5079, %v5071
    %v6664 = vpack.c.b16 %v5080, %v5072
    %v6665 = vpack.c.b16 %v5081, %v5073
    %v6666 = vpack.c.b16 %v5082, %v5074
    %v6667 = vpack.c.b16 %v5083, %v5075
    %v6668 = vpack.c.b16 %v5092, %v5084
    %v6669 = vpack.c.b16 %v5093, %v5085
    %v6670 = vpack.c.b16 %v5094, %v5086
    %v6671 = vpack.c.b16 %v5095, %v5087
    %v6672 = vpack.c.b16 %v5096, %v5088
    %v6673 = vpack.c.b16 %v5097, %v5089
    %v6674 = vpack.c.b16 %v5098, %v5090
    %v6675 = vpack.c.b16 %v5099, %v5091
    %v6676 = vpack.c.b16 %v5108, %v5100
    %v6677 = vpack.c.b16 %v5109, %v5101
    %v6678 = vpack.c.b16 %v5110, %v5102
    %v6679 = vpack.c.b16 %v5111, %v5103
    %v6680 = vpack.c.b16 %v5112, %v5104
    %v6681 = vpack.c.b16 %v5113, %v5105
    %v6682 = vpack.c.b16 %v5114, %v5106
    %v6683 = vpack.c.b16 %v5115, %v5107
    %v6684 = vpack.c.b16 %v5124, %v5116
    %v6685 = vpack.c.b16 %v5125, %v5117
    %v6686 = vpack.c.b16 %v5126, %v5118
    %v6687 = vpack.c.b16 %v5127, %v5119
    %v6688 = vpack.c.b16 %v5128, %v5120
    %v6689 = vpack.c.b16 %v5129, %v5121
    %v6690 = vpack.c.b16 %v5130, %v5122
    %v6691 = vpack.c.b16 %v5131, %v5123
    %v6692 = vpack.c.b16 %v5140, %v5132
    %v6693 = vpack.c.b16 %v5141, %v5133
    %v6694 = vpack.c.b16 %v5142, %v5134
    %v6695 = vpack.c.b16 %v5143, %v5135
    %v6696 = vpack.c.b16 %v5144, %v5136
    %v6697 = vpack.c.b16 %v5145, %v5137
    %v6698 = vpack.c.b16 %v5146, %v5138
    %v6699 = vpack.c.b16 %v5147, %v5139
    %v6700 = vpack.c.b16 %v5156, %v5148
    %v6701 = vpack.c.b16 %v5157, %v5149
    %v6702 = vpack.c.b16 %v5158, %v5150
    %v6703 = vpack.c.b16 %v5159, %v5151
    %v6704 = vpack.c.b16 %v5160, %v5152
    %v6705 = vpack.c.b16 %v5161, %v5153
    %v6706 = vpack.c.b16 %v5162, %v5154
    %v6707 = vpack.c.b16 %v5163, %v5155
    %v6708 = vpack.c.b16 %v5172, %v5164
    %v6709 = vpack.c.b16 %v5173, %v5165
    %v6710 = vpack.c.b16 %v5174, %v5166
    %v6711 = vpack.c.b16 %v5175, %v5167
    %v6712 = vpack.c.b16 %v5176, %v5168
    %v6713 = vpack.c.b16 %v5177, %v5169
    %v6714 = vpack.c.b16 %v5178, %v5170
    %v6715 = vpack.c.b16 %v5179, %v5171
    %v6716 = vpack.c.b16 %v5188, %v5180
    %v6717 = vpack.c.b16 %v5189, %v5181
    %v6718 = vpack.c.b16 %v5190, %v5182
    %v6719 = vpack.c.b16 %v5191, %v5183
    %v6720 = vpack.c.b16 %v5192, %v5184
    %v6721 = vpack.c.b16 %v5193, %v5185
    %v6722 = vpack.c.b16 %v5194, %v5186
    %v6723 = vpack.c.b16 %v5195, %v5187
    %v6724 = vpack.c.b16 %v5204, %v5196
    %v6725 = vpack.c.b16 %v5205, %v5197
    %v6726 = vpack.c.b16 %v5206, %v5198
    %v6727 = vpack.c.b16 %v5207, %v5199
    %v6728 = vpack.c.b16 %v5208, %v5200
    %v6729 = vpack.c.b16 %v5209, %v5201
    %v6730 = vpack.c.b16 %v5210, %v5202
    %v6731 = vpack.c.b16 %v5211, %v5203
    %v6732 = vpack.c.b16 %v5220, %v5212
    %v6733 = vpack.c.b16 %v5221, %v5213
    %v6734 = vpack.c.b16 %v5222, %v5214
    %v6735 = vpack.c.b16 %v5223, %v5215
    %v6736 = vpack.c.b16 %v5224, %v5216
    %v6737 = vpack.c.b16 %v5225, %v5217
    %v6738 = vpack.c.b16 %v5226, %v5218
    %v6739 = vpack.c.b16 %v5227, %v5219
    %v6740 = vpack.c.b16 %v5236, %v5228
    %v6741 = vpack.c.b16 %v5237, %v5229
    %v6742 = vpack.c.b16 %v5238, %v5230
    %v6743 = vpack.c.b16 %v5239, %v5231
    %v6744 = vpack.c.b16 %v5240, %v5232
    %v6745 = vpack.c.b16 %v5241, %v5233
    %v6746 = vpack.c.b16 %v5242, %v5234
    %v6747 = vpack.c.b16 %v5243, %v5235
    %v6748 = vpack.c.b16 %v5252, %v5244
    %v6749 = vpack.c.b16 %v5253, %v5245
    %v6750 = vpack.c.b16 %v5254, %v5246
    %v6751 = vpack.c.b16 %v5255, %v5247
    %v6752 = vpack.c.b16 %v5256, %v5248
    %v6753 = vpack.c.b16 %v5257, %v5249
    %v6754 = vpack.c.b16 %v5258, %v5250
    %v6755 = vpack.c.b16 %v5259, %v5251
    %v6756 = vpack.c.b16 %v5268, %v5260
    %v6757 = vpack.c.b16 %v5269, %v5261
    %v6758 = vpack.c.b16 %v5270, %v5262
    %v6759 = vpack.c.b16 %v5271, %v5263
    %v6760 = vpack.c.b16 %v5272, %v5264
    %v6761 = vpack.c.b16 %v5273, %v5265
    %v6762 = vpack.c.b16 %v5274, %v5266
    %v6763 = vpack.c.b16 %v5275, %v5267
    %v6764 = vpack.c.b16 %v5284, %v5276
    %v6765 = vpack.c.b16 %v5285, %v5277
    %v6766 = vpack.c.b16 %v5286, %v5278
    %v6767 = vpack.c.b16 %v5287, %v5279
    %v6768 = vpack.c.b16 %v5288, %v5280
    %v6769 = vpack.c.b16 %v5289, %v5281
    %v6770 = vpack.c.b16 %v5290, %v5282
    %v6771 = vpack.c.b16 %v5291, %v5283
    %v6772 = vpack.c.b16 %v5300, %v5292
    %v6773 = vpack.c.b16 %v5301, %v5293
    %v6774 = vpack.c.b16 %v5302, %v5294
    %v6775 = vpack.c.b16 %v5303, %v5295
    %v6776 = vpack.c.b16 %v5304, %v5296
    %v6777 = vpack.c.b16 %v5305, %v5297
    %v6778 = vpack.c.b16 %v5306, %v5298
    %v6779 = vpack.c.b16 %v5307, %v5299
    %v6780 = vpack.c.b16 %v5316, %v5308
    %v6781 = vpack.c.b16 %v5317, %v5309
    %v6782 = vpack.c.b16 %v5318, %v5310
    %v6783 = vpack.c.b16 %v5319, %v5311
    %v6784 = vpack.c.b16 %v5320, %v5312
    %v6785 = vpack.c.b16 %v5321, %v5313
    %v6786 = vpack.c.b16 %v5322, %v5314
    %v6787 = vpack.c.b16 %v5323, %v5315
    %v6788 = vpack.c.b16 %v5332, %v5324
    %v6789 = vpack.c.b16 %v5333, %v5325
    %v6790 = vpack.c.b16 %v5334, %v5326
    %v6791 = vpack.c.b16 %v5335, %v5327
    %v6792 = vpack.c.b16 %v5336, %v5328
    %v6793 = vpack.c.b16 %v5337, %v5329
    %v6794 = vpack.c.b16 %v5338, %v5330
    %v6795 = vpack.c.b16 %v5339, %v5331
    %v6796 = vpack.c.b16 %v5348, %v5340
    %v6797 = vpack.c.b16 %v5349, %v5341
    %v6798 = vpack.c.b16 %v5350, %v5342
    %v6799 = vpack.c.b16 %v5351, %v5343
    %v6800 = vpack.c.b16 %v5352, %v5344
    %v6801 = vpack.c.b16 %v5353, %v5345
    %v6802 = vpack.c.b16 %v5354, %v5346
    %v6803 = vpack.c.b16 %v5355, %v5347
    %v6804 = vpack.c.b16 %v5364, %v5356
    %v6805 = vpack.c.b16 %v5365, %v5357
    %v6806 = vpack.c.b16 %v5366, %v5358
    %v6807 = vpack.c.b16 %v5367, %v5359
    %v6808 = vpack.c.b16 %v5368, %v5360
    %v6809 = vpack.c.b16 %v5369, %v5361
    %v6810 = vpack.c.b16 %v5370, %v5362
    %v6811 = vpack.c.b16 %v5371, %v5363
    %v6812 = vpack.c.b16 %v5380, %v5372
    %v6813 = vpack.c.b16 %v5381, %v5373
    %v6814 = vpack.c.b16 %v5382, %v5374
    %v6815 = vpack.c.b16 %v5383, %v5375
    %v6816 = vpack.c.b16 %v5384, %v5376
    %v6817 = vpack.c.b16 %v5385, %v5377
    %v6818 = vpack.c.b16 %v5386, %v5378
    %v6819 = vpack.c.b16 %v5387, %v5379
    %v6820 = vpack.c.b16 %v5396, %v5388
    %v6821 = vpack.c.b16 %v5397, %v5389
    %v6822 = vpack.c.b16 %v5398, %v5390
    %v6823 = vpack.c.b16 %v5399, %v5391
    %v6824 = vpack.c.b16 %v5400, %v5392
    %v6825 = vpack.c.b16 %v5401, %v5393
    %v6826 = vpack.c.b16 %v5402, %v5394
    %v6827 = vpack.c.b16 %v5403, %v5395
    %v6828 = vpack.c.b16 %v5412, %v5404
    %v6829 = vpack.c.b16 %v5413, %v5405
    %v6830 = vpack.c.b16 %v5414, %v5406
    %v6831 = vpack.c.b16 %v5415, %v5407
    %v6832 = vpack.c.b16 %v5416, %v5408
    %v6833 = vpack.c.b16 %v5417, %v5409
    %v6834 = vpack.c.b16 %v5418, %v5410
    %v6835 = vpack.c.b16 %v5419, %v5411
    %v6836 = vpack.c.b16 %v5428, %v5420
    %v6837 = vpack.c.b16 %v5429, %v5421
    %v6838 = vpack.c.b16 %v5430, %v5422
    %v6839 = vpack.c.b16 %v5431, %v5423
    %v6840 = vpack.c.b16 %v5432, %v5424
    %v6841 = vpack.c.b16 %v5433, %v5425
    %v6842 = vpack.c.b16 %v5434, %v5426
    %v6843 = vpack.c.b16 %v5435, %v5427
    %v6844 = vpack.c.b16 %v5444, %v5436
    %v6845 = vpack.c.b16 %v5445, %v5437
    %v6846 = vpack.c.b16 %v5446, %v5438
    %v6847 = vpack.c.b16 %v5447, %v5439
    %v6848 = vpack.c.b16 %v5448, %v5440
    %v6849 = vpack.c.b16 %v5449, %v5441
    %v6850 = vpack.c.b16 %v5450, %v5442
    %v6851 = vpack.c.b16 %v5451, %v5443
    %v6852 = vpack.c.b16 %v5460, %v5452
    %v6853 = vpack.c.b16 %v5461, %v5453
    %v6854 = vpack.c.b16 %v5462, %v5454
    %v6855 = vpack.c.b16 %v5463, %v5455
    %v6856 = vpack.c.b16 %v5464, %v5456
    %v6857 = vpack.c.b16 %v5465, %v5457
    %v6858 = vpack.c.b16 %v5466, %v5458
    %v6859 = vpack.c.b16 %v5467, %v5459
    %v6860 = vpack.c.b16 %v5476, %v5468
    %v6861 = vpack.c.b16 %v5477, %v5469
    %v6862 = vpack.c.b16 %v5478, %v5470
    %v6863 = vpack.c.b16 %v5479, %v5471
    %v6864 = vpack.c.b16 %v5480, %v5472
    %v6865 = vpack.c.b16 %v5481, %v5473
    %v6866 = vpack.c.b16 %v5482, %v5474
    %v6867 = vpack.c.b16 %v5483, %v5475
    %v6868 = vpack.c.b16 %v5492, %v5484
    %v6869 = vpack.c.b16 %v5493, %v5485
    %v6870 = vpack.c.b16 %v5494, %v5486
    %v6871 = vpack.c.b16 %v5495, %v5487
    %v6872 = vpack.c.b16 %v5496, %v5488
    %v6873 = vpack.c.b16 %v5497, %v5489
    %v6874 = vpack.c.b16 %v5498, %v5490
    %v6875 = vpack.c.b16 %v5499, %v5491
    %v6876 = vpack.c.b16 %v5508, %v5500
    %v6877 = vpack.c.b16 %v5509, %v5501
    %v6878 = vpack.c.b16 %v5510, %v5502
    %v6879 = vpack.c.b16 %v5511, %v5503
    %v6880 = vpack.c.b16 %v5512, %v5504
    %v6881 = vpack.c.b16 %v5513, %v5505
    %v6882 = vpack.c.b16 %v5514, %v5506
    %v6883 = vpack.c.b16 %v5515, %v5507
    %v6884 = vpack.c.b16 %v5524, %v5516
    %v6885 = vpack.c.b16 %v5525, %v5517
    %v6886 = vpack.c.b16 %v5526, %v5518
    %v6887 = vpack.c.b16 %v5527, %v5519
    %v6888 = vpack.c.b16 %v5528, %v5520
    %v6889 = vpack.c.b16 %v5529, %v5521
    %v6890 = vpack.c.b16 %v5530, %v5522
    %v6891 = vpack.c.b16 %v5531, %v5523
    %v6892 = vpack.c.b16 %v5540, %v5532
    %v6893 = vpack.c.b16 %v5541, %v5533
    %v6894 = vpack.c.b16 %v5542, %v5534
    %v6895 = vpack.c.b16 %v5543, %v5535
    %v6896 = vpack.c.b16 %v5544, %v5536
    %v6897 = vpack.c.b16 %v5545, %v5537
    %v6898 = vpack.c.b16 %v5546, %v5538
    %v6899 = vpack.c.b16 %v5547, %v5539
    %v6900 = vpack.c.b16 %v5556, %v5548
    %v6901 = vpack.c.b16 %v5557, %v5549
    %v6902 = vpack.c.b16 %v5558, %v5550
    %v6903 = vpack.c.b16 %v5559, %v5551
    %v6904 = vpack.c.b16 %v5560, %v5552
    %v6905 = vpack.c.b16 %v5561, %v5553
    %v6906 = vpack.c.b16 %v5562, %v5554
    %v6907 = vpack.c.b16 %v5563, %v5555
    %v6908 = vpack.c.b16 %v5572, %v5564
    %v6909 = vpack.c.b16 %v5573, %v5565
    %v6910 = vpack.c.b16 %v5574, %v5566
    %v6911 = vpack.c.b16 %v5575, %v5567
    %v6912 = vpack.c.b16 %v5576, %v5568
    %v6913 = vpack.c.b16 %v5577, %v5569
    %v6914 = vpack.c.b16 %v5578, %v5570
    %v6915 = vpack.c.b16 %v5579, %v5571
    %v6916 = vpack.c.b16 %v5588, %v5580
    %v6917 = vpack.c.b16 %v5589, %v5581
    %v6918 = vpack.c.b16 %v5590, %v5582
    %v6919 = vpack.c.b16 %v5591, %v5583
    %v6920 = vpack.c.b16 %v5592, %v5584
    %v6921 = vpack.c.b16 %v5593, %v5585
    %v6922 = vpack.c.b16 %v5594, %v5586
    %v6923 = vpack.c.b16 %v5595, %v5587
    %v6924 = vpack.c.b16 %v5604, %v5596
    %v6925 = vpack.c.b16 %v5605, %v5597
    %v6926 = vpack.c.b16 %v5606, %v5598
    %v6927 = vpack.c.b16 %v5607, %v5599
    %v6928 = vpack.c.b16 %v5608, %v5600
    %v6929 = vpack.c.b16 %v5609, %v5601
    %v6930 = vpack.c.b16 %v5610, %v5602
    %v6931 = vpack.c.b16 %v5611, %v5603
    %v6932 = vpack.c.b16 %v5620, %v5612
    %v6933 = vpack.c.b16 %v5621, %v5613
    %v6934 = vpack.c.b16 %v5622, %v5614
    %v6935 = vpack.c.b16 %v5623, %v5615
    %v6936 = vpack.c.b16 %v5624, %v5616
    %v6937 = vpack.c.b16 %v5625, %v5617
    %v6938 = vpack.c.b16 %v5626, %v5618
    %v6939 = vpack.c.b16 %v5627, %v5619
    %v6940 = vpack.c.b16 %v5636, %v5628
    %v6941 = vpack.c.b16 %v5637, %v5629
    %v6942 = vpack.c.b16 %v5638, %v5630
    %v6943 = vpack.c.b16 %v5639, %v5631
    %v6944 = vpack.c.b16 %v5640, %v5632
    %v6945 = vpack.c.b16 %v5641, %v5633
    %v6946 = vpack.c.b16 %v5642, %v5634
    %v6947 = vpack.c.b16 %v5643, %v5635
    %v6948 = vpack.c.b16 %v5652, %v5644
    %v6949 = vpack.c.b16 %v5653, %v5645
    %v6950 = vpack.c.b16 %v5654, %v5646
    %v6951 = vpack.c.b16 %v5655, %v5647
    %v6952 = vpack.c.b16 %v5656, %v5648
    %v6953 = vpack.c.b16 %v5657, %v5649
    %v6954 = vpack.c.b16 %v5658, %v5650
    %v6955 = vpack.c.b16 %v5659, %v5651
    %v6956 = vpack.c.b16 %v5668, %v5660
    %v6957 = vpack.c.b16 %v5669, %v5661
    %v6958 = vpack.c.b16 %v5670, %v5662
    %v6959 = vpack.c.b16 %v5671, %v5663
    %v6960 = vpack.c.b16 %v5672, %v5664
    %v6961 = vpack.c.b16 %v5673, %v5665
    %v6962 = vpack.c.b16 %v5674, %v5666
    %v6963 = vpack.c.b16 %v5675, %v5667
    %v6964 = vpack.c.b16 %v5684, %v5676
    %v6965 = vpack.c.b16 %v5685, %v5677
    %v6966 = vpack.c.b16 %v5686, %v5678
    %v6967 = vpack.c.b16 %v5687, %v5679
    %v6968 = vpack.c.b16 %v5688, %v5680
    %v6969 = vpack.c.b16 %v5689, %v5681
    %v6970 = vpack.c.b16 %v5690, %v5682
    %v6971 = vpack.c.b16 %v5691, %v5683
    %v6972 = vpack.c.b16 %v5700, %v5692
    %v6973 = vpack.c.b16 %v5701, %v5693
    %v6974 = vpack.c.b16 %v5702, %v5694
    %v6975 = vpack.c.b16 %v5703, %v5695
    %v6976 = vpack.c.b16 %v5704, %v5696
    %v6977 = vpack.c.b16 %v5705, %v5697
    %v6978 = vpack.c.b16 %v5706, %v5698
    %v6979 = vpack.c.b16 %v5707, %v5699
    %v6980 = vpack.c.b16 %v5716, %v5708
    %v6981 = vpack.c.b16 %v5717, %v5709
    %v6982 = vpack.c.b16 %v5718, %v5710
    %v6983 = vpack.c.b16 %v5719, %v5711
    %v6984 = vpack.c.b16 %v5720, %v5712
    %v6985 = vpack.c.b16 %v5721, %v5713
    %v6986 = vpack.c.b16 %v5722, %v5714
    %v6987 = vpack.c.b16 %v5723, %v5715
    %v6988 = vpack.c.b16 %v5732, %v5724
    %v6989 = vpack.c.b16 %v5733, %v5725
    %v6990 = vpack.c.b16 %v5734, %v5726
    %v6991 = vpack.c.b16 %v5735, %v5727
    %v6992 = vpack.c.b16 %v5736, %v5728
    %v6993 = vpack.c.b16 %v5737, %v5729
    %v6994 = vpack.c.b16 %v5738, %v5730
    %v6995 = vpack.c.b16 %v5739, %v5731
    %v6996 = vpack.c.b16 %v5748, %v5740
    %v6997 = vpack.c.b16 %v5749, %v5741
    %v6998 = vpack.c.b16 %v5750, %v5742
    %v6999 = vpack.c.b16 %v5751, %v5743
    %v7000 = vpack.c.b16 %v5752, %v5744
    %v7001 = vpack.c.b16 %v5753, %v5745
    %v7002 = vpack.c.b16 %v5754, %v5746
    %v7003 = vpack.c.b16 %v5755, %v5747
    %v7004 = vpack.c.b16 %v5764, %v5756
    %v7005 = vpack.c.b16 %v5765, %v5757
    %v7006 = vpack.c.b16 %v5766, %v5758
    %v7007 = vpack.c.b16 %v5767, %v5759
    %v7008 = vpack.c.b16 %v5768, %v5760
    %v7009 = vpack.c.b16 %v5769, %v5761
    %v7010 = vpack.c.b16 %v5770, %v5762
    %v7011 = vpack.c.b16 %v5771, %v5763
    %v7012 = vpack.c.b16 %v5780, %v5772
    %v7013 = vpack.c.b16 %v5781, %v5773
    %v7014 = vpack.c.b16 %v5782, %v5774
    %v7015 = vpack.c.b16 %v5783, %v5775
    %v7016 = vpack.c.b16 %v5784, %v5776
    %v7017 = vpack.c.b16 %v5785, %v5777
    %v7018 = vpack.c.b16 %v5786, %v5778
    %v7019 = vpack.c.b16 %v5787, %v5779
    %v7020 = vpack.c.b16 %v5796, %v5788
    %v7021 = vpack.c.b16 %v5797, %v5789
    %v7022 = vpack.c.b16 %v5798, %v5790
    %v7023 = vpack.c.b16 %v5799, %v5791
    %v7024 = vpack.c.b16 %v5800, %v5792
    %v7025 = vpack.c.b16 %v5801, %v5793
    %v7026 = vpack.c.b16 %v5802, %v5794
    %v7027 = vpack.c.b16 %v5803, %v5795
    %v7028 = vpack.c.b16 %v5812, %v5804
    %v7029 = vpack.c.b16 %v5813, %v5805
    %v7030 = vpack.c.b16 %v5814, %v5806
    %v7031 = vpack.c.b16 %v5815, %v5807
    %v7032 = vpack.c.b16 %v5816, %v5808
    %v7033 = vpack.c.b16 %v5817, %v5809
    %v7034 = vpack.c.b16 %v5818, %v5810
    %v7035 = vpack.c.b16 %v5819, %v5811
    %v7036 = vpack.c.b16 %v5828, %v5820
    %v7037 = vpack.c.b16 %v5829, %v5821
    %v7038 = vpack.c.b16 %v5830, %v5822
    %v7039 = vpack.c.b16 %v5831, %v5823
    %v7040 = vpack.c.b16 %v5832, %v5824
    %v7041 = vpack.c.b16 %v5833, %v5825
    %v7042 = vpack.c.b16 %v5834, %v5826
    %v7043 = vpack.c.b16 %v5835, %v5827
    %v7044 = vpack.c.b16 %v5844, %v5836
    %v7045 = vpack.c.b16 %v5845, %v5837
    %v7046 = vpack.c.b16 %v5846, %v5838
    %v7047 = vpack.c.b16 %v5847, %v5839
    %v7048 = vpack.c.b16 %v5848, %v5840
    %v7049 = vpack.c.b16 %v5849, %v5841
    %v7050 = vpack.c.b16 %v5850, %v5842
    %v7051 = vpack.c.b16 %v5851, %v5843
    %v7052 = vpack.c.b16 %v5860, %v5852
    %v7053 = vpack.c.b16 %v5861, %v5853
    %v7054 = vpack.c.b16 %v5862, %v5854
    %v7055 = vpack.c.b16 %v5863, %v5855
    %v7056 = vpack.c.b16 %v5864, %v5856
    %v7057 = vpack.c.b16 %v5865, %v5857
    %v7058 = vpack.c.b16 %v5866, %v5858
    %v7059 = vpack.c.b16 %v5867, %v5859
    %v7060 = vpack.c.b16 %v5876, %v5868
    %v7061 = vpack.c.b16 %v5877, %v5869
    %v7062 = vpack.c.b16 %v5878, %v5870
    %v7063 = vpack.c.b16 %v5879, %v5871
    %v7064 = vpack.c.b16 %v5880, %v5872
    %v7065 = vpack.c.b16 %v5881, %v5873
    %v7066 = vpack.c.b16 %v5882, %v5874
    %v7067 = vpack.c.b16 %v5883, %v5875
    %v7068 = vpack.c.b16 %v5892, %v5884
    %v7069 = vpack.c.b16 %v5893, %v5885
    %v7070 = vpack.c.b16 %v5894, %v5886
    %v7071 = vpack.c.b16 %v5895, %v5887
    %v7072 = vpack.c.b16 %v5896, %v5888
    %v7073 = vpack.c.b16 %v5897, %v5889
    %v7074 = vpack.c.b16 %v5898, %v5890
    %v7075 = vpack.c.b16 %v5899, %v5891
    %v7076 = vpack.c.b16 %v5908, %v5900
    %v7077 = vpack.c.b16 %v5909, %v5901
    %v7078 = vpack.c.b16 %v5910, %v5902
    %v7079 = vpack.c.b16 %v5911, %v5903
    %v7080 = vpack.c.b16 %v5912, %v5904
    %v7081 = vpack.c.b16 %v5913, %v5905
    %v7082 = vpack.c.b16 %v5914, %v5906
    %v7083 = vpack.c.b16 %v5915, %v5907
    %v7084 = vpack.c.b16 %v5924, %v5916
    %v7085 = vpack.c.b16 %v5925, %v5917
    %v7086 = vpack.c.b16 %v5926, %v5918
    %v7087 = vpack.c.b16 %v5927, %v5919
    %v7088 = vpack.c.b16 %v5928, %v5920
    %v7089 = vpack.c.b16 %v5929, %v5921
    %v7090 = vpack.c.b16 %v5930, %v5922
    %v7091 = vpack.c.b16 %v5931, %v5923
    %v7092 = vpack.c.b16 %v5940, %v5932
    %v7093 = vpack.c.b16 %v5941, %v5933
    %v7094 = vpack.c.b16 %v5942, %v5934
    %v7095 = vpack.c.b16 %v5943, %v5935
    %v7096 = vpack.c.b16 %v5944, %v5936
    %v7097 = vpack.c.b16 %v5945, %v5937
    %v7098 = vpack.c.b16 %v5946, %v5938
    %v7099 = vpack.c.b16 %v5947, %v5939
    %v7100 = vpack.c.b16 %v5956, %v5948
    %v7101 = vpack.c.b16 %v5957, %v5949
    %v7102 = vpack.c.b16 %v5958, %v5950
    %v7103 = vpack.c.b16 %v5959, %v5951
    %v7104 = vpack.c.b16 %v5960, %v5952
    %v7105 = vpack.c.b16 %v5961, %v5953
    %v7106 = vpack.c.b16 %v5962, %v5954
    %v7107 = vpack.c.b16 %v5963, %v5955
    %v7108 = vpack.c.b16 %v5972, %v5964
    %v7109 = vpack.c.b16 %v5973, %v5965
    %v7110 = vpack.c.b16 %v5974, %v5966
    %v7111 = vpack.c.b16 %v5975, %v5967
    %v7112 = vpack.c.b16 %v5976, %v5968
    %v7113 = vpack.c.b16 %v5977, %v5969
    %v7114 = vpack.c.b16 %v5978, %v5970
    %v7115 = vpack.c.b16 %v5979, %v5971
    %v7116 = vpack.c.b16 %v5988, %v5980
    %v7117 = vpack.c.b16 %v5989, %v5981
    %v7118 = vpack.c.b16 %v5990, %v5982
    %v7119 = vpack.c.b16 %v5991, %v5983
    %v7120 = vpack.c.b16 %v5992, %v5984
    %v7121 = vpack.c.b16 %v5993, %v5985
    %v7122 = vpack.c.b16 %v5994, %v5986
    %v7123 = vpack.c.b16 %v5995, %v5987
    %v7124 = vpack.c.b16 %v6004, %v5996
    %v7125 = vpack.c.b16 %v6005, %v5997
    %v7126 = vpack.c.b16 %v6006, %v5998
    %v7127 = vpack.c.b16 %v6007, %v5999
    %v7128 = vpack.c.b16 %v6008, %v6000
    %v7129 = vpack.c.b16 %v6009, %v6001
    %v7130 = vpack.c.b16 %v6010, %v6002
    %v7131 = vpack.c.b16 %v6011, %v6003
    %v7132 = vpack.c.b16 %v6020, %v6012
    %v7133 = vpack.c.b16 %v6021, %v6013
    %v7134 = vpack.c.b16 %v6022, %v6014
    %v7135 = vpack.c.b16 %v6023, %v6015
    %v7136 = vpack.c.b16 %v6024, %v6016
    %v7137 = vpack.c.b16 %v6025, %v6017
    %v7138 = vpack.c.b16 %v6026, %v6018
    %v7139 = vpack.c.b16 %v6027, %v6019
    %v7140 = vpack.c.b16 %v6036, %v6028
    %v7141 = vpack.c.b16 %v6037, %v6029
    %v7142 = vpack.c.b16 %v6038, %v6030
    %v7143 = vpack.c.b16 %v6039, %v6031
    %v7144 = vpack.c.b16 %v6040, %v6032
    %v7145 = vpack.c.b16 %v6041, %v6033
    %v7146 = vpack.c.b16 %v6042, %v6034
    %v7147 = vpack.c.b16 %v6043, %v6035
    %v7148 = vpack.c.b16 %v6052, %v6044
    %v7149 = vpack.c.b16 %v6053, %v6045
    %v7150 = vpack.c.b16 %v6054, %v6046
    %v7151 = vpack.c.b16 %v6055, %v6047
    %v7152 = vpack.c.b16 %v6056, %v6048
    %v7153 = vpack.c.b16 %v6057, %v6049
    %v7154 = vpack.c.b16 %v6058, %v6050
    %v7155 = vpack.c.b16 %v6059, %v6051
    %v7156 = vpack.c.b16 %v6068, %v6060
    %v7157 = vpack.c.b16 %v6069, %v6061
    %v7158 = vpack.c.b16 %v6070, %v6062
    %v7159 = vpack.c.b16 %v6071, %v6063
    %v7160 = vpack.c.b16 %v6072, %v6064
    %v7161 = vpack.c.b16 %v6073, %v6065
    %v7162 = vpack.c.b16 %v6074, %v6066
    %v7163 = vpack.c.b16 %v6075, %v6067
    %v7164 = vpack.c.b16 %v6084, %v6076
    %v7165 = vpack.c.b16 %v6085, %v6077
    %v7166 = vpack.c.b16 %v6086, %v6078
    %v7167 = vpack.c.b16 %v6087, %v6079
    %v7168 = vpack.c.b16 %v6088, %v6080
    %v7169 = vpack.c.b16 %v6089, %v6081
    %v7170 = vpack.c.b16 %v6090, %v6082
    %v7171 = vpack.c.b16 %v6091, %v6083
    %v7172 = vpack.c.b16 %v6100, %v6092
    %v7173 = vpack.c.b16 %v6101, %v6093
    %v7174 = vpack.c.b16 %v6102, %v6094
    %v7175 = vpack.c.b16 %v6103, %v6095
    %v7176 = vpack.c.b16 %v6104, %v6096
    %v7177 = vpack.c.b16 %v6105, %v6097
    %v7178 = vpack.c.b16 %v6106, %v6098
    %v7179 = vpack.c.b16 %v6107, %v6099
    %v7180 = vpack.c.b16 %v6116, %v6108
    %v7181 = vpack.c.b16 %v6117, %v6109
    %v7182 = vpack.c.b16 %v6118, %v6110
    %v7183 = vpack.c.b16 %v6119, %v6111
    %v7184 = vpack.c.b16 %v6120, %v6112
    %v7185 = vpack.c.b16 %v6121, %v6113
    %v7186 = vpack.c.b16 %v6122, %v6114
    %v7187 = vpack.c.b16 %v6123, %v6115
    %v7188 = vpack.c.b16 %v6132, %v6124
    %v7189 = vpack.c.b16 %v6133, %v6125
    %v7190 = vpack.c.b16 %v6134, %v6126
    %v7191 = vpack.c.b16 %v6135, %v6127
    %v7192 = vpack.c.b16 %v6136, %v6128
    %v7193 = vpack.c.b16 %v6137, %v6129
    %v7194 = vpack.c.b16 %v6138, %v6130
    %v7195 = vpack.c.b16 %v6139, %v6131
    %v7196 = vpack.c.b16 %v6148, %v6140
    %v7197 = vpack.c.b16 %v6149, %v6141
    %v7198 = vpack.c.b16 %v6150, %v6142
    %v7199 = vpack.c.b16 %v6151, %v6143
    %v7200 = vpack.c.b16 %v6152, %v6144
    %v7201 = vpack.c.b16 %v6153, %v6145
    %v7202 = vpack.c.b16 %v6154, %v6146
    %v7203 = vpack.c.b16 %v6155, %v6147
    %v7204 = vpack.c.b16 %v6164, %v6156
    %v7205 = vpack.c.b16 %v6165, %v6157
    %v7206 = vpack.c.b16 %v6166, %v6158
    %v7207 = vpack.c.b16 %v6167, %v6159
    %v7208 = vpack.c.b16 %v6168, %v6160
    %v7209 = vpack.c.b16 %v6169, %v6161
    %v7210 = vpack.c.b16 %v6170, %v6162
    %v7211 = vpack.c.b16 %v6171, %v6163
    %v7212 = vpack.c.b16 %v6180, %v6172
    %v7213 = vpack.c.b16 %v6181, %v6173
    %v7214 = vpack.c.b16 %v6182, %v6174
    %v7215 = vpack.c.b16 %v6183, %v6175
    %v7216 = vpack.c.b16 %v6184, %v6176
    %v7217 = vpack.c.b16 %v6185, %v6177
    %v7218 = vpack.c.b16 %v6186, %v6178
    %v7219 = vpack.c.b16 %v6187, %v6179
    %v7220 = vpack.c.b16 %v6196, %v6188
    %v7221 = vpack.c.b16 %v6197, %v6189
    %v7222 = vpack.c.b16 %v6198, %v6190
    %v7223 = vpack.c.b16 %v6199, %v6191
    %v7224 = vpack.c.b16 %v6200, %v6192
    %v7225 = vpack.c.b16 %v6201, %v6193
    %v7226 = vpack.c.b16 %v6202, %v6194
    %v7227 = vpack.c.b16 %v6203, %v6195
    %8252 = vmatprep.subr.bf16.mxu0 %v6205
    %8253 = vmatpush1.bf16.msra.mxu0 %v6204
    %8254 = vmatprep.subr.bf16.mxu0 %v6213
    %8255 = vmatpush1.bf16.msra.mxu0 %v6212
    %8256 = vmatprep.subr.bf16.mxu0 %v6221
    %8257 = vmatpush1.bf16.msra.mxu0 %v6220
    %8258 = vmatprep.subr.bf16.mxu0 %v6229
    %8259 = vmatpush1.bf16.msra.mxu0 %v6228
    %8260 = vmatprep.subr.bf16.mxu0 %v6237
    %8261 = vmatpush1.bf16.msra.mxu0 %v6236
    %8262 = vmatprep.subr.bf16.mxu0 %v6245
    %8263 = vmatpush1.bf16.msra.mxu0 %v6244
    %8264 = vmatprep.subr.bf16.mxu0 %v6253
    %8265 = vmatpush1.bf16.msra.mxu0 %v6252
    %8266 = vmatprep.subr.bf16.mxu0 %v6261
    %8267 = vmatpush1.bf16.msra.mxu0 %v6260
    %8268 = vmatprep.subr.bf16.mxu0 %v6269
    %8269 = vmatpush1.bf16.msra.mxu0 %v6268
    %8270 = vmatprep.subr.bf16.mxu0 %v6277
    %8271 = vmatpush1.bf16.msra.mxu0 %v6276
    %8272 = vmatprep.subr.bf16.mxu0 %v6285
    %8273 = vmatpush1.bf16.msra.mxu0 %v6284
    %8274 = vmatprep.subr.bf16.mxu0 %v6293
    %8275 = vmatpush1.bf16.msra.mxu0 %v6292
    %8276 = vmatprep.subr.bf16.mxu0 %v6301
    %8277 = vmatpush1.bf16.msra.mxu0 %v6300
    %8278 = vmatprep.subr.bf16.mxu0 %v6309
    %8279 = vmatpush1.bf16.msra.mxu0 %v6308
    %8280 = vmatprep.subr.bf16.mxu0 %v6317
    %8281 = vmatpush1.bf16.msra.mxu0 %v6316
    %8282 = vmatprep.subr.bf16.mxu0 %v6325
    %8283 = vmatpush1.bf16.msra.mxu0 %v6324
    %8284 = vmatprep.mubr.bf16.mxu0 %v199
    %8285 = vmatmul.mubr.bf16.gmra.mrb[0].mxu0 %v198
    %v8286 = vpop.f32.mrb[0].mxu0
    %v8287 = vadd.f32 %v2880, %v8286
    %v8288 = vpop.f32.mrb[0].mxu0
    %v8289 = vadd.f32 %v2882, %v8288
    %v8290 = vpop.f32.mrb[0].mxu0
    %v8291 = vpop.f32.mrb[0].mxu0
    %8292 = vdwg.mxu0
    %8293 = vmatprep.subr.bf16.mxu0 %v6333
    %8294 = vmatpush1.bf16.msra.mxu0 %v6332
    %8295 = vmatprep.subr.bf16.mxu0 %v6341
    %8296 = vmatpush1.bf16.msra.mxu0 %v6340
    %8297 = vmatprep.subr.bf16.mxu0 %v6349
    %8298 = vmatpush1.bf16.msra.mxu0 %v6348
    %8299 = vmatprep.subr.bf16.mxu0 %v6357
    %8300 = vmatpush1.bf16.msra.mxu0 %v6356
    %8301 = vmatprep.subr.bf16.mxu0 %v6365
    %8302 = vmatpush1.bf16.msra.mxu0 %v6364
    %8303 = vmatprep.subr.bf16.mxu0 %v6373
    %8304 = vmatpush1.bf16.msra.mxu0 %v6372
    %8305 = vmatprep.subr.bf16.mxu0 %v6381
    %8306 = vmatpush1.bf16.msra.mxu0 %v6380
    %8307 = vmatprep.subr.bf16.mxu0 %v6389
    %8308 = vmatpush1.bf16.msra.mxu0 %v6388
    %8309 = vmatprep.subr.bf16.mxu0 %v6397
    %8310 = vmatpush1.bf16.msra.mxu0 %v6396
    %8311 = vmatprep.subr.bf16.mxu0 %v6405
    %8312 = vmatpush1.bf16.msra.mxu0 %v6404
    %8313 = vmatprep.subr.bf16.mxu0 %v6413
    %8314 = vmatpush1.bf16.msra.mxu0 %v6412
    %8315 = vmatprep.subr.bf16.mxu0 %v6421
    %8316 = vmatpush1.bf16.msra.mxu0 %v6420
    %8317 = vmatprep.subr.bf16.mxu0 %v6429
    %8318 = vmatpush1.bf16.msra.mxu0 %v6428
    %8319 = vmatprep.subr.bf16.mxu0 %v6437
    %8320 = vmatpush1.bf16.msra.mxu0 %v6436
    %8321 = vmatprep.subr.bf16.mxu0 %v6445
    %8322 = vmatpush1.bf16.msra.mxu0 %v6444
    %8323 = vmatprep.subr.bf16.mxu0 %v6453
    %8324 = vmatpush1.bf16.msra.mxu0 %v6452
    %8325 = vmatprep.mubr.bf16.mxu0 %v201
    %8326 = vmatmul.mubr.bf16.gmra.mrb[0].mxu0 %v200
    %v8327 = vpop.f32.mrb[0].mxu0
    %v8328 = vadd.f32 %v8287, %v8327
    %v8329 = vpop.f32.mrb[0].mxu0
    %v8330 = vadd.f32 %v8289, %v8329
    %v8331 = vpop.f32.mrb[0].mxu0
    %v8332 = vpop.f32.mrb[0].mxu0
    %8333 = vdwg.mxu0
    %8334 = vmatprep.subr.bf16.mxu0 %v6461
    %8335 = vmatpush1.bf16.msra.mxu0 %v6460
    %8336 = vmatprep.subr.bf16.mxu0 %v6469
    %8337 = vmatpush1.bf16.msra.mxu0 %v6468
    %8338 = vmatprep.subr.bf16.mxu0 %v6477
    %8339 = vmatpush1.bf16.msra.mxu0 %v6476
    %8340 = vmatprep.subr.bf16.mxu0 %v6485
    %8341 = vmatpush1.bf16.msra.mxu0 %v6484
    %8342 = vmatprep.subr.bf16.mxu0 %v6493
    %8343 = vmatpush1.bf16.msra.mxu0 %v6492
    %8344 = vmatprep.subr.bf16.mxu0 %v6501
    %8345 = vmatpush1.bf16.msra.mxu0 %v6500
    %8346 = vmatprep.subr.bf16.mxu0 %v6509
    %8347 = vmatpush1.bf16.msra.mxu0 %v6508
    %8348 = vmatprep.subr.bf16.mxu0 %v6517
    %8349 = vmatpush1.bf16.msra.mxu0 %v6516
    %8350 = vmatprep.subr.bf16.mxu0 %v6525
    %8351 = vmatpush1.bf16.msra.mxu0 %v6524
    %8352 = vmatprep.subr.bf16.mxu0 %v6533
    %8353 = vmatpush1.bf16.msra.mxu0 %v6532
    %8354 = vmatprep.subr.bf16.mxu0 %v6541
    %8355 = vmatpush1.bf16.msra.mxu0 %v6540
    %8356 = vmatprep.subr.bf16.mxu0 %v6549
    %8357 = vmatpush1.bf16.msra.mxu0 %v6548
    %8358 = vmatprep.subr.bf16.mxu0 %v6557
    %8359 = vmatpush1.bf16.msra.mxu0 %v6556
    %8360 = vmatprep.subr.bf16.mxu0 %v6565
    %8361 = vmatpush1.bf16.msra.mxu0 %v6564
    %8362 = vmatprep.subr.bf16.mxu0 %v6573
    %8363 = vmatpush1.bf16.msra.mxu0 %v6572
    %8364 = vmatprep.subr.bf16.mxu0 %v6581
    %8365 = vmatpush1.bf16.msra.mxu0 %v6580
    %8366 = vmatprep.mubr.bf16.mxu0 %v203
    %8367 = vmatmul.mubr.bf16.gmra.mrb[0].mxu0 %v202
    %v8368 = vpop.f32.mrb[0].mxu0
    %v8369 = vadd.f32 %v8328, %v8368
    %v8370 = vpop.f32.mrb[0].mxu0
    %v8371 = vadd.f32 %v8330, %v8370
    %v8372 = vpop.f32.mrb[0].mxu0
    %v8373 = vpop.f32.mrb[0].mxu0
    %8374 = vdwg.mxu0
    %8375 = vmatprep.subr.bf16.mxu0 %v6589
    %8376 = vmatpush1.bf16.msra.mxu0 %v6588
    %8377 = vmatprep.subr.bf16.mxu0 %v6597
    %8378 = vmatpush1.bf16.msra.mxu0 %v6596
    %8379 = vmatprep.subr.bf16.mxu0 %v6605
    %8380 = vmatpush1.bf16.msra.mxu0 %v6604
    %8381 = vmatprep.subr.bf16.mxu0 %v6613
    %8382 = vmatpush1.bf16.msra.mxu0 %v6612
    %8383 = vmatprep.subr.bf16.mxu0 %v6621
    %8384 = vmatpush1.bf16.msra.mxu0 %v6620
    %8385 = vmatprep.subr.bf16.mxu0 %v6629
    %8386 = vmatpush1.bf16.msra.mxu0 %v6628
    %8387 = vmatprep.subr.bf16.mxu0 %v6637
    %8388 = vmatpush1.bf16.msra.mxu0 %v6636
    %8389 = vmatprep.subr.bf16.mxu0 %v6645
    %8390 = vmatpush1.bf16.msra.mxu0 %v6644
    %8391 = vmatprep.subr.bf16.mxu0 %v6653
    %8392 = vmatpush1.bf16.msra.mxu0 %v6652
    %8393 = vmatprep.subr.bf16.mxu0 %v6661
    %8394 = vmatpush1.bf16.msra.mxu0 %v6660
    %8395 = vmatprep.subr.bf16.mxu0 %v6669
    %8396 = vmatpush1.bf16.msra.mxu0 %v6668
    %8397 = vmatprep.subr.bf16.mxu0 %v6677
    %8398 = vmatpush1.bf16.msra.mxu0 %v6676
    %8399 = vmatprep.subr.bf16.mxu0 %v6685
    %8400 = vmatpush1.bf16.msra.mxu0 %v6684
    %8401 = vmatprep.subr.bf16.mxu0 %v6693
    %8402 = vmatpush1.bf16.msra.mxu0 %v6692
    %8403 = vmatprep.subr.bf16.mxu0 %v6701
    %8404 = vmatpush1.bf16.msra.mxu0 %v6700
    %8405 = vmatprep.subr.bf16.mxu0 %v6709
    %8406 = vmatpush1.bf16.msra.mxu0 %v6708
    %8407 = vmatprep.mubr.bf16.mxu0 %v205
    %8408 = vmatmul.mubr.bf16.gmra.mrb[0].mxu0 %v204
    %v8409 = vpop.f32.mrb[0].mxu0
    %v8410 = vadd.f32 %v8369, %v8409
    %v8411 = vpop.f32.mrb[0].mxu0
    %v8412 = vadd.f32 %v8371, %v8411
    %v8413 = vpop.f32.mrb[0].mxu0
    %v8414 = vpop.f32.mrb[0].mxu0
    %8415 = vdwg.mxu0
    %8416 = vmatprep.subr.bf16.mxu0 %v6717
    %8417 = vmatpush1.bf16.msra.mxu0 %v6716
    %8418 = vmatprep.subr.bf16.mxu0 %v6725
    %8419 = vmatpush1.bf16.msra.mxu0 %v6724
    %8420 = vmatprep.subr.bf16.mxu0 %v6733
    %8421 = vmatpush1.bf16.msra.mxu0 %v6732
    %8422 = vmatprep.subr.bf16.mxu0 %v6741
    %8423 = vmatpush1.bf16.msra.mxu0 %v6740
    %8424 = vmatprep.subr.bf16.mxu0 %v6749
    %8425 = vmatpush1.bf16.msra.mxu0 %v6748
    %8426 = vmatprep.subr.bf16.mxu0 %v6757
    %8427 = vmatpush1.bf16.msra.mxu0 %v6756
    %8428 = vmatprep.subr.bf16.mxu0 %v6765
    %8429 = vmatpush1.bf16.msra.mxu0 %v6764
    %8430 = vmatprep.subr.bf16.mxu0 %v6773
    %8431 = vmatpush1.bf16.msra.mxu0 %v6772
    %8432 = vmatprep.subr.bf16.mxu0 %v6781
    %8433 = vmatpush1.bf16.msra.mxu0 %v6780
    %8434 = vmatprep.subr.bf16.mxu0 %v6789
    %8435 = vmatpush1.bf16.msra.mxu0 %v6788
    %8436 = vmatprep.subr.bf16.mxu0 %v6797
    %8437 = vmatpush1.bf16.msra.mxu0 %v6796
    %8438 = vmatprep.subr.bf16.mxu0 %v6805
    %8439 = vmatpush1.bf16.msra.mxu0 %v6804
    %8440 = vmatprep.subr.bf16.mxu0 %v6813
    %8441 = vmatpush1.bf16.msra.mxu0 %v6812
    %8442 = vmatprep.subr.bf16.mxu0 %v6821
    %8443 = vmatpush1.bf16.msra.mxu0 %v6820
    %8444 = vmatprep.subr.bf16.mxu0 %v6829
    %8445 = vmatpush1.bf16.msra.mxu0 %v6828
    %8446 = vmatprep.subr.bf16.mxu0 %v6837
    %8447 = vmatpush1.bf16.msra.mxu0 %v6836
    %8448 = vmatprep.mubr.bf16.mxu0 %v207
    %8449 = vmatmul.mubr.bf16.gmra.mrb[0].mxu0 %v206
    %v8450 = vpop.f32.mrb[0].mxu0
    %v8451 = vadd.f32 %v8410, %v8450
    %v8452 = vpop.f32.mrb[0].mxu0
    %v8453 = vadd.f32 %v8412, %v8452
    %v8454 = vpop.f32.mrb[0].mxu0
    %v8455 = vpop.f32.mrb[0].mxu0
    %8456 = vdwg.mxu0
    %8457 = vmatprep.subr.bf16.mxu0 %v6845
    %8458 = vmatpush1.bf16.msra.mxu0 %v6844
    %8459 = vmatprep.subr.bf16.mxu0 %v6853
    %8460 = vmatpush1.bf16.msra.mxu0 %v6852
    %8461 = vmatprep.subr.bf16.mxu0 %v6861
    %8462 = vmatpush1.bf16.msra.mxu0 %v6860
    %8463 = vmatprep.subr.bf16.mxu0 %v6869
    %8464 = vmatpush1.bf16.msra.mxu0 %v6868
    %8465 = vmatprep.subr.bf16.mxu0 %v6877
    %8466 = vmatpush1.bf16.msra.mxu0 %v6876
    %8467 = vmatprep.subr.bf16.mxu0 %v6885
    %8468 = vmatpush1.bf16.msra.mxu0 %v6884
    %8469 = vmatprep.subr.bf16.mxu0 %v6893
    %8470 = vmatpush1.bf16.msra.mxu0 %v6892
    %8471 = vmatprep.subr.bf16.mxu0 %v6901
    %8472 = vmatpush1.bf16.msra.mxu0 %v6900
    %8473 = vmatprep.subr.bf16.mxu0 %v6909
    %8474 = vmatpush1.bf16.msra.mxu0 %v6908
    %8475 = vmatprep.subr.bf16.mxu0 %v6917
    %8476 = vmatpush1.bf16.msra.mxu0 %v6916
    %8477 = vmatprep.subr.bf16.mxu0 %v6925
    %8478 = vmatpush1.bf16.msra.mxu0 %v6924
    %8479 = vmatprep.subr.bf16.mxu0 %v6933
    %8480 = vmatpush1.bf16.msra.mxu0 %v6932
    %8481 = vmatprep.subr.bf16.mxu0 %v6941
    %8482 = vmatpush1.bf16.msra.mxu0 %v6940
    %8483 = vmatprep.subr.bf16.mxu0 %v6949
    %8484 = vmatpush1.bf16.msra.mxu0 %v6948
    %8485 = vmatprep.subr.bf16.mxu0 %v6957
    %8486 = vmatpush1.bf16.msra.mxu0 %v6956
    %8487 = vmatprep.subr.bf16.mxu0 %v6965
    %8488 = vmatpush1.bf16.msra.mxu0 %v6964
    %8489 = vmatprep.mubr.bf16.mxu0 %v209
    %8490 = vmatmul.mubr.bf16.gmra.mrb[0].mxu0 %v208
    %v8491 = vpop.f32.mrb[0].mxu0
    %v8492 = vadd.f32 %v8451, %v8491
    %v8493 = vpop.f32.mrb[0].mxu0
    %v8494 = vadd.f32 %v8453, %v8493
    %v8495 = vpop.f32.mrb[0].mxu0
    %v8496 = vpop.f32.mrb[0].mxu0
    %8497 = vdwg.mxu0
    %8498 = vmatprep.subr.bf16.mxu0 %v6973
    %8499 = vmatpush1.bf16.msra.mxu0 %v6972
    %8500 = vmatprep.subr.bf16.mxu0 %v6981
    %8501 = vmatpush1.bf16.msra.mxu0 %v6980
    %8502 = vmatprep.subr.bf16.mxu0 %v6989
    %8503 = vmatpush1.bf16.msra.mxu0 %v6988
    %8504 = vmatprep.subr.bf16.mxu0 %v6997
    %8505 = vmatpush1.bf16.msra.mxu0 %v6996
    %8506 = vmatprep.subr.bf16.mxu0 %v7005
    %8507 = vmatpush1.bf16.msra.mxu0 %v7004
    %8508 = vmatprep.subr.bf16.mxu0 %v7013
    %8509 = vmatpush1.bf16.msra.mxu0 %v7012
    %8510 = vmatprep.subr.bf16.mxu0 %v7021
    %8511 = vmatpush1.bf16.msra.mxu0 %v7020
    %8512 = vmatprep.subr.bf16.mxu0 %v7029
    %8513 = vmatpush1.bf16.msra.mxu0 %v7028
    %8514 = vmatprep.subr.bf16.mxu0 %v7037
    %8515 = vmatpush1.bf16.msra.mxu0 %v7036
    %8516 = vmatprep.subr.bf16.mxu0 %v7045
    %8517 = vmatpush1.bf16.msra.mxu0 %v7044
    %8518 = vmatprep.subr.bf16.mxu0 %v7053
    %8519 = vmatpush1.bf16.msra.mxu0 %v7052
    %8520 = vmatprep.subr.bf16.mxu0 %v7061
    %8521 = vmatpush1.bf16.msra.mxu0 %v7060
    %8522 = vmatprep.subr.bf16.mxu0 %v7069
    %8523 = vmatpush1.bf16.msra.mxu0 %v7068
    %8524 = vmatprep.subr.bf16.mxu0 %v7077
    %8525 = vmatpush1.bf16.msra.mxu0 %v7076
    %8526 = vmatprep.subr.bf16.mxu0 %v7085
    %8527 = vmatpush1.bf16.msra.mxu0 %v7084
    %8528 = vmatprep.subr.bf16.mxu0 %v7093
    %8529 = vmatpush1.bf16.msra.mxu0 %v7092
    %8530 = vmatprep.mubr.bf16.mxu0 %v211
    %8531 = vmatmul.mubr.bf16.gmra.mrb[0].mxu0 %v210
    %v8532 = vpop.f32.mrb[0].mxu0
    %v8533 = vadd.f32 %v8492, %v8532
    %v8534 = vpop.f32.mrb[0].mxu0
    %v8535 = vadd.f32 %v8494, %v8534
    %v8536 = vpop.f32.mrb[0].mxu0
    %v8537 = vpop.f32.mrb[0].mxu0
    %8538 = vdwg.mxu0
    %8539 = vmatprep.subr.bf16.mxu0 %v7101
    %8540 = vmatpush1.bf16.msra.mxu0 %v7100
    %8541 = vmatprep.subr.bf16.mxu0 %v7109
    %8542 = vmatpush1.bf16.msra.mxu0 %v7108
    %8543 = vmatprep.subr.bf16.mxu0 %v7117
    %8544 = vmatpush1.bf16.msra.mxu0 %v7116
    %8545 = vmatprep.subr.bf16.mxu0 %v7125
    %8546 = vmatpush1.bf16.msra.mxu0 %v7124
    %8547 = vmatprep.subr.bf16.mxu0 %v7133
    %8548 = vmatpush1.bf16.msra.mxu0 %v7132
    %8549 = vmatprep.subr.bf16.mxu0 %v7141
    %8550 = vmatpush1.bf16.msra.mxu0 %v7140
    %8551 = vmatprep.subr.bf16.mxu0 %v7149
    %8552 = vmatpush1.bf16.msra.mxu0 %v7148
    %8553 = vmatprep.subr.bf16.mxu0 %v7157
    %8554 = vmatpush1.bf16.msra.mxu0 %v7156
    %8555 = vmatprep.subr.bf16.mxu0 %v7165
    %8556 = vmatpush1.bf16.msra.mxu0 %v7164
    %8557 = vmatprep.subr.bf16.mxu0 %v7173
    %8558 = vmatpush1.bf16.msra.mxu0 %v7172
    %8559 = vmatprep.subr.bf16.mxu0 %v7181
    %8560 = vmatpush1.bf16.msra.mxu0 %v7180
    %8561 = vmatprep.subr.bf16.mxu0 %v7189
    %8562 = vmatpush1.bf16.msra.mxu0 %v7188
    %8563 = vmatprep.subr.bf16.mxu0 %v7197
    %8564 = vmatpush1.bf16.msra.mxu0 %v7196
    %8565 = vmatprep.subr.bf16.mxu0 %v7205
    %8566 = vmatpush1.bf16.msra.mxu0 %v7204
    %8567 = vmatprep.subr.bf16.mxu0 %v7213
    %8568 = vmatpush1.bf16.msra.mxu0 %v7212
    %8569 = vmatprep.subr.bf16.mxu0 %v7221
    %8570 = vmatpush1.bf16.msra.mxu0 %v7220
    %8571 = vmatprep.mubr.bf16.mxu0 %v213
    %8572 = vmatmul.mubr.bf16.gmra.mrb[0].mxu0 %v212
    %v8573 = vpop.f32.mrb[0].mxu0
    %v8574 = vadd.f32 %v8533, %v8573
    %v8575 = vpop.f32.mrb[0].mxu0
    %v8576 = vadd.f32 %v8535, %v8575
    %v8577 = vpop.f32.mrb[0].mxu0
    %v8578 = vpop.f32.mrb[0].mxu0
    %8579 = vdwg.mxu0
    %8580 = vmatprep.subr.bf16.mxu0 %v6207
    %8581 = vmatpush1.bf16.msra.mxu0 %v6206
    %8582 = vmatprep.subr.bf16.mxu0 %v6215
    %8583 = vmatpush1.bf16.msra.mxu0 %v6214
    %8584 = vmatprep.subr.bf16.mxu0 %v6223
    %8585 = vmatpush1.bf16.msra.mxu0 %v6222
    %8586 = vmatprep.subr.bf16.mxu0 %v6231
    %8587 = vmatpush1.bf16.msra.mxu0 %v6230
    %8588 = vmatprep.subr.bf16.mxu0 %v6239
    %8589 = vmatpush1.bf16.msra.mxu0 %v6238
    %8590 = vmatprep.subr.bf16.mxu0 %v6247
    %8591 = vmatpush1.bf16.msra.mxu0 %v6246
    %8592 = vmatprep.subr.bf16.mxu0 %v6255
    %8593 = vmatpush1.bf16.msra.mxu0 %v6254
    %8594 = vmatprep.subr.bf16.mxu0 %v6263
    %8595 = vmatpush1.bf16.msra.mxu0 %v6262
    %8596 = vmatprep.subr.bf16.mxu0 %v6271
    %8597 = vmatpush1.bf16.msra.mxu0 %v6270
    %8598 = vmatprep.subr.bf16.mxu0 %v6279
    %8599 = vmatpush1.bf16.msra.mxu0 %v6278
    %8600 = vmatprep.subr.bf16.mxu0 %v6287
    %8601 = vmatpush1.bf16.msra.mxu0 %v6286
    %8602 = vmatprep.subr.bf16.mxu0 %v6295
    %8603 = vmatpush1.bf16.msra.mxu0 %v6294
    %8604 = vmatprep.subr.bf16.mxu0 %v6303
    %8605 = vmatpush1.bf16.msra.mxu0 %v6302
    %8606 = vmatprep.subr.bf16.mxu0 %v6311
    %8607 = vmatpush1.bf16.msra.mxu0 %v6310
    %8608 = vmatprep.subr.bf16.mxu0 %v6319
    %8609 = vmatpush1.bf16.msra.mxu0 %v6318
    %8610 = vmatprep.subr.bf16.mxu0 %v6327
    %8611 = vmatpush1.bf16.msra.mxu0 %v6326
    %8612 = vmatprep.mubr.bf16.mxu0 %v199
    %8613 = vmatmul.mubr.bf16.gmra.mrb[0].mxu0 %v198
    %v8614 = vpop.f32.mrb[0].mxu0
    %v8615 = vadd.f32 %v2962, %v8614
    %v8616 = vpop.f32.mrb[0].mxu0
    %v8617 = vadd.f32 %v2964, %v8616
    %v8618 = vpop.f32.mrb[0].mxu0
    %v8619 = vpop.f32.mrb[0].mxu0
    %8620 = vdwg.mxu0
    %8621 = vmatprep.subr.bf16.mxu0 %v6335
    %8622 = vmatpush1.bf16.msra.mxu0 %v6334
    %8623 = vmatprep.subr.bf16.mxu0 %v6343
    %8624 = vmatpush1.bf16.msra.mxu0 %v6342
    %8625 = vmatprep.subr.bf16.mxu0 %v6351
    %8626 = vmatpush1.bf16.msra.mxu0 %v6350
    %8627 = vmatprep.subr.bf16.mxu0 %v6359
    %8628 = vmatpush1.bf16.msra.mxu0 %v6358
    %8629 = vmatprep.subr.bf16.mxu0 %v6367
    %8630 = vmatpush1.bf16.msra.mxu0 %v6366
    %8631 = vmatprep.subr.bf16.mxu0 %v6375
    %8632 = vmatpush1.bf16.msra.mxu0 %v6374
    %8633 = vmatprep.subr.bf16.mxu0 %v6383
    %8634 = vmatpush1.bf16.msra.mxu0 %v6382
    %8635 = vmatprep.subr.bf16.mxu0 %v6391
    %8636 = vmatpush1.bf16.msra.mxu0 %v6390
    %8637 = vmatprep.subr.bf16.mxu0 %v6399
    %8638 = vmatpush1.bf16.msra.mxu0 %v6398
    %8639 = vmatprep.subr.bf16.mxu0 %v6407
    %8640 = vmatpush1.bf16.msra.mxu0 %v6406
    %8641 = vmatprep.subr.bf16.mxu0 %v6415
    %8642 = vmatpush1.bf16.msra.mxu0 %v6414
    %8643 = vmatprep.subr.bf16.mxu0 %v6423
    %8644 = vmatpush1.bf16.msra.mxu0 %v6422
    %8645 = vmatprep.subr.bf16.mxu0 %v6431
    %8646 = vmatpush1.bf16.msra.mxu0 %v6430
    %8647 = vmatprep.subr.bf16.mxu0 %v6439
    %8648 = vmatpush1.bf16.msra.mxu0 %v6438
    %8649 = vmatprep.subr.bf16.mxu0 %v6447
    %8650 = vmatpush1.bf16.msra.mxu0 %v6446
    %8651 = vmatprep.subr.bf16.mxu0 %v6455
    %8652 = vmatpush1.bf16.msra.mxu0 %v6454
    %8653 = vmatprep.mubr.bf16.mxu0 %v201
    %8654 = vmatmul.mubr.bf16.gmra.mrb[0].mxu0 %v200
    %v8655 = vpop.f32.mrb[0].mxu0
    %v8656 = vadd.f32 %v8615, %v8655
    %v8657 = vpop.f32.mrb[0].mxu0
    %v8658 = vadd.f32 %v8617, %v8657
    %v8659 = vpop.f32.mrb[0].mxu0
    %v8660 = vpop.f32.mrb[0].mxu0
    %8661 = vdwg.mxu0
    %8662 = vmatprep.subr.bf16.mxu0 %v6463
    %8663 = vmatpush1.bf16.msra.mxu0 %v6462
    %8664 = vmatprep.subr.bf16.mxu0 %v6471
    %8665 = vmatpush1.bf16.msra.mxu0 %v6470
    %8666 = vmatprep.subr.bf16.mxu0 %v6479
    %8667 = vmatpush1.bf16.msra.mxu0 %v6478
    %8668 = vmatprep.subr.bf16.mxu0 %v6487
    %8669 = vmatpush1.bf16.msra.mxu0 %v6486
    %8670 = vmatprep.subr.bf16.mxu0 %v6495
    %8671 = vmatpush1.bf16.msra.mxu0 %v6494
    %8672 = vmatprep.subr.bf16.mxu0 %v6503
    %8673 = vmatpush1.bf16.msra.mxu0 %v6502
    %8674 = vmatprep.subr.bf16.mxu0 %v6511
    %8675 = vmatpush1.bf16.msra.mxu0 %v6510
    %8676 = vmatprep.subr.bf16.mxu0 %v6519
    %8677 = vmatpush1.bf16.msra.mxu0 %v6518
    %8678 = vmatprep.subr.bf16.mxu0 %v6527
    %8679 = vmatpush1.bf16.msra.mxu0 %v6526
    %8680 = vmatprep.subr.bf16.mxu0 %v6535
    %8681 = vmatpush1.bf16.msra.mxu0 %v6534
    %8682 = vmatprep.subr.bf16.mxu0 %v6543
    %8683 = vmatpush1.bf16.msra.mxu0 %v6542
    %8684 = vmatprep.subr.bf16.mxu0 %v6551
    %8685 = vmatpush1.bf16.msra.mxu0 %v6550
    %8686 = vmatprep.subr.bf16.mxu0 %v6559
    %8687 = vmatpush1.bf16.msra.mxu0 %v6558
    %8688 = vmatprep.subr.bf16.mxu0 %v6567
    %8689 = vmatpush1.bf16.msra.mxu0 %v6566
    %8690 = vmatprep.subr.bf16.mxu0 %v6575
    %8691 = vmatpush1.bf16.msra.mxu0 %v6574
    %8692 = vmatprep.subr.bf16.mxu0 %v6583
    %8693 = vmatpush1.bf16.msra.mxu0 %v6582
    %8694 = vmatprep.mubr.bf16.mxu0 %v203
    %8695 = vmatmul.mubr.bf16.gmra.mrb[0].mxu0 %v202
    %v8696 = vpop.f32.mrb[0].mxu0
    %v8697 = vadd.f32 %v8656, %v8696
    %v8698 = vpop.f32.mrb[0].mxu0
    %v8699 = vadd.f32 %v8658, %v8698
    %v8700 = vpop.f32.mrb[0].mxu0
    %v8701 = vpop.f32.mrb[0].mxu0
    %8702 = vdwg.mxu0
    %8703 = vmatprep.subr.bf16.mxu0 %v6591
    %8704 = vmatpush1.bf16.msra.mxu0 %v6590
    %8705 = vmatprep.subr.bf16.mxu0 %v6599
    %8706 = vmatpush1.bf16.msra.mxu0 %v6598
    %8707 = vmatprep.subr.bf16.mxu0 %v6607
    %8708 = vmatpush1.bf16.msra.mxu0 %v6606
    %8709 = vmatprep.subr.bf16.mxu0 %v6615
    %8710 = vmatpush1.bf16.msra.mxu0 %v6614
    %8711 = vmatprep.subr.bf16.mxu0 %v6623
    %8712 = vmatpush1.bf16.msra.mxu0 %v6622
    %8713 = vmatprep.subr.bf16.mxu0 %v6631
    %8714 = vmatpush1.bf16.msra.mxu0 %v6630
    %8715 = vmatprep.subr.bf16.mxu0 %v6639
    %8716 = vmatpush1.bf16.msra.mxu0 %v6638
    %8717 = vmatprep.subr.bf16.mxu0 %v6647
    %8718 = vmatpush1.bf16.msra.mxu0 %v6646
    %8719 = vmatprep.subr.bf16.mxu0 %v6655
    %8720 = vmatpush1.bf16.msra.mxu0 %v6654
    %8721 = vmatprep.subr.bf16.mxu0 %v6663
    %8722 = vmatpush1.bf16.msra.mxu0 %v6662
    %8723 = vmatprep.subr.bf16.mxu0 %v6671
    %8724 = vmatpush1.bf16.msra.mxu0 %v6670
    %8725 = vmatprep.subr.bf16.mxu0 %v6679
    %8726 = vmatpush1.bf16.msra.mxu0 %v6678
    %8727 = vmatprep.subr.bf16.mxu0 %v6687
    %8728 = vmatpush1.bf16.msra.mxu0 %v6686
    %8729 = vmatprep.subr.bf16.mxu0 %v6695
    %8730 = vmatpush1.bf16.msra.mxu0 %v6694
    %8731 = vmatprep.subr.bf16.mxu0 %v6703
    %8732 = vmatpush1.bf16.msra.mxu0 %v6702
    %8733 = vmatprep.subr.bf16.mxu0 %v6711
    %8734 = vmatpush1.bf16.msra.mxu0 %v6710
    %8735 = vmatprep.mubr.bf16.mxu0 %v205
    %8736 = vmatmul.mubr.bf16.gmra.mrb[0].mxu0 %v204
    %v8737 = vpop.f32.mrb[0].mxu0
    %v8738 = vadd.f32 %v8697, %v8737
    %v8739 = vpop.f32.mrb[0].mxu0
    %v8740 = vadd.f32 %v8699, %v8739
    %v8741 = vpop.f32.mrb[0].mxu0
    %v8742 = vpop.f32.mrb[0].mxu0
    %8743 = vdwg.mxu0
    %8744 = vmatprep.subr.bf16.mxu0 %v6719
    %8745 = vmatpush1.bf16.msra.mxu0 %v6718
    %8746 = vmatprep.subr.bf16.mxu0 %v6727
    %8747 = vmatpush1.bf16.msra.mxu0 %v6726
    %8748 = vmatprep.subr.bf16.mxu0 %v6735
    %8749 = vmatpush1.bf16.msra.mxu0 %v6734
    %8750 = vmatprep.subr.bf16.mxu0 %v6743
    %8751 = vmatpush1.bf16.msra.mxu0 %v6742
    %8752 = vmatprep.subr.bf16.mxu0 %v6751
    %8753 = vmatpush1.bf16.msra.mxu0 %v6750
    %8754 = vmatprep.subr.bf16.mxu0 %v6759
    %8755 = vmatpush1.bf16.msra.mxu0 %v6758
    %8756 = vmatprep.subr.bf16.mxu0 %v6767
    %8757 = vmatpush1.bf16.msra.mxu0 %v6766
    %8758 = vmatprep.subr.bf16.mxu0 %v6775
    %8759 = vmatpush1.bf16.msra.mxu0 %v6774
    %8760 = vmatprep.subr.bf16.mxu0 %v6783
    %8761 = vmatpush1.bf16.msra.mxu0 %v6782
    %8762 = vmatprep.subr.bf16.mxu0 %v6791
    %8763 = vmatpush1.bf16.msra.mxu0 %v6790
    %8764 = vmatprep.subr.bf16.mxu0 %v6799
    %8765 = vmatpush1.bf16.msra.mxu0 %v6798
    %8766 = vmatprep.subr.bf16.mxu0 %v6807
    %8767 = vmatpush1.bf16.msra.mxu0 %v6806
    %8768 = vmatprep.subr.bf16.mxu0 %v6815
    %8769 = vmatpush1.bf16.msra.mxu0 %v6814
    %8770 = vmatprep.subr.bf16.mxu0 %v6823
    %8771 = vmatpush1.bf16.msra.mxu0 %v6822
    %8772 = vmatprep.subr.bf16.mxu0 %v6831
    %8773 = vmatpush1.bf16.msra.mxu0 %v6830
    %8774 = vmatprep.subr.bf16.mxu0 %v6839
    %8775 = vmatpush1.bf16.msra.mxu0 %v6838
    %8776 = vmatprep.mubr.bf16.mxu0 %v207
    %8777 = vmatmul.mubr.bf16.gmra.mrb[0].mxu0 %v206
    %v8778 = vpop.f32.mrb[0].mxu0
    %v8779 = vadd.f32 %v8738, %v8778
    %v8780 = vpop.f32.mrb[0].mxu0
    %v8781 = vadd.f32 %v8740, %v8780
    %v8782 = vpop.f32.mrb[0].mxu0
    %v8783 = vpop.f32.mrb[0].mxu0
    %8784 = vdwg.mxu0
    %8785 = vmatprep.subr.bf16.mxu0 %v6847
    %8786 = vmatpush1.bf16.msra.mxu0 %v6846
    %8787 = vmatprep.subr.bf16.mxu0 %v6855
    %8788 = vmatpush1.bf16.msra.mxu0 %v6854
    %8789 = vmatprep.subr.bf16.mxu0 %v6863
    %8790 = vmatpush1.bf16.msra.mxu0 %v6862
    %8791 = vmatprep.subr.bf16.mxu0 %v6871
    %8792 = vmatpush1.bf16.msra.mxu0 %v6870
    %8793 = vmatprep.subr.bf16.mxu0 %v6879
    %8794 = vmatpush1.bf16.msra.mxu0 %v6878
    %8795 = vmatprep.subr.bf16.mxu0 %v6887
    %8796 = vmatpush1.bf16.msra.mxu0 %v6886
    %8797 = vmatprep.subr.bf16.mxu0 %v6895
    %8798 = vmatpush1.bf16.msra.mxu0 %v6894
    %8799 = vmatprep.subr.bf16.mxu0 %v6903
    %8800 = vmatpush1.bf16.msra.mxu0 %v6902
    %8801 = vmatprep.subr.bf16.mxu0 %v6911
    %8802 = vmatpush1.bf16.msra.mxu0 %v6910
    %8803 = vmatprep.subr.bf16.mxu0 %v6919
    %8804 = vmatpush1.bf16.msra.mxu0 %v6918
    %8805 = vmatprep.subr.bf16.mxu0 %v6927
    %8806 = vmatpush1.bf16.msra.mxu0 %v6926
    %8807 = vmatprep.subr.bf16.mxu0 %v6935
    %8808 = vmatpush1.bf16.msra.mxu0 %v6934
    %8809 = vmatprep.subr.bf16.mxu0 %v6943
    %8810 = vmatpush1.bf16.msra.mxu0 %v6942
    %8811 = vmatprep.subr.bf16.mxu0 %v6951
    %8812 = vmatpush1.bf16.msra.mxu0 %v6950
    %8813 = vmatprep.subr.bf16.mxu0 %v6959
    %8814 = vmatpush1.bf16.msra.mxu0 %v6958
    %8815 = vmatprep.subr.bf16.mxu0 %v6967
    %8816 = vmatpush1.bf16.msra.mxu0 %v6966
    %8817 = vmatprep.mubr.bf16.mxu0 %v209
    %8818 = vmatmul.mubr.bf16.gmra.mrb[0].mxu0 %v208
    %v8819 = vpop.f32.mrb[0].mxu0
    %v8820 = vadd.f32 %v8779, %v8819
    %v8821 = vpop.f32.mrb[0].mxu0
    %v8822 = vadd.f32 %v8781, %v8821
    %v8823 = vpop.f32.mrb[0].mxu0
    %v8824 = vpop.f32.mrb[0].mxu0
    %8825 = vdwg.mxu0
    %8826 = vmatprep.subr.bf16.mxu0 %v6975
    %8827 = vmatpush1.bf16.msra.mxu0 %v6974
    %8828 = vmatprep.subr.bf16.mxu0 %v6983
    %8829 = vmatpush1.bf16.msra.mxu0 %v6982
    %8830 = vmatprep.subr.bf16.mxu0 %v6991
    %8831 = vmatpush1.bf16.msra.mxu0 %v6990
    %8832 = vmatprep.subr.bf16.mxu0 %v6999
    %8833 = vmatpush1.bf16.msra.mxu0 %v6998
    %8834 = vmatprep.subr.bf16.mxu0 %v7007
    %8835 = vmatpush1.bf16.msra.mxu0 %v7006
    %8836 = vmatprep.subr.bf16.mxu0 %v7015
    %8837 = vmatpush1.bf16.msra.mxu0 %v7014
    %8838 = vmatprep.subr.bf16.mxu0 %v7023
    %8839 = vmatpush1.bf16.msra.mxu0 %v7022
    %8840 = vmatprep.subr.bf16.mxu0 %v7031
    %8841 = vmatpush1.bf16.msra.mxu0 %v7030
    %8842 = vmatprep.subr.bf16.mxu0 %v7039
    %8843 = vmatpush1.bf16.msra.mxu0 %v7038
    %8844 = vmatprep.subr.bf16.mxu0 %v7047
    %8845 = vmatpush1.bf16.msra.mxu0 %v7046
    %8846 = vmatprep.subr.bf16.mxu0 %v7055
    %8847 = vmatpush1.bf16.msra.mxu0 %v7054
    %8848 = vmatprep.subr.bf16.mxu0 %v7063
    %8849 = vmatpush1.bf16.msra.mxu0 %v7062
    %8850 = vmatprep.subr.bf16.mxu0 %v7071
    %8851 = vmatpush1.bf16.msra.mxu0 %v7070
    %8852 = vmatprep.subr.bf16.mxu0 %v7079
    %8853 = vmatpush1.bf16.msra.mxu0 %v7078
    %8854 = vmatprep.subr.bf16.mxu0 %v7087
    %8855 = vmatpush1.bf16.msra.mxu0 %v7086
    %8856 = vmatprep.subr.bf16.mxu0 %v7095
    %8857 = vmatpush1.bf16.msra.mxu0 %v7094
    %8858 = vmatprep.mubr.bf16.mxu0 %v211
    %8859 = vmatmul.mubr.bf16.gmra.mrb[0].mxu0 %v210
    %v8860 = vpop.f32.mrb[0].mxu0
    %v8861 = vadd.f32 %v8820, %v8860
    %v8862 = vpop.f32.mrb[0].mxu0
    %v8863 = vadd.f32 %v8822, %v8862
    %v8864 = vpop.f32.mrb[0].mxu0
    %v8865 = vpop.f32.mrb[0].mxu0
    %8866 = vdwg.mxu0
    %8867 = vmatprep.subr.bf16.mxu0 %v7103
    %8868 = vmatpush1.bf16.msra.mxu0 %v7102
    %8869 = vmatprep.subr.bf16.mxu0 %v7111
    %8870 = vmatpush1.bf16.msra.mxu0 %v7110
    %8871 = vmatprep.subr.bf16.mxu0 %v7119
    %8872 = vmatpush1.bf16.msra.mxu0 %v7118
    %8873 = vmatprep.subr.bf16.mxu0 %v7127
    %8874 = vmatpush1.bf16.msra.mxu0 %v7126
    %8875 = vmatprep.subr.bf16.mxu0 %v7135
    %8876 = vmatpush1.bf16.msra.mxu0 %v7134
    %8877 = vmatprep.subr.bf16.mxu0 %v7143
    %8878 = vmatpush1.bf16.msra.mxu0 %v7142
    %8879 = vmatprep.subr.bf16.mxu0 %v7151
    %8880 = vmatpush1.bf16.msra.mxu0 %v7150
    %8881 = vmatprep.subr.bf16.mxu0 %v7159
    %8882 = vmatpush1.bf16.msra.mxu0 %v7158
    %8883 = vmatprep.subr.bf16.mxu0 %v7167
    %8884 = vmatpush1.bf16.msra.mxu0 %v7166
    %8885 = vmatprep.subr.bf16.mxu0 %v7175
    %8886 = vmatpush1.bf16.msra.mxu0 %v7174
    %8887 = vmatprep.subr.bf16.mxu0 %v7183
    %8888 = vmatpush1.bf16.msra.mxu0 %v7182
    %8889 = vmatprep.subr.bf16.mxu0 %v7191
    %8890 = vmatpush1.bf16.msra.mxu0 %v7190
    %8891 = vmatprep.subr.bf16.mxu0 %v7199
    %8892 = vmatpush1.bf16.msra.mxu0 %v7198
    %8893 = vmatprep.subr.bf16.mxu0 %v7207
    %8894 = vmatpush1.bf16.msra.mxu0 %v7206
    %8895 = vmatprep.subr.bf16.mxu0 %v7215
    %8896 = vmatpush1.bf16.msra.mxu0 %v7214
    %8897 = vmatprep.subr.bf16.mxu0 %v7223
    %8898 = vmatpush1.bf16.msra.mxu0 %v7222
    %8899 = vmatprep.mubr.bf16.mxu0 %v213
    %8900 = vmatmul.mubr.bf16.gmra.mrb[0].mxu0 %v212
    %v8901 = vpop.f32.mrb[0].mxu0
    %v8902 = vadd.f32 %v8861, %v8901
    %v8903 = vpop.f32.mrb[0].mxu0
    %v8904 = vadd.f32 %v8863, %v8903
    %v8905 = vpop.f32.mrb[0].mxu0
    %v8906 = vpop.f32.mrb[0].mxu0
    %8907 = vdwg.mxu0
    %8908 = vmatprep.subr.bf16.mxu0 %v6209
    %8909 = vmatpush1.bf16.msra.mxu0 %v6208
    %8910 = vmatprep.subr.bf16.mxu0 %v6217
    %8911 = vmatpush1.bf16.msra.mxu0 %v6216
    %8912 = vmatprep.subr.bf16.mxu0 %v6225
    %8913 = vmatpush1.bf16.msra.mxu0 %v6224
    %8914 = vmatprep.subr.bf16.mxu0 %v6233
    %8915 = vmatpush1.bf16.msra.mxu0 %v6232
    %8916 = vmatprep.subr.bf16.mxu0 %v6241
    %8917 = vmatpush1.bf16.msra.mxu0 %v6240
    %8918 = vmatprep.subr.bf16.mxu0 %v6249
    %8919 = vmatpush1.bf16.msra.mxu0 %v6248
    %8920 = vmatprep.subr.bf16.mxu0 %v6257
    %8921 = vmatpush1.bf16.msra.mxu0 %v6256
    %8922 = vmatprep.subr.bf16.mxu0 %v6265
    %8923 = vmatpush1.bf16.msra.mxu0 %v6264
    %8924 = vmatprep.subr.bf16.mxu0 %v6273
    %8925 = vmatpush1.bf16.msra.mxu0 %v6272
    %8926 = vmatprep.subr.bf16.mxu0 %v6281
    %8927 = vmatpush1.bf16.msra.mxu0 %v6280
    %8928 = vmatprep.subr.bf16.mxu0 %v6289
    %8929 = vmatpush1.bf16.msra.mxu0 %v6288
    %8930 = vmatprep.subr.bf16.mxu0 %v6297
    %8931 = vmatpush1.bf16.msra.mxu0 %v6296
    %8932 = vmatprep.subr.bf16.mxu0 %v6305
    %8933 = vmatpush1.bf16.msra.mxu0 %v6304
    %8934 = vmatprep.subr.bf16.mxu0 %v6313
    %8935 = vmatpush1.bf16.msra.mxu0 %v6312
    %8936 = vmatprep.subr.bf16.mxu0 %v6321
    %8937 = vmatpush1.bf16.msra.mxu0 %v6320
    %8938 = vmatprep.subr.bf16.mxu0 %v6329
    %8939 = vmatpush1.bf16.msra.mxu0 %v6328
    %8940 = vmatprep.mubr.bf16.mxu0 %v199
    %8941 = vmatmul.mubr.bf16.gmra.mrb[0].mxu0 %v198
    %v8942 = vpop.f32.mrb[0].mxu0
    %v8943 = vadd.f32 %v3044, %v8942
    %v8944 = vpop.f32.mrb[0].mxu0
    %v8945 = vadd.f32 %v3046, %v8944
    %v8946 = vpop.f32.mrb[0].mxu0
    %v8947 = vpop.f32.mrb[0].mxu0
    %8948 = vdwg.mxu0
    %8949 = vmatprep.subr.bf16.mxu0 %v6337
    %8950 = vmatpush1.bf16.msra.mxu0 %v6336
    %8951 = vmatprep.subr.bf16.mxu0 %v6345
    %8952 = vmatpush1.bf16.msra.mxu0 %v6344
    %8953 = vmatprep.subr.bf16.mxu0 %v6353
    %8954 = vmatpush1.bf16.msra.mxu0 %v6352
    %8955 = vmatprep.subr.bf16.mxu0 %v6361
    %8956 = vmatpush1.bf16.msra.mxu0 %v6360
    %8957 = vmatprep.subr.bf16.mxu0 %v6369
    %8958 = vmatpush1.bf16.msra.mxu0 %v6368
    %8959 = vmatprep.subr.bf16.mxu0 %v6377
    %8960 = vmatpush1.bf16.msra.mxu0 %v6376
    %8961 = vmatprep.subr.bf16.mxu0 %v6385
    %8962 = vmatpush1.bf16.msra.mxu0 %v6384
    %8963 = vmatprep.subr.bf16.mxu0 %v6393
    %8964 = vmatpush1.bf16.msra.mxu0 %v6392
    %8965 = vmatprep.subr.bf16.mxu0 %v6401
    %8966 = vmatpush1.bf16.msra.mxu0 %v6400
    %8967 = vmatprep.subr.bf16.mxu0 %v6409
    %8968 = vmatpush1.bf16.msra.mxu0 %v6408
    %8969 = vmatprep.subr.bf16.mxu0 %v6417
    %8970 = vmatpush1.bf16.msra.mxu0 %v6416
    %8971 = vmatprep.subr.bf16.mxu0 %v6425
    %8972 = vmatpush1.bf16.msra.mxu0 %v6424
    %8973 = vmatprep.subr.bf16.mxu0 %v6433
    %8974 = vmatpush1.bf16.msra.mxu0 %v6432
    %8975 = vmatprep.subr.bf16.mxu0 %v6441
    %8976 = vmatpush1.bf16.msra.mxu0 %v6440
    %8977 = vmatprep.subr.bf16.mxu0 %v6449
    %8978 = vmatpush1.bf16.msra.mxu0 %v6448
    %8979 = vmatprep.subr.bf16.mxu0 %v6457
    %8980 = vmatpush1.bf16.msra.mxu0 %v6456
    %8981 = vmatprep.mubr.bf16.mxu0 %v201
    %8982 = vmatmul.mubr.bf16.gmra.mrb[0].mxu0 %v200
    %v8983 = vpop.f32.mrb[0].mxu0
    %v8984 = vadd.f32 %v8943, %v8983
    %v8985 = vpop.f32.mrb[0].mxu0
    %v8986 = vadd.f32 %v8945, %v8985
    %v8987 = vpop.f32.mrb[0].mxu0
    %v8988 = vpop.f32.mrb[0].mxu0
    %8989 = vdwg.mxu0
    %8990 = vmatprep.subr.bf16.mxu0 %v6465
    %8991 = vmatpush1.bf16.msra.mxu0 %v6464
    %8992 = vmatprep.subr.bf16.mxu0 %v6473
    %8993 = vmatpush1.bf16.msra.mxu0 %v6472
    %8994 = vmatprep.subr.bf16.mxu0 %v6481
    %8995 = vmatpush1.bf16.msra.mxu0 %v6480
    %8996 = vmatprep.subr.bf16.mxu0 %v6489
    %8997 = vmatpush1.bf16.msra.mxu0 %v6488
    %8998 = vmatprep.subr.bf16.mxu0 %v6497
    %8999 = vmatpush1.bf16.msra.mxu0 %v6496
    %9000 = vmatprep.subr.bf16.mxu0 %v6505
    %9001 = vmatpush1.bf16.msra.mxu0 %v6504
    %9002 = vmatprep.subr.bf16.mxu0 %v6513
    %9003 = vmatpush1.bf16.msra.mxu0 %v6512
    %9004 = vmatprep.subr.bf16.mxu0 %v6521
    %9005 = vmatpush1.bf16.msra.mxu0 %v6520
    %9006 = vmatprep.subr.bf16.mxu0 %v6529
    %9007 = vmatpush1.bf16.msra.mxu0 %v6528
    %9008 = vmatprep.subr.bf16.mxu0 %v6537
    %9009 = vmatpush1.bf16.msra.mxu0 %v6536
    %9010 = vmatprep.subr.bf16.mxu0 %v6545
    %9011 = vmatpush1.bf16.msra.mxu0 %v6544
    %9012 = vmatprep.subr.bf16.mxu0 %v6553
    %9013 = vmatpush1.bf16.msra.mxu0 %v6552
    %9014 = vmatprep.subr.bf16.mxu0 %v6561
    %9015 = vmatpush1.bf16.msra.mxu0 %v6560
    %9016 = vmatprep.subr.bf16.mxu0 %v6569
    %9017 = vmatpush1.bf16.msra.mxu0 %v6568
    %9018 = vmatprep.subr.bf16.mxu0 %v6577
    %9019 = vmatpush1.bf16.msra.mxu0 %v6576
    %9020 = vmatprep.subr.bf16.mxu0 %v6585
    %9021 = vmatpush1.bf16.msra.mxu0 %v6584
    %9022 = vmatprep.mubr.bf16.mxu0 %v203
    %9023 = vmatmul.mubr.bf16.gmra.mrb[0].mxu0 %v202
    %v9024 = vpop.f32.mrb[0].mxu0
    %v9025 = vadd.f32 %v8984, %v9024
    %v9026 = vpop.f32.mrb[0].mxu0
    %v9027 = vadd.f32 %v8986, %v9026
    %v9028 = vpop.f32.mrb[0].mxu0
    %v9029 = vpop.f32.mrb[0].mxu0
    %9030 = vdwg.mxu0
    %9031 = vmatprep.subr.bf16.mxu0 %v6593
    %9032 = vmatpush1.bf16.msra.mxu0 %v6592
    %9033 = vmatprep.subr.bf16.mxu0 %v6601
    %9034 = vmatpush1.bf16.msra.mxu0 %v6600
    %9035 = vmatprep.subr.bf16.mxu0 %v6609
    %9036 = vmatpush1.bf16.msra.mxu0 %v6608
    %9037 = vmatprep.subr.bf16.mxu0 %v6617
    %9038 = vmatpush1.bf16.msra.mxu0 %v6616
    %9039 = vmatprep.subr.bf16.mxu0 %v6625
    %9040 = vmatpush1.bf16.msra.mxu0 %v6624
    %9041 = vmatprep.subr.bf16.mxu0 %v6633
    %9042 = vmatpush1.bf16.msra.mxu0 %v6632
    %9043 = vmatprep.subr.bf16.mxu0 %v6641
    %9044 = vmatpush1.bf16.msra.mxu0 %v6640
    %9045 = vmatprep.subr.bf16.mxu0 %v6649
    %9046 = vmatpush1.bf16.msra.mxu0 %v6648
    %9047 = vmatprep.subr.bf16.mxu0 %v6657
    %9048 = vmatpush1.bf16.msra.mxu0 %v6656
    %9049 = vmatprep.subr.bf16.mxu0 %v6665
    %9050 = vmatpush1.bf16.msra.mxu0 %v6664
    %9051 = vmatprep.subr.bf16.mxu0 %v6673
    %9052 = vmatpush1.bf16.msra.mxu0 %v6672
    %9053 = vmatprep.subr.bf16.mxu0 %v6681
    %9054 = vmatpush1.bf16.msra.mxu0 %v6680
    %9055 = vmatprep.subr.bf16.mxu0 %v6689
    %9056 = vmatpush1.bf16.msra.mxu0 %v6688
    %9057 = vmatprep.subr.bf16.mxu0 %v6697
    %9058 = vmatpush1.bf16.msra.mxu0 %v6696
    %9059 = vmatprep.subr.bf16.mxu0 %v6705
    %9060 = vmatpush1.bf16.msra.mxu0 %v6704
    %9061 = vmatprep.subr.bf16.mxu0 %v6713
    %9062 = vmatpush1.bf16.msra.mxu0 %v6712
    %9063 = vmatprep.mubr.bf16.mxu0 %v205
    %9064 = vmatmul.mubr.bf16.gmra.mrb[0].mxu0 %v204
    %v9065 = vpop.f32.mrb[0].mxu0
    %v9066 = vadd.f32 %v9025, %v9065
    %v9067 = vpop.f32.mrb[0].mxu0
    %v9068 = vadd.f32 %v9027, %v9067
    %v9069 = vpop.f32.mrb[0].mxu0
    %v9070 = vpop.f32.mrb[0].mxu0
    %9071 = vdwg.mxu0
    %9072 = vmatprep.subr.bf16.mxu0 %v6721
    %9073 = vmatpush1.bf16.msra.mxu0 %v6720
    %9074 = vmatprep.subr.bf16.mxu0 %v6729
    %9075 = vmatpush1.bf16.msra.mxu0 %v6728
    %9076 = vmatprep.subr.bf16.mxu0 %v6737
    %9077 = vmatpush1.bf16.msra.mxu0 %v6736
    %9078 = vmatprep.subr.bf16.mxu0 %v6745
    %9079 = vmatpush1.bf16.msra.mxu0 %v6744
    %9080 = vmatprep.subr.bf16.mxu0 %v6753
    %9081 = vmatpush1.bf16.msra.mxu0 %v6752
    %9082 = vmatprep.subr.bf16.mxu0 %v6761
    %9083 = vmatpush1.bf16.msra.mxu0 %v6760
    %9084 = vmatprep.subr.bf16.mxu0 %v6769
    %9085 = vmatpush1.bf16.msra.mxu0 %v6768
    %9086 = vmatprep.subr.bf16.mxu0 %v6777
    %9087 = vmatpush1.bf16.msra.mxu0 %v6776
    %9088 = vmatprep.subr.bf16.mxu0 %v6785
    %9089 = vmatpush1.bf16.msra.mxu0 %v6784
    %9090 = vmatprep.subr.bf16.mxu0 %v6793
    %9091 = vmatpush1.bf16.msra.mxu0 %v6792
    %9092 = vmatprep.subr.bf16.mxu0 %v6801
    %9093 = vmatpush1.bf16.msra.mxu0 %v6800
    %9094 = vmatprep.subr.bf16.mxu0 %v6809
    %9095 = vmatpush1.bf16.msra.mxu0 %v6808
    %9096 = vmatprep.subr.bf16.mxu0 %v6817
    %9097 = vmatpush1.bf16.msra.mxu0 %v6816
    %9098 = vmatprep.subr.bf16.mxu0 %v6825
    %9099 = vmatpush1.bf16.msra.mxu0 %v6824
    %9100 = vmatprep.subr.bf16.mxu0 %v6833
    %9101 = vmatpush1.bf16.msra.mxu0 %v6832
    %9102 = vmatprep.subr.bf16.mxu0 %v6841
    %9103 = vmatpush1.bf16.msra.mxu0 %v6840
    %9104 = vmatprep.mubr.bf16.mxu0 %v207
    %9105 = vmatmul.mubr.bf16.gmra.mrb[0].mxu0 %v206
    %v9106 = vpop.f32.mrb[0].mxu0
    %v9107 = vadd.f32 %v9066, %v9106
    %v9108 = vpop.f32.mrb[0].mxu0
    %v9109 = vadd.f32 %v9068, %v9108
    %v9110 = vpop.f32.mrb[0].mxu0
    %v9111 = vpop.f32.mrb[0].mxu0
    %9112 = vdwg.mxu0
    %9113 = vmatprep.subr.bf16.mxu0 %v6849
    %9114 = vmatpush1.bf16.msra.mxu0 %v6848
    %9115 = vmatprep.subr.bf16.mxu0 %v6857
    %9116 = vmatpush1.bf16.msra.mxu0 %v6856
    %9117 = vmatprep.subr.bf16.mxu0 %v6865
    %9118 = vmatpush1.bf16.msra.mxu0 %v6864
    %9119 = vmatprep.subr.bf16.mxu0 %v6873
    %9120 = vmatpush1.bf16.msra.mxu0 %v6872
    %9121 = vmatprep.subr.bf16.mxu0 %v6881
    %9122 = vmatpush1.bf16.msra.mxu0 %v6880
    %9123 = vmatprep.subr.bf16.mxu0 %v6889
    %9124 = vmatpush1.bf16.msra.mxu0 %v6888
    %9125 = vmatprep.subr.bf16.mxu0 %v6897
    %9126 = vmatpush1.bf16.msra.mxu0 %v6896
    %9127 = vmatprep.subr.bf16.mxu0 %v6905
    %9128 = vmatpush1.bf16.msra.mxu0 %v6904
    %9129 = vmatprep.subr.bf16.mxu0 %v6913
    %9130 = vmatpush1.bf16.msra.mxu0 %v6912
    %9131 = vmatprep.subr.bf16.mxu0 %v6921
    %9132 = vmatpush1.bf16.msra.mxu0 %v6920
    %9133 = vmatprep.subr.bf16.mxu0 %v6929
    %9134 = vmatpush1.bf16.msra.mxu0 %v6928
    %9135 = vmatprep.subr.bf16.mxu0 %v6937
    %9136 = vmatpush1.bf16.msra.mxu0 %v6936
    %9137 = vmatprep.subr.bf16.mxu0 %v6945
    %9138 = vmatpush1.bf16.msra.mxu0 %v6944
    %9139 = vmatprep.subr.bf16.mxu0 %v6953
    %9140 = vmatpush1.bf16.msra.mxu0 %v6952
    %9141 = vmatprep.subr.bf16.mxu0 %v6961
    %9142 = vmatpush1.bf16.msra.mxu0 %v6960
    %9143 = vmatprep.subr.bf16.mxu0 %v6969
    %9144 = vmatpush1.bf16.msra.mxu0 %v6968
    %9145 = vmatprep.mubr.bf16.mxu0 %v209
    %9146 = vmatmul.mubr.bf16.gmra.mrb[0].mxu0 %v208
    %v9147 = vpop.f32.mrb[0].mxu0
    %v9148 = vadd.f32 %v9107, %v9147
    %v9149 = vpop.f32.mrb[0].mxu0
    %v9150 = vadd.f32 %v9109, %v9149
    %v9151 = vpop.f32.mrb[0].mxu0
    %v9152 = vpop.f32.mrb[0].mxu0
    %9153 = vdwg.mxu0
    %9154 = vmatprep.subr.bf16.mxu0 %v6977
    %9155 = vmatpush1.bf16.msra.mxu0 %v6976
    %9156 = vmatprep.subr.bf16.mxu0 %v6985
    %9157 = vmatpush1.bf16.msra.mxu0 %v6984
    %9158 = vmatprep.subr.bf16.mxu0 %v6993
    %9159 = vmatpush1.bf16.msra.mxu0 %v6992
    %9160 = vmatprep.subr.bf16.mxu0 %v7001
    %9161 = vmatpush1.bf16.msra.mxu0 %v7000
    %9162 = vmatprep.subr.bf16.mxu0 %v7009
    %9163 = vmatpush1.bf16.msra.mxu0 %v7008
    %9164 = vmatprep.subr.bf16.mxu0 %v7017
    %9165 = vmatpush1.bf16.msra.mxu0 %v7016
    %9166 = vmatprep.subr.bf16.mxu0 %v7025
    %9167 = vmatpush1.bf16.msra.mxu0 %v7024
    %9168 = vmatprep.subr.bf16.mxu0 %v7033
    %9169 = vmatpush1.bf16.msra.mxu0 %v7032
    %9170 = vmatprep.subr.bf16.mxu0 %v7041
    %9171 = vmatpush1.bf16.msra.mxu0 %v7040
    %9172 = vmatprep.subr.bf16.mxu0 %v7049
    %9173 = vmatpush1.bf16.msra.mxu0 %v7048
    %9174 = vmatprep.subr.bf16.mxu0 %v7057
    %9175 = vmatpush1.bf16.msra.mxu0 %v7056
    %9176 = vmatprep.subr.bf16.mxu0 %v7065
    %9177 = vmatpush1.bf16.msra.mxu0 %v7064
    %9178 = vmatprep.subr.bf16.mxu0 %v7073
    %9179 = vmatpush1.bf16.msra.mxu0 %v7072
    %9180 = vmatprep.subr.bf16.mxu0 %v7081
    %9181 = vmatpush1.bf16.msra.mxu0 %v7080
    %9182 = vmatprep.subr.bf16.mxu0 %v7089
    %9183 = vmatpush1.bf16.msra.mxu0 %v7088
    %9184 = vmatprep.subr.bf16.mxu0 %v7097
    %9185 = vmatpush1.bf16.msra.mxu0 %v7096
    %9186 = vmatprep.mubr.bf16.mxu0 %v211
    %9187 = vmatmul.mubr.bf16.gmra.mrb[0].mxu0 %v210
    %v9188 = vpop.f32.mrb[0].mxu0
    %v9189 = vadd.f32 %v9148, %v9188
    %v9190 = vpop.f32.mrb[0].mxu0
    %v9191 = vadd.f32 %v9150, %v9190
    %v9192 = vpop.f32.mrb[0].mxu0
    %v9193 = vpop.f32.mrb[0].mxu0
    %9194 = vdwg.mxu0
    %9195 = vmatprep.subr.bf16.mxu0 %v7105
    %9196 = vmatpush1.bf16.msra.mxu0 %v7104
    %9197 = vmatprep.subr.bf16.mxu0 %v7113
    %9198 = vmatpush1.bf16.msra.mxu0 %v7112
    %9199 = vmatprep.subr.bf16.mxu0 %v7121
    %9200 = vmatpush1.bf16.msra.mxu0 %v7120
    %9201 = vmatprep.subr.bf16.mxu0 %v7129
    %9202 = vmatpush1.bf16.msra.mxu0 %v7128
    %9203 = vmatprep.subr.bf16.mxu0 %v7137
    %9204 = vmatpush1.bf16.msra.mxu0 %v7136
    %9205 = vmatprep.subr.bf16.mxu0 %v7145
    %9206 = vmatpush1.bf16.msra.mxu0 %v7144
    %9207 = vmatprep.subr.bf16.mxu0 %v7153
    %9208 = vmatpush1.bf16.msra.mxu0 %v7152
    %9209 = vmatprep.subr.bf16.mxu0 %v7161
    %9210 = vmatpush1.bf16.msra.mxu0 %v7160
    %9211 = vmatprep.subr.bf16.mxu0 %v7169
    %9212 = vmatpush1.bf16.msra.mxu0 %v7168
    %9213 = vmatprep.subr.bf16.mxu0 %v7177
    %9214 = vmatpush1.bf16.msra.mxu0 %v7176
    %9215 = vmatprep.subr.bf16.mxu0 %v7185
    %9216 = vmatpush1.bf16.msra.mxu0 %v7184
    %9217 = vmatprep.subr.bf16.mxu0 %v7193
    %9218 = vmatpush1.bf16.msra.mxu0 %v7192
    %9219 = vmatprep.subr.bf16.mxu0 %v7201
    %9220 = vmatpush1.bf16.msra.mxu0 %v7200
    %9221 = vmatprep.subr.bf16.mxu0 %v7209
    %9222 = vmatpush1.bf16.msra.mxu0 %v7208
    %9223 = vmatprep.subr.bf16.mxu0 %v7217
    %9224 = vmatpush1.bf16.msra.mxu0 %v7216
    %9225 = vmatprep.subr.bf16.mxu0 %v7225
    %9226 = vmatpush1.bf16.msra.mxu0 %v7224
    %9227 = vmatprep.mubr.bf16.mxu0 %v213
    %9228 = vmatmul.mubr.bf16.gmra.mrb[0].mxu0 %v212
    %v9229 = vpop.f32.mrb[0].mxu0
    %v9230 = vadd.f32 %v9189, %v9229
    %v9231 = vpop.f32.mrb[0].mxu0
    %v9232 = vadd.f32 %v9191, %v9231
    %v9233 = vpop.f32.mrb[0].mxu0
    %v9234 = vpop.f32.mrb[0].mxu0
    %9235 = vdwg.mxu0
    %9236 = vmatprep.subr.bf16.mxu0 %v6211
    %9237 = vmatpush1.bf16.msra.mxu0 %v6210
    %9238 = vmatprep.subr.bf16.mxu0 %v6219
    %9239 = vmatpush1.bf16.msra.mxu0 %v6218
    %9240 = vmatprep.subr.bf16.mxu0 %v6227
    %9241 = vmatpush1.bf16.msra.mxu0 %v6226
    %9242 = vmatprep.subr.bf16.mxu0 %v6235
    %9243 = vmatpush1.bf16.msra.mxu0 %v6234
    %9244 = vmatprep.subr.bf16.mxu0 %v6243
    %9245 = vmatpush1.bf16.msra.mxu0 %v6242
    %9246 = vmatprep.subr.bf16.mxu0 %v6251
    %9247 = vmatpush1.bf16.msra.mxu0 %v6250
    %9248 = vmatprep.subr.bf16.mxu0 %v6259
    %9249 = vmatpush1.bf16.msra.mxu0 %v6258
    %9250 = vmatprep.subr.bf16.mxu0 %v6267
    %9251 = vmatpush1.bf16.msra.mxu0 %v6266
    %9252 = vmatprep.subr.bf16.mxu0 %v6275
    %9253 = vmatpush1.bf16.msra.mxu0 %v6274
    %9254 = vmatprep.subr.bf16.mxu0 %v6283
    %9255 = vmatpush1.bf16.msra.mxu0 %v6282
    %9256 = vmatprep.subr.bf16.mxu0 %v6291
    %9257 = vmatpush1.bf16.msra.mxu0 %v6290
    %9258 = vmatprep.subr.bf16.mxu0 %v6299
    %9259 = vmatpush1.bf16.msra.mxu0 %v6298
    %9260 = vmatprep.subr.bf16.mxu0 %v6307
    %9261 = vmatpush1.bf16.msra.mxu0 %v6306
    %9262 = vmatprep.subr.bf16.mxu0 %v6315
    %9263 = vmatpush1.bf16.msra.mxu0 %v6314
    %9264 = vmatprep.subr.bf16.mxu0 %v6323
    %9265 = vmatpush1.bf16.msra.mxu0 %v6322
    %9266 = vmatprep.subr.bf16.mxu0 %v6331
    %9267 = vmatpush1.bf16.msra.mxu0 %v6330
    %9268 = vmatprep.mubr.bf16.mxu0 %v199
    %9269 = vmatmul.mubr.bf16.gmra.mrb[0].mxu0 %v198
    %v9270 = vpop.f32.mrb[0].mxu0
    %v9271 = vadd.f32 %v3126, %v9270
    %v9272 = vpop.f32.mrb[0].mxu0
    %v9273 = vadd.f32 %v3128, %v9272
    %v9274 = vpop.f32.mrb[0].mxu0
    %v9275 = vpop.f32.mrb[0].mxu0
    %9276 = vdwg.mxu0
    %9277 = vmatprep.subr.bf16.mxu0 %v6339
    %9278 = vmatpush1.bf16.msra.mxu0 %v6338
    %9279 = vmatprep.subr.bf16.mxu0 %v6347
    %9280 = vmatpush1.bf16.msra.mxu0 %v6346
    %9281 = vmatprep.subr.bf16.mxu0 %v6355
    %9282 = vmatpush1.bf16.msra.mxu0 %v6354
    %9283 = vmatprep.subr.bf16.mxu0 %v6363
    %9284 = vmatpush1.bf16.msra.mxu0 %v6362
    %9285 = vmatprep.subr.bf16.mxu0 %v6371
    %9286 = vmatpush1.bf16.msra.mxu0 %v6370
    %9287 = vmatprep.subr.bf16.mxu0 %v6379
    %9288 = vmatpush1.bf16.msra.mxu0 %v6378
    %9289 = vmatprep.subr.bf16.mxu0 %v6387
    %9290 = vmatpush1.bf16.msra.mxu0 %v6386
    %9291 = vmatprep.subr.bf16.mxu0 %v6395
    %9292 = vmatpush1.bf16.msra.mxu0 %v6394
    %9293 = vmatprep.subr.bf16.mxu0 %v6403
    %9294 = vmatpush1.bf16.msra.mxu0 %v6402
    %9295 = vmatprep.subr.bf16.mxu0 %v6411
    %9296 = vmatpush1.bf16.msra.mxu0 %v6410
    %9297 = vmatprep.subr.bf16.mxu0 %v6419
    %9298 = vmatpush1.bf16.msra.mxu0 %v6418
    %9299 = vmatprep.subr.bf16.mxu0 %v6427
    %9300 = vmatpush1.bf16.msra.mxu0 %v6426
    %9301 = vmatprep.subr.bf16.mxu0 %v6435
    %9302 = vmatpush1.bf16.msra.mxu0 %v6434
    %9303 = vmatprep.subr.bf16.mxu0 %v6443
    %9304 = vmatpush1.bf16.msra.mxu0 %v6442
    %9305 = vmatprep.subr.bf16.mxu0 %v6451
    %9306 = vmatpush1.bf16.msra.mxu0 %v6450
    %9307 = vmatprep.subr.bf16.mxu0 %v6459
    %9308 = vmatpush1.bf16.msra.mxu0 %v6458
    %9309 = vmatprep.mubr.bf16.mxu0 %v201
    %9310 = vmatmul.mubr.bf16.gmra.mrb[0].mxu0 %v200
    %v9311 = vpop.f32.mrb[0].mxu0
    %v9312 = vadd.f32 %v9271, %v9311
    %v9313 = vpop.f32.mrb[0].mxu0
    %v9314 = vadd.f32 %v9273, %v9313
    %v9315 = vpop.f32.mrb[0].mxu0
    %v9316 = vpop.f32.mrb[0].mxu0
    %9317 = vdwg.mxu0
    %9318 = vmatprep.subr.bf16.mxu0 %v6467
    %9319 = vmatpush1.bf16.msra.mxu0 %v6466
    %9320 = vmatprep.subr.bf16.mxu0 %v6475
    %9321 = vmatpush1.bf16.msra.mxu0 %v6474
    %9322 = vmatprep.subr.bf16.mxu0 %v6483
    %9323 = vmatpush1.bf16.msra.mxu0 %v6482
    %9324 = vmatprep.subr.bf16.mxu0 %v6491
    %9325 = vmatpush1.bf16.msra.mxu0 %v6490
    %9326 = vmatprep.subr.bf16.mxu0 %v6499
    %9327 = vmatpush1.bf16.msra.mxu0 %v6498
    %9328 = vmatprep.subr.bf16.mxu0 %v6507
    %9329 = vmatpush1.bf16.msra.mxu0 %v6506
    %9330 = vmatprep.subr.bf16.mxu0 %v6515
    %9331 = vmatpush1.bf16.msra.mxu0 %v6514
    %9332 = vmatprep.subr.bf16.mxu0 %v6523
    %9333 = vmatpush1.bf16.msra.mxu0 %v6522
    %9334 = vmatprep.subr.bf16.mxu0 %v6531
    %9335 = vmatpush1.bf16.msra.mxu0 %v6530
    %9336 = vmatprep.subr.bf16.mxu0 %v6539
    %9337 = vmatpush1.bf16.msra.mxu0 %v6538
    %9338 = vmatprep.subr.bf16.mxu0 %v6547
    %9339 = vmatpush1.bf16.msra.mxu0 %v6546
    %9340 = vmatprep.subr.bf16.mxu0 %v6555
    %9341 = vmatpush1.bf16.msra.mxu0 %v6554
    %9342 = vmatprep.subr.bf16.mxu0 %v6563
    %9343 = vmatpush1.bf16.msra.mxu0 %v6562
    %9344 = vmatprep.subr.bf16.mxu0 %v6571
    %9345 = vmatpush1.bf16.msra.mxu0 %v6570
    %9346 = vmatprep.subr.bf16.mxu0 %v6579
    %9347 = vmatpush1.bf16.msra.mxu0 %v6578
    %9348 = vmatprep.subr.bf16.mxu0 %v6587
    %9349 = vmatpush1.bf16.msra.mxu0 %v6586
    %9350 = vmatprep.mubr.bf16.mxu0 %v203
    %9351 = vmatmul.mubr.bf16.gmra.mrb[0].mxu0 %v202
    %v9352 = vpop.f32.mrb[0].mxu0
    %v9353 = vadd.f32 %v9312, %v9352
    %v9354 = vpop.f32.mrb[0].mxu0
    %v9355 = vadd.f32 %v9314, %v9354
    %v9356 = vpop.f32.mrb[0].mxu0
    %v9357 = vpop.f32.mrb[0].mxu0
    %9358 = vdwg.mxu0
    %9359 = vmatprep.subr.bf16.mxu0 %v6595
    %9360 = vmatpush1.bf16.msra.mxu0 %v6594
    %9361 = vmatprep.subr.bf16.mxu0 %v6603
    %9362 = vmatpush1.bf16.msra.mxu0 %v6602
    %9363 = vmatprep.subr.bf16.mxu0 %v6611
    %9364 = vmatpush1.bf16.msra.mxu0 %v6610
    %9365 = vmatprep.subr.bf16.mxu0 %v6619
    %9366 = vmatpush1.bf16.msra.mxu0 %v6618
    %9367 = vmatprep.subr.bf16.mxu0 %v6627
    %9368 = vmatpush1.bf16.msra.mxu0 %v6626
    %9369 = vmatprep.subr.bf16.mxu0 %v6635
    %9370 = vmatpush1.bf16.msra.mxu0 %v6634
    %9371 = vmatprep.subr.bf16.mxu0 %v6643
    %9372 = vmatpush1.bf16.msra.mxu0 %v6642
    %9373 = vmatprep.subr.bf16.mxu0 %v6651
    %9374 = vmatpush1.bf16.msra.mxu0 %v6650
    %9375 = vmatprep.subr.bf16.mxu0 %v6659
    %9376 = vmatpush1.bf16.msra.mxu0 %v6658
    %9377 = vmatprep.subr.bf16.mxu0 %v6667
    %9378 = vmatpush1.bf16.msra.mxu0 %v6666
    %9379 = vmatprep.subr.bf16.mxu0 %v6675
    %9380 = vmatpush1.bf16.msra.mxu0 %v6674
    %9381 = vmatprep.subr.bf16.mxu0 %v6683
    %9382 = vmatpush1.bf16.msra.mxu0 %v6682
    %9383 = vmatprep.subr.bf16.mxu0 %v6691
    %9384 = vmatpush1.bf16.msra.mxu0 %v6690
    %9385 = vmatprep.subr.bf16.mxu0 %v6699
    %9386 = vmatpush1.bf16.msra.mxu0 %v6698
    %9387 = vmatprep.subr.bf16.mxu0 %v6707
    %9388 = vmatpush1.bf16.msra.mxu0 %v6706
    %9389 = vmatprep.subr.bf16.mxu0 %v6715
    %9390 = vmatpush1.bf16.msra.mxu0 %v6714
    %9391 = vmatprep.mubr.bf16.mxu0 %v205
    %9392 = vmatmul.mubr.bf16.gmra.mrb[0].mxu0 %v204
    %v9393 = vpop.f32.mrb[0].mxu0
    %v9394 = vadd.f32 %v9353, %v9393
    %v9395 = vpop.f32.mrb[0].mxu0
    %v9396 = vadd.f32 %v9355, %v9395
    %v9397 = vpop.f32.mrb[0].mxu0
    %v9398 = vpop.f32.mrb[0].mxu0
    %9399 = vdwg.mxu0
    %9400 = vmatprep.subr.bf16.mxu0 %v6723
    %9401 = vmatpush1.bf16.msra.mxu0 %v6722
    %9402 = vmatprep.subr.bf16.mxu0 %v6731
    %9403 = vmatpush1.bf16.msra.mxu0 %v6730
    %9404 = vmatprep.subr.bf16.mxu0 %v6739
    %9405 = vmatpush1.bf16.msra.mxu0 %v6738
    %9406 = vmatprep.subr.bf16.mxu0 %v6747
    %9407 = vmatpush1.bf16.msra.mxu0 %v6746
    %9408 = vmatprep.subr.bf16.mxu0 %v6755
    %9409 = vmatpush1.bf16.msra.mxu0 %v6754
    %9410 = vmatprep.subr.bf16.mxu0 %v6763
    %9411 = vmatpush1.bf16.msra.mxu0 %v6762
    %9412 = vmatprep.subr.bf16.mxu0 %v6771
    %9413 = vmatpush1.bf16.msra.mxu0 %v6770
    %9414 = vmatprep.subr.bf16.mxu0 %v6779
    %9415 = vmatpush1.bf16.msra.mxu0 %v6778
    %9416 = vmatprep.subr.bf16.mxu0 %v6787
    %9417 = vmatpush1.bf16.msra.mxu0 %v6786
    %9418 = vmatprep.subr.bf16.mxu0 %v6795
    %9419 = vmatpush1.bf16.msra.mxu0 %v6794
    %9420 = vmatprep.subr.bf16.mxu0 %v6803
    %9421 = vmatpush1.bf16.msra.mxu0 %v6802
    %9422 = vmatprep.subr.bf16.mxu0 %v6811
    %9423 = vmatpush1.bf16.msra.mxu0 %v6810
    %9424 = vmatprep.subr.bf16.mxu0 %v6819
    %9425 = vmatpush1.bf16.msra.mxu0 %v6818
    %9426 = vmatprep.subr.bf16.mxu0 %v6827
    %9427 = vmatpush1.bf16.msra.mxu0 %v6826
    %9428 = vmatprep.subr.bf16.mxu0 %v6835
    %9429 = vmatpush1.bf16.msra.mxu0 %v6834
    %9430 = vmatprep.subr.bf16.mxu0 %v6843
    %9431 = vmatpush1.bf16.msra.mxu0 %v6842
    %9432 = vmatprep.mubr.bf16.mxu0 %v207
    %9433 = vmatmul.mubr.bf16.gmra.mrb[0].mxu0 %v206
    %v9434 = vpop.f32.mrb[0].mxu0
    %v9435 = vadd.f32 %v9394, %v9434
    %v9436 = vpop.f32.mrb[0].mxu0
    %v9437 = vadd.f32 %v9396, %v9436
    %v9438 = vpop.f32.mrb[0].mxu0
    %v9439 = vpop.f32.mrb[0].mxu0
    %9440 = vdwg.mxu0
    %9441 = vmatprep.subr.bf16.mxu0 %v6851
    %9442 = vmatpush1.bf16.msra.mxu0 %v6850
    %9443 = vmatprep.subr.bf16.mxu0 %v6859
    %9444 = vmatpush1.bf16.msra.mxu0 %v6858
    %9445 = vmatprep.subr.bf16.mxu0 %v6867
    %9446 = vmatpush1.bf16.msra.mxu0 %v6866
    %9447 = vmatprep.subr.bf16.mxu0 %v6875
    %9448 = vmatpush1.bf16.msra.mxu0 %v6874
    %9449 = vmatprep.subr.bf16.mxu0 %v6883
    %9450 = vmatpush1.bf16.msra.mxu0 %v6882
    %9451 = vmatprep.subr.bf16.mxu0 %v6891
    %9452 = vmatpush1.bf16.msra.mxu0 %v6890
    %9453 = vmatprep.subr.bf16.mxu0 %v6899
    %9454 = vmatpush1.bf16.msra.mxu0 %v6898
    %9455 = vmatprep.subr.bf16.mxu0 %v6907
    %9456 = vmatpush1.bf16.msra.mxu0 %v6906
    %9457 = vmatprep.subr.bf16.mxu0 %v6915
    %9458 = vmatpush1.bf16.msra.mxu0 %v6914
    %9459 = vmatprep.subr.bf16.mxu0 %v6923
    %9460 = vmatpush1.bf16.msra.mxu0 %v6922
    %9461 = vmatprep.subr.bf16.mxu0 %v6931
    %9462 = vmatpush1.bf16.msra.mxu0 %v6930
    %9463 = vmatprep.subr.bf16.mxu0 %v6939
    %9464 = vmatpush1.bf16.msra.mxu0 %v6938
    %9465 = vmatprep.subr.bf16.mxu0 %v6947
    %9466 = vmatpush1.bf16.msra.mxu0 %v6946
    %9467 = vmatprep.subr.bf16.mxu0 %v6955
    %9468 = vmatpush1.bf16.msra.mxu0 %v6954
    %9469 = vmatprep.subr.bf16.mxu0 %v6963
    %9470 = vmatpush1.bf16.msra.mxu0 %v6962
    %9471 = vmatprep.subr.bf16.mxu0 %v6971
    %9472 = vmatpush1.bf16.msra.mxu0 %v6970
    %9473 = vmatprep.mubr.bf16.mxu0 %v209
    %9474 = vmatmul.mubr.bf16.gmra.mrb[0].mxu0 %v208
    %v9475 = vpop.f32.mrb[0].mxu0
    %v9476 = vadd.f32 %v9435, %v9475
    %v9477 = vpop.f32.mrb[0].mxu0
    %v9478 = vadd.f32 %v9437, %v9477
    %v9479 = vpop.f32.mrb[0].mxu0
    %v9480 = vpop.f32.mrb[0].mxu0
    %9481 = vdwg.mxu0
    %9482 = vmatprep.subr.bf16.mxu0 %v6979
    %9483 = vmatpush1.bf16.msra.mxu0 %v6978
    %9484 = vmatprep.subr.bf16.mxu0 %v6987
    %9485 = vmatpush1.bf16.msra.mxu0 %v6986
    %9486 = vmatprep.subr.bf16.mxu0 %v6995
    %9487 = vmatpush1.bf16.msra.mxu0 %v6994
    %9488 = vmatprep.subr.bf16.mxu0 %v7003
    %9489 = vmatpush1.bf16.msra.mxu0 %v7002
    %9490 = vmatprep.subr.bf16.mxu0 %v7011
    %9491 = vmatpush1.bf16.msra.mxu0 %v7010
    %9492 = vmatprep.subr.bf16.mxu0 %v7019
    %9493 = vmatpush1.bf16.msra.mxu0 %v7018
    %9494 = vmatprep.subr.bf16.mxu0 %v7027
    %9495 = vmatpush1.bf16.msra.mxu0 %v7026
    %9496 = vmatprep.subr.bf16.mxu0 %v7035
    %9497 = vmatpush1.bf16.msra.mxu0 %v7034
    %9498 = vmatprep.subr.bf16.mxu0 %v7043
    %9499 = vmatpush1.bf16.msra.mxu0 %v7042
    %9500 = vmatprep.subr.bf16.mxu0 %v7051
    %9501 = vmatpush1.bf16.msra.mxu0 %v7050
    %9502 = vmatprep.subr.bf16.mxu0 %v7059
    %9503 = vmatpush1.bf16.msra.mxu0 %v7058
    %9504 = vmatprep.subr.bf16.mxu0 %v7067
    %9505 = vmatpush1.bf16.msra.mxu0 %v7066
    %9506 = vmatprep.subr.bf16.mxu0 %v7075
    %9507 = vmatpush1.bf16.msra.mxu0 %v7074
    %9508 = vmatprep.subr.bf16.mxu0 %v7083
    %9509 = vmatpush1.bf16.msra.mxu0 %v7082
    %9510 = vmatprep.subr.bf16.mxu0 %v7091
    %9511 = vmatpush1.bf16.msra.mxu0 %v7090
    %9512 = vmatprep.subr.bf16.mxu0 %v7099
    %9513 = vmatpush1.bf16.msra.mxu0 %v7098
    %9514 = vmatprep.mubr.bf16.mxu0 %v211
    %9515 = vmatmul.mubr.bf16.gmra.mrb[0].mxu0 %v210
    %v9516 = vpop.f32.mrb[0].mxu0
    %v9517 = vadd.f32 %v9476, %v9516
    %v9518 = vpop.f32.mrb[0].mxu0
    %v9519 = vadd.f32 %v9478, %v9518
    %v9520 = vpop.f32.mrb[0].mxu0
    %v9521 = vpop.f32.mrb[0].mxu0
    %9522 = vdwg.mxu0
    %9523 = vmatprep.subr.bf16.mxu0 %v7107
    %9524 = vmatpush1.bf16.msra.mxu0 %v7106
    %9525 = vmatprep.subr.bf16.mxu0 %v7115
    %9526 = vmatpush1.bf16.msra.mxu0 %v7114
    %9527 = vmatprep.subr.bf16.mxu0 %v7123
    %9528 = vmatpush1.bf16.msra.mxu0 %v7122
    %9529 = vmatprep.subr.bf16.mxu0 %v7131
    %9530 = vmatpush1.bf16.msra.mxu0 %v7130
    %9531 = vmatprep.subr.bf16.mxu0 %v7139
    %9532 = vmatpush1.bf16.msra.mxu0 %v7138
    %9533 = vmatprep.subr.bf16.mxu0 %v7147
    %9534 = vmatpush1.bf16.msra.mxu0 %v7146
    %9535 = vmatprep.subr.bf16.mxu0 %v7155
    %9536 = vmatpush1.bf16.msra.mxu0 %v7154
    %9537 = vmatprep.subr.bf16.mxu0 %v7163
    %9538 = vmatpush1.bf16.msra.mxu0 %v7162
    %9539 = vmatprep.subr.bf16.mxu0 %v7171
    %9540 = vmatpush1.bf16.msra.mxu0 %v7170
    %9541 = vmatprep.subr.bf16.mxu0 %v7179
    %9542 = vmatpush1.bf16.msra.mxu0 %v7178
    %9543 = vmatprep.subr.bf16.mxu0 %v7187
    %9544 = vmatpush1.bf16.msra.mxu0 %v7186
    %9545 = vmatprep.subr.bf16.mxu0 %v7195
    %9546 = vmatpush1.bf16.msra.mxu0 %v7194
    %9547 = vmatprep.subr.bf16.mxu0 %v7203
    %9548 = vmatpush1.bf16.msra.mxu0 %v7202
    %9549 = vmatprep.subr.bf16.mxu0 %v7211
    %9550 = vmatpush1.bf16.msra.mxu0 %v7210
    %9551 = vmatprep.subr.bf16.mxu0 %v7219
    %9552 = vmatpush1.bf16.msra.mxu0 %v7218
    %9553 = vmatprep.subr.bf16.mxu0 %v7227
    %9554 = vmatpush1.bf16.msra.mxu0 %v7226
    %9555 = vmatprep.mubr.bf16.mxu0 %v213
    %9556 = vmatmul.mubr.bf16.gmra.mrb[0].mxu0 %v212
    %v9557 = vpop.f32.mrb[0].mxu0
    %v9558 = vadd.f32 %v9517, %v9557
    %v9559 = vpop.f32.mrb[0].mxu0
    %v9560 = vadd.f32 %v9519, %v9559
    %v9561 = vpop.f32.mrb[0].mxu0
    %v9562 = vpop.f32.mrb[0].mxu0
    %9563 = vdwg.mxu0
    %v9565 = vlaneseq
    %v9566 = vshrl.u32 %v9565, 7
    %v9567 = vsub.s32 0, %v9566
    %v9568 = vrot.slane %v241, %v9567
    %v9569 = vlaneseq
    %v9570 = vshrl.u32 %v9569, 7
    %v9571 = vsub.s32 1, %v9570
    %v9572 = vrot.slane %v241, %v9571
    %v9573 = vlaneseq
    %v9574 = vshrl.u32 %v9573, 7
    %v9575 = vsub.s32 2, %v9574
    %v9576 = vrot.slane %v241, %v9575
    %v9577 = vlaneseq
    %v9578 = vshrl.u32 %v9577, 7
    %v9579 = vsub.s32 3, %v9578
    %v9580 = vrot.slane %v241, %v9579
    %v9581 = vlaneseq
    %v9582 = vshrl.u32 %v9581, 7
    %v9583 = vsub.s32 4, %v9582
    %v9584 = vrot.slane %v241, %v9583
    %v9585 = vlaneseq
    %v9586 = vshrl.u32 %v9585, 7
    %v9587 = vsub.s32 5, %v9586
    %v9588 = vrot.slane %v241, %v9587
    %v9589 = vlaneseq
    %v9590 = vshrl.u32 %v9589, 7
    %v9591 = vsub.s32 6, %v9590
    %v9592 = vrot.slane %v241, %v9591
    %v9593 = vlaneseq
    %v9594 = vshrl.u32 %v9593, 7
    %v9595 = vsub.s32 7, %v9594
    %v9596 = vrot.slane %v241, %v9595
    %v9605 = vadd.f32 %v8574, %v9568
    %v9606 = vadd.f32 %v8576, %v9572
    %v9607 = vadd.f32 %v8902, %v9576
    %v9608 = vadd.f32 %v8904, %v9580
    %v9609 = vadd.f32 %v9230, %v9584
    %v9610 = vadd.f32 %v9232, %v9588
    %v9611 = vadd.f32 %v9558, %v9592
    %v9612 = vadd.f32 %v9560, %v9596
    %v9613 = vmax.f32 %v9605, 0.0
    %v9614 = vmax.f32 %v9606, 0.0
    %v9615 = vmax.f32 %v9607, 0.0
    %v9616 = vmax.f32 %v9608, 0.0
    %v9617 = vmax.f32 %v9609, 0.0
    %v9618 = vmax.f32 %v9610, 0.0
    %v9619 = vmax.f32 %v9611, 0.0
    %v9620 = vmax.f32 %v9612, 0.0
    %v9621 = vpack.c.bf16 %v9613, %v9613
    %v9622 = vpack.c.bf16 %v9614, %v9614
    %v9623 = vpack.c.bf16 %v9615, %v9615
    %v9624 = vpack.c.bf16 %v9616, %v9616
    %v9625 = vpack.c.bf16 %v9617, %v9617
    %v9626 = vpack.c.bf16 %v9618, %v9618
    %v9627 = vpack.c.bf16 %v9619, %v9619
    %v9628 = vpack.c.bf16 %v9620, %v9620
    %v9629 = vld [vmem:[#allocation8] sm:$0xff]
    %v9630 = vld [vmem:[#allocation8 + $0x8] sm:$0xff]
    %v9631 = vld [vmem:[#allocation8 + $0x10] sm:$0xff]
    %v9632 = vld [vmem:[#allocation8 + $0x18] sm:$0xff]
    %v9633 = vld [vmem:[#allocation8 + $0x20] sm:$0xff]
    %v9634 = vld [vmem:[#allocation8 + $0x28] sm:$0xff]
    %v9635 = vld [vmem:[#allocation8 + $0x30] sm:$0xff]
    %v9636 = vld [vmem:[#allocation8 + $0x38] sm:$0xff]
    %v9637 = vld [vmem:[#allocation8 + $0x40] sm:$0xff]
    %v9638 = vld [vmem:[#allocation8 + $0x48] sm:$0xff]
    %v9639 = vld [vmem:[#allocation8 + $0x50] sm:$0xff]
    %v9640 = vld [vmem:[#allocation8 + $0x58] sm:$0xff]
    %v9641 = vld [vmem:[#allocation8 + $0x60] sm:$0xff]
    %v9642 = vld [vmem:[#allocation8 + $0x68] sm:$0xff]
    %v9643 = vld [vmem:[#allocation8 + $0x70] sm:$0xff]
    %v9644 = vld [vmem:[#allocation8 + $0x78] sm:$0xff]
    %v9645 = vld [vmem:[#allocation8 + $0x80] sm:$0xff]
    %v9646 = vld [vmem:[#allocation8 + $0x88] sm:$0xff]
    %v9647 = vld [vmem:[#allocation8 + $0x90] sm:$0xff]
    %v9648 = vld [vmem:[#allocation8 + $0x98] sm:$0xff]
    %v9649 = vld [vmem:[#allocation8 + $0xa0] sm:$0xff]
    %v9650 = vld [vmem:[#allocation8 + $0xa8] sm:$0xff]
    %v9651 = vld [vmem:[#allocation8 + $0xb0] sm:$0xff]
    %v9652 = vld [vmem:[#allocation8 + $0xb8] sm:$0xff]
    %v9653 = vld [vmem:[#allocation8 + $0xc0] sm:$0xff]
    %v9654 = vld [vmem:[#allocation8 + $0xc8] sm:$0xff]
    %v9655 = vld [vmem:[#allocation8 + $0xd0] sm:$0xff]
    %v9656 = vld [vmem:[#allocation8 + $0xd8] sm:$0xff]
    %v9657 = vld [vmem:[#allocation8 + $0xe0] sm:$0xff]
    %v9658 = vld [vmem:[#allocation8 + $0xe8] sm:$0xff]
    %v9659 = vld [vmem:[#allocation8 + $0xf0] sm:$0xff]
    %v9660 = vld [vmem:[#allocation8 + $0xf8] sm:$0xff]
    %v9661 = vld [vmem:[#allocation8 + $0x100] sm:$0xff]
    %v9662 = vld [vmem:[#allocation8 + $0x108] sm:$0xff]
    %v9663 = vld [vmem:[#allocation8 + $0x110] sm:$0xff]
    %v9664 = vld [vmem:[#allocation8 + $0x118] sm:$0xff]
    %v9665 = vld [vmem:[#allocation8 + $0x120] sm:$0xff]
    %v9666 = vld [vmem:[#allocation8 + $0x128] sm:$0xff]
    %v9667 = vld [vmem:[#allocation8 + $0x130] sm:$0xff]
    %v9668 = vld [vmem:[#allocation8 + $0x138] sm:$0xff]
    %v9669 = vld [vmem:[#allocation8 + $0x140] sm:$0xff]
    %v9670 = vld [vmem:[#allocation8 + $0x148] sm:$0xff]
    %v9671 = vld [vmem:[#allocation8 + $0x150] sm:$0xff]
    %v9672 = vld [vmem:[#allocation8 + $0x158] sm:$0xff]
    %v9673 = vld [vmem:[#allocation8 + $0x160] sm:$0xff]
    %v9674 = vld [vmem:[#allocation8 + $0x168] sm:$0xff]
    %v9675 = vld [vmem:[#allocation8 + $0x170] sm:$0xff]
    %v9676 = vld [vmem:[#allocation8 + $0x178] sm:$0xff]
    %v9677 = vld [vmem:[#allocation8 + $0x180] sm:$0xff]
    %v9678 = vld [vmem:[#allocation8 + $0x188] sm:$0xff]
    %v9679 = vld [vmem:[#allocation8 + $0x190] sm:$0xff]
    %v9680 = vld [vmem:[#allocation8 + $0x198] sm:$0xff]
    %v9681 = vld [vmem:[#allocation8 + $0x1a0] sm:$0xff]
    %v9682 = vld [vmem:[#allocation8 + $0x1a8] sm:$0xff]
    %v9683 = vld [vmem:[#allocation8 + $0x1b0] sm:$0xff]
    %v9684 = vld [vmem:[#allocation8 + $0x1b8] sm:$0xff]
    %v9685 = vld [vmem:[#allocation8 + $0x1c0] sm:$0xff]
    %v9686 = vld [vmem:[#allocation8 + $0x1c8] sm:$0xff]
    %v9687 = vld [vmem:[#allocation8 + $0x1d0] sm:$0xff]
    %v9688 = vld [vmem:[#allocation8 + $0x1d8] sm:$0xff]
    %v9689 = vld [vmem:[#allocation8 + $0x1e0] sm:$0xff]
    %v9690 = vld [vmem:[#allocation8 + $0x1e8] sm:$0xff]
    %v9691 = vld [vmem:[#allocation8 + $0x1f0] sm:$0xff]
    %v9692 = vld [vmem:[#allocation8 + $0x1f8] sm:$0xff]
    %v9693 = vld [vmem:[#allocation8 + $0x200] sm:$0xff]
    %v9694 = vld [vmem:[#allocation8 + $0x208] sm:$0xff]
    %v9695 = vld [vmem:[#allocation8 + $0x210] sm:$0xff]
    %v9696 = vld [vmem:[#allocation8 + $0x218] sm:$0xff]
    %v9697 = vld [vmem:[#allocation8 + $0x220] sm:$0xff]
    %v9698 = vld [vmem:[#allocation8 + $0x228] sm:$0xff]
    %v9699 = vld [vmem:[#allocation8 + $0x230] sm:$0xff]
    %v9700 = vld [vmem:[#allocation8 + $0x238] sm:$0xff]
    %v9701 = vld [vmem:[#allocation8 + $0x240] sm:$0xff]
    %v9702 = vld [vmem:[#allocation8 + $0x248] sm:$0xff]
    %v9703 = vld [vmem:[#allocation8 + $0x250] sm:$0xff]
    %v9704 = vld [vmem:[#allocation8 + $0x258] sm:$0xff]
    %v9705 = vld [vmem:[#allocation8 + $0x260] sm:$0xff]
    %v9706 = vld [vmem:[#allocation8 + $0x268] sm:$0xff]
    %v9707 = vld [vmem:[#allocation8 + $0x270] sm:$0xff]
    %v9708 = vld [vmem:[#allocation8 + $0x278] sm:$0xff]
    %v9709 = vld [vmem:[#allocation8 + $0x280] sm:$0xff]
    %v9710 = vld [vmem:[#allocation8 + $0x288] sm:$0xff]
    %v9711 = vld [vmem:[#allocation8 + $0x290] sm:$0xff]
    %v9712 = vld [vmem:[#allocation8 + $0x298] sm:$0xff]
    %v9713 = vld [vmem:[#allocation8 + $0x2a0] sm:$0xff]
    %v9714 = vld [vmem:[#allocation8 + $0x2a8] sm:$0xff]
    %v9715 = vld [vmem:[#allocation8 + $0x2b0] sm:$0xff]
    %v9716 = vld [vmem:[#allocation8 + $0x2b8] sm:$0xff]
    %v9717 = vld [vmem:[#allocation8 + $0x2c0] sm:$0xff]
    %v9718 = vld [vmem:[#allocation8 + $0x2c8] sm:$0xff]
    %v9719 = vld [vmem:[#allocation8 + $0x2d0] sm:$0xff]
    %v9720 = vld [vmem:[#allocation8 + $0x2d8] sm:$0xff]
    %v9721 = vld [vmem:[#allocation8 + $0x2e0] sm:$0xff]
    %v9722 = vld [vmem:[#allocation8 + $0x2e8] sm:$0xff]
    %v9723 = vld [vmem:[#allocation8 + $0x2f0] sm:$0xff]
    %v9724 = vld [vmem:[#allocation8 + $0x2f8] sm:$0xff]
    %v9725 = vld [vmem:[#allocation8 + $0x300] sm:$0xff]
    %v9726 = vld [vmem:[#allocation8 + $0x308] sm:$0xff]
    %v9727 = vld [vmem:[#allocation8 + $0x310] sm:$0xff]
    %v9728 = vld [vmem:[#allocation8 + $0x318] sm:$0xff]
    %v9729 = vld [vmem:[#allocation8 + $0x320] sm:$0xff]
    %v9730 = vld [vmem:[#allocation8 + $0x328] sm:$0xff]
    %v9731 = vld [vmem:[#allocation8 + $0x330] sm:$0xff]
    %v9732 = vld [vmem:[#allocation8 + $0x338] sm:$0xff]
    %v9733 = vld [vmem:[#allocation8 + $0x340] sm:$0xff]
    %v9734 = vld [vmem:[#allocation8 + $0x348] sm:$0xff]
    %v9735 = vld [vmem:[#allocation8 + $0x350] sm:$0xff]
    %v9736 = vld [vmem:[#allocation8 + $0x358] sm:$0xff]
    %v9737 = vld [vmem:[#allocation8 + $0x360] sm:$0xff]
    %v9738 = vld [vmem:[#allocation8 + $0x368] sm:$0xff]
    %v9739 = vld [vmem:[#allocation8 + $0x370] sm:$0xff]
    %v9740 = vld [vmem:[#allocation8 + $0x378] sm:$0xff]
    %v9741 = vld [vmem:[#allocation8 + $0x380] sm:$0xff]
    %v9742 = vld [vmem:[#allocation8 + $0x388] sm:$0xff]
    %v9743 = vld [vmem:[#allocation8 + $0x390] sm:$0xff]
    %v9744 = vld [vmem:[#allocation8 + $0x398] sm:$0xff]
    %v9745 = vld [vmem:[#allocation8 + $0x3a0] sm:$0xff]
    %v9746 = vld [vmem:[#allocation8 + $0x3a8] sm:$0xff]
    %v9747 = vld [vmem:[#allocation8 + $0x3b0] sm:$0xff]
    %v9748 = vld [vmem:[#allocation8 + $0x3b8] sm:$0xff]
    %v9749 = vld [vmem:[#allocation8 + $0x3c0] sm:$0xff]
    %v9750 = vld [vmem:[#allocation8 + $0x3c8] sm:$0xff]
    %v9751 = vld [vmem:[#allocation8 + $0x3d0] sm:$0xff]
    %v9752 = vld [vmem:[#allocation8 + $0x3d8] sm:$0xff]
    %v9753 = vld [vmem:[#allocation8 + $0x3e0] sm:$0xff]
    %v9754 = vld [vmem:[#allocation8 + $0x3e8] sm:$0xff]
    %v9755 = vld [vmem:[#allocation8 + $0x3f0] sm:$0xff]
    %v9756 = vld [vmem:[#allocation8 + $0x3f8] sm:$0xff]
    %v9757 = vld [vmem:[#allocation8 + $0x400] sm:$0xff]
    %v9758 = vld [vmem:[#allocation8 + $0x408] sm:$0xff]
    %v9759 = vld [vmem:[#allocation8 + $0x410] sm:$0xff]
    %v9760 = vld [vmem:[#allocation8 + $0x418] sm:$0xff]
    %v9761 = vld [vmem:[#allocation8 + $0x420] sm:$0xff]
    %v9762 = vld [vmem:[#allocation8 + $0x428] sm:$0xff]
    %v9763 = vld [vmem:[#allocation8 + $0x430] sm:$0xff]
    %v9764 = vld [vmem:[#allocation8 + $0x438] sm:$0xff]
    %v9765 = vld [vmem:[#allocation8 + $0x440] sm:$0xff]
    %v9766 = vld [vmem:[#allocation8 + $0x448] sm:$0xff]
    %v9767 = vld [vmem:[#allocation8 + $0x450] sm:$0xff]
    %v9768 = vld [vmem:[#allocation8 + $0x458] sm:$0xff]
    %v9769 = vld [vmem:[#allocation8 + $0x460] sm:$0xff]
    %v9770 = vld [vmem:[#allocation8 + $0x468] sm:$0xff]
    %v9771 = vld [vmem:[#allocation8 + $0x470] sm:$0xff]
    %v9772 = vld [vmem:[#allocation8 + $0x478] sm:$0xff]
    %v9773 = vld [vmem:[#allocation8 + $0x480] sm:$0xff]
    %v9774 = vld [vmem:[#allocation8 + $0x488] sm:$0xff]
    %v9775 = vld [vmem:[#allocation8 + $0x490] sm:$0xff]
    %v9776 = vld [vmem:[#allocation8 + $0x498] sm:$0xff]
    %v9777 = vld [vmem:[#allocation8 + $0x4a0] sm:$0xff]
    %v9778 = vld [vmem:[#allocation8 + $0x4a8] sm:$0xff]
    %v9779 = vld [vmem:[#allocation8 + $0x4b0] sm:$0xff]
    %v9780 = vld [vmem:[#allocation8 + $0x4b8] sm:$0xff]
    %v9781 = vld [vmem:[#allocation8 + $0x4c0] sm:$0xff]
    %v9782 = vld [vmem:[#allocation8 + $0x4c8] sm:$0xff]
    %v9783 = vld [vmem:[#allocation8 + $0x4d0] sm:$0xff]
    %v9784 = vld [vmem:[#allocation8 + $0x4d8] sm:$0xff]
    %v9785 = vld [vmem:[#allocation8 + $0x4e0] sm:$0xff]
    %v9786 = vld [vmem:[#allocation8 + $0x4e8] sm:$0xff]
    %v9787 = vld [vmem:[#allocation8 + $0x4f0] sm:$0xff]
    %v9788 = vld [vmem:[#allocation8 + $0x4f8] sm:$0xff]
    %v9789 = vld [vmem:[#allocation8 + $0x500] sm:$0xff]
    %v9790 = vld [vmem:[#allocation8 + $0x508] sm:$0xff]
    %v9791 = vld [vmem:[#allocation8 + $0x510] sm:$0xff]
    %v9792 = vld [vmem:[#allocation8 + $0x518] sm:$0xff]
    %v9793 = vld [vmem:[#allocation8 + $0x520] sm:$0xff]
    %v9794 = vld [vmem:[#allocation8 + $0x528] sm:$0xff]
    %v9795 = vld [vmem:[#allocation8 + $0x530] sm:$0xff]
    %v9796 = vld [vmem:[#allocation8 + $0x538] sm:$0xff]
    %v9797 = vld [vmem:[#allocation8 + $0x540] sm:$0xff]
    %v9798 = vld [vmem:[#allocation8 + $0x548] sm:$0xff]
    %v9799 = vld [vmem:[#allocation8 + $0x550] sm:$0xff]
    %v9800 = vld [vmem:[#allocation8 + $0x558] sm:$0xff]
    %v9801 = vld [vmem:[#allocation8 + $0x560] sm:$0xff]
    %v9802 = vld [vmem:[#allocation8 + $0x568] sm:$0xff]
    %v9803 = vld [vmem:[#allocation8 + $0x570] sm:$0xff]
    %v9804 = vld [vmem:[#allocation8 + $0x578] sm:$0xff]
    %v9805 = vld [vmem:[#allocation8 + $0x580] sm:$0xff]
    %v9806 = vld [vmem:[#allocation8 + $0x588] sm:$0xff]
    %v9807 = vld [vmem:[#allocation8 + $0x590] sm:$0xff]
    %v9808 = vld [vmem:[#allocation8 + $0x598] sm:$0xff]
    %v9809 = vld [vmem:[#allocation8 + $0x5a0] sm:$0xff]
    %v9810 = vld [vmem:[#allocation8 + $0x5a8] sm:$0xff]
    %v9811 = vld [vmem:[#allocation8 + $0x5b0] sm:$0xff]
    %v9812 = vld [vmem:[#allocation8 + $0x5b8] sm:$0xff]
    %v9813 = vld [vmem:[#allocation8 + $0x5c0] sm:$0xff]
    %v9814 = vld [vmem:[#allocation8 + $0x5c8] sm:$0xff]
    %v9815 = vld [vmem:[#allocation8 + $0x5d0] sm:$0xff]
    %v9816 = vld [vmem:[#allocation8 + $0x5d8] sm:$0xff]
    %v9817 = vld [vmem:[#allocation8 + $0x5e0] sm:$0xff]
    %v9818 = vld [vmem:[#allocation8 + $0x5e8] sm:$0xff]
    %v9819 = vld [vmem:[#allocation8 + $0x5f0] sm:$0xff]
    %v9820 = vld [vmem:[#allocation8 + $0x5f8] sm:$0xff]
    %v9821 = vld [vmem:[#allocation8 + $0x600] sm:$0xff]
    %v9822 = vld [vmem:[#allocation8 + $0x608] sm:$0xff]
    %v9823 = vld [vmem:[#allocation8 + $0x610] sm:$0xff]
    %v9824 = vld [vmem:[#allocation8 + $0x618] sm:$0xff]
    %v9825 = vld [vmem:[#allocation8 + $0x620] sm:$0xff]
    %v9826 = vld [vmem:[#allocation8 + $0x628] sm:$0xff]
    %v9827 = vld [vmem:[#allocation8 + $0x630] sm:$0xff]
    %v9828 = vld [vmem:[#allocation8 + $0x638] sm:$0xff]
    %v9829 = vld [vmem:[#allocation8 + $0x640] sm:$0xff]
    %v9830 = vld [vmem:[#allocation8 + $0x648] sm:$0xff]
    %v9831 = vld [vmem:[#allocation8 + $0x650] sm:$0xff]
    %v9832 = vld [vmem:[#allocation8 + $0x658] sm:$0xff]
    %v9833 = vld [vmem:[#allocation8 + $0x660] sm:$0xff]
    %v9834 = vld [vmem:[#allocation8 + $0x668] sm:$0xff]
    %v9835 = vld [vmem:[#allocation8 + $0x670] sm:$0xff]
    %v9836 = vld [vmem:[#allocation8 + $0x678] sm:$0xff]
    %v9837 = vld [vmem:[#allocation8 + $0x680] sm:$0xff]
    %v9838 = vld [vmem:[#allocation8 + $0x688] sm:$0xff]
    %v9839 = vld [vmem:[#allocation8 + $0x690] sm:$0xff]
    %v9840 = vld [vmem:[#allocation8 + $0x698] sm:$0xff]
    %v9841 = vld [vmem:[#allocation8 + $0x6a0] sm:$0xff]
    %v9842 = vld [vmem:[#allocation8 + $0x6a8] sm:$0xff]
    %v9843 = vld [vmem:[#allocation8 + $0x6b0] sm:$0xff]
    %v9844 = vld [vmem:[#allocation8 + $0x6b8] sm:$0xff]
    %v9845 = vld [vmem:[#allocation8 + $0x6c0] sm:$0xff]
    %v9846 = vld [vmem:[#allocation8 + $0x6c8] sm:$0xff]
    %v9847 = vld [vmem:[#allocation8 + $0x6d0] sm:$0xff]
    %v9848 = vld [vmem:[#allocation8 + $0x6d8] sm:$0xff]
    %v9849 = vld [vmem:[#allocation8 + $0x6e0] sm:$0xff]
    %v9850 = vld [vmem:[#allocation8 + $0x6e8] sm:$0xff]
    %v9851 = vld [vmem:[#allocation8 + $0x6f0] sm:$0xff]
    %v9852 = vld [vmem:[#allocation8 + $0x6f8] sm:$0xff]
    %v9853 = vld [vmem:[#allocation8 + $0x700] sm:$0xff]
    %v9854 = vld [vmem:[#allocation8 + $0x708] sm:$0xff]
    %v9855 = vld [vmem:[#allocation8 + $0x710] sm:$0xff]
    %v9856 = vld [vmem:[#allocation8 + $0x718] sm:$0xff]
    %v9857 = vld [vmem:[#allocation8 + $0x720] sm:$0xff]
    %v9858 = vld [vmem:[#allocation8 + $0x728] sm:$0xff]
    %v9859 = vld [vmem:[#allocation8 + $0x730] sm:$0xff]
    %v9860 = vld [vmem:[#allocation8 + $0x738] sm:$0xff]
    %v9861 = vld [vmem:[#allocation8 + $0x740] sm:$0xff]
    %v9862 = vld [vmem:[#allocation8 + $0x748] sm:$0xff]
    %v9863 = vld [vmem:[#allocation8 + $0x750] sm:$0xff]
    %v9864 = vld [vmem:[#allocation8 + $0x758] sm:$0xff]
    %v9865 = vld [vmem:[#allocation8 + $0x760] sm:$0xff]
    %v9866 = vld [vmem:[#allocation8 + $0x768] sm:$0xff]
    %v9867 = vld [vmem:[#allocation8 + $0x770] sm:$0xff]
    %v9868 = vld [vmem:[#allocation8 + $0x778] sm:$0xff]
    %v9869 = vld [vmem:[#allocation8 + $0x780] sm:$0xff]
    %v9870 = vld [vmem:[#allocation8 + $0x788] sm:$0xff]
    %v9871 = vld [vmem:[#allocation8 + $0x790] sm:$0xff]
    %v9872 = vld [vmem:[#allocation8 + $0x798] sm:$0xff]
    %v9873 = vld [vmem:[#allocation8 + $0x7a0] sm:$0xff]
    %v9874 = vld [vmem:[#allocation8 + $0x7a8] sm:$0xff]
    %v9875 = vld [vmem:[#allocation8 + $0x7b0] sm:$0xff]
    %v9876 = vld [vmem:[#allocation8 + $0x7b8] sm:$0xff]
    %v9877 = vld [vmem:[#allocation8 + $0x7c0] sm:$0xff]
    %v9878 = vld [vmem:[#allocation8 + $0x7c8] sm:$0xff]
    %v9879 = vld [vmem:[#allocation8 + $0x7d0] sm:$0xff]
    %v9880 = vld [vmem:[#allocation8 + $0x7d8] sm:$0xff]
    %v9881 = vld [vmem:[#allocation8 + $0x7e0] sm:$0xff]
    %v9882 = vld [vmem:[#allocation8 + $0x7e8] sm:$0xff]
    %v9883 = vld [vmem:[#allocation8 + $0x7f0] sm:$0xff]
    %v9884 = vld [vmem:[#allocation8 + $0x7f8] sm:$0xff]
    %v9886 = vlaneseq
    %v9887 = vshrl.u32 %v9886, 7
    %v9888 = vsub.s32 0, %v9887
    %v9889 = vrot.slane %v242, %v9888
    %v9890 = vlaneseq
    %v9891 = vshrl.u32 %v9890, 7
    %v9892 = vsub.s32 1, %v9891
    %v9893 = vrot.slane %v242, %v9892
    %v9894 = vlaneseq
    %v9895 = vshrl.u32 %v9894, 7
    %v9896 = vsub.s32 2, %v9895
    %v9897 = vrot.slane %v242, %v9896
    %v9898 = vlaneseq
    %v9899 = vshrl.u32 %v9898, 7
    %v9900 = vsub.s32 3, %v9899
    %v9901 = vrot.slane %v242, %v9900
    %v10162 = vunpack.c.l.b16 %v9629
    %v10163 = vunpack.c.h.b16 %v9629
    %v10164 = vunpack.c.l.b16 %v9630
    %v10165 = vunpack.c.h.b16 %v9630
    %v10166 = vunpack.c.l.b16 %v9631
    %v10167 = vunpack.c.h.b16 %v9631
    %v10168 = vunpack.c.l.b16 %v9632
    %v10169 = vunpack.c.h.b16 %v9632
    %v10170 = vunpack.c.l.b16 %v9633
    %v10171 = vunpack.c.h.b16 %v9633
    %v10172 = vunpack.c.l.b16 %v9634
    %v10173 = vunpack.c.h.b16 %v9634
    %v10174 = vunpack.c.l.b16 %v9635
    %v10175 = vunpack.c.h.b16 %v9635
    %v10176 = vunpack.c.l.b16 %v9636
    %v10177 = vunpack.c.h.b16 %v9636
    %v10178 = vunpack.c.l.b16 %v9637
    %v10179 = vunpack.c.h.b16 %v9637
    %v10180 = vunpack.c.l.b16 %v9638
    %v10181 = vunpack.c.h.b16 %v9638
    %v10182 = vunpack.c.l.b16 %v9639
    %v10183 = vunpack.c.h.b16 %v9639
    %v10184 = vunpack.c.l.b16 %v9640
    %v10185 = vunpack.c.h.b16 %v9640
    %v10186 = vunpack.c.l.b16 %v9641
    %v10187 = vunpack.c.h.b16 %v9641
    %v10188 = vunpack.c.l.b16 %v9642
    %v10189 = vunpack.c.h.b16 %v9642
    %v10190 = vunpack.c.l.b16 %v9643
    %v10191 = vunpack.c.h.b16 %v9643
    %v10192 = vunpack.c.l.b16 %v9644
    %v10193 = vunpack.c.h.b16 %v9644
    %v10194 = vunpack.c.l.b16 %v9645
    %v10195 = vunpack.c.h.b16 %v9645
    %v10196 = vunpack.c.l.b16 %v9646
    %v10197 = vunpack.c.h.b16 %v9646
    %v10198 = vunpack.c.l.b16 %v9647
    %v10199 = vunpack.c.h.b16 %v9647
    %v10200 = vunpack.c.l.b16 %v9648
    %v10201 = vunpack.c.h.b16 %v9648
    %v10202 = vunpack.c.l.b16 %v9649
    %v10203 = vunpack.c.h.b16 %v9649
    %v10204 = vunpack.c.l.b16 %v9650
    %v10205 = vunpack.c.h.b16 %v9650
    %v10206 = vunpack.c.l.b16 %v9651
    %v10207 = vunpack.c.h.b16 %v9651
    %v10208 = vunpack.c.l.b16 %v9652
    %v10209 = vunpack.c.h.b16 %v9652
    %v10210 = vunpack.c.l.b16 %v9653
    %v10211 = vunpack.c.h.b16 %v9653
    %v10212 = vunpack.c.l.b16 %v9654
    %v10213 = vunpack.c.h.b16 %v9654
    %v10214 = vunpack.c.l.b16 %v9655
    %v10215 = vunpack.c.h.b16 %v9655
    %v10216 = vunpack.c.l.b16 %v9656
    %v10217 = vunpack.c.h.b16 %v9656
    %v10218 = vunpack.c.l.b16 %v9657
    %v10219 = vunpack.c.h.b16 %v9657
    %v10220 = vunpack.c.l.b16 %v9658
    %v10221 = vunpack.c.h.b16 %v9658
    %v10222 = vunpack.c.l.b16 %v9659
    %v10223 = vunpack.c.h.b16 %v9659
    %v10224 = vunpack.c.l.b16 %v9660
    %v10225 = vunpack.c.h.b16 %v9660
    %v10226 = vunpack.c.l.b16 %v9661
    %v10227 = vunpack.c.h.b16 %v9661
    %v10228 = vunpack.c.l.b16 %v9662
    %v10229 = vunpack.c.h.b16 %v9662
    %v10230 = vunpack.c.l.b16 %v9663
    %v10231 = vunpack.c.h.b16 %v9663
    %v10232 = vunpack.c.l.b16 %v9664
    %v10233 = vunpack.c.h.b16 %v9664
    %v10234 = vunpack.c.l.b16 %v9665
    %v10235 = vunpack.c.h.b16 %v9665
    %v10236 = vunpack.c.l.b16 %v9666
    %v10237 = vunpack.c.h.b16 %v9666
    %v10238 = vunpack.c.l.b16 %v9667
    %v10239 = vunpack.c.h.b16 %v9667
    %v10240 = vunpack.c.l.b16 %v9668
    %v10241 = vunpack.c.h.b16 %v9668
    %v10242 = vunpack.c.l.b16 %v9669
    %v10243 = vunpack.c.h.b16 %v9669
    %v10244 = vunpack.c.l.b16 %v9670
    %v10245 = vunpack.c.h.b16 %v9670
    %v10246 = vunpack.c.l.b16 %v9671
    %v10247 = vunpack.c.h.b16 %v9671
    %v10248 = vunpack.c.l.b16 %v9672
    %v10249 = vunpack.c.h.b16 %v9672
    %v10250 = vunpack.c.l.b16 %v9673
    %v10251 = vunpack.c.h.b16 %v9673
    %v10252 = vunpack.c.l.b16 %v9674
    %v10253 = vunpack.c.h.b16 %v9674
    %v10254 = vunpack.c.l.b16 %v9675
    %v10255 = vunpack.c.h.b16 %v9675
    %v10256 = vunpack.c.l.b16 %v9676
    %v10257 = vunpack.c.h.b16 %v9676
    %v10258 = vunpack.c.l.b16 %v9677
    %v10259 = vunpack.c.h.b16 %v9677
    %v10260 = vunpack.c.l.b16 %v9678
    %v10261 = vunpack.c.h.b16 %v9678
    %v10262 = vunpack.c.l.b16 %v9679
    %v10263 = vunpack.c.h.b16 %v9679
    %v10264 = vunpack.c.l.b16 %v9680
    %v10265 = vunpack.c.h.b16 %v9680
    %v10266 = vunpack.c.l.b16 %v9681
    %v10267 = vunpack.c.h.b16 %v9681
    %v10268 = vunpack.c.l.b16 %v9682
    %v10269 = vunpack.c.h.b16 %v9682
    %v10270 = vunpack.c.l.b16 %v9683
    %v10271 = vunpack.c.h.b16 %v9683
    %v10272 = vunpack.c.l.b16 %v9684
    %v10273 = vunpack.c.h.b16 %v9684
    %v10274 = vunpack.c.l.b16 %v9685
    %v10275 = vunpack.c.h.b16 %v9685
    %v10276 = vunpack.c.l.b16 %v9686
    %v10277 = vunpack.c.h.b16 %v9686
    %v10278 = vunpack.c.l.b16 %v9687
    %v10279 = vunpack.c.h.b16 %v9687
    %v10280 = vunpack.c.l.b16 %v9688
    %v10281 = vunpack.c.h.b16 %v9688
    %v10282 = vunpack.c.l.b16 %v9689
    %v10283 = vunpack.c.h.b16 %v9689
    %v10284 = vunpack.c.l.b16 %v9690
    %v10285 = vunpack.c.h.b16 %v9690
    %v10286 = vunpack.c.l.b16 %v9691
    %v10287 = vunpack.c.h.b16 %v9691
    %v10288 = vunpack.c.l.b16 %v9692
    %v10289 = vunpack.c.h.b16 %v9692
    %v10290 = vunpack.c.l.b16 %v9693
    %v10291 = vunpack.c.h.b16 %v9693
    %v10292 = vunpack.c.l.b16 %v9694
    %v10293 = vunpack.c.h.b16 %v9694
    %v10294 = vunpack.c.l.b16 %v9695
    %v10295 = vunpack.c.h.b16 %v9695
    %v10296 = vunpack.c.l.b16 %v9696
    %v10297 = vunpack.c.h.b16 %v9696
    %v10298 = vunpack.c.l.b16 %v9697
    %v10299 = vunpack.c.h.b16 %v9697
    %v10300 = vunpack.c.l.b16 %v9698
    %v10301 = vunpack.c.h.b16 %v9698
    %v10302 = vunpack.c.l.b16 %v9699
    %v10303 = vunpack.c.h.b16 %v9699
    %v10304 = vunpack.c.l.b16 %v9700
    %v10305 = vunpack.c.h.b16 %v9700
    %v10306 = vunpack.c.l.b16 %v9701
    %v10307 = vunpack.c.h.b16 %v9701
    %v10308 = vunpack.c.l.b16 %v9702
    %v10309 = vunpack.c.h.b16 %v9702
    %v10310 = vunpack.c.l.b16 %v9703
    %v10311 = vunpack.c.h.b16 %v9703
    %v10312 = vunpack.c.l.b16 %v9704
    %v10313 = vunpack.c.h.b16 %v9704
    %v10314 = vunpack.c.l.b16 %v9705
    %v10315 = vunpack.c.h.b16 %v9705
    %v10316 = vunpack.c.l.b16 %v9706
    %v10317 = vunpack.c.h.b16 %v9706
    %v10318 = vunpack.c.l.b16 %v9707
    %v10319 = vunpack.c.h.b16 %v9707
    %v10320 = vunpack.c.l.b16 %v9708
    %v10321 = vunpack.c.h.b16 %v9708
    %v10322 = vunpack.c.l.b16 %v9709
    %v10323 = vunpack.c.h.b16 %v9709
    %v10324 = vunpack.c.l.b16 %v9710
    %v10325 = vunpack.c.h.b16 %v9710
    %v10326 = vunpack.c.l.b16 %v9711
    %v10327 = vunpack.c.h.b16 %v9711
    %v10328 = vunpack.c.l.b16 %v9712
    %v10329 = vunpack.c.h.b16 %v9712
    %v10330 = vunpack.c.l.b16 %v9713
    %v10331 = vunpack.c.h.b16 %v9713
    %v10332 = vunpack.c.l.b16 %v9714
    %v10333 = vunpack.c.h.b16 %v9714
    %v10334 = vunpack.c.l.b16 %v9715
    %v10335 = vunpack.c.h.b16 %v9715
    %v10336 = vunpack.c.l.b16 %v9716
    %v10337 = vunpack.c.h.b16 %v9716
    %v10338 = vunpack.c.l.b16 %v9717
    %v10339 = vunpack.c.h.b16 %v9717
    %v10340 = vunpack.c.l.b16 %v9718
    %v10341 = vunpack.c.h.b16 %v9718
    %v10342 = vunpack.c.l.b16 %v9719
    %v10343 = vunpack.c.h.b16 %v9719
    %v10344 = vunpack.c.l.b16 %v9720
    %v10345 = vunpack.c.h.b16 %v9720
    %v10346 = vunpack.c.l.b16 %v9721
    %v10347 = vunpack.c.h.b16 %v9721
    %v10348 = vunpack.c.l.b16 %v9722
    %v10349 = vunpack.c.h.b16 %v9722
    %v10350 = vunpack.c.l.b16 %v9723
    %v10351 = vunpack.c.h.b16 %v9723
    %v10352 = vunpack.c.l.b16 %v9724
    %v10353 = vunpack.c.h.b16 %v9724
    %v10354 = vunpack.c.l.b16 %v9725
    %v10355 = vunpack.c.h.b16 %v9725
    %v10356 = vunpack.c.l.b16 %v9726
    %v10357 = vunpack.c.h.b16 %v9726
    %v10358 = vunpack.c.l.b16 %v9727
    %v10359 = vunpack.c.h.b16 %v9727
    %v10360 = vunpack.c.l.b16 %v9728
    %v10361 = vunpack.c.h.b16 %v9728
    %v10362 = vunpack.c.l.b16 %v9729
    %v10363 = vunpack.c.h.b16 %v9729
    %v10364 = vunpack.c.l.b16 %v9730
    %v10365 = vunpack.c.h.b16 %v9730
    %v10366 = vunpack.c.l.b16 %v9731
    %v10367 = vunpack.c.h.b16 %v9731
    %v10368 = vunpack.c.l.b16 %v9732
    %v10369 = vunpack.c.h.b16 %v9732
    %v10370 = vunpack.c.l.b16 %v9733
    %v10371 = vunpack.c.h.b16 %v9733
    %v10372 = vunpack.c.l.b16 %v9734
    %v10373 = vunpack.c.h.b16 %v9734
    %v10374 = vunpack.c.l.b16 %v9735
    %v10375 = vunpack.c.h.b16 %v9735
    %v10376 = vunpack.c.l.b16 %v9736
    %v10377 = vunpack.c.h.b16 %v9736
    %v10378 = vunpack.c.l.b16 %v9737
    %v10379 = vunpack.c.h.b16 %v9737
    %v10380 = vunpack.c.l.b16 %v9738
    %v10381 = vunpack.c.h.b16 %v9738
    %v10382 = vunpack.c.l.b16 %v9739
    %v10383 = vunpack.c.h.b16 %v9739
    %v10384 = vunpack.c.l.b16 %v9740
    %v10385 = vunpack.c.h.b16 %v9740
    %v10386 = vunpack.c.l.b16 %v9741
    %v10387 = vunpack.c.h.b16 %v9741
    %v10388 = vunpack.c.l.b16 %v9742
    %v10389 = vunpack.c.h.b16 %v9742
    %v10390 = vunpack.c.l.b16 %v9743
    %v10391 = vunpack.c.h.b16 %v9743
    %v10392 = vunpack.c.l.b16 %v9744
    %v10393 = vunpack.c.h.b16 %v9744
    %v10394 = vunpack.c.l.b16 %v9745
    %v10395 = vunpack.c.h.b16 %v9745
    %v10396 = vunpack.c.l.b16 %v9746
    %v10397 = vunpack.c.h.b16 %v9746
    %v10398 = vunpack.c.l.b16 %v9747
    %v10399 = vunpack.c.h.b16 %v9747
    %v10400 = vunpack.c.l.b16 %v9748
    %v10401 = vunpack.c.h.b16 %v9748
    %v10402 = vunpack.c.l.b16 %v9749
    %v10403 = vunpack.c.h.b16 %v9749
    %v10404 = vunpack.c.l.b16 %v9750
    %v10405 = vunpack.c.h.b16 %v9750
    %v10406 = vunpack.c.l.b16 %v9751
    %v10407 = vunpack.c.h.b16 %v9751
    %v10408 = vunpack.c.l.b16 %v9752
    %v10409 = vunpack.c.h.b16 %v9752
    %v10410 = vunpack.c.l.b16 %v9753
    %v10411 = vunpack.c.h.b16 %v9753
    %v10412 = vunpack.c.l.b16 %v9754
    %v10413 = vunpack.c.h.b16 %v9754
    %v10414 = vunpack.c.l.b16 %v9755
    %v10415 = vunpack.c.h.b16 %v9755
    %v10416 = vunpack.c.l.b16 %v9756
    %v10417 = vunpack.c.h.b16 %v9756
    %v10418 = vunpack.c.l.b16 %v9757
    %v10419 = vunpack.c.h.b16 %v9757
    %v10420 = vunpack.c.l.b16 %v9758
    %v10421 = vunpack.c.h.b16 %v9758
    %v10422 = vunpack.c.l.b16 %v9759
    %v10423 = vunpack.c.h.b16 %v9759
    %v10424 = vunpack.c.l.b16 %v9760
    %v10425 = vunpack.c.h.b16 %v9760
    %v10426 = vunpack.c.l.b16 %v9761
    %v10427 = vunpack.c.h.b16 %v9761
    %v10428 = vunpack.c.l.b16 %v9762
    %v10429 = vunpack.c.h.b16 %v9762
    %v10430 = vunpack.c.l.b16 %v9763
    %v10431 = vunpack.c.h.b16 %v9763
    %v10432 = vunpack.c.l.b16 %v9764
    %v10433 = vunpack.c.h.b16 %v9764
    %v10434 = vunpack.c.l.b16 %v9765
    %v10435 = vunpack.c.h.b16 %v9765
    %v10436 = vunpack.c.l.b16 %v9766
    %v10437 = vunpack.c.h.b16 %v9766
    %v10438 = vunpack.c.l.b16 %v9767
    %v10439 = vunpack.c.h.b16 %v9767
    %v10440 = vunpack.c.l.b16 %v9768
    %v10441 = vunpack.c.h.b16 %v9768
    %v10442 = vunpack.c.l.b16 %v9769
    %v10443 = vunpack.c.h.b16 %v9769
    %v10444 = vunpack.c.l.b16 %v9770
    %v10445 = vunpack.c.h.b16 %v9770
    %v10446 = vunpack.c.l.b16 %v9771
    %v10447 = vunpack.c.h.b16 %v9771
    %v10448 = vunpack.c.l.b16 %v9772
    %v10449 = vunpack.c.h.b16 %v9772
    %v10450 = vunpack.c.l.b16 %v9773
    %v10451 = vunpack.c.h.b16 %v9773
    %v10452 = vunpack.c.l.b16 %v9774
    %v10453 = vunpack.c.h.b16 %v9774
    %v10454 = vunpack.c.l.b16 %v9775
    %v10455 = vunpack.c.h.b16 %v9775
    %v10456 = vunpack.c.l.b16 %v9776
    %v10457 = vunpack.c.h.b16 %v9776
    %v10458 = vunpack.c.l.b16 %v9777
    %v10459 = vunpack.c.h.b16 %v9777
    %v10460 = vunpack.c.l.b16 %v9778
    %v10461 = vunpack.c.h.b16 %v9778
    %v10462 = vunpack.c.l.b16 %v9779
    %v10463 = vunpack.c.h.b16 %v9779
    %v10464 = vunpack.c.l.b16 %v9780
    %v10465 = vunpack.c.h.b16 %v9780
    %v10466 = vunpack.c.l.b16 %v9781
    %v10467 = vunpack.c.h.b16 %v9781
    %v10468 = vunpack.c.l.b16 %v9782
    %v10469 = vunpack.c.h.b16 %v9782
    %v10470 = vunpack.c.l.b16 %v9783
    %v10471 = vunpack.c.h.b16 %v9783
    %v10472 = vunpack.c.l.b16 %v9784
    %v10473 = vunpack.c.h.b16 %v9784
    %v10474 = vunpack.c.l.b16 %v9785
    %v10475 = vunpack.c.h.b16 %v9785
    %v10476 = vunpack.c.l.b16 %v9786
    %v10477 = vunpack.c.h.b16 %v9786
    %v10478 = vunpack.c.l.b16 %v9787
    %v10479 = vunpack.c.h.b16 %v9787
    %v10480 = vunpack.c.l.b16 %v9788
    %v10481 = vunpack.c.h.b16 %v9788
    %v10482 = vunpack.c.l.b16 %v9789
    %v10483 = vunpack.c.h.b16 %v9789
    %v10484 = vunpack.c.l.b16 %v9790
    %v10485 = vunpack.c.h.b16 %v9790
    %v10486 = vunpack.c.l.b16 %v9791
    %v10487 = vunpack.c.h.b16 %v9791
    %v10488 = vunpack.c.l.b16 %v9792
    %v10489 = vunpack.c.h.b16 %v9792
    %v10490 = vunpack.c.l.b16 %v9793
    %v10491 = vunpack.c.h.b16 %v9793
    %v10492 = vunpack.c.l.b16 %v9794
    %v10493 = vunpack.c.h.b16 %v9794
    %v10494 = vunpack.c.l.b16 %v9795
    %v10495 = vunpack.c.h.b16 %v9795
    %v10496 = vunpack.c.l.b16 %v9796
    %v10497 = vunpack.c.h.b16 %v9796
    %v10498 = vunpack.c.l.b16 %v9797
    %v10499 = vunpack.c.h.b16 %v9797
    %v10500 = vunpack.c.l.b16 %v9798
    %v10501 = vunpack.c.h.b16 %v9798
    %v10502 = vunpack.c.l.b16 %v9799
    %v10503 = vunpack.c.h.b16 %v9799
    %v10504 = vunpack.c.l.b16 %v9800
    %v10505 = vunpack.c.h.b16 %v9800
    %v10506 = vunpack.c.l.b16 %v9801
    %v10507 = vunpack.c.h.b16 %v9801
    %v10508 = vunpack.c.l.b16 %v9802
    %v10509 = vunpack.c.h.b16 %v9802
    %v10510 = vunpack.c.l.b16 %v9803
    %v10511 = vunpack.c.h.b16 %v9803
    %v10512 = vunpack.c.l.b16 %v9804
    %v10513 = vunpack.c.h.b16 %v9804
    %v10514 = vunpack.c.l.b16 %v9805
    %v10515 = vunpack.c.h.b16 %v9805
    %v10516 = vunpack.c.l.b16 %v9806
    %v10517 = vunpack.c.h.b16 %v9806
    %v10518 = vunpack.c.l.b16 %v9807
    %v10519 = vunpack.c.h.b16 %v9807
    %v10520 = vunpack.c.l.b16 %v9808
    %v10521 = vunpack.c.h.b16 %v9808
    %v10522 = vunpack.c.l.b16 %v9809
    %v10523 = vunpack.c.h.b16 %v9809
    %v10524 = vunpack.c.l.b16 %v9810
    %v10525 = vunpack.c.h.b16 %v9810
    %v10526 = vunpack.c.l.b16 %v9811
    %v10527 = vunpack.c.h.b16 %v9811
    %v10528 = vunpack.c.l.b16 %v9812
    %v10529 = vunpack.c.h.b16 %v9812
    %v10530 = vunpack.c.l.b16 %v9813
    %v10531 = vunpack.c.h.b16 %v9813
    %v10532 = vunpack.c.l.b16 %v9814
    %v10533 = vunpack.c.h.b16 %v9814
    %v10534 = vunpack.c.l.b16 %v9815
    %v10535 = vunpack.c.h.b16 %v9815
    %v10536 = vunpack.c.l.b16 %v9816
    %v10537 = vunpack.c.h.b16 %v9816
    %v10538 = vunpack.c.l.b16 %v9817
    %v10539 = vunpack.c.h.b16 %v9817
    %v10540 = vunpack.c.l.b16 %v9818
    %v10541 = vunpack.c.h.b16 %v9818
    %v10542 = vunpack.c.l.b16 %v9819
    %v10543 = vunpack.c.h.b16 %v9819
    %v10544 = vunpack.c.l.b16 %v9820
    %v10545 = vunpack.c.h.b16 %v9820
    %v10546 = vunpack.c.l.b16 %v9821
    %v10547 = vunpack.c.h.b16 %v9821
    %v10548 = vunpack.c.l.b16 %v9822
    %v10549 = vunpack.c.h.b16 %v9822
    %v10550 = vunpack.c.l.b16 %v9823
    %v10551 = vunpack.c.h.b16 %v9823
    %v10552 = vunpack.c.l.b16 %v9824
    %v10553 = vunpack.c.h.b16 %v9824
    %v10554 = vunpack.c.l.b16 %v9825
    %v10555 = vunpack.c.h.b16 %v9825
    %v10556 = vunpack.c.l.b16 %v9826
    %v10557 = vunpack.c.h.b16 %v9826
    %v10558 = vunpack.c.l.b16 %v9827
    %v10559 = vunpack.c.h.b16 %v9827
    %v10560 = vunpack.c.l.b16 %v9828
    %v10561 = vunpack.c.h.b16 %v9828
    %v10562 = vunpack.c.l.b16 %v9829
    %v10563 = vunpack.c.h.b16 %v9829
    %v10564 = vunpack.c.l.b16 %v9830
    %v10565 = vunpack.c.h.b16 %v9830
    %v10566 = vunpack.c.l.b16 %v9831
    %v10567 = vunpack.c.h.b16 %v9831
    %v10568 = vunpack.c.l.b16 %v9832
    %v10569 = vunpack.c.h.b16 %v9832
    %v10570 = vunpack.c.l.b16 %v9833
    %v10571 = vunpack.c.h.b16 %v9833
    %v10572 = vunpack.c.l.b16 %v9834
    %v10573 = vunpack.c.h.b16 %v9834
    %v10574 = vunpack.c.l.b16 %v9835
    %v10575 = vunpack.c.h.b16 %v9835
    %v10576 = vunpack.c.l.b16 %v9836
    %v10577 = vunpack.c.h.b16 %v9836
    %v10578 = vunpack.c.l.b16 %v9837
    %v10579 = vunpack.c.h.b16 %v9837
    %v10580 = vunpack.c.l.b16 %v9838
    %v10581 = vunpack.c.h.b16 %v9838
    %v10582 = vunpack.c.l.b16 %v9839
    %v10583 = vunpack.c.h.b16 %v9839
    %v10584 = vunpack.c.l.b16 %v9840
    %v10585 = vunpack.c.h.b16 %v9840
    %v10586 = vunpack.c.l.b16 %v9841
    %v10587 = vunpack.c.h.b16 %v9841
    %v10588 = vunpack.c.l.b16 %v9842
    %v10589 = vunpack.c.h.b16 %v9842
    %v10590 = vunpack.c.l.b16 %v9843
    %v10591 = vunpack.c.h.b16 %v9843
    %v10592 = vunpack.c.l.b16 %v9844
    %v10593 = vunpack.c.h.b16 %v9844
    %v10594 = vunpack.c.l.b16 %v9845
    %v10595 = vunpack.c.h.b16 %v9845
    %v10596 = vunpack.c.l.b16 %v9846
    %v10597 = vunpack.c.h.b16 %v9846
    %v10598 = vunpack.c.l.b16 %v9847
    %v10599 = vunpack.c.h.b16 %v9847
    %v10600 = vunpack.c.l.b16 %v9848
    %v10601 = vunpack.c.h.b16 %v9848
    %v10602 = vunpack.c.l.b16 %v9849
    %v10603 = vunpack.c.h.b16 %v9849
    %v10604 = vunpack.c.l.b16 %v9850
    %v10605 = vunpack.c.h.b16 %v9850
    %v10606 = vunpack.c.l.b16 %v9851
    %v10607 = vunpack.c.h.b16 %v9851
    %v10608 = vunpack.c.l.b16 %v9852
    %v10609 = vunpack.c.h.b16 %v9852
    %v10610 = vunpack.c.l.b16 %v9853
    %v10611 = vunpack.c.h.b16 %v9853
    %v10612 = vunpack.c.l.b16 %v9854
    %v10613 = vunpack.c.h.b16 %v9854
    %v10614 = vunpack.c.l.b16 %v9855
    %v10615 = vunpack.c.h.b16 %v9855
    %v10616 = vunpack.c.l.b16 %v9856
    %v10617 = vunpack.c.h.b16 %v9856
    %v10618 = vunpack.c.l.b16 %v9857
    %v10619 = vunpack.c.h.b16 %v9857
    %v10620 = vunpack.c.l.b16 %v9858
    %v10621 = vunpack.c.h.b16 %v9858
    %v10622 = vunpack.c.l.b16 %v9859
    %v10623 = vunpack.c.h.b16 %v9859
    %v10624 = vunpack.c.l.b16 %v9860
    %v10625 = vunpack.c.h.b16 %v9860
    %v10626 = vunpack.c.l.b16 %v9861
    %v10627 = vunpack.c.h.b16 %v9861
    %v10628 = vunpack.c.l.b16 %v9862
    %v10629 = vunpack.c.h.b16 %v9862
    %v10630 = vunpack.c.l.b16 %v9863
    %v10631 = vunpack.c.h.b16 %v9863
    %v10632 = vunpack.c.l.b16 %v9864
    %v10633 = vunpack.c.h.b16 %v9864
    %v10634 = vunpack.c.l.b16 %v9865
    %v10635 = vunpack.c.h.b16 %v9865
    %v10636 = vunpack.c.l.b16 %v9866
    %v10637 = vunpack.c.h.b16 %v9866
    %v10638 = vunpack.c.l.b16 %v9867
    %v10639 = vunpack.c.h.b16 %v9867
    %v10640 = vunpack.c.l.b16 %v9868
    %v10641 = vunpack.c.h.b16 %v9868
    %v10642 = vunpack.c.l.b16 %v9869
    %v10643 = vunpack.c.h.b16 %v9869
    %v10644 = vunpack.c.l.b16 %v9870
    %v10645 = vunpack.c.h.b16 %v9870
    %v10646 = vunpack.c.l.b16 %v9871
    %v10647 = vunpack.c.h.b16 %v9871
    %v10648 = vunpack.c.l.b16 %v9872
    %v10649 = vunpack.c.h.b16 %v9872
    %v10650 = vunpack.c.l.b16 %v9873
    %v10651 = vunpack.c.h.b16 %v9873
    %v10652 = vunpack.c.l.b16 %v9874
    %v10653 = vunpack.c.h.b16 %v9874
    %v10654 = vunpack.c.l.b16 %v9875
    %v10655 = vunpack.c.h.b16 %v9875
    %v10656 = vunpack.c.l.b16 %v9876
    %v10657 = vunpack.c.h.b16 %v9876
    %v10658 = vunpack.c.l.b16 %v9877
    %v10659 = vunpack.c.h.b16 %v9877
    %v10660 = vunpack.c.l.b16 %v9878
    %v10661 = vunpack.c.h.b16 %v9878
    %v10662 = vunpack.c.l.b16 %v9879
    %v10663 = vunpack.c.h.b16 %v9879
    %v10664 = vunpack.c.l.b16 %v9880
    %v10665 = vunpack.c.h.b16 %v9880
    %v10666 = vunpack.c.l.b16 %v9881
    %v10667 = vunpack.c.h.b16 %v9881
    %v10668 = vunpack.c.l.b16 %v9882
    %v10669 = vunpack.c.h.b16 %v9882
    %v10670 = vunpack.c.l.b16 %v9883
    %v10671 = vunpack.c.h.b16 %v9883
    %v10672 = vunpack.c.l.b16 %v9884
    %v10673 = vunpack.c.h.b16 %v9884
    %v10674 = vpack.c.b16 %v10166, %v10162
    %v10675 = vpack.c.b16 %v10167, %v10163
    %v10676 = vpack.c.b16 %v10168, %v10164
    %v10677 = vpack.c.b16 %v10169, %v10165
    %v10678 = vpack.c.b16 %v10174, %v10170
    %v10679 = vpack.c.b16 %v10175, %v10171
    %v10680 = vpack.c.b16 %v10176, %v10172
    %v10681 = vpack.c.b16 %v10177, %v10173
    %v10682 = vpack.c.b16 %v10182, %v10178
    %v10683 = vpack.c.b16 %v10183, %v10179
    %v10684 = vpack.c.b16 %v10184, %v10180
    %v10685 = vpack.c.b16 %v10185, %v10181
    %v10686 = vpack.c.b16 %v10190, %v10186
    %v10687 = vpack.c.b16 %v10191, %v10187
    %v10688 = vpack.c.b16 %v10192, %v10188
    %v10689 = vpack.c.b16 %v10193, %v10189
    %v10690 = vpack.c.b16 %v10198, %v10194
    %v10691 = vpack.c.b16 %v10199, %v10195
    %v10692 = vpack.c.b16 %v10200, %v10196
    %v10693 = vpack.c.b16 %v10201, %v10197
    %v10694 = vpack.c.b16 %v10206, %v10202
    %v10695 = vpack.c.b16 %v10207, %v10203
    %v10696 = vpack.c.b16 %v10208, %v10204
    %v10697 = vpack.c.b16 %v10209, %v10205
    %v10698 = vpack.c.b16 %v10214, %v10210
    %v10699 = vpack.c.b16 %v10215, %v10211
    %v10700 = vpack.c.b16 %v10216, %v10212
    %v10701 = vpack.c.b16 %v10217, %v10213
    %v10702 = vpack.c.b16 %v10222, %v10218
    %v10703 = vpack.c.b16 %v10223, %v10219
    %v10704 = vpack.c.b16 %v10224, %v10220
    %v10705 = vpack.c.b16 %v10225, %v10221
    %v10706 = vpack.c.b16 %v10230, %v10226
    %v10707 = vpack.c.b16 %v10231, %v10227
    %v10708 = vpack.c.b16 %v10232, %v10228
    %v10709 = vpack.c.b16 %v10233, %v10229
    %v10710 = vpack.c.b16 %v10238, %v10234
    %v10711 = vpack.c.b16 %v10239, %v10235
    %v10712 = vpack.c.b16 %v10240, %v10236
    %v10713 = vpack.c.b16 %v10241, %v10237
    %v10714 = vpack.c.b16 %v10246, %v10242
    %v10715 = vpack.c.b16 %v10247, %v10243
    %v10716 = vpack.c.b16 %v10248, %v10244
    %v10717 = vpack.c.b16 %v10249, %v10245
    %v10718 = vpack.c.b16 %v10254, %v10250
    %v10719 = vpack.c.b16 %v10255, %v10251
    %v10720 = vpack.c.b16 %v10256, %v10252
    %v10721 = vpack.c.b16 %v10257, %v10253
    %v10722 = vpack.c.b16 %v10262, %v10258
    %v10723 = vpack.c.b16 %v10263, %v10259
    %v10724 = vpack.c.b16 %v10264, %v10260
    %v10725 = vpack.c.b16 %v10265, %v10261
    %v10726 = vpack.c.b16 %v10270, %v10266
    %v10727 = vpack.c.b16 %v10271, %v10267
    %v10728 = vpack.c.b16 %v10272, %v10268
    %v10729 = vpack.c.b16 %v10273, %v10269
    %v10730 = vpack.c.b16 %v10278, %v10274
    %v10731 = vpack.c.b16 %v10279, %v10275
    %v10732 = vpack.c.b16 %v10280, %v10276
    %v10733 = vpack.c.b16 %v10281, %v10277
    %v10734 = vpack.c.b16 %v10286, %v10282
    %v10735 = vpack.c.b16 %v10287, %v10283
    %v10736 = vpack.c.b16 %v10288, %v10284
    %v10737 = vpack.c.b16 %v10289, %v10285
    %v10738 = vpack.c.b16 %v10294, %v10290
    %v10739 = vpack.c.b16 %v10295, %v10291
    %v10740 = vpack.c.b16 %v10296, %v10292
    %v10741 = vpack.c.b16 %v10297, %v10293
    %v10742 = vpack.c.b16 %v10302, %v10298
    %v10743 = vpack.c.b16 %v10303, %v10299
    %v10744 = vpack.c.b16 %v10304, %v10300
    %v10745 = vpack.c.b16 %v10305, %v10301
    %v10746 = vpack.c.b16 %v10310, %v10306
    %v10747 = vpack.c.b16 %v10311, %v10307
    %v10748 = vpack.c.b16 %v10312, %v10308
    %v10749 = vpack.c.b16 %v10313, %v10309
    %v10750 = vpack.c.b16 %v10318, %v10314
    %v10751 = vpack.c.b16 %v10319, %v10315
    %v10752 = vpack.c.b16 %v10320, %v10316
    %v10753 = vpack.c.b16 %v10321, %v10317
    %v10754 = vpack.c.b16 %v10326, %v10322
    %v10755 = vpack.c.b16 %v10327, %v10323
    %v10756 = vpack.c.b16 %v10328, %v10324
    %v10757 = vpack.c.b16 %v10329, %v10325
    %v10758 = vpack.c.b16 %v10334, %v10330
    %v10759 = vpack.c.b16 %v10335, %v10331
    %v10760 = vpack.c.b16 %v10336, %v10332
    %v10761 = vpack.c.b16 %v10337, %v10333
    %v10762 = vpack.c.b16 %v10342, %v10338
    %v10763 = vpack.c.b16 %v10343, %v10339
    %v10764 = vpack.c.b16 %v10344, %v10340
    %v10765 = vpack.c.b16 %v10345, %v10341
    %v10766 = vpack.c.b16 %v10350, %v10346
    %v10767 = vpack.c.b16 %v10351, %v10347
    %v10768 = vpack.c.b16 %v10352, %v10348
    %v10769 = vpack.c.b16 %v10353, %v10349
    %v10770 = vpack.c.b16 %v10358, %v10354
    %v10771 = vpack.c.b16 %v10359, %v10355
    %v10772 = vpack.c.b16 %v10360, %v10356
    %v10773 = vpack.c.b16 %v10361, %v10357
    %v10774 = vpack.c.b16 %v10366, %v10362
    %v10775 = vpack.c.b16 %v10367, %v10363
    %v10776 = vpack.c.b16 %v10368, %v10364
    %v10777 = vpack.c.b16 %v10369, %v10365
    %v10778 = vpack.c.b16 %v10374, %v10370
    %v10779 = vpack.c.b16 %v10375, %v10371
    %v10780 = vpack.c.b16 %v10376, %v10372
    %v10781 = vpack.c.b16 %v10377, %v10373
    %v10782 = vpack.c.b16 %v10382, %v10378
    %v10783 = vpack.c.b16 %v10383, %v10379
    %v10784 = vpack.c.b16 %v10384, %v10380
    %v10785 = vpack.c.b16 %v10385, %v10381
    %v10786 = vpack.c.b16 %v10390, %v10386
    %v10787 = vpack.c.b16 %v10391, %v10387
    %v10788 = vpack.c.b16 %v10392, %v10388
    %v10789 = vpack.c.b16 %v10393, %v10389
    %v10790 = vpack.c.b16 %v10398, %v10394
    %v10791 = vpack.c.b16 %v10399, %v10395
    %v10792 = vpack.c.b16 %v10400, %v10396
    %v10793 = vpack.c.b16 %v10401, %v10397
    %v10794 = vpack.c.b16 %v10406, %v10402
    %v10795 = vpack.c.b16 %v10407, %v10403
    %v10796 = vpack.c.b16 %v10408, %v10404
    %v10797 = vpack.c.b16 %v10409, %v10405
    %v10798 = vpack.c.b16 %v10414, %v10410
    %v10799 = vpack.c.b16 %v10415, %v10411
    %v10800 = vpack.c.b16 %v10416, %v10412
    %v10801 = vpack.c.b16 %v10417, %v10413
    %v10802 = vpack.c.b16 %v10422, %v10418
    %v10803 = vpack.c.b16 %v10423, %v10419
    %v10804 = vpack.c.b16 %v10424, %v10420
    %v10805 = vpack.c.b16 %v10425, %v10421
    %v10806 = vpack.c.b16 %v10430, %v10426
    %v10807 = vpack.c.b16 %v10431, %v10427
    %v10808 = vpack.c.b16 %v10432, %v10428
    %v10809 = vpack.c.b16 %v10433, %v10429
    %v10810 = vpack.c.b16 %v10438, %v10434
    %v10811 = vpack.c.b16 %v10439, %v10435
    %v10812 = vpack.c.b16 %v10440, %v10436
    %v10813 = vpack.c.b16 %v10441, %v10437
    %v10814 = vpack.c.b16 %v10446, %v10442
    %v10815 = vpack.c.b16 %v10447, %v10443
    %v10816 = vpack.c.b16 %v10448, %v10444
    %v10817 = vpack.c.b16 %v10449, %v10445
    %v10818 = vpack.c.b16 %v10454, %v10450
    %v10819 = vpack.c.b16 %v10455, %v10451
    %v10820 = vpack.c.b16 %v10456, %v10452
    %v10821 = vpack.c.b16 %v10457, %v10453
    %v10822 = vpack.c.b16 %v10462, %v10458
    %v10823 = vpack.c.b16 %v10463, %v10459
    %v10824 = vpack.c.b16 %v10464, %v10460
    %v10825 = vpack.c.b16 %v10465, %v10461
    %v10826 = vpack.c.b16 %v10470, %v10466
    %v10827 = vpack.c.b16 %v10471, %v10467
    %v10828 = vpack.c.b16 %v10472, %v10468
    %v10829 = vpack.c.b16 %v10473, %v10469
    %v10830 = vpack.c.b16 %v10478, %v10474
    %v10831 = vpack.c.b16 %v10479, %v10475
    %v10832 = vpack.c.b16 %v10480, %v10476
    %v10833 = vpack.c.b16 %v10481, %v10477
    %v10834 = vpack.c.b16 %v10486, %v10482
    %v10835 = vpack.c.b16 %v10487, %v10483
    %v10836 = vpack.c.b16 %v10488, %v10484
    %v10837 = vpack.c.b16 %v10489, %v10485
    %v10838 = vpack.c.b16 %v10494, %v10490
    %v10839 = vpack.c.b16 %v10495, %v10491
    %v10840 = vpack.c.b16 %v10496, %v10492
    %v10841 = vpack.c.b16 %v10497, %v10493
    %v10842 = vpack.c.b16 %v10502, %v10498
    %v10843 = vpack.c.b16 %v10503, %v10499
    %v10844 = vpack.c.b16 %v10504, %v10500
    %v10845 = vpack.c.b16 %v10505, %v10501
    %v10846 = vpack.c.b16 %v10510, %v10506
    %v10847 = vpack.c.b16 %v10511, %v10507
    %v10848 = vpack.c.b16 %v10512, %v10508
    %v10849 = vpack.c.b16 %v10513, %v10509
    %v10850 = vpack.c.b16 %v10518, %v10514
    %v10851 = vpack.c.b16 %v10519, %v10515
    %v10852 = vpack.c.b16 %v10520, %v10516
    %v10853 = vpack.c.b16 %v10521, %v10517
    %v10854 = vpack.c.b16 %v10526, %v10522
    %v10855 = vpack.c.b16 %v10527, %v10523
    %v10856 = vpack.c.b16 %v10528, %v10524
    %v10857 = vpack.c.b16 %v10529, %v10525
    %v10858 = vpack.c.b16 %v10534, %v10530
    %v10859 = vpack.c.b16 %v10535, %v10531
    %v10860 = vpack.c.b16 %v10536, %v10532
    %v10861 = vpack.c.b16 %v10537, %v10533
    %v10862 = vpack.c.b16 %v10542, %v10538
    %v10863 = vpack.c.b16 %v10543, %v10539
    %v10864 = vpack.c.b16 %v10544, %v10540
    %v10865 = vpack.c.b16 %v10545, %v10541
    %v10866 = vpack.c.b16 %v10550, %v10546
    %v10867 = vpack.c.b16 %v10551, %v10547
    %v10868 = vpack.c.b16 %v10552, %v10548
    %v10869 = vpack.c.b16 %v10553, %v10549
    %v10870 = vpack.c.b16 %v10558, %v10554
    %v10871 = vpack.c.b16 %v10559, %v10555
    %v10872 = vpack.c.b16 %v10560, %v10556
    %v10873 = vpack.c.b16 %v10561, %v10557
    %v10874 = vpack.c.b16 %v10566, %v10562
    %v10875 = vpack.c.b16 %v10567, %v10563
    %v10876 = vpack.c.b16 %v10568, %v10564
    %v10877 = vpack.c.b16 %v10569, %v10565
    %v10878 = vpack.c.b16 %v10574, %v10570
    %v10879 = vpack.c.b16 %v10575, %v10571
    %v10880 = vpack.c.b16 %v10576, %v10572
    %v10881 = vpack.c.b16 %v10577, %v10573
    %v10882 = vpack.c.b16 %v10582, %v10578
    %v10883 = vpack.c.b16 %v10583, %v10579
    %v10884 = vpack.c.b16 %v10584, %v10580
    %v10885 = vpack.c.b16 %v10585, %v10581
    %v10886 = vpack.c.b16 %v10590, %v10586
    %v10887 = vpack.c.b16 %v10591, %v10587
    %v10888 = vpack.c.b16 %v10592, %v10588
    %v10889 = vpack.c.b16 %v10593, %v10589
    %v10890 = vpack.c.b16 %v10598, %v10594
    %v10891 = vpack.c.b16 %v10599, %v10595
    %v10892 = vpack.c.b16 %v10600, %v10596
    %v10893 = vpack.c.b16 %v10601, %v10597
    %v10894 = vpack.c.b16 %v10606, %v10602
    %v10895 = vpack.c.b16 %v10607, %v10603
    %v10896 = vpack.c.b16 %v10608, %v10604
    %v10897 = vpack.c.b16 %v10609, %v10605
    %v10898 = vpack.c.b16 %v10614, %v10610
    %v10899 = vpack.c.b16 %v10615, %v10611
    %v10900 = vpack.c.b16 %v10616, %v10612
    %v10901 = vpack.c.b16 %v10617, %v10613
    %v10902 = vpack.c.b16 %v10622, %v10618
    %v10903 = vpack.c.b16 %v10623, %v10619
    %v10904 = vpack.c.b16 %v10624, %v10620
    %v10905 = vpack.c.b16 %v10625, %v10621
    %v10906 = vpack.c.b16 %v10630, %v10626
    %v10907 = vpack.c.b16 %v10631, %v10627
    %v10908 = vpack.c.b16 %v10632, %v10628
    %v10909 = vpack.c.b16 %v10633, %v10629
    %v10910 = vpack.c.b16 %v10638, %v10634
    %v10911 = vpack.c.b16 %v10639, %v10635
    %v10912 = vpack.c.b16 %v10640, %v10636
    %v10913 = vpack.c.b16 %v10641, %v10637
    %v10914 = vpack.c.b16 %v10646, %v10642
    %v10915 = vpack.c.b16 %v10647, %v10643
    %v10916 = vpack.c.b16 %v10648, %v10644
    %v10917 = vpack.c.b16 %v10649, %v10645
    %v10918 = vpack.c.b16 %v10654, %v10650
    %v10919 = vpack.c.b16 %v10655, %v10651
    %v10920 = vpack.c.b16 %v10656, %v10652
    %v10921 = vpack.c.b16 %v10657, %v10653
    %v10922 = vpack.c.b16 %v10662, %v10658
    %v10923 = vpack.c.b16 %v10663, %v10659
    %v10924 = vpack.c.b16 %v10664, %v10660
    %v10925 = vpack.c.b16 %v10665, %v10661
    %v10926 = vpack.c.b16 %v10670, %v10666
    %v10927 = vpack.c.b16 %v10671, %v10667
    %v10928 = vpack.c.b16 %v10672, %v10668
    %v10929 = vpack.c.b16 %v10673, %v10669
    %11186 = vmatprep.subr.bf16.mxu0 %v10675
    %11187 = vmatpush1.bf16.msra.mxu0 %v10674
    %11188 = vmatprep.subr.bf16.mxu0 %v10679
    %11189 = vmatpush1.bf16.msra.mxu0 %v10678
    %11190 = vmatprep.subr.bf16.mxu0 %v10683
    %11191 = vmatpush1.bf16.msra.mxu0 %v10682
    %11192 = vmatprep.subr.bf16.mxu0 %v10687
    %11193 = vmatpush1.bf16.msra.mxu0 %v10686
    %11194 = vmatprep.subr.bf16.mxu0 %v10691
    %11195 = vmatpush1.bf16.msra.mxu0 %v10690
    %11196 = vmatprep.subr.bf16.mxu0 %v10695
    %11197 = vmatpush1.bf16.msra.mxu0 %v10694
    %11198 = vmatprep.subr.bf16.mxu0 %v10699
    %11199 = vmatpush1.bf16.msra.mxu0 %v10698
    %11200 = vmatprep.subr.bf16.mxu0 %v10703
    %11201 = vmatpush1.bf16.msra.mxu0 %v10702
    %11202 = vmatprep.subr.bf16.mxu0 %v10707
    %11203 = vmatpush1.bf16.msra.mxu0 %v10706
    %11204 = vmatprep.subr.bf16.mxu0 %v10711
    %11205 = vmatpush1.bf16.msra.mxu0 %v10710
    %11206 = vmatprep.subr.bf16.mxu0 %v10715
    %11207 = vmatpush1.bf16.msra.mxu0 %v10714
    %11208 = vmatprep.subr.bf16.mxu0 %v10719
    %11209 = vmatpush1.bf16.msra.mxu0 %v10718
    %11210 = vmatprep.subr.bf16.mxu0 %v10723
    %11211 = vmatpush1.bf16.msra.mxu0 %v10722
    %11212 = vmatprep.subr.bf16.mxu0 %v10727
    %11213 = vmatpush1.bf16.msra.mxu0 %v10726
    %11214 = vmatprep.subr.bf16.mxu0 %v10731
    %11215 = vmatpush1.bf16.msra.mxu0 %v10730
    %11216 = vmatprep.subr.bf16.mxu0 %v10735
    %11217 = vmatpush1.bf16.msra.mxu0 %v10734
    %11218 = vmatprep.mubr.bf16.mxu0 %v9622
    %11219 = vmatmul.mubr.bf16.gmra.mrb[0].mxu0 %v9621
    %v11220 = vpop.f32.mrb[0].mxu0
    %v11221 = vadd.f32 %v9889, %v11220
    %v11222 = vpop.f32.mrb[0].mxu0
    %v11223 = vadd.f32 %v9893, %v11222
    %v11224 = vpop.f32.mrb[0].mxu0
    %v11225 = vpop.f32.mrb[0].mxu0
    %11226 = vdwg.mxu0
    %11227 = vmatprep.subr.bf16.mxu0 %v10739
    %11228 = vmatpush1.bf16.msra.mxu0 %v10738
    %11229 = vmatprep.subr.bf16.mxu0 %v10743
    %11230 = vmatpush1.bf16.msra.mxu0 %v10742
    %11231 = vmatprep.subr.bf16.mxu0 %v10747
    %11232 = vmatpush1.bf16.msra.mxu0 %v10746
    %11233 = vmatprep.subr.bf16.mxu0 %v10751
    %11234 = vmatpush1.bf16.msra.mxu0 %v10750
    %11235 = vmatprep.subr.bf16.mxu0 %v10755
    %11236 = vmatpush1.bf16.msra.mxu0 %v10754
    %11237 = vmatprep.subr.bf16.mxu0 %v10759
    %11238 = vmatpush1.bf16.msra.mxu0 %v10758
    %11239 = vmatprep.subr.bf16.mxu0 %v10763
    %11240 = vmatpush1.bf16.msra.mxu0 %v10762
    %11241 = vmatprep.subr.bf16.mxu0 %v10767
    %11242 = vmatpush1.bf16.msra.mxu0 %v10766
    %11243 = vmatprep.subr.bf16.mxu0 %v10771
    %11244 = vmatpush1.bf16.msra.mxu0 %v10770
    %11245 = vmatprep.subr.bf16.mxu0 %v10775
    %11246 = vmatpush1.bf16.msra.mxu0 %v10774
    %11247 = vmatprep.subr.bf16.mxu0 %v10779
    %11248 = vmatpush1.bf16.msra.mxu0 %v10778
    %11249 = vmatprep.subr.bf16.mxu0 %v10783
    %11250 = vmatpush1.bf16.msra.mxu0 %v10782
    %11251 = vmatprep.subr.bf16.mxu0 %v10787
    %11252 = vmatpush1.bf16.msra.mxu0 %v10786
    %11253 = vmatprep.subr.bf16.mxu0 %v10791
    %11254 = vmatpush1.bf16.msra.mxu0 %v10790
    %11255 = vmatprep.subr.bf16.mxu0 %v10795
    %11256 = vmatpush1.bf16.msra.mxu0 %v10794
    %11257 = vmatprep.subr.bf16.mxu0 %v10799
    %11258 = vmatpush1.bf16.msra.mxu0 %v10798
    %11259 = vmatprep.mubr.bf16.mxu0 %v9624
    %11260 = vmatmul.mubr.bf16.gmra.mrb[0].mxu0 %v9623
    %v11261 = vpop.f32.mrb[0].mxu0
    %v11262 = vadd.f32 %v11221, %v11261
    %v11263 = vpop.f32.mrb[0].mxu0
    %v11264 = vadd.f32 %v11223, %v11263
    %v11265 = vpop.f32.mrb[0].mxu0
    %v11266 = vpop.f32.mrb[0].mxu0
    %11267 = vdwg.mxu0
    %11268 = vmatprep.subr.bf16.mxu0 %v10803
    %11269 = vmatpush1.bf16.msra.mxu0 %v10802
    %11270 = vmatprep.subr.bf16.mxu0 %v10807
    %11271 = vmatpush1.bf16.msra.mxu0 %v10806
    %11272 = vmatprep.subr.bf16.mxu0 %v10811
    %11273 = vmatpush1.bf16.msra.mxu0 %v10810
    %11274 = vmatprep.subr.bf16.mxu0 %v10815
    %11275 = vmatpush1.bf16.msra.mxu0 %v10814
    %11276 = vmatprep.subr.bf16.mxu0 %v10819
    %11277 = vmatpush1.bf16.msra.mxu0 %v10818
    %11278 = vmatprep.subr.bf16.mxu0 %v10823
    %11279 = vmatpush1.bf16.msra.mxu0 %v10822
    %11280 = vmatprep.subr.bf16.mxu0 %v10827
    %11281 = vmatpush1.bf16.msra.mxu0 %v10826
    %11282 = vmatprep.subr.bf16.mxu0 %v10831
    %11283 = vmatpush1.bf16.msra.mxu0 %v10830
    %11284 = vmatprep.subr.bf16.mxu0 %v10835
    %11285 = vmatpush1.bf16.msra.mxu0 %v10834
    %11286 = vmatprep.subr.bf16.mxu0 %v10839
    %11287 = vmatpush1.bf16.msra.mxu0 %v10838
    %11288 = vmatprep.subr.bf16.mxu0 %v10843
    %11289 = vmatpush1.bf16.msra.mxu0 %v10842
    %11290 = vmatprep.subr.bf16.mxu0 %v10847
    %11291 = vmatpush1.bf16.msra.mxu0 %v10846
    %11292 = vmatprep.subr.bf16.mxu0 %v10851
    %11293 = vmatpush1.bf16.msra.mxu0 %v10850
    %11294 = vmatprep.subr.bf16.mxu0 %v10855
    %11295 = vmatpush1.bf16.msra.mxu0 %v10854
    %11296 = vmatprep.subr.bf16.mxu0 %v10859
    %11297 = vmatpush1.bf16.msra.mxu0 %v10858
    %11298 = vmatprep.subr.bf16.mxu0 %v10863
    %11299 = vmatpush1.bf16.msra.mxu0 %v10862
    %11300 = vmatprep.mubr.bf16.mxu0 %v9626
    %11301 = vmatmul.mubr.bf16.gmra.mrb[0].mxu0 %v9625
    %v11302 = vpop.f32.mrb[0].mxu0
    %v11303 = vadd.f32 %v11262, %v11302
    %v11304 = vpop.f32.mrb[0].mxu0
    %v11305 = vadd.f32 %v11264, %v11304
    %v11306 = vpop.f32.mrb[0].mxu0
    %v11307 = vpop.f32.mrb[0].mxu0
    %11308 = vdwg.mxu0
    %11309 = vmatprep.subr.bf16.mxu0 %v10867
    %11310 = vmatpush1.bf16.msra.mxu0 %v10866
    %11311 = vmatprep.subr.bf16.mxu0 %v10871
    %11312 = vmatpush1.bf16.msra.mxu0 %v10870
    %11313 = vmatprep.subr.bf16.mxu0 %v10875
    %11314 = vmatpush1.bf16.msra.mxu0 %v10874
    %11315 = vmatprep.subr.bf16.mxu0 %v10879
    %11316 = vmatpush1.bf16.msra.mxu0 %v10878
    %11317 = vmatprep.subr.bf16.mxu0 %v10883
    %11318 = vmatpush1.bf16.msra.mxu0 %v10882
    %11319 = vmatprep.subr.bf16.mxu0 %v10887
    %11320 = vmatpush1.bf16.msra.mxu0 %v10886
    %11321 = vmatprep.subr.bf16.mxu0 %v10891
    %11322 = vmatpush1.bf16.msra.mxu0 %v10890
    %11323 = vmatprep.subr.bf16.mxu0 %v10895
    %11324 = vmatpush1.bf16.msra.mxu0 %v10894
    %11325 = vmatprep.subr.bf16.mxu0 %v10899
    %11326 = vmatpush1.bf16.msra.mxu0 %v10898
    %11327 = vmatprep.subr.bf16.mxu0 %v10903
    %11328 = vmatpush1.bf16.msra.mxu0 %v10902
    %11329 = vmatprep.subr.bf16.mxu0 %v10907
    %11330 = vmatpush1.bf16.msra.mxu0 %v10906
    %11331 = vmatprep.subr.bf16.mxu0 %v10911
    %11332 = vmatpush1.bf16.msra.mxu0 %v10910
    %11333 = vmatprep.subr.bf16.mxu0 %v10915
    %11334 = vmatpush1.bf16.msra.mxu0 %v10914
    %11335 = vmatprep.subr.bf16.mxu0 %v10919
    %11336 = vmatpush1.bf16.msra.mxu0 %v10918
    %11337 = vmatprep.subr.bf16.mxu0 %v10923
    %11338 = vmatpush1.bf16.msra.mxu0 %v10922
    %11339 = vmatprep.subr.bf16.mxu0 %v10927
    %11340 = vmatpush1.bf16.msra.mxu0 %v10926
    %11341 = vmatprep.mubr.bf16.mxu0 %v9628
    %11342 = vmatmul.mubr.bf16.gmra.mrb[0].mxu0 %v9627
    %v11343 = vpop.f32.mrb[0].mxu0
    %v11344 = vadd.f32 %v11303, %v11343
    %v11345 = vpop.f32.mrb[0].mxu0
    %v11346 = vadd.f32 %v11305, %v11345
    %v11347 = vpop.f32.mrb[0].mxu0
    %v11348 = vpop.f32.mrb[0].mxu0
    %11349 = vdwg.mxu0
    %11350 = vmatprep.subr.bf16.mxu0 %v10677
    %11351 = vmatpush1.bf16.msra.mxu0 %v10676
    %11352 = vmatprep.subr.bf16.mxu0 %v10681
    %11353 = vmatpush1.bf16.msra.mxu0 %v10680
    %11354 = vmatprep.subr.bf16.mxu0 %v10685
    %11355 = vmatpush1.bf16.msra.mxu0 %v10684
    %11356 = vmatprep.subr.bf16.mxu0 %v10689
    %11357 = vmatpush1.bf16.msra.mxu0 %v10688
    %11358 = vmatprep.subr.bf16.mxu0 %v10693
    %11359 = vmatpush1.bf16.msra.mxu0 %v10692
    %11360 = vmatprep.subr.bf16.mxu0 %v10697
    %11361 = vmatpush1.bf16.msra.mxu0 %v10696
    %11362 = vmatprep.subr.bf16.mxu0 %v10701
    %11363 = vmatpush1.bf16.msra.mxu0 %v10700
    %11364 = vmatprep.subr.bf16.mxu0 %v10705
    %11365 = vmatpush1.bf16.msra.mxu0 %v10704
    %11366 = vmatprep.subr.bf16.mxu0 %v10709
    %11367 = vmatpush1.bf16.msra.mxu0 %v10708
    %11368 = vmatprep.subr.bf16.mxu0 %v10713
    %11369 = vmatpush1.bf16.msra.mxu0 %v10712
    %11370 = vmatprep.subr.bf16.mxu0 %v10717
    %11371 = vmatpush1.bf16.msra.mxu0 %v10716
    %11372 = vmatprep.subr.bf16.mxu0 %v10721
    %11373 = vmatpush1.bf16.msra.mxu0 %v10720
    %11374 = vmatprep.subr.bf16.mxu0 %v10725
    %11375 = vmatpush1.bf16.msra.mxu0 %v10724
    %11376 = vmatprep.subr.bf16.mxu0 %v10729
    %11377 = vmatpush1.bf16.msra.mxu0 %v10728
    %11378 = vmatprep.subr.bf16.mxu0 %v10733
    %11379 = vmatpush1.bf16.msra.mxu0 %v10732
    %11380 = vmatprep.subr.bf16.mxu0 %v10737
    %11381 = vmatpush1.bf16.msra.mxu0 %v10736
    %11382 = vmatprep.mubr.bf16.mxu0 %v9622
    %11383 = vmatmul.mubr.bf16.gmra.mrb[0].mxu0 %v9621
    %v11384 = vpop.f32.mrb[0].mxu0
    %v11385 = vadd.f32 %v9897, %v11384
    %v11386 = vpop.f32.mrb[0].mxu0
    %v11387 = vadd.f32 %v9901, %v11386
    %v11388 = vpop.f32.mrb[0].mxu0
    %v11389 = vpop.f32.mrb[0].mxu0
    %11390 = vdwg.mxu0
    %11391 = vmatprep.subr.bf16.mxu0 %v10741
    %11392 = vmatpush1.bf16.msra.mxu0 %v10740
    %11393 = vmatprep.subr.bf16.mxu0 %v10745
    %11394 = vmatpush1.bf16.msra.mxu0 %v10744
    %11395 = vmatprep.subr.bf16.mxu0 %v10749
    %11396 = vmatpush1.bf16.msra.mxu0 %v10748
    %11397 = vmatprep.subr.bf16.mxu0 %v10753
    %11398 = vmatpush1.bf16.msra.mxu0 %v10752
    %11399 = vmatprep.subr.bf16.mxu0 %v10757
    %11400 = vmatpush1.bf16.msra.mxu0 %v10756
    %11401 = vmatprep.subr.bf16.mxu0 %v10761
    %11402 = vmatpush1.bf16.msra.mxu0 %v10760
    %11403 = vmatprep.subr.bf16.mxu0 %v10765
    %11404 = vmatpush1.bf16.msra.mxu0 %v10764
    %11405 = vmatprep.subr.bf16.mxu0 %v10769
    %11406 = vmatpush1.bf16.msra.mxu0 %v10768
    %11407 = vmatprep.subr.bf16.mxu0 %v10773
    %11408 = vmatpush1.bf16.msra.mxu0 %v10772
    %11409 = vmatprep.subr.bf16.mxu0 %v10777
    %11410 = vmatpush1.bf16.msra.mxu0 %v10776
    %11411 = vmatprep.subr.bf16.mxu0 %v10781
    %11412 = vmatpush1.bf16.msra.mxu0 %v10780
    %11413 = vmatprep.subr.bf16.mxu0 %v10785
    %11414 = vmatpush1.bf16.msra.mxu0 %v10784
    %11415 = vmatprep.subr.bf16.mxu0 %v10789
    %11416 = vmatpush1.bf16.msra.mxu0 %v10788
    %11417 = vmatprep.subr.bf16.mxu0 %v10793
    %11418 = vmatpush1.bf16.msra.mxu0 %v10792
    %11419 = vmatprep.subr.bf16.mxu0 %v10797
    %11420 = vmatpush1.bf16.msra.mxu0 %v10796
    %11421 = vmatprep.subr.bf16.mxu0 %v10801
    %11422 = vmatpush1.bf16.msra.mxu0 %v10800
    %11423 = vmatprep.mubr.bf16.mxu0 %v9624
    %11424 = vmatmul.mubr.bf16.gmra.mrb[0].mxu0 %v9623
    %v11425 = vpop.f32.mrb[0].mxu0
    %v11426 = vadd.f32 %v11385, %v11425
    %v11427 = vpop.f32.mrb[0].mxu0
    %v11428 = vadd.f32 %v11387, %v11427
    %v11429 = vpop.f32.mrb[0].mxu0
    %v11430 = vpop.f32.mrb[0].mxu0
    %11431 = vdwg.mxu0
    %11432 = vmatprep.subr.bf16.mxu0 %v10805
    %11433 = vmatpush1.bf16.msra.mxu0 %v10804
    %11434 = vmatprep.subr.bf16.mxu0 %v10809
    %11435 = vmatpush1.bf16.msra.mxu0 %v10808
    %11436 = vmatprep.subr.bf16.mxu0 %v10813
    %11437 = vmatpush1.bf16.msra.mxu0 %v10812
    %11438 = vmatprep.subr.bf16.mxu0 %v10817
    %11439 = vmatpush1.bf16.msra.mxu0 %v10816
    %11440 = vmatprep.subr.bf16.mxu0 %v10821
    %11441 = vmatpush1.bf16.msra.mxu0 %v10820
    %11442 = vmatprep.subr.bf16.mxu0 %v10825
    %11443 = vmatpush1.bf16.msra.mxu0 %v10824
    %11444 = vmatprep.subr.bf16.mxu0 %v10829
    %11445 = vmatpush1.bf16.msra.mxu0 %v10828
    %11446 = vmatprep.subr.bf16.mxu0 %v10833
    %11447 = vmatpush1.bf16.msra.mxu0 %v10832
    %11448 = vmatprep.subr.bf16.mxu0 %v10837
    %11449 = vmatpush1.bf16.msra.mxu0 %v10836
    %11450 = vmatprep.subr.bf16.mxu0 %v10841
    %11451 = vmatpush1.bf16.msra.mxu0 %v10840
    %11452 = vmatprep.subr.bf16.mxu0 %v10845
    %11453 = vmatpush1.bf16.msra.mxu0 %v10844
    %11454 = vmatprep.subr.bf16.mxu0 %v10849
    %11455 = vmatpush1.bf16.msra.mxu0 %v10848
    %11456 = vmatprep.subr.bf16.mxu0 %v10853
    %11457 = vmatpush1.bf16.msra.mxu0 %v10852
    %11458 = vmatprep.subr.bf16.mxu0 %v10857
    %11459 = vmatpush1.bf16.msra.mxu0 %v10856
    %11460 = vmatprep.subr.bf16.mxu0 %v10861
    %11461 = vmatpush1.bf16.msra.mxu0 %v10860
    %11462 = vmatprep.subr.bf16.mxu0 %v10865
    %11463 = vmatpush1.bf16.msra.mxu0 %v10864
    %11464 = vmatprep.mubr.bf16.mxu0 %v9626
    %11465 = vmatmul.mubr.bf16.gmra.mrb[0].mxu0 %v9625
    %v11466 = vpop.f32.mrb[0].mxu0
    %v11467 = vadd.f32 %v11426, %v11466
    %v11468 = vpop.f32.mrb[0].mxu0
    %v11469 = vadd.f32 %v11428, %v11468
    %v11470 = vpop.f32.mrb[0].mxu0
    %v11471 = vpop.f32.mrb[0].mxu0
    %11472 = vdwg.mxu0
    %11473 = vmatprep.subr.bf16.mxu0 %v10869
    %11474 = vmatpush1.bf16.msra.mxu0 %v10868
    %11475 = vmatprep.subr.bf16.mxu0 %v10873
    %11476 = vmatpush1.bf16.msra.mxu0 %v10872
    %11477 = vmatprep.subr.bf16.mxu0 %v10877
    %11478 = vmatpush1.bf16.msra.mxu0 %v10876
    %11479 = vmatprep.subr.bf16.mxu0 %v10881
    %11480 = vmatpush1.bf16.msra.mxu0 %v10880
    %11481 = vmatprep.subr.bf16.mxu0 %v10885
    %11482 = vmatpush1.bf16.msra.mxu0 %v10884
    %11483 = vmatprep.subr.bf16.mxu0 %v10889
    %11484 = vmatpush1.bf16.msra.mxu0 %v10888
    %11485 = vmatprep.subr.bf16.mxu0 %v10893
    %11486 = vmatpush1.bf16.msra.mxu0 %v10892
    %11487 = vmatprep.subr.bf16.mxu0 %v10897
    %11488 = vmatpush1.bf16.msra.mxu0 %v10896
    %11489 = vmatprep.subr.bf16.mxu0 %v10901
    %11490 = vmatpush1.bf16.msra.mxu0 %v10900
    %11491 = vmatprep.subr.bf16.mxu0 %v10905
    %11492 = vmatpush1.bf16.msra.mxu0 %v10904
    %11493 = vmatprep.subr.bf16.mxu0 %v10909
    %11494 = vmatpush1.bf16.msra.mxu0 %v10908
    %11495 = vmatprep.subr.bf16.mxu0 %v10913
    %11496 = vmatpush1.bf16.msra.mxu0 %v10912
    %11497 = vmatprep.subr.bf16.mxu0 %v10917
    %11498 = vmatpush1.bf16.msra.mxu0 %v10916
    %11499 = vmatprep.subr.bf16.mxu0 %v10921
    %11500 = vmatpush1.bf16.msra.mxu0 %v10920
    %11501 = vmatprep.subr.bf16.mxu0 %v10925
    %11502 = vmatpush1.bf16.msra.mxu0 %v10924
    %11503 = vmatprep.subr.bf16.mxu0 %v10929
    %11504 = vmatpush1.bf16.msra.mxu0 %v10928
    %11505 = vmatprep.mubr.bf16.mxu0 %v9628
    %11506 = vmatmul.mubr.bf16.gmra.mrb[0].mxu0 %v9627
    %v11507 = vpop.f32.mrb[0].mxu0
    %v11508 = vadd.f32 %v11467, %v11507
    %v11509 = vpop.f32.mrb[0].mxu0
    %v11510 = vadd.f32 %v11469, %v11509
    %v11511 = vpop.f32.mrb[0].mxu0
    %v11512 = vpop.f32.mrb[0].mxu0
    %11513 = vdwg.mxu0
    %v11514 = vmax.f32 %v11344, 0.0
    %v11515 = vmax.f32 %v11346, 0.0
    %v11516 = vmax.f32 %v11508, 0.0
    %v11517 = vmax.f32 %v11510, 0.0
    %v11518 = vpack.c.bf16 %v11514, %v11514
    %v11519 = vpack.c.bf16 %v11515, %v11515
    %v11520 = vpack.c.bf16 %v11516, %v11516
    %v11521 = vpack.c.bf16 %v11517, %v11517
    %v11522 = vld [vmem:[#allocation10] sm:$0xf]
    %v11523 = vld [vmem:[#allocation10 + $0x4] sm:$0xf]
    %v11524 = vld [vmem:[#allocation10 + $0x8] sm:$0xf]
    %v11525 = vld [vmem:[#allocation10 + $0xc] sm:$0xf]
    %v11526 = vld [vmem:[#allocation10 + $0x10] sm:$0xf]
    %v11527 = vld [vmem:[#allocation10 + $0x14] sm:$0xf]
    %v11528 = vld [vmem:[#allocation10 + $0x18] sm:$0xf]
    %v11529 = vld [vmem:[#allocation10 + $0x1c] sm:$0xf]
    %v11530 = vld [vmem:[#allocation10 + $0x20] sm:$0xf]
    %v11531 = vld [vmem:[#allocation10 + $0x24] sm:$0xf]
    %v11532 = vld [vmem:[#allocation10 + $0x28] sm:$0xf]
    %v11533 = vld [vmem:[#allocation10 + $0x2c] sm:$0xf]
    %v11534 = vld [vmem:[#allocation10 + $0x30] sm:$0xf]
    %v11535 = vld [vmem:[#allocation10 + $0x34] sm:$0xf]
    %v11536 = vld [vmem:[#allocation10 + $0x38] sm:$0xf]
    %v11537 = vld [vmem:[#allocation10 + $0x3c] sm:$0xf]
    %v11538 = vld [vmem:[#allocation10 + $0x40] sm:$0xf]
    %v11539 = vld [vmem:[#allocation10 + $0x44] sm:$0xf]
    %v11540 = vld [vmem:[#allocation10 + $0x48] sm:$0xf]
    %v11541 = vld [vmem:[#allocation10 + $0x4c] sm:$0xf]
    %v11542 = vld [vmem:[#allocation10 + $0x50] sm:$0xf]
    %v11543 = vld [vmem:[#allocation10 + $0x54] sm:$0xf]
    %v11544 = vld [vmem:[#allocation10 + $0x58] sm:$0xf]
    %v11545 = vld [vmem:[#allocation10 + $0x5c] sm:$0xf]
    %v11546 = vld [vmem:[#allocation10 + $0x60] sm:$0xf]
    %v11547 = vld [vmem:[#allocation10 + $0x64] sm:$0xf]
    %v11548 = vld [vmem:[#allocation10 + $0x68] sm:$0xf]
    %v11549 = vld [vmem:[#allocation10 + $0x6c] sm:$0xf]
    %v11550 = vld [vmem:[#allocation10 + $0x70] sm:$0xf]
    %v11551 = vld [vmem:[#allocation10 + $0x74] sm:$0xf]
    %v11552 = vld [vmem:[#allocation10 + $0x78] sm:$0xf]
    %v11553 = vld [vmem:[#allocation10 + $0x7c] sm:$0xf]
    %v11554 = vld [vmem:[#allocation10 + $0x80] sm:$0xf]
    %v11555 = vld [vmem:[#allocation10 + $0x84] sm:$0xf]
    %v11556 = vld [vmem:[#allocation10 + $0x88] sm:$0xf]
    %v11557 = vld [vmem:[#allocation10 + $0x8c] sm:$0xf]
    %v11558 = vld [vmem:[#allocation10 + $0x90] sm:$0xf]
    %v11559 = vld [vmem:[#allocation10 + $0x94] sm:$0xf]
    %v11560 = vld [vmem:[#allocation10 + $0x98] sm:$0xf]
    %v11561 = vld [vmem:[#allocation10 + $0x9c] sm:$0xf]
    %v11562 = vld [vmem:[#allocation10 + $0xa0] sm:$0xf]
    %v11563 = vld [vmem:[#allocation10 + $0xa4] sm:$0xf]
    %v11564 = vld [vmem:[#allocation10 + $0xa8] sm:$0xf]
    %v11565 = vld [vmem:[#allocation10 + $0xac] sm:$0xf]
    %v11566 = vld [vmem:[#allocation10 + $0xb0] sm:$0xf]
    %v11567 = vld [vmem:[#allocation10 + $0xb4] sm:$0xf]
    %v11568 = vld [vmem:[#allocation10 + $0xb8] sm:$0xf]
    %v11569 = vld [vmem:[#allocation10 + $0xbc] sm:$0xf]
    %v11570 = vld [vmem:[#allocation10 + $0xc0] sm:$0xf]
    %v11571 = vld [vmem:[#allocation10 + $0xc4] sm:$0xf]
    %v11572 = vld [vmem:[#allocation10 + $0xc8] sm:$0xf]
    %v11573 = vld [vmem:[#allocation10 + $0xcc] sm:$0xf]
    %v11574 = vld [vmem:[#allocation10 + $0xd0] sm:$0xf]
    %v11575 = vld [vmem:[#allocation10 + $0xd4] sm:$0xf]
    %v11576 = vld [vmem:[#allocation10 + $0xd8] sm:$0xf]
    %v11577 = vld [vmem:[#allocation10 + $0xdc] sm:$0xf]
    %v11578 = vld [vmem:[#allocation10 + $0xe0] sm:$0xf]
    %v11579 = vld [vmem:[#allocation10 + $0xe4] sm:$0xf]
    %v11580 = vld [vmem:[#allocation10 + $0xe8] sm:$0xf]
    %v11581 = vld [vmem:[#allocation10 + $0xec] sm:$0xf]
    %v11582 = vld [vmem:[#allocation10 + $0xf0] sm:$0xf]
    %v11583 = vld [vmem:[#allocation10 + $0xf4] sm:$0xf]
    %v11584 = vld [vmem:[#allocation10 + $0xf8] sm:$0xf]
    %v11585 = vld [vmem:[#allocation10 + $0xfc] sm:$0xf]
    %v11587 = vlaneseq
    %v11588 = vshrl.u32 %v11587, 7
    %v11589 = vsub.s32 0, %v11588
    %v11590 = vrot.slane %v243, %v11589
    %v11656 = vunpack.c.l.b16 %v11522
    %v11657 = vunpack.c.l.b16 %v11523
    %v11658 = vunpack.c.l.b16 %v11524
    %v11659 = vunpack.c.l.b16 %v11525
    %v11660 = vunpack.c.l.b16 %v11526
    %v11661 = vunpack.c.l.b16 %v11527
    %v11662 = vunpack.c.l.b16 %v11528
    %v11663 = vunpack.c.l.b16 %v11529
    %v11664 = vunpack.c.l.b16 %v11530
    %v11665 = vunpack.c.l.b16 %v11531
    %v11666 = vunpack.c.l.b16 %v11532
    %v11667 = vunpack.c.l.b16 %v11533
    %v11668 = vunpack.c.l.b16 %v11534
    %v11669 = vunpack.c.l.b16 %v11535
    %v11670 = vunpack.c.l.b16 %v11536
    %v11671 = vunpack.c.l.b16 %v11537
    %v11672 = vunpack.c.l.b16 %v11538
    %v11673 = vunpack.c.l.b16 %v11539
    %v11674 = vunpack.c.l.b16 %v11540
    %v11675 = vunpack.c.l.b16 %v11541
    %v11676 = vunpack.c.l.b16 %v11542
    %v11677 = vunpack.c.l.b16 %v11543
    %v11678 = vunpack.c.l.b16 %v11544
    %v11679 = vunpack.c.l.b16 %v11545
    %v11680 = vunpack.c.l.b16 %v11546
    %v11681 = vunpack.c.l.b16 %v11547
    %v11682 = vunpack.c.l.b16 %v11548
    %v11683 = vunpack.c.l.b16 %v11549
    %v11684 = vunpack.c.l.b16 %v11550
    %v11685 = vunpack.c.l.b16 %v11551
    %v11686 = vunpack.c.l.b16 %v11552
    %v11687 = vunpack.c.l.b16 %v11553
    %v11688 = vunpack.c.l.b16 %v11554
    %v11689 = vunpack.c.l.b16 %v11555
    %v11690 = vunpack.c.l.b16 %v11556
    %v11691 = vunpack.c.l.b16 %v11557
    %v11692 = vunpack.c.l.b16 %v11558
    %v11693 = vunpack.c.l.b16 %v11559
    %v11694 = vunpack.c.l.b16 %v11560
    %v11695 = vunpack.c.l.b16 %v11561
    %v11696 = vunpack.c.l.b16 %v11562
    %v11697 = vunpack.c.l.b16 %v11563
    %v11698 = vunpack.c.l.b16 %v11564
    %v11699 = vunpack.c.l.b16 %v11565
    %v11700 = vunpack.c.l.b16 %v11566
    %v11701 = vunpack.c.l.b16 %v11567
    %v11702 = vunpack.c.l.b16 %v11568
    %v11703 = vunpack.c.l.b16 %v11569
    %v11704 = vunpack.c.l.b16 %v11570
    %v11705 = vunpack.c.l.b16 %v11571
    %v11706 = vunpack.c.l.b16 %v11572
    %v11707 = vunpack.c.l.b16 %v11573
    %v11708 = vunpack.c.l.b16 %v11574
    %v11709 = vunpack.c.l.b16 %v11575
    %v11710 = vunpack.c.l.b16 %v11576
    %v11711 = vunpack.c.l.b16 %v11577
    %v11712 = vunpack.c.l.b16 %v11578
    %v11713 = vunpack.c.l.b16 %v11579
    %v11714 = vunpack.c.l.b16 %v11580
    %v11715 = vunpack.c.l.b16 %v11581
    %v11716 = vunpack.c.l.b16 %v11582
    %v11717 = vunpack.c.l.b16 %v11583
    %v11718 = vunpack.c.l.b16 %v11584
    %v11719 = vunpack.c.l.b16 %v11585
    %v11720 = vpack.c.b16 %v11657, %v11656
    %v11721 = vpack.c.b16 %v11659, %v11658
    %v11722 = vpack.c.b16 %v11661, %v11660
    %v11723 = vpack.c.b16 %v11663, %v11662
    %v11724 = vpack.c.b16 %v11665, %v11664
    %v11725 = vpack.c.b16 %v11667, %v11666
    %v11726 = vpack.c.b16 %v11669, %v11668
    %v11727 = vpack.c.b16 %v11671, %v11670
    %v11728 = vpack.c.b16 %v11673, %v11672
    %v11729 = vpack.c.b16 %v11675, %v11674
    %v11730 = vpack.c.b16 %v11677, %v11676
    %v11731 = vpack.c.b16 %v11679, %v11678
    %v11732 = vpack.c.b16 %v11681, %v11680
    %v11733 = vpack.c.b16 %v11683, %v11682
    %v11734 = vpack.c.b16 %v11685, %v11684
    %v11735 = vpack.c.b16 %v11687, %v11686
    %v11736 = vpack.c.b16 %v11689, %v11688
    %v11737 = vpack.c.b16 %v11691, %v11690
    %v11738 = vpack.c.b16 %v11693, %v11692
    %v11739 = vpack.c.b16 %v11695, %v11694
    %v11740 = vpack.c.b16 %v11697, %v11696
    %v11741 = vpack.c.b16 %v11699, %v11698
    %v11742 = vpack.c.b16 %v11701, %v11700
    %v11743 = vpack.c.b16 %v11703, %v11702
    %v11744 = vpack.c.b16 %v11705, %v11704
    %v11745 = vpack.c.b16 %v11707, %v11706
    %v11746 = vpack.c.b16 %v11709, %v11708
    %v11747 = vpack.c.b16 %v11711, %v11710
    %v11748 = vpack.c.b16 %v11713, %v11712
    %v11749 = vpack.c.b16 %v11715, %v11714
    %v11750 = vpack.c.b16 %v11717, %v11716
    %v11751 = vpack.c.b16 %v11719, %v11718
    %11784 = vmatprep.subr.bf16.mxu0 0
    %11785 = vmatpush1.bf16.msra.mxu0 %v11720
    %11786 = vmatprep.subr.bf16.mxu0 0
    %11787 = vmatpush1.bf16.msra.mxu0 %v11721
    %11788 = vmatprep.subr.bf16.mxu0 0
    %11789 = vmatpush1.bf16.msra.mxu0 %v11722
    %11790 = vmatprep.subr.bf16.mxu0 0
    %11791 = vmatpush1.bf16.msra.mxu0 %v11723
    %11792 = vmatprep.subr.bf16.mxu0 0
    %11793 = vmatpush1.bf16.msra.mxu0 %v11724
    %11794 = vmatprep.subr.bf16.mxu0 0
    %11795 = vmatpush1.bf16.msra.mxu0 %v11725
    %11796 = vmatprep.subr.bf16.mxu0 0
    %11797 = vmatpush1.bf16.msra.mxu0 %v11726
    %11798 = vmatprep.subr.bf16.mxu0 0
    %11799 = vmatpush1.bf16.msra.mxu0 %v11727
    %11800 = vmatprep.subr.bf16.mxu0 0
    %11801 = vmatpush1.bf16.msra.mxu0 %v11728
    %11802 = vmatprep.subr.bf16.mxu0 0
    %11803 = vmatpush1.bf16.msra.mxu0 %v11729
    %11804 = vmatprep.subr.bf16.mxu0 0
    %11805 = vmatpush1.bf16.msra.mxu0 %v11730
    %11806 = vmatprep.subr.bf16.mxu0 0
    %11807 = vmatpush1.bf16.msra.mxu0 %v11731
    %11808 = vmatprep.subr.bf16.mxu0 0
    %11809 = vmatpush1.bf16.msra.mxu0 %v11732
    %11810 = vmatprep.subr.bf16.mxu0 0
    %11811 = vmatpush1.bf16.msra.mxu0 %v11733
    %11812 = vmatprep.subr.bf16.mxu0 0
    %11813 = vmatpush1.bf16.msra.mxu0 %v11734
    %11814 = vmatprep.subr.bf16.mxu0 0
    %11815 = vmatpush1.bf16.msra.mxu0 %v11735
    %11816 = vmatprep.mubr.bf16.mxu0 %v11519
    %11817 = vmatmul.mubr.bf16.gmra.mrb[0].mxu0 %v11518
    %v11818 = vpop.f32.mrb[0].mxu0
    %v11819 = vadd.f32 %v11590, %v11818
    %v11820 = vpop.f32.mrb[0].mxu0
    %v11821 = vpop.f32.mrb[0].mxu0
    %v11822 = vpop.f32.mrb[0].mxu0
    %11823 = vdwg.mxu0
    %11824 = vmatprep.subr.bf16.mxu0 0
    %11825 = vmatpush1.bf16.msra.mxu0 %v11736
    %11826 = vmatprep.subr.bf16.mxu0 0
    %11827 = vmatpush1.bf16.msra.mxu0 %v11737
    %11828 = vmatprep.subr.bf16.mxu0 0
    %11829 = vmatpush1.bf16.msra.mxu0 %v11738
    %11830 = vmatprep.subr.bf16.mxu0 0
    %11831 = vmatpush1.bf16.msra.mxu0 %v11739
    %11832 = vmatprep.subr.bf16.mxu0 0
    %11833 = vmatpush1.bf16.msra.mxu0 %v11740
    %11834 = vmatprep.subr.bf16.mxu0 0
    %11835 = vmatpush1.bf16.msra.mxu0 %v11741
    %11836 = vmatprep.subr.bf16.mxu0 0
    %11837 = vmatpush1.bf16.msra.mxu0 %v11742
    %11838 = vmatprep.subr.bf16.mxu0 0
    %11839 = vmatpush1.bf16.msra.mxu0 %v11743
    %11840 = vmatprep.subr.bf16.mxu0 0
    %11841 = vmatpush1.bf16.msra.mxu0 %v11744
    %11842 = vmatprep.subr.bf16.mxu0 0
    %11843 = vmatpush1.bf16.msra.mxu0 %v11745
    %11844 = vmatprep.subr.bf16.mxu0 0
    %11845 = vmatpush1.bf16.msra.mxu0 %v11746
    %11846 = vmatprep.subr.bf16.mxu0 0
    %11847 = vmatpush1.bf16.msra.mxu0 %v11747
    %11848 = vmatprep.subr.bf16.mxu0 0
    %11849 = vmatpush1.bf16.msra.mxu0 %v11748
    %11850 = vmatprep.subr.bf16.mxu0 0
    %11851 = vmatpush1.bf16.msra.mxu0 %v11749
    %11852 = vmatprep.subr.bf16.mxu0 0
    %11853 = vmatpush1.bf16.msra.mxu0 %v11750
    %11854 = vmatprep.subr.bf16.mxu0 0
    %11855 = vmatpush1.bf16.msra.mxu0 %v11751
    %11856 = vmatprep.mubr.bf16.mxu0 %v11521
    %11857 = vmatmul.mubr.bf16.gmra.mrb[0].mxu0 %v11520
    %v11858 = vpop.f32.mrb[0].mxu0
    %v11859 = vadd.f32 %v11819, %v11858
    %v11860 = vpop.f32.mrb[0].mxu0
    %v11861 = vpop.f32.mrb[0].mxu0
    %v11862 = vpop.f32.mrb[0].mxu0
    %11863 = vdwg.mxu0
    %11864 = vst [vmem:[#allocation13] sm:$0x3] %v11859
    // Predicated region
    $region54: #{forward.1} parent=1 // pred_check
      _
    $region55: #{forward.1} parent=1 // pred_check_branch
      %11866 = sbr.rel (0) target = $region57
    $region56: #{forward.1} parent=1 // pred_region
      %s11868 = ssub.s32 32, 32
      %11869 = vsyncadd [#allocation4], %s11868
      %s11871 = sshll.u32 [#allocation13], 4
      %s11872 = int_to_ptr.vmem [resolvable:$true] %s11871
      %11874 = dma.vmem_to_hbm [thread:$0]  %s11872, 32, %s7, [#allocation4]
    $region57: #{forward.1} parent=1 // pred_fallthru
      _
    // Predicated region
    $region58: #{forward.1} parent=1 // pred_check
      _
    $region59: #{forward.1} parent=1 // pred_check_branch
      %11876 = sbr.rel (0) target = $region61
    $region60: #{forward.1} parent=1 // pred_region
      %11877 = dma.done [#allocation4], 32
    $region61: #{forward.1} parent=1 // pred_fallthru
      _
    %11878 = vsyncpa [#allocation3], 1
    %11879 = vsyncpa [#allocation6], 1
    %11880 = vsyncpa [#allocation9], 1
    %11881 = vsyncpa [#allocation12], 1
    %11882 = vsyncpa [#allocation4], 1

</llo_original>
